<compile_context>
chip_gen: v7x
topology: tpu7x:2x2x1
jax: 0.10.0
libtpu: 0.0.40
codegen_flags: <defaults>
</compile_context>

<pallas_src>
import math

import jax
import jax.numpy as jnp
from jax import lax
from jax.experimental import pallas as pl
from jax.experimental.pallas import tpu as pltpu

# ----------------------- model hyper-parameters (small) ----------------------
B_DEFAULT = 2
POSE_DIM = 16            # original: 135
T_POSE = 128             # original: 240  (chosen so lanes/core = 128)
L_AUDIO = T_POSE * 8     # WavEncoder downsamples 8x
COND_CHANNELS = 32       # WavEncoder output channels (conditioner)
RESIDUAL_CHANNELS = 32
DILATION_CYCLE = (1, 2, 4)
N_LAYERS = 3             # original: 30
EMB_DIM = 128
EMB_HIDDEN = 512
MAX_STEPS = 50

VMEM_SPEC = pl.BlockSpec(memory_space=pltpu.MemorySpace.VMEM)


# ============================ fused WavEncoder ================================
def _make_wavenc_kernel(B, L):
    """All 3 Conv1d(k=5, s=2, p=2) stages (+BN+LeakyReLU(0.3) on the first two)
    in one kernel.  A stride-2 conv stage is computed as a full-resolution
    dilated conv (dilation doubles per stage); only positions u % 8 == 0 of the
    final stage are real outputs (subsampled by the wrapper).  BN train-mode
    stats are masked sums over exactly the strided output positions."""
    BL = B * L
    f32, bf16 = jnp.float32, jnp.bfloat16

    def taps(x, dil):
        # 5 shifted copies of x (zero-padded per sample), stacked tap-major.
        u = lax.broadcasted_iota(jnp.int32, (1, BL), 1) % L    # per-sample pos
        parts = []
        for k in range(5):
            off = (k - 2) * dil
            v = x if off == 0 else pltpu.roll(x, (-off) % BL, axis=1)
            valid = jnp.logical_and(u + off >= 0, u + off < L)  # pad + batch isolation
            parts.append(jnp.where(valid, v, 0.0))
        return jnp.concatenate(parts, axis=0).astype(bf16)      # (5*Cin, BL)

    def bn_lrelu(pre, gamma, beta, sel, cnt):
        # two-pass (numerically safe) masked BatchNorm1d, train mode, + LeakyReLU
        mean = jnp.sum(pre * sel, axis=1, keepdims=True) * (1.0 / cnt)
        cen = pre - mean
        var = jnp.sum(cen * cen * sel, axis=1, keepdims=True) * (1.0 / cnt)
        y = cen * lax.rsqrt(var + 1e-5) * gamma + beta
        return jnp.where(y >= 0.0, y, 0.3 * y)

    def kernel(a_ref, w1_ref, b1_ref, g1_ref, be1_ref,
               w2_ref, b2_ref, g2_ref, be2_ref,
               w3_ref, b3_ref, o_ref):
        u = lax.broadcasted_iota(jnp.int32, (1, BL), 1) % L
        sel1 = (u % 2 == 0).astype(f32)
        sel2 = (u % 4 == 0).astype(f32)
        cnt1 = B * (L // 2)
        cnt2 = B * (L // 4)

        x0 = a_ref[...]                                          # (1, BL) f32
        p1 = jnp.dot(w1_ref[...], taps(x0, 1),
                     preferred_element_type=f32) + b1_ref[...]
        f1 = bn_lrelu(p1, g1_ref[...], be1_ref[...], sel1, cnt1)  # (16, BL)
        p2 = jnp.dot(w2_ref[...], taps(f1, 2),
                     preferred_element_type=f32) + b2_ref[...]
        f2 = bn_lrelu(p2, g2_ref[...], be2_ref[...], sel2, cnt2)  # (32, BL)
        o_ref[...] = jnp.dot(w3_ref[...], taps(f2, 4),
                             preferred_element_type=f32) + b3_ref[...]

    return kernel


def wav_encoder(p, audio):
    """Returns the full-resolution conditioner (Cc, B*L); real samples are every
    8th column (subsampled by the caller — lane compaction has no cheap Pallas
    op, and the extra compute/HBM is negligible)."""
    B, L = audio.shape
    a = audio.reshape(1, B * L).astype(jnp.float32)
    return pl.pallas_call(
        _make_wavenc_kernel(B, L),
        out_shape=jax.ShapeDtypeStruct((COND_CHANNELS, B * L), jnp.float32),
        in_specs=[VMEM_SPEC] * 11,
        out_specs=VMEM_SPEC,
    )(a, p["we1_w"], p["we1_b"], p["we1_g"], p["we1_be"],
      p["we2_w"], p["we2_b"], p["we2_g"], p["we2_be"],
      p["we3_w"], p["we3_b"])


# ============================ fused DiffWave + loss ===========================
def _make_diffwave_kernel(C, D, Cc, T, n_layers, dil_cycle):
    ncyc = len(dil_cycle)
    inv_sqrt2 = 1.0 / math.sqrt(2.0)
    inv_sqrt_nl = 1.0 / math.sqrt(n_layers)
    f32, bf16 = jnp.float32, jnp.bfloat16

    def kernel(x_ref, cond_ref, noise_ref, d_ref,
               inw_ref, inb_ref,
               convw_ref, convb_ref, condw_ref, condb_ref, outw_ref, outb_ref,
               skipw_ref, skipb_ref, projw_ref, projb_ref,
               loss_ref, x_sc, skip_sc, y3_sc):
        l = pl.program_id(1)

        # ---- prologue (per batch): input 1x1 conv + ReLU, zero accumulators
        @pl.when(l == 0)
        def _():
            x0 = jnp.dot(inw_ref[...], x_ref[0],
                         preferred_element_type=f32) + inb_ref[...]
            x_sc[...] = jnp.maximum(x0, 0.0)
            skip_sc[...] = jnp.zeros_like(skip_sc)
            loss_ref[...] = jnp.zeros_like(loss_ref)

        # ---- residual layer l -----------------------------------------------
        # per-layer, per-batch diffusion bias: (C, 1) broadcast over T lanes
        y = x_sc[...] + d_ref[0, 0]                              # (C, T) f32
        y3_sc[C:2 * C, :] = y.astype(bf16)                       # center tap

        # dilated taps via roll + lane mask (zero padding == batch isolation).
        # Static shifts selected per dilation-cycle slot with pl.when.
        t_idx = lax.broadcasted_iota(jnp.int32, (1, T), 1)
        cyc = l % ncyc
        for ci, dil in enumerate(dil_cycle):
            @pl.when(cyc == ci)
            def _(dil=dil):
                prev = pltpu.roll(y, dil, axis=1)                # y[:, t-dil]
                nxt = pltpu.roll(y, T - dil, axis=1)             # y[:, t+dil]
                y3_sc[0:C, :] = jnp.where(t_idx >= dil, prev, 0.0).astype(bf16)
                y3_sc[2 * C:3 * C, :] = jnp.where(t_idx < T - dil, nxt, 0.0).astype(bf16)

        # dilated conv (K=3C) + conditioner 1x1 conv, bf16 MXU, f32 accumulate
        z = (jnp.dot(convw_ref[0], y3_sc[...], preferred_element_type=f32)
             + convb_ref[0]
             + jnp.dot(condw_ref[0], cond_ref[0], preferred_element_type=f32)
             + condb_ref[0])                                     # (2C, T)
        g = jax.nn.sigmoid(z[:C, :]) * jnp.tanh(z[C:, :])        # gated activation
        o = jnp.dot(outw_ref[0], g.astype(bf16),
                    preferred_element_type=f32) + outb_ref[0]    # (2C, T)
        x_sc[...] = (x_sc[...] + o[:C, :]) * inv_sqrt2           # residual (f32)
        skip_sc[...] = skip_sc[...] + o[C:, :]                   # skip sum  (f32)

        # ---- epilogue: skip head + SmoothL1 partial sum (per batch) ----------
        @pl.when(l == n_layers - 1)
        def _():
            xs = skip_sc[...] * inv_sqrt_nl
            xs = jnp.dot(skipw_ref[...], xs.astype(bf16),
                         preferred_element_type=f32) + skipb_ref[...]
            xs = jnp.maximum(xs, 0.0)
            pred = jnp.dot(projw_ref[...], xs.astype(bf16),
                           preferred_element_type=f32) + projb_ref[...]
            diff = pred - noise_ref[0]
            ad = jnp.abs(diff)
            part = jnp.sum(jnp.where(ad < 1.0, 0.5 * diff * diff, ad - 0.5))
            loss_ref[...] = part + jnp.zeros_like(loss_ref)

    return kernel


def diffwave_loss(p, noisy_pose, t, cond_bct, noise):
    """One pallas_call: grid=(B, layers), ('parallel','arbitrary')."""
    B, D, T = noisy_pose.shape
    C = RESIDUAL_CHANNELS
    Cc = cond_bct.shape[1]
    nl = N_LAYERS

    # Tiny diffusion-step embedding MLP (N=B matmuls) kept in XLA per review.
    emb = p["emb_table_T"][:, t]                                 # (128, B)
    h = jnp.dot(p["emb_w1"], emb) + p["emb_b1"][:, None]
    h = h * jax.nn.sigmoid(h)
    h = jnp.dot(p["emb_w2"], h) + p["emb_b2"][:, None]
    h = h * jax.nn.sigmoid(h)
    d_all = jnp.dot(p["diff_w"], h) + p["diff_b"][:, None]       # (nl*C, B)
    d_all = jnp.transpose(d_all.reshape(nl, C, B), (2, 0, 1))[..., None]  # (B,nl,C,1)

    x_in = noisy_pose.astype(jnp.bfloat16)                       # (B, D, T)

    per_b = lambda b, l: (b, 0, 0)
    per_l = lambda b, l: (l, 0, 0)
    const2 = lambda b, l: (0, 0)

    loss_parts = pl.pallas_call(
        _make_diffwave_kernel(C, D, Cc, T, nl, DILATION_CYCLE),
        out_shape=jax.ShapeDtypeStruct((B, 8, 128), jnp.float32),
        grid_spec=pltpu.PrefetchScalarGridSpec(
            num_scalar_prefetch=0,
            grid=(B, nl),
            in_specs=[
                pl.BlockSpec((1, D, T), per_b),                  # noisy pose (bf16)
                pl.BlockSpec((1, Cc, T), per_b),                 # conditioner (bf16)
                pl.BlockSpec((1, D, T), per_b),                  # noise (f32)
                pl.BlockSpec((1, 1, C, 1), lambda b, l: (b, l, 0, 0)),  # diff bias
                pl.BlockSpec((C, D), const2),                    # in_w
                pl.BlockSpec((C, 1), const2),                    # in_b
                pl.BlockSpec((1, 2 * C, 3 * C), per_l),          # conv_w  (per layer)
                pl.BlockSpec((1, 2 * C, 1), per_l),              # conv_b
                pl.BlockSpec((1, 2 * C, Cc), per_l),             # cond_w
                pl.BlockSpec((1, 2 * C, 1), per_l),              # cond_b
                pl.BlockSpec((1, 2 * C, C), per_l),              # out_w
                pl.BlockSpec((1, 2 * C, 1), per_l),              # out_b
                pl.BlockSpec((C, C), const2),                    # skip_w
                pl.BlockSpec((C, 1), const2),                    # skip_b
                pl.BlockSpec((D, C), const2),                    # proj_w
                pl.BlockSpec((D, 1), const2),                    # proj_b
            ],
            out_specs=pl.BlockSpec((1, 8, 128), per_b),
            scratch_shapes=[
                pltpu.VMEM((C, T), jnp.float32),                 # residual x
                pltpu.VMEM((C, T), jnp.float32),                 # skip sum
                pltpu.VMEM((3 * C, T), jnp.bfloat16),            # dilated taps
            ],
        ),
        compiler_params=pltpu.CompilerParams(
            dimension_semantics=("parallel", "arbitrary")),
    )(x_in, cond_bct, noise, d_all,
      p["in_w"], p["in_b"],
      p["conv_w"], p["conv_b"], p["cond_w"], p["cond_b"], p["out_w"], p["out_b"],
      p["skip_w"], p["skip_b"], p["proj_w"], p["proj_b"])

    return loss_parts[:, 0, 0].sum() / noise.size                # SmoothL1 mean


def model_forward(p, noisy_pose, t, audio, noise):
    # diffwav_model.forward: encoder conditioner -> DiffWave -> SmoothL1Loss
    B, L = audio.shape
    T = L // 8
    cond_full = wav_encoder(p, audio)                            # (Cc, B*L) f32
    cond = cond_full.reshape(COND_CHANNELS, B, L)[:, :, ::8]     # stride-8 subsample
    cond = jnp.transpose(cond, (1, 0, 2)).astype(jnp.bfloat16)   # (B, Cc, T)
    return diffwave_loss(p, noisy_pose, t, cond, noise)


# ------------------------------ parameter init --------------------------------
def init_params(key):
    keys = iter(jax.random.split(key, 64))

    def w(shape, scale=0.1):
        return scale * jax.random.normal(next(keys), shape, jnp.float32)

    bf = jnp.bfloat16
    C, D, Cc, nl = RESIDUAL_CHANNELS, POSE_DIM, COND_CHANNELS, N_LAYERS
    p = {}

    # WavEncoder Conv1d weights, packed tap-major (Cout, K*Cin) and bf16 once.
    def pack_conv(wt):                                           # (Cout, Cin, K)
        return jnp.transpose(wt, (0, 2, 1)).reshape(wt.shape[0], -1).astype(bf)

    p["we1_w"] = pack_conv(w((16, 1, 5)));  p["we1_b"] = w((16, 1), 0.01)
    p["we1_g"] = 1.0 + w((16, 1), 0.01);    p["we1_be"] = w((16, 1), 0.01)
    p["we2_w"] = pack_conv(w((32, 16, 5))); p["we2_b"] = w((32, 1), 0.01)
    p["we2_g"] = 1.0 + w((32, 1), 0.01);    p["we2_be"] = w((32, 1), 0.01)
    p["we3_w"] = pack_conv(w((Cc, 32, 5))); p["we3_b"] = w((Cc, 1), 0.01)

    # DiffWave
    p["in_w"] = w((C, D)).astype(bf);       p["in_b"] = w((C, 1), 0.01)
    steps = jnp.arange(MAX_STEPS, dtype=jnp.float32)[:, None]
    dims = jnp.arange(EMB_DIM // 2, dtype=jnp.float32)[None, :]
    tab = steps * 10.0 ** (dims * 4.0 / 63.0)
    p["emb_table_T"] = jnp.concatenate([jnp.sin(tab), jnp.cos(tab)], axis=1).T
    p["emb_w1"] = w((EMB_HIDDEN, EMB_DIM));    p["emb_b1"] = w((EMB_HIDDEN,), 0.01)
    p["emb_w2"] = w((EMB_HIDDEN, EMB_HIDDEN)); p["emb_b2"] = w((EMB_HIDDEN,), 0.01)

    p["diff_w"] = w((nl * C, EMB_HIDDEN));  p["diff_b"] = w((nl * C,), 0.01)
    # dilated conv (2C, C, 3) packed tap-major -> (2C, 3C): cols = [k*C + c]
    conv_w = w((nl, 2 * C, C, 3))
    p["conv_w"] = jnp.transpose(conv_w, (0, 1, 3, 2)).reshape(nl, 2 * C, 3 * C).astype(bf)
    p["conv_b"] = w((nl, 2 * C, 1), 0.01)
    p["cond_w"] = w((nl, 2 * C, Cc)).astype(bf); p["cond_b"] = w((nl, 2 * C, 1), 0.01)
    p["out_w"] = w((nl, 2 * C, C)).astype(bf);   p["out_b"] = w((nl, 2 * C, 1), 0.01)
    p["skip_w"] = w((C, C)).astype(bf);     p["skip_b"] = w((C, 1), 0.01)
    p["proj_w"] = w((D, C)).astype(bf);     p["proj_b"] = w((D, 1), 0.01)
    return p


# ----------------------------------- main --------------------------------------
if __name__ == "__main__":
    B = B_DEFAULT
    key = jax.random.PRNGKey(0)
    kp, k1, k2, k3, k4 = jax.random.split(key, 5)

    params = init_params(kp)
    noisy_pose = jax.random.normal(k1, (B, POSE_DIM, T_POSE), jnp.float32)
    audio = jax.random.normal(k2, (B, L_AUDIO), jnp.float32)
    noise = jax.random.normal(k3, (B, POSE_DIM, T_POSE), jnp.float32)
    t = jax.random.randint(k4, (B,), 0, MAX_STEPS, dtype=jnp.int32)

    loss = jax.jit(model_forward)(params, noisy_pose, t, audio, noise)
    loss = jax.block_until_ready(loss)
    assert loss.shape == () and bool(jnp.isfinite(loss))
    print("KERNEL_OK")
</pallas_src>

<mosaic_0001>
module attributes {stable_mosaic.version = 11 : i64} {
  func.func @kernel(%arg0: memref<1x2048xf32, #tpu.memory_space<vmem>>, %arg1: memref<16x5xbf16, #tpu.memory_space<vmem>>, %arg2: memref<16x1xf32, #tpu.memory_space<vmem>>, %arg3: memref<16x1xf32, #tpu.memory_space<vmem>>, %arg4: memref<16x1xf32, #tpu.memory_space<vmem>>, %arg5: memref<32x80xbf16, #tpu.memory_space<vmem>>, %arg6: memref<32x1xf32, #tpu.memory_space<vmem>>, %arg7: memref<32x1xf32, #tpu.memory_space<vmem>>, %arg8: memref<32x1xf32, #tpu.memory_space<vmem>>, %arg9: memref<32x160xbf16, #tpu.memory_space<vmem>>, %arg10: memref<32x1xf32, #tpu.memory_space<vmem>>, %arg11: memref<32x2048xf32, #tpu.memory_space<vmem>>) attributes {dimension_semantics = [], scalar_prefetch = 0 : i64, scratch_operands = 0 : i64, tpu.core_type = #tpu.core_type<tc>} {
    %0 = tpu.iota {dimensions = array<i32: 1>} : vector<1x2048xi32>
    %c1024_i32 = arith.constant 1024 : i32
    %c0_i32 = arith.constant 0 : i32
    %1 = arith.cmpi eq, %c1024_i32, %c0_i32 : i32
    %c1_i32 = arith.constant 1 : i32
    %2 = arith.select %1, %c1_i32, %c1024_i32 : i32
    %3 = vector.broadcast %2 : i32 to vector<1x2048xi32>
    %4 = arith.remsi %0, %3 : vector<1x2048xi32>
    %c0_i32_0 = arith.constant 0 : i32
    %5 = vector.broadcast %c0_i32_0 : i32 to vector<1x2048xi32>
    %6 = arith.cmpi ne, %4, %5 : vector<1x2048xi32>
    %c0_i32_1 = arith.constant 0 : i32
    %7 = vector.broadcast %c0_i32_1 : i32 to vector<1x2048xi32>
    %8 = arith.cmpi slt, %4, %7 : vector<1x2048xi32>
    %c0_i32_2 = arith.constant 0 : i32
    %9 = arith.cmpi slt, %2, %c0_i32_2 : i32
    %10 = vector.broadcast %9 : i1 to vector<1x2048xi1>
    %11 = vector.broadcast %10 : vector<1x2048xi1> to vector<1x2048xi1>
    %12 = arith.xori %8, %11 : vector<1x2048xi1>
    %13 = arith.andi %12, %6 : vector<1x2048xi1>
    %14 = vector.broadcast %2 : i32 to vector<1x2048xi32>
    %15 = arith.addi %4, %14 : vector<1x2048xi32>
    %16 = arith.select %13, %15, %4 : vector<1x2048xi1>, vector<1x2048xi32>
    %c2_i32 = arith.constant 2 : i32
    %c0_i32_3 = arith.constant 0 : i32
    %17 = arith.cmpi eq, %c2_i32, %c0_i32_3 : i32
    %c1_i32_4 = arith.constant 1 : i32
    %18 = arith.select %17, %c1_i32_4, %c2_i32 : i32
    %19 = vector.broadcast %18 : i32 to vector<1x2048xi32>
    %20 = arith.remsi %16, %19 : vector<1x2048xi32>
    %c0_i32_5 = arith.constant 0 : i32
    %21 = vector.broadcast %c0_i32_5 : i32 to vector<1x2048xi32>
    %22 = arith.cmpi ne, %20, %21 : vector<1x2048xi32>
    %c0_i32_6 = arith.constant 0 : i32
    %23 = vector.broadcast %c0_i32_6 : i32 to vector<1x2048xi32>
    %24 = arith.cmpi slt, %20, %23 : vector<1x2048xi32>
    %c0_i32_7 = arith.constant 0 : i32
    %25 = arith.cmpi slt, %18, %c0_i32_7 : i32
    %26 = vector.broadcast %25 : i1 to vector<1x2048xi1>
    %27 = vector.broadcast %26 : vector<1x2048xi1> to vector<1x2048xi1>
    %28 = arith.xori %24, %27 : vector<1x2048xi1>
    %29 = arith.andi %28, %22 : vector<1x2048xi1>
    %30 = vector.broadcast %18 : i32 to vector<1x2048xi32>
    %31 = arith.addi %20, %30 : vector<1x2048xi32>
    %32 = arith.select %29, %31, %20 : vector<1x2048xi1>, vector<1x2048xi32>
    %c0_i32_8 = arith.constant 0 : i32
    %33 = vector.broadcast %c0_i32_8 : i32 to vector<1x2048xi32>
    %34 = arith.cmpi eq, %32, %33 : vector<1x2048xi32>
    %35 = arith.extui %34 : vector<1x2048xi1> to vector<1x2048xi32>
    %36 = arith.sitofp %35 : vector<1x2048xi32> to vector<1x2048xf32>
    %c4_i32 = arith.constant 4 : i32
    %c0_i32_9 = arith.constant 0 : i32
    %37 = arith.cmpi eq, %c4_i32, %c0_i32_9 : i32
    %c1_i32_10 = arith.constant 1 : i32
    %38 = arith.select %37, %c1_i32_10, %c4_i32 : i32
    %39 = vector.broadcast %38 : i32 to vector<1x2048xi32>
    %40 = arith.remsi %16, %39 : vector<1x2048xi32>
    %c0_i32_11 = arith.constant 0 : i32
    %41 = vector.broadcast %c0_i32_11 : i32 to vector<1x2048xi32>
    %42 = arith.cmpi ne, %40, %41 : vector<1x2048xi32>
    %c0_i32_12 = arith.constant 0 : i32
    %43 = vector.broadcast %c0_i32_12 : i32 to vector<1x2048xi32>
    %44 = arith.cmpi slt, %40, %43 : vector<1x2048xi32>
    %c0_i32_13 = arith.constant 0 : i32
    %45 = arith.cmpi slt, %38, %c0_i32_13 : i32
    %46 = vector.broadcast %45 : i1 to vector<1x2048xi1>
    %47 = vector.broadcast %46 : vector<1x2048xi1> to vector<1x2048xi1>
    %48 = arith.xori %44, %47 : vector<1x2048xi1>
    %49 = arith.andi %48, %42 : vector<1x2048xi1>
    %50 = vector.broadcast %38 : i32 to vector<1x2048xi32>
    %51 = arith.addi %40, %50 : vector<1x2048xi32>
    %52 = arith.select %49, %51, %40 : vector<1x2048xi1>, vector<1x2048xi32>
    %c0_i32_14 = arith.constant 0 : i32
    %53 = vector.broadcast %c0_i32_14 : i32 to vector<1x2048xi32>
    %54 = arith.cmpi eq, %52, %53 : vector<1x2048xi32>
    %55 = arith.extui %54 : vector<1x2048xi1> to vector<1x2048xi32>
    %56 = arith.sitofp %55 : vector<1x2048xi32> to vector<1x2048xf32>
    %c0 = arith.constant 0 : index
    %c0_15 = arith.constant 0 : index
    %57 = vector.load %arg0[%c0, %c0_15] : memref<1x2048xf32, #tpu.memory_space<vmem>>, vector<1x2048xf32>
    %c0_16 = arith.constant 0 : index
    %c0_17 = arith.constant 0 : index
    %58 = vector.load %arg1[%c0_16, %c0_17] : memref<16x5xbf16, #tpu.memory_space<vmem>>, vector<16x5xbf16>
    %59 = tpu.iota {dimensions = array<i32: 1>} : vector<1x2048xi32>
    %c1024_i32_18 = arith.constant 1024 : i32
    %c0_i32_19 = arith.constant 0 : i32
    %60 = arith.cmpi eq, %c1024_i32_18, %c0_i32_19 : i32
    %c1_i32_20 = arith.constant 1 : i32
    %61 = arith.select %60, %c1_i32_20, %c1024_i32_18 : i32
    %62 = vector.broadcast %61 : i32 to vector<1x2048xi32>
    %63 = arith.remsi %59, %62 : vector<1x2048xi32>
    %c0_i32_21 = arith.constant 0 : i32
    %64 = vector.broadcast %c0_i32_21 : i32 to vector<1x2048xi32>
    %65 = arith.cmpi ne, %63, %64 : vector<1x2048xi32>
    %c0_i32_22 = arith.constant 0 : i32
    %66 = vector.broadcast %c0_i32_22 : i32 to vector<1x2048xi32>
    %67 = arith.cmpi slt, %63, %66 : vector<1x2048xi32>
    %c0_i32_23 = arith.constant 0 : i32
    %68 = arith.cmpi slt, %61, %c0_i32_23 : i32
    %69 = vector.broadcast %68 : i1 to vector<1x2048xi1>
    %70 = vector.broadcast %69 : vector<1x2048xi1> to vector<1x2048xi1>
    %71 = arith.xori %67, %70 : vector<1x2048xi1>
    %72 = arith.andi %71, %65 : vector<1x2048xi1>
    %73 = vector.broadcast %61 : i32 to vector<1x2048xi32>
    %74 = arith.addi %63, %73 : vector<1x2048xi32>
    %75 = arith.select %72, %74, %63 : vector<1x2048xi1>, vector<1x2048xi32>
    %c2_i32_24 = arith.constant 2 : i32
    %76 = tpu.dynamic_rotate %57 by %c2_i32_24 dim 1 : vector<1x2048xf32>, i32 -> vector<1x2048xf32>
    %c-2_i32 = arith.constant -2 : i32
    %77 = vector.broadcast %c-2_i32 : i32 to vector<1x2048xi32>
    %78 = arith.addi %75, %77 : vector<1x2048xi32>
    %c0_i32_25 = arith.constant 0 : i32
    %79 = vector.broadcast %c0_i32_25 : i32 to vector<1x2048xi32>
    %80 = arith.cmpi sge, %78, %79 : vector<1x2048xi32>
    %c-2_i32_26 = arith.constant -2 : i32
    %81 = vector.broadcast %c-2_i32_26 : i32 to vector<1x2048xi32>
    %82 = arith.addi %75, %81 : vector<1x2048xi32>
    %c1024_i32_27 = arith.constant 1024 : i32
    %83 = vector.broadcast %c1024_i32_27 : i32 to vector<1x2048xi32>
    %84 = arith.cmpi slt, %82, %83 : vector<1x2048xi32>
    %85 = arith.andi %80, %84 : vector<1x2048xi1>
    %cst = arith.constant 0.000000e+00 : f32
    %86 = vector.broadcast %cst : f32 to vector<1x2048xf32>
    %87 = arith.select %85, %76, %86 : vector<1x2048xi1>, vector<1x2048xf32>
    %c1_i32_28 = arith.constant 1 : i32
    %88 = tpu.dynamic_rotate %57 by %c1_i32_28 dim 1 : vector<1x2048xf32>, i32 -> vector<1x2048xf32>
    %c-1_i32 = arith.constant -1 : i32
    %89 = vector.broadcast %c-1_i32 : i32 to vector<1x2048xi32>
    %90 = arith.addi %75, %89 : vector<1x2048xi32>
    %c0_i32_29 = arith.constant 0 : i32
    %91 = vector.broadcast %c0_i32_29 : i32 to vector<1x2048xi32>
    %92 = arith.cmpi sge, %90, %91 : vector<1x2048xi32>
    %c-1_i32_30 = arith.constant -1 : i32
    %93 = vector.broadcast %c-1_i32_30 : i32 to vector<1x2048xi32>
    %94 = arith.addi %75, %93 : vector<1x2048xi32>
    %c1024_i32_31 = arith.constant 1024 : i32
    %95 = vector.broadcast %c1024_i32_31 : i32 to vector<1x2048xi32>
    %96 = arith.cmpi slt, %94, %95 : vector<1x2048xi32>
    %97 = arith.andi %92, %96 : vector<1x2048xi1>
    %cst_32 = arith.constant 0.000000e+00 : f32
    %98 = vector.broadcast %cst_32 : f32 to vector<1x2048xf32>
    %99 = arith.select %97, %88, %98 : vector<1x2048xi1>, vector<1x2048xf32>
    %c0_i32_33 = arith.constant 0 : i32
    %100 = vector.broadcast %c0_i32_33 : i32 to vector<1x2048xi32>
    %101 = arith.addi %75, %100 : vector<1x2048xi32>
    %c0_i32_34 = arith.constant 0 : i32
    %102 = vector.broadcast %c0_i32_34 : i32 to vector<1x2048xi32>
    %103 = arith.cmpi sge, %101, %102 : vector<1x2048xi32>
    %c0_i32_35 = arith.constant 0 : i32
    %104 = vector.broadcast %c0_i32_35 : i32 to vector<1x2048xi32>
    %105 = arith.addi %75, %104 : vector<1x2048xi32>
    %c1024_i32_36 = arith.constant 1024 : i32
    %106 = vector.broadcast %c1024_i32_36 : i32 to vector<1x2048xi32>
    %107 = arith.cmpi slt, %105, %106 : vector<1x2048xi32>
    %108 = arith.andi %103, %107 : vector<1x2048xi1>
    %cst_37 = arith.constant 0.000000e+00 : f32
    %109 = vector.broadcast %cst_37 : f32 to vector<1x2048xf32>
    %110 = arith.select %108, %57, %109 : vector<1x2048xi1>, vector<1x2048xf32>
    %c2047_i32 = arith.constant 2047 : i32
    %111 = tpu.dynamic_rotate %57 by %c2047_i32 dim 1 : vector<1x2048xf32>, i32 -> vector<1x2048xf32>
    %c1_i32_38 = arith.constant 1 : i32
    %112 = vector.broadcast %c1_i32_38 : i32 to vector<1x2048xi32>
    %113 = arith.addi %75, %112 : vector<1x2048xi32>
    %c0_i32_39 = arith.constant 0 : i32
    %114 = vector.broadcast %c0_i32_39 : i32 to vector<1x2048xi32>
    %115 = arith.cmpi sge, %113, %114 : vector<1x2048xi32>
    %c1_i32_40 = arith.constant 1 : i32
    %116 = vector.broadcast %c1_i32_40 : i32 to vector<1x2048xi32>
    %117 = arith.addi %75, %116 : vector<1x2048xi32>
    %c1024_i32_41 = arith.constant 1024 : i32
    %118 = vector.broadcast %c1024_i32_41 : i32 to vector<1x2048xi32>
    %119 = arith.cmpi slt, %117, %118 : vector<1x2048xi32>
    %120 = arith.andi %115, %119 : vector<1x2048xi1>
    %cst_42 = arith.constant 0.000000e+00 : f32
    %121 = vector.broadcast %cst_42 : f32 to vector<1x2048xf32>
    %122 = arith.select %120, %111, %121 : vector<1x2048xi1>, vector<1x2048xf32>
    %c2046_i32 = arith.constant 2046 : i32
    %123 = tpu.dynamic_rotate %57 by %c2046_i32 dim 1 : vector<1x2048xf32>, i32 -> vector<1x2048xf32>
    %c2_i32_43 = arith.constant 2 : i32
    %124 = vector.broadcast %c2_i32_43 : i32 to vector<1x2048xi32>
    %125 = arith.addi %75, %124 : vector<1x2048xi32>
    %c0_i32_44 = arith.constant 0 : i32
    %126 = vector.broadcast %c0_i32_44 : i32 to vector<1x2048xi32>
    %127 = arith.cmpi sge, %125, %126 : vector<1x2048xi32>
    %c2_i32_45 = arith.constant 2 : i32
    %128 = vector.broadcast %c2_i32_45 : i32 to vector<1x2048xi32>
    %129 = arith.addi %75, %128 : vector<1x2048xi32>
    %c1024_i32_46 = arith.constant 1024 : i32
    %130 = vector.broadcast %c1024_i32_46 : i32 to vector<1x2048xi32>
    %131 = arith.cmpi slt, %129, %130 : vector<1x2048xi32>
    %132 = arith.andi %127, %131 : vector<1x2048xi1>
    %cst_47 = arith.constant 0.000000e+00 : f32
    %133 = vector.broadcast %cst_47 : f32 to vector<1x2048xf32>
    %134 = arith.select %132, %123, %133 : vector<1x2048xi1>, vector<1x2048xf32>
    %135 = tpu.concatenate %87, %99, %110, %122, %134 in 0 : vector<1x2048xf32>, vector<1x2048xf32>, vector<1x2048xf32>, vector<1x2048xf32>, vector<1x2048xf32> -> vector<5x2048xf32>
    %136 = arith.truncf %135 : vector<5x2048xf32> to vector<5x2048xbf16>
    %cst_48 = arith.constant dense<0.000000e+00> : vector<16x2048xf32>
    %137 = tpu.matmul %58, %136, %cst_48 {dimension_numbers = #tpu.dot_dimension_numbers<[1], [0], [0], [1], [0, 0, 1, 1], [], []>} : vector<16x5xbf16>, vector<5x2048xbf16>, vector<16x2048xf32> -> vector<16x2048xf32>
    %c0_49 = arith.constant 0 : index
    %c0_50 = arith.constant 0 : index
    %138 = vector.load %arg2[%c0_49, %c0_50] : memref<16x1xf32, #tpu.memory_space<vmem>>, vector<16x1xf32>
    %139 = vector.broadcast %138 : vector<16x1xf32> to vector<16x2048xf32>
    %140 = arith.addf %137, %139 : vector<16x2048xf32>
    %c0_51 = arith.constant 0 : index
    %c0_52 = arith.constant 0 : index
    %141 = vector.load %arg3[%c0_51, %c0_52] : memref<16x1xf32, #tpu.memory_space<vmem>>, vector<16x1xf32>
    %c0_53 = arith.constant 0 : index
    %c0_54 = arith.constant 0 : index
    %142 = vector.load %arg4[%c0_53, %c0_54] : memref<16x1xf32, #tpu.memory_space<vmem>>, vector<16x1xf32>
    %143 = vector.broadcast %36 : vector<1x2048xf32> to vector<16x2048xf32>
    %144 = arith.mulf %140, %143 : vector<16x2048xf32>
    %cst_55 = arith.constant dense<0.000000e+00> : vector<16xf32>
    %145 = vector.multi_reduction <add>, %144, %cst_55 [1] : vector<16x2048xf32> to vector<16xf32>
    %146 = vector.shape_cast %145 : vector<16xf32> to vector<16x1xf32>
    %cst_56 = arith.constant 9.765625E-4 : f32
    %147 = vector.broadcast %cst_56 : f32 to vector<16x1xf32>
    %148 = arith.mulf %146, %147 : vector<16x1xf32>
    %149 = vector.broadcast %148 : vector<16x1xf32> to vector<16x2048xf32>
    %150 = arith.subf %140, %149 : vector<16x2048xf32>
    %151 = arith.mulf %150, %150 : vector<16x2048xf32>
    %152 = vector.broadcast %36 : vector<1x2048xf32> to vector<16x2048xf32>
    %153 = arith.mulf %151, %152 : vector<16x2048xf32>
    %cst_57 = arith.constant dense<0.000000e+00> : vector<16xf32>
    %154 = vector.multi_reduction <add>, %153, %cst_57 [1] : vector<16x2048xf32> to vector<16xf32>
    %155 = vector.shape_cast %154 : vector<16xf32> to vector<16x1xf32>
    %cst_58 = arith.constant 9.765625E-4 : f32
    %156 = vector.broadcast %cst_58 : f32 to vector<16x1xf32>
    %157 = arith.mulf %155, %156 : vector<16x1xf32>
    %cst_59 = arith.constant 9.99999974E-6 : f32
    %158 = vector.broadcast %cst_59 : f32 to vector<16x1xf32>
    %159 = arith.addf %157, %158 : vector<16x1xf32>
    %160 = math.rsqrt %159 : vector<16x1xf32>
    %161 = vector.broadcast %160 : vector<16x1xf32> to vector<16x2048xf32>
    %162 = arith.mulf %150, %161 : vector<16x2048xf32>
    %163 = vector.broadcast %141 : vector<16x1xf32> to vector<16x2048xf32>
    %164 = arith.mulf %162, %163 : vector<16x2048xf32>
    %165 = vector.broadcast %142 : vector<16x1xf32> to vector<16x2048xf32>
    %166 = arith.addf %164, %165 : vector<16x2048xf32>
    %cst_60 = arith.constant 0.000000e+00 : f32
    %167 = vector.broadcast %cst_60 : f32 to vector<16x2048xf32>
    %168 = arith.cmpf oge, %166, %167 : vector<16x2048xf32>
    %cst_61 = arith.constant 3.000000e-01 : f32
    %169 = vector.broadcast %cst_61 : f32 to vector<16x2048xf32>
    %170 = arith.mulf %169, %166 : vector<16x2048xf32>
    %171 = arith.select %168, %166, %170 : vector<16x2048xi1>, vector<16x2048xf32>
    %c0_62 = arith.constant 0 : index
    %c0_63 = arith.constant 0 : index
    %172 = vector.load %arg5[%c0_62, %c0_63] : memref<32x80xbf16, #tpu.memory_space<vmem>>, vector<32x80xbf16>
    %173 = tpu.iota {dimensions = array<i32: 1>} : vector<1x2048xi32>
    %c1024_i32_64 = arith.constant 1024 : i32
    %c0_i32_65 = arith.constant 0 : i32
    %174 = arith.cmpi eq, %c1024_i32_64, %c0_i32_65 : i32
    %c1_i32_66 = arith.constant 1 : i32
    %175 = arith.select %174, %c1_i32_66, %c1024_i32_64 : i32
    %176 = vector.broadcast %175 : i32 to vector<1x2048xi32>
    %177 = arith.remsi %173, %176 : vector<1x2048xi32>
    %c0_i32_67 = arith.constant 0 : i32
    %178 = vector.broadcast %c0_i32_67 : i32 to vector<1x2048xi32>
    %179 = arith.cmpi ne, %177, %178 : vector<1x2048xi32>
    %c0_i32_68 = arith.constant 0 : i32
    %180 = vector.broadcast %c0_i32_68 : i32 to vector<1x2048xi32>
    %181 = arith.cmpi slt, %177, %180 : vector<1x2048xi32>
    %c0_i32_69 = arith.constant 0 : i32
    %182 = arith.cmpi slt, %175, %c0_i32_69 : i32
    %183 = vector.broadcast %182 : i1 to vector<1x2048xi1>
    %184 = vector.broadcast %183 : vector<1x2048xi1> to vector<1x2048xi1>
    %185 = arith.xori %181, %184 : vector<1x2048xi1>
    %186 = arith.andi %185, %179 : vector<1x2048xi1>
    %187 = vector.broadcast %175 : i32 to vector<1x2048xi32>
    %188 = arith.addi %177, %187 : vector<1x2048xi32>
    %189 = arith.select %186, %188, %177 : vector<1x2048xi1>, vector<1x2048xi32>
    %c4_i32_70 = arith.constant 4 : i32
    %190 = tpu.dynamic_rotate %171 by %c4_i32_70 dim 1 : vector<16x2048xf32>, i32 -> vector<16x2048xf32>
    %c-4_i32 = arith.constant -4 : i32
    %191 = vector.broadcast %c-4_i32 : i32 to vector<1x2048xi32>
    %192 = arith.addi %189, %191 : vector<1x2048xi32>
    %c0_i32_71 = arith.constant 0 : i32
    %193 = vector.broadcast %c0_i32_71 : i32 to vector<1x2048xi32>
    %194 = arith.cmpi sge, %192, %193 : vector<1x2048xi32>
    %c-4_i32_72 = arith.constant -4 : i32
    %195 = vector.broadcast %c-4_i32_72 : i32 to vector<1x2048xi32>
    %196 = arith.addi %189, %195 : vector<1x2048xi32>
    %c1024_i32_73 = arith.constant 1024 : i32
    %197 = vector.broadcast %c1024_i32_73 : i32 to vector<1x2048xi32>
    %198 = arith.cmpi slt, %196, %197 : vector<1x2048xi32>
    %199 = arith.andi %194, %198 : vector<1x2048xi1>
    %cst_74 = arith.constant 0.000000e+00 : f32
    %200 = vector.shape_cast %199 : vector<1x2048xi1> to vector<1x2048xi1>
    %201 = vector.broadcast %200 : vector<1x2048xi1> to vector<16x2048xi1>
    %202 = vector.broadcast %cst_74 : f32 to vector<16x2048xf32>
    %203 = arith.select %201, %190, %202 : vector<16x2048xi1>, vector<16x2048xf32>
    %c2_i32_75 = arith.constant 2 : i32
    %204 = tpu.dynamic_rotate %171 by %c2_i32_75 dim 1 : vector<16x2048xf32>, i32 -> vector<16x2048xf32>
    %c-2_i32_76 = arith.constant -2 : i32
    %205 = vector.broadcast %c-2_i32_76 : i32 to vector<1x2048xi32>
    %206 = arith.addi %189, %205 : vector<1x2048xi32>
    %c0_i32_77 = arith.constant 0 : i32
    %207 = vector.broadcast %c0_i32_77 : i32 to vector<1x2048xi32>
    %208 = arith.cmpi sge, %206, %207 : vector<1x2048xi32>
    %c-2_i32_78 = arith.constant -2 : i32
    %209 = vector.broadcast %c-2_i32_78 : i32 to vector<1x2048xi32>
    %210 = arith.addi %189, %209 : vector<1x2048xi32>
    %c1024_i32_79 = arith.constant 1024 : i32
    %211 = vector.broadcast %c1024_i32_79 : i32 to vector<1x2048xi32>
    %212 = arith.cmpi slt, %210, %211 : vector<1x2048xi32>
    %213 = arith.andi %208, %212 : vector<1x2048xi1>
    %cst_80 = arith.constant 0.000000e+00 : f32
    %214 = vector.shape_cast %213 : vector<1x2048xi1> to vector<1x2048xi1>
    %215 = vector.broadcast %214 : vector<1x2048xi1> to vector<16x2048xi1>
    %216 = vector.broadcast %cst_80 : f32 to vector<16x2048xf32>
    %217 = arith.select %215, %204, %216 : vector<16x2048xi1>, vector<16x2048xf32>
    %c0_i32_81 = arith.constant 0 : i32
    %218 = vector.broadcast %c0_i32_81 : i32 to vector<1x2048xi32>
    %219 = arith.addi %189, %218 : vector<1x2048xi32>
    %c0_i32_82 = arith.constant 0 : i32
    %220 = vector.broadcast %c0_i32_82 : i32 to vector<1x2048xi32>
    %221 = arith.cmpi sge, %219, %220 : vector<1x2048xi32>
    %c0_i32_83 = arith.constant 0 : i32
    %222 = vector.broadcast %c0_i32_83 : i32 to vector<1x2048xi32>
    %223 = arith.addi %189, %222 : vector<1x2048xi32>
    %c1024_i32_84 = arith.constant 1024 : i32
    %224 = vector.broadcast %c1024_i32_84 : i32 to vector<1x2048xi32>
    %225 = arith.cmpi slt, %223, %224 : vector<1x2048xi32>
    %226 = arith.andi %221, %225 : vector<1x2048xi1>
    %cst_85 = arith.constant 0.000000e+00 : f32
    %227 = vector.shape_cast %226 : vector<1x2048xi1> to vector<1x2048xi1>
    %228 = vector.broadcast %227 : vector<1x2048xi1> to vector<16x2048xi1>
    %229 = vector.broadcast %cst_85 : f32 to vector<16x2048xf32>
    %230 = arith.select %228, %171, %229 : vector<16x2048xi1>, vector<16x2048xf32>
    %c2046_i32_86 = arith.constant 2046 : i32
    %231 = tpu.dynamic_rotate %171 by %c2046_i32_86 dim 1 : vector<16x2048xf32>, i32 -> vector<16x2048xf32>
    %c2_i32_87 = arith.constant 2 : i32
    %232 = vector.broadcast %c2_i32_87 : i32 to vector<1x2048xi32>
    %233 = arith.addi %189, %232 : vector<1x2048xi32>
    %c0_i32_88 = arith.constant 0 : i32
    %234 = vector.broadcast %c0_i32_88 : i32 to vector<1x2048xi32>
    %235 = arith.cmpi sge, %233, %234 : vector<1x2048xi32>
    %c2_i32_89 = arith.constant 2 : i32
    %236 = vector.broadcast %c2_i32_89 : i32 to vector<1x2048xi32>
    %237 = arith.addi %189, %236 : vector<1x2048xi32>
    %c1024_i32_90 = arith.constant 1024 : i32
    %238 = vector.broadcast %c1024_i32_90 : i32 to vector<1x2048xi32>
    %239 = arith.cmpi slt, %237, %238 : vector<1x2048xi32>
    %240 = arith.andi %235, %239 : vector<1x2048xi1>
    %cst_91 = arith.constant 0.000000e+00 : f32
    %241 = vector.shape_cast %240 : vector<1x2048xi1> to vector<1x2048xi1>
    %242 = vector.broadcast %241 : vector<1x2048xi1> to vector<16x2048xi1>
    %243 = vector.broadcast %cst_91 : f32 to vector<16x2048xf32>
    %244 = arith.select %242, %231, %243 : vector<16x2048xi1>, vector<16x2048xf32>
    %c2044_i32 = arith.constant 2044 : i32
    %245 = tpu.dynamic_rotate %171 by %c2044_i32 dim 1 : vector<16x2048xf32>, i32 -> vector<16x2048xf32>
    %c4_i32_92 = arith.constant 4 : i32
    %246 = vector.broadcast %c4_i32_92 : i32 to vector<1x2048xi32>
    %247 = arith.addi %189, %246 : vector<1x2048xi32>
    %c0_i32_93 = arith.constant 0 : i32
    %248 = vector.broadcast %c0_i32_93 : i32 to vector<1x2048xi32>
    %249 = arith.cmpi sge, %247, %248 : vector<1x2048xi32>
    %c4_i32_94 = arith.constant 4 : i32
    %250 = vector.broadcast %c4_i32_94 : i32 to vector<1x2048xi32>
    %251 = arith.addi %189, %250 : vector<1x2048xi32>
    %c1024_i32_95 = arith.constant 1024 : i32
    %252 = vector.broadcast %c1024_i32_95 : i32 to vector<1x2048xi32>
    %253 = arith.cmpi slt, %251, %252 : vector<1x2048xi32>
    %254 = arith.andi %249, %253 : vector<1x2048xi1>
    %cst_96 = arith.constant 0.000000e+00 : f32
    %255 = vector.shape_cast %254 : vector<1x2048xi1> to vector<1x2048xi1>
    %256 = vector.broadcast %255 : vector<1x2048xi1> to vector<16x2048xi1>
    %257 = vector.broadcast %cst_96 : f32 to vector<16x2048xf32>
    %258 = arith.select %256, %245, %257 : vector<16x2048xi1>, vector<16x2048xf32>
    %259 = tpu.concatenate %203, %217, %230, %244, %258 in 0 : vector<16x2048xf32>, vector<16x2048xf32>, vector<16x2048xf32>, vector<16x2048xf32>, vector<16x2048xf32> -> vector<80x2048xf32>
    %260 = arith.truncf %259 : vector<80x2048xf32> to vector<80x2048xbf16>
    %cst_97 = arith.constant dense<0.000000e+00> : vector<32x2048xf32>
    %261 = tpu.matmul %172, %260, %cst_97 {dimension_numbers = #tpu.dot_dimension_numbers<[1], [0], [0], [1], [0, 0, 1, 1], [], []>} : vector<32x80xbf16>, vector<80x2048xbf16>, vector<32x2048xf32> -> vector<32x2048xf32>
    %c0_98 = arith.constant 0 : index
    %c0_99 = arith.constant 0 : index
    %262 = vector.load %arg6[%c0_98, %c0_99] : memref<32x1xf32, #tpu.memory_space<vmem>>, vector<32x1xf32>
    %263 = vector.broadcast %262 : vector<32x1xf32> to vector<32x2048xf32>
    %264 = arith.addf %261, %263 : vector<32x2048xf32>
    %c0_100 = arith.constant 0 : index
    %c0_101 = arith.constant 0 : index
    %265 = vector.load %arg7[%c0_100, %c0_101] : memref<32x1xf32, #tpu.memory_space<vmem>>, vector<32x1xf32>
    %c0_102 = arith.constant 0 : index
    %c0_103 = arith.constant 0 : index
    %266 = vector.load %arg8[%c0_102, %c0_103] : memref<32x1xf32, #tpu.memory_space<vmem>>, vector<32x1xf32>
    %267 = vector.broadcast %56 : vector<1x2048xf32> to vector<32x2048xf32>
    %268 = arith.mulf %264, %267 : vector<32x2048xf32>
    %cst_104 = arith.constant dense<0.000000e+00> : vector<32xf32>
    %269 = vector.multi_reduction <add>, %268, %cst_104 [1] : vector<32x2048xf32> to vector<32xf32>
    %270 = vector.shape_cast %269 : vector<32xf32> to vector<32x1xf32>
    %cst_105 = arith.constant 0.001953125 : f32
    %271 = vector.broadcast %cst_105 : f32 to vector<32x1xf32>
    %272 = arith.mulf %270, %271 : vector<32x1xf32>
    %273 = vector.broadcast %272 : vector<32x1xf32> to vector<32x2048xf32>
    %274 = arith.subf %264, %273 : vector<32x2048xf32>
    %275 = arith.mulf %274, %274 : vector<32x2048xf32>
    %276 = vector.broadcast %56 : vector<1x2048xf32> to vector<32x2048xf32>
    %277 = arith.mulf %275, %276 : vector<32x2048xf32>
    %cst_106 = arith.constant dense<0.000000e+00> : vector<32xf32>
    %278 = vector.multi_reduction <add>, %277, %cst_106 [1] : vector<32x2048xf32> to vector<32xf32>
    %279 = vector.shape_cast %278 : vector<32xf32> to vector<32x1xf32>
    %cst_107 = arith.constant 0.001953125 : f32
    %280 = vector.broadcast %cst_107 : f32 to vector<32x1xf32>
    %281 = arith.mulf %279, %280 : vector<32x1xf32>
    %cst_108 = arith.constant 9.99999974E-6 : f32
    %282 = vector.broadcast %cst_108 : f32 to vector<32x1xf32>
    %283 = arith.addf %281, %282 : vector<32x1xf32>
    %284 = math.rsqrt %283 : vector<32x1xf32>
    %285 = vector.broadcast %284 : vector<32x1xf32> to vector<32x2048xf32>
    %286 = arith.mulf %274, %285 : vector<32x2048xf32>
    %287 = vector.broadcast %265 : vector<32x1xf32> to vector<32x2048xf32>
    %288 = arith.mulf %286, %287 : vector<32x2048xf32>
    %289 = vector.broadcast %266 : vector<32x1xf32> to vector<32x2048xf32>
    %290 = arith.addf %288, %289 : vector<32x2048xf32>
    %cst_109 = arith.constant 0.000000e+00 : f32
    %291 = vector.broadcast %cst_109 : f32 to vector<32x2048xf32>
    %292 = arith.cmpf oge, %290, %291 : vector<32x2048xf32>
    %cst_110 = arith.constant 3.000000e-01 : f32
    %293 = vector.broadcast %cst_110 : f32 to vector<32x2048xf32>
    %294 = arith.mulf %293, %290 : vector<32x2048xf32>
    %295 = arith.select %292, %290, %294 : vector<32x2048xi1>, vector<32x2048xf32>
    %c0_111 = arith.constant 0 : index
    %c0_112 = arith.constant 0 : index
    %296 = vector.load %arg9[%c0_111, %c0_112] : memref<32x160xbf16, #tpu.memory_space<vmem>>, vector<32x160xbf16>
    %297 = tpu.iota {dimensions = array<i32: 1>} : vector<1x2048xi32>
    %c1024_i32_113 = arith.constant 1024 : i32
    %c0_i32_114 = arith.constant 0 : i32
    %298 = arith.cmpi eq, %c1024_i32_113, %c0_i32_114 : i32
    %c1_i32_115 = arith.constant 1 : i32
    %299 = arith.select %298, %c1_i32_115, %c1024_i32_113 : i32
    %300 = vector.broadcast %299 : i32 to vector<1x2048xi32>
    %301 = arith.remsi %297, %300 : vector<1x2048xi32>
    %c0_i32_116 = arith.constant 0 : i32
    %302 = vector.broadcast %c0_i32_116 : i32 to vector<1x2048xi32>
    %303 = arith.cmpi ne, %301, %302 : vector<1x2048xi32>
    %c0_i32_117 = arith.constant 0 : i32
    %304 = vector.broadcast %c0_i32_117 : i32 to vector<1x2048xi32>
    %305 = arith.cmpi slt, %301, %304 : vector<1x2048xi32>
    %c0_i32_118 = arith.constant 0 : i32
    %306 = arith.cmpi slt, %299, %c0_i32_118 : i32
    %307 = vector.broadcast %306 : i1 to vector<1x2048xi1>
    %308 = vector.broadcast %307 : vector<1x2048xi1> to vector<1x2048xi1>
    %309 = arith.xori %305, %308 : vector<1x2048xi1>
    %310 = arith.andi %309, %303 : vector<1x2048xi1>
    %311 = vector.broadcast %299 : i32 to vector<1x2048xi32>
    %312 = arith.addi %301, %311 : vector<1x2048xi32>
    %313 = arith.select %310, %312, %301 : vector<1x2048xi1>, vector<1x2048xi32>
    %c8_i32 = arith.constant 8 : i32
    %314 = tpu.dynamic_rotate %295 by %c8_i32 dim 1 : vector<32x2048xf32>, i32 -> vector<32x2048xf32>
    %c-8_i32 = arith.constant -8 : i32
    %315 = vector.broadcast %c-8_i32 : i32 to vector<1x2048xi32>
    %316 = arith.addi %313, %315 : vector<1x2048xi32>
    %c0_i32_119 = arith.constant 0 : i32
    %317 = vector.broadcast %c0_i32_119 : i32 to vector<1x2048xi32>
    %318 = arith.cmpi sge, %316, %317 : vector<1x2048xi32>
    %c-8_i32_120 = arith.constant -8 : i32
    %319 = vector.broadcast %c-8_i32_120 : i32 to vector<1x2048xi32>
    %320 = arith.addi %313, %319 : vector<1x2048xi32>
    %c1024_i32_121 = arith.constant 1024 : i32
    %321 = vector.broadcast %c1024_i32_121 : i32 to vector<1x2048xi32>
    %322 = arith.cmpi slt, %320, %321 : vector<1x2048xi32>
    %323 = arith.andi %318, %322 : vector<1x2048xi1>
    %cst_122 = arith.constant 0.000000e+00 : f32
    %324 = vector.shape_cast %323 : vector<1x2048xi1> to vector<1x2048xi1>
    %325 = vector.broadcast %324 : vector<1x2048xi1> to vector<32x2048xi1>
    %326 = vector.broadcast %cst_122 : f32 to vector<32x2048xf32>
    %327 = arith.select %325, %314, %326 : vector<32x2048xi1>, vector<32x2048xf32>
    %c4_i32_123 = arith.constant 4 : i32
    %328 = tpu.dynamic_rotate %295 by %c4_i32_123 dim 1 : vector<32x2048xf32>, i32 -> vector<32x2048xf32>
    %c-4_i32_124 = arith.constant -4 : i32
    %329 = vector.broadcast %c-4_i32_124 : i32 to vector<1x2048xi32>
    %330 = arith.addi %313, %329 : vector<1x2048xi32>
    %c0_i32_125 = arith.constant 0 : i32
    %331 = vector.broadcast %c0_i32_125 : i32 to vector<1x2048xi32>
    %332 = arith.cmpi sge, %330, %331 : vector<1x2048xi32>
    %c-4_i32_126 = arith.constant -4 : i32
    %333 = vector.broadcast %c-4_i32_126 : i32 to vector<1x2048xi32>
    %334 = arith.addi %313, %333 : vector<1x2048xi32>
    %c1024_i32_127 = arith.constant 1024 : i32
    %335 = vector.broadcast %c1024_i32_127 : i32 to vector<1x2048xi32>
    %336 = arith.cmpi slt, %334, %335 : vector<1x2048xi32>
    %337 = arith.andi %332, %336 : vector<1x2048xi1>
    %cst_128 = arith.constant 0.000000e+00 : f32
    %338 = vector.shape_cast %337 : vector<1x2048xi1> to vector<1x2048xi1>
    %339 = vector.broadcast %338 : vector<1x2048xi1> to vector<32x2048xi1>
    %340 = vector.broadcast %cst_128 : f32 to vector<32x2048xf32>
    %341 = arith.select %339, %328, %340 : vector<32x2048xi1>, vector<32x2048xf32>
    %c0_i32_129 = arith.constant 0 : i32
    %342 = vector.broadcast %c0_i32_129 : i32 to vector<1x2048xi32>
    %343 = arith.addi %313, %342 : vector<1x2048xi32>
    %c0_i32_130 = arith.constant 0 : i32
    %344 = vector.broadcast %c0_i32_130 : i32 to vector<1x2048xi32>
    %345 = arith.cmpi sge, %343, %344 : vector<1x2048xi32>
    %c0_i32_131 = arith.constant 0 : i32
    %346 = vector.broadcast %c0_i32_131 : i32 to vector<1x2048xi32>
    %347 = arith.addi %313, %346 : vector<1x2048xi32>
    %c1024_i32_132 = arith.constant 1024 : i32
    %348 = vector.broadcast %c1024_i32_132 : i32 to vector<1x2048xi32>
    %349 = arith.cmpi slt, %347, %348 : vector<1x2048xi32>
    %350 = arith.andi %345, %349 : vector<1x2048xi1>
    %cst_133 = arith.constant 0.000000e+00 : f32
    %351 = vector.shape_cast %350 : vector<1x2048xi1> to vector<1x2048xi1>
    %352 = vector.broadcast %351 : vector<1x2048xi1> to vector<32x2048xi1>
    %353 = vector.broadcast %cst_133 : f32 to vector<32x2048xf32>
    %354 = arith.select %352, %295, %353 : vector<32x2048xi1>, vector<32x2048xf32>
    %c2044_i32_134 = arith.constant 2044 : i32
    %355 = tpu.dynamic_rotate %295 by %c2044_i32_134 dim 1 : vector<32x2048xf32>, i32 -> vector<32x2048xf32>
    %c4_i32_135 = arith.constant 4 : i32
    %356 = vector.broadcast %c4_i32_135 : i32 to vector<1x2048xi32>
    %357 = arith.addi %313, %356 : vector<1x2048xi32>
    %c0_i32_136 = arith.constant 0 : i32
    %358 = vector.broadcast %c0_i32_136 : i32 to vector<1x2048xi32>
    %359 = arith.cmpi sge, %357, %358 : vector<1x2048xi32>
    %c4_i32_137 = arith.constant 4 : i32
    %360 = vector.broadcast %c4_i32_137 : i32 to vector<1x2048xi32>
    %361 = arith.addi %313, %360 : vector<1x2048xi32>
    %c1024_i32_138 = arith.constant 1024 : i32
    %362 = vector.broadcast %c1024_i32_138 : i32 to vector<1x2048xi32>
    %363 = arith.cmpi slt, %361, %362 : vector<1x2048xi32>
    %364 = arith.andi %359, %363 : vector<1x2048xi1>
    %cst_139 = arith.constant 0.000000e+00 : f32
    %365 = vector.shape_cast %364 : vector<1x2048xi1> to vector<1x2048xi1>
    %366 = vector.broadcast %365 : vector<1x2048xi1> to vector<32x2048xi1>
    %367 = vector.broadcast %cst_139 : f32 to vector<32x2048xf32>
    %368 = arith.select %366, %355, %367 : vector<32x2048xi1>, vector<32x2048xf32>
    %c2040_i32 = arith.constant 2040 : i32
    %369 = tpu.dynamic_rotate %295 by %c2040_i32 dim 1 : vector<32x2048xf32>, i32 -> vector<32x2048xf32>
    %c8_i32_140 = arith.constant 8 : i32
    %370 = vector.broadcast %c8_i32_140 : i32 to vector<1x2048xi32>
    %371 = arith.addi %313, %370 : vector<1x2048xi32>
    %c0_i32_141 = arith.constant 0 : i32
    %372 = vector.broadcast %c0_i32_141 : i32 to vector<1x2048xi32>
    %373 = arith.cmpi sge, %371, %372 : vector<1x2048xi32>
    %c8_i32_142 = arith.constant 8 : i32
    %374 = vector.broadcast %c8_i32_142 : i32 to vector<1x2048xi32>
    %375 = arith.addi %313, %374 : vector<1x2048xi32>
    %c1024_i32_143 = arith.constant 1024 : i32
    %376 = vector.broadcast %c1024_i32_143 : i32 to vector<1x2048xi32>
    %377 = arith.cmpi slt, %375, %376 : vector<1x2048xi32>
    %378 = arith.andi %373, %377 : vector<1x2048xi1>
    %cst_144 = arith.constant 0.000000e+00 : f32
    %379 = vector.shape_cast %378 : vector<1x2048xi1> to vector<1x2048xi1>
    %380 = vector.broadcast %379 : vector<1x2048xi1> to vector<32x2048xi1>
    %381 = vector.broadcast %cst_144 : f32 to vector<32x2048xf32>
    %382 = arith.select %380, %369, %381 : vector<32x2048xi1>, vector<32x2048xf32>
    %383 = tpu.concatenate %327, %341, %354, %368, %382 in 0 : vector<32x2048xf32>, vector<32x2048xf32>, vector<32x2048xf32>, vector<32x2048xf32>, vector<32x2048xf32> -> vector<160x2048xf32>
    %384 = arith.truncf %383 : vector<160x2048xf32> to vector<160x2048xbf16>
    %cst_145 = arith.constant dense<0.000000e+00> : vector<32x2048xf32>
    %385 = tpu.matmul %296, %384, %cst_145 {dimension_numbers = #tpu.dot_dimension_numbers<[1], [0], [0], [1], [0, 0, 1, 1], [], []>} : vector<32x160xbf16>, vector<160x2048xbf16>, vector<32x2048xf32> -> vector<32x2048xf32>
    %c0_146 = arith.constant 0 : index
    %c0_147 = arith.constant 0 : index
    %386 = vector.load %arg10[%c0_146, %c0_147] : memref<32x1xf32, #tpu.memory_space<vmem>>, vector<32x1xf32>
    %387 = vector.broadcast %386 : vector<32x1xf32> to vector<32x2048xf32>
    %388 = arith.addf %385, %387 : vector<32x2048xf32>
    %c0_148 = arith.constant 0 : index
    %c0_149 = arith.constant 0 : index
    %389 = vector.load %arg11[%c0_148, %c0_149] : memref<32x2048xf32, #tpu.memory_space<vmem>>, vector<32x2048xf32>
    tpu.vector_store %arg11[%c0_148, %c0_149], %388 {strides = array<i32>} : memref<32x2048xf32, #tpu.memory_space<vmem>>, vector<32x2048xf32>,
    return
  }
}

module attributes {stable_mosaic.version = 11 : i64} {
  func.func @kernel(%arg0: i32, %arg1: i32, %arg2: memref<1x16x128xbf16, #tpu.memory_space<vmem>>, %arg3: memref<1x32x128xbf16, #tpu.memory_space<vmem>>, %arg4: memref<1x16x128xf32, #tpu.memory_space<vmem>>, %arg5: memref<1x1x32x1xf32, #tpu.memory_space<vmem>>, %arg6: memref<32x16xbf16, #tpu.memory_space<vmem>>, %arg7: memref<32x1xf32, #tpu.memory_space<vmem>>, %arg8: memref<1x64x96xbf16, #tpu.memory_space<vmem>>, %arg9: memref<1x64x1xf32, #tpu.memory_space<vmem>>, %arg10: memref<1x64x32xbf16, #tpu.memory_space<vmem>>, %arg11: memref<1x64x1xf32, #tpu.memory_space<vmem>>, %arg12: memref<1x64x32xbf16, #tpu.memory_space<vmem>>, %arg13: memref<1x64x1xf32, #tpu.memory_space<vmem>>, %arg14: memref<32x32xbf16, #tpu.memory_space<vmem>>, %arg15: memref<32x1xf32, #tpu.memory_space<vmem>>, %arg16: memref<16x32xbf16, #tpu.memory_space<vmem>>, %arg17: memref<16x1xf32, #tpu.memory_space<vmem>>, %arg18: memref<1x8x128xf32, #tpu.memory_space<vmem>>, %arg19: memref<32x128xf32, #tpu.memory_space<vmem>>, %arg20: memref<32x128xf32, #tpu.memory_space<vmem>>, %arg21: memref<96x128xbf16, #tpu.memory_space<vmem>>) attributes {dimension_semantics = [#tpu.dimension_semantics<parallel>, #tpu.dimension_semantics<arbitrary>], iteration_bounds = array<i64: 2, 3>, scalar_prefetch = 0 : i64, scratch_operands = 3 : i64, tpu.core_type = #tpu.core_type<tc>, window_params = [{transform_indices = @transform_0, window_bounds = array<i64: 1, 16, 128>}, {transform_indices = @transform_1, window_bounds = array<i64: 1, 32, 128>}, {transform_indices = @transform_2, window_bounds = array<i64: 1, 16, 128>}, {transform_indices = @transform_3, window_bounds = array<i64: 1, 1, 32, 1>}, {pipeline_mode = #tpu.pipeline_mode<synchronous>, transform_indices = @transform_4, window_bounds = array<i64: 32, 16>}, {pipeline_mode = #tpu.pipeline_mode<synchronous>, transform_indices = @transform_5, window_bounds = array<i64: 32, 1>}, {transform_indices = @transform_6, window_bounds = array<i64: 1, 64, 96>}, {transform_indices = @transform_7, window_bounds = array<i64: 1, 64, 1>}, {transform_indices = @transform_8, window_bounds = array<i64: 1, 64, 32>}, {transform_indices = @transform_9, window_bounds = array<i64: 1, 64, 1>}, {transform_indices = @transform_10, window_bounds = array<i64: 1, 64, 32>}, {transform_indices = @transform_11, window_bounds = array<i64: 1, 64, 1>}, {pipeline_mode = #tpu.pipeline_mode<synchronous>, transform_indices = @transform_12, window_bounds = array<i64: 32, 32>}, {pipeline_mode = #tpu.pipeline_mode<synchronous>, transform_indices = @transform_13, window_bounds = array<i64: 32, 1>}, {pipeline_mode = #tpu.pipeline_mode<synchronous>, transform_indices = @transform_14, window_bounds = array<i64: 16, 32>}, {pipeline_mode = #tpu.pipeline_mode<synchronous>, transform_indices = @transform_15, window_bounds = array<i64: 16, 1>}, {transform_indices = @transform_16, window_bounds = array<i64: 1, 8, 128>}]} {
    %c0_i32 = arith.constant 0 : i32
    %0 = arith.cmpi eq, %arg1, %c0_i32 : i32
    %1 = arith.extui %0 : i1 to i32
    %c0_i32_0 = arith.constant 0 : i32
    %2 = arith.cmpi ne, %1, %c0_i32_0 : i32
    scf.if %2 {
      %c0_53 = arith.constant 0 : index
      %c0_54 = arith.constant 0 : index
      %78 = vector.load %arg6[%c0_53, %c0_54] : memref<32x16xbf16, #tpu.memory_space<vmem>>, vector<32x16xbf16>
      %c0_55 = arith.constant 0 : index
      %c0_56 = arith.constant 0 : index
      %c0_57 = arith.constant 0 : index
      %79 = vector.load %arg2[%c0_55, %c0_56, %c0_57] : memref<1x16x128xbf16, #tpu.memory_space<vmem>>, vector<1x16x128xbf16>
      %80 = vector.shape_cast %79 : vector<1x16x128xbf16> to vector<16x128xbf16>
      %cst_58 = arith.constant dense<0.000000e+00> : vector<32x128xf32>
      %81 = tpu.matmul %78, %80, %cst_58 {dimension_numbers = #tpu.dot_dimension_numbers<[1], [0], [0], [1], [0, 0, 1, 1], [], []>} : vector<32x16xbf16>, vector<16x128xbf16>, vector<32x128xf32> -> vector<32x128xf32>
      %c0_59 = arith.constant 0 : index
      %c0_60 = arith.constant 0 : index
      %82 = vector.load %arg7[%c0_59, %c0_60] : memref<32x1xf32, #tpu.memory_space<vmem>>, vector<32x1xf32>
      %83 = vector.broadcast %82 : vector<32x1xf32> to vector<32x128xf32>
      %84 = arith.addf %81, %83 : vector<32x128xf32>
      %cst_61 = arith.constant 0.000000e+00 : f32
      %85 = vector.broadcast %cst_61 : f32 to vector<32x128xf32>
      %86 = arith.maximumf %84, %85 : vector<32x128xf32>
      %c0_62 = arith.constant 0 : index
      %c0_63 = arith.constant 0 : index
      %87 = vector.load %arg19[%c0_62, %c0_63] : memref<32x128xf32, #tpu.memory_space<vmem>>, vector<32x128xf32>
      tpu.vector_store %arg19[%c0_62, %c0_63], %86 {strides = array<i32>} : memref<32x128xf32, #tpu.memory_space<vmem>>, vector<32x128xf32>,
      %cst_64 = arith.constant 0.000000e+00 : f32
      %88 = vector.broadcast %cst_64 : f32 to vector<32x128xf32>
      %c0_65 = arith.constant 0 : index
      %c0_66 = arith.constant 0 : index
      %89 = vector.load %arg20[%c0_65, %c0_66] : memref<32x128xf32, #tpu.memory_space<vmem>>, vector<32x128xf32>
      tpu.vector_store %arg20[%c0_65, %c0_66], %88 {strides = array<i32>} : memref<32x128xf32, #tpu.memory_space<vmem>>, vector<32x128xf32>,
      %cst_67 = arith.constant 0.000000e+00 : f32
      %90 = vector.broadcast %cst_67 : f32 to vector<1x8x128xf32>
      %c0_68 = arith.constant 0 : index
      %c0_69 = arith.constant 0 : index
      %c0_70 = arith.constant 0 : index
      %91 = vector.load %arg18[%c0_68, %c0_69, %c0_70] : memref<1x8x128xf32, #tpu.memory_space<vmem>>, vector<1x8x128xf32>
      tpu.vector_store %arg18[%c0_68, %c0_69, %c0_70], %90 {strides = array<i32>} : memref<1x8x128xf32, #tpu.memory_space<vmem>>, vector<1x8x128xf32>,
    } else {
    }
    %c0 = arith.constant 0 : index
    %c0_1 = arith.constant 0 : index
    %3 = vector.load %arg19[%c0, %c0_1] : memref<32x128xf32, #tpu.memory_space<vmem>>, vector<32x128xf32>
    %c0_2 = arith.constant 0 : index
    %c0_3 = arith.constant 0 : index
    %c0_4 = arith.constant 0 : index
    %c0_5 = arith.constant 0 : index
    %4 = vector.load %arg5[%c0_2, %c0_3, %c0_4, %c0_5] : memref<1x1x32x1xf32, #tpu.memory_space<vmem>>, vector<1x1x32x1xf32>
    %5 = vector.shape_cast %4 : vector<1x1x32x1xf32> to vector<32x1xf32>
    %6 = vector.broadcast %5 : vector<32x1xf32> to vector<32x128xf32>
    %7 = arith.addf %3, %6 : vector<32x128xf32>
    %8 = arith.truncf %7 : vector<32x128xf32> to vector<32x128xbf16>
    %c32 = arith.constant 32 : index
    %c0_6 = arith.constant 0 : index
    %9 = vector.load %arg21[%c32, %c0_6] : memref<96x128xbf16, #tpu.memory_space<vmem>>, vector<32x128xbf16>
    tpu.vector_store %arg21[%c32, %c0_6], %8 {strides = array<i32>} : memref<96x128xbf16, #tpu.memory_space<vmem>>, vector<32x128xbf16>,
    %10 = tpu.iota {dimensions = array<i32: 1>} : vector<1x128xi32>
    %c3_i32 = arith.constant 3 : i32
    %c0_i32_7 = arith.constant 0 : i32
    %11 = arith.cmpi eq, %c3_i32, %c0_i32_7 : i32
    %c1_i32 = arith.constant 1 : i32
    %12 = arith.select %11, %c1_i32, %c3_i32 : i32
    %13 = arith.remsi %arg1, %12 : i32
    %c0_i32_8 = arith.constant 0 : i32
    %14 = arith.cmpi ne, %13, %c0_i32_8 : i32
    %c0_i32_9 = arith.constant 0 : i32
    %15 = arith.cmpi slt, %13, %c0_i32_9 : i32
    %c0_i32_10 = arith.constant 0 : i32
    %16 = arith.cmpi slt, %12, %c0_i32_10 : i32
    %17 = arith.xori %15, %16 : i1
    %18 = arith.andi %17, %14 : i1
    %19 = arith.addi %13, %12 : i32
    %20 = arith.select %18, %19, %13 : i32
    %c0_i32_11 = arith.constant 0 : i32
    %21 = arith.cmpi eq, %20, %c0_i32_11 : i32
    %22 = arith.extui %21 : i1 to i32
    %c0_i32_12 = arith.constant 0 : i32
    %23 = arith.cmpi ne, %22, %c0_i32_12 : i32
    scf.if %23 {
      %c1_i32_53 = arith.constant 1 : i32
      %78 = tpu.dynamic_rotate %7 by %c1_i32_53 dim 1 : vector<32x128xf32>, i32 -> vector<32x128xf32>
      %c127_i32 = arith.constant 127 : i32
      %79 = tpu.dynamic_rotate %7 by %c127_i32 dim 1 : vector<32x128xf32>, i32 -> vector<32x128xf32>
      %c1_i32_54 = arith.constant 1 : i32
      %80 = vector.broadcast %c1_i32_54 : i32 to vector<1x128xi32>
      %81 = arith.cmpi sge, %10, %80 : vector<1x128xi32>
      %cst_55 = arith.constant 0.000000e+00 : f32
      %82 = vector.shape_cast %81 : vector<1x128xi1> to vector<1x128xi1>
      %83 = vector.broadcast %82 : vector<1x128xi1> to vector<32x128xi1>
      %84 = vector.broadcast %cst_55 : f32 to vector<32x128xf32>
      %85 = arith.select %83, %78, %84 : vector<32x128xi1>, vector<32x128xf32>
      %86 = arith.truncf %85 : vector<32x128xf32> to vector<32x128xbf16>
      %c0_56 = arith.constant 0 : index
      %c0_57 = arith.constant 0 : index
      %87 = vector.load %arg21[%c0_56, %c0_57] : memref<96x128xbf16, #tpu.memory_space<vmem>>, vector<32x128xbf16>
      tpu.vector_store %arg21[%c0_56, %c0_57], %86 {strides = array<i32>} : memref<96x128xbf16, #tpu.memory_space<vmem>>, vector<32x128xbf16>,
      %c127_i32_58 = arith.constant 127 : i32
      %88 = vector.broadcast %c127_i32_58 : i32 to vector<1x128xi32>
      %89 = arith.cmpi slt, %10, %88 : vector<1x128xi32>
      %cst_59 = arith.constant 0.000000e+00 : f32
      %90 = vector.shape_cast %89 : vector<1x128xi1> to vector<1x128xi1>
      %91 = vector.broadcast %90 : vector<1x128xi1> to vector<32x128xi1>
      %92 = vector.broadcast %cst_59 : f32 to vector<32x128xf32>
      %93 = arith.select %91, %79, %92 : vector<32x128xi1>, vector<32x128xf32>
      %94 = arith.truncf %93 : vector<32x128xf32> to vector<32x128xbf16>
      %c64 = arith.constant 64 : index
      %c0_60 = arith.constant 0 : index
      %95 = vector.load %arg21[%c64, %c0_60] : memref<96x128xbf16, #tpu.memory_space<vmem>>, vector<32x128xbf16>
      tpu.vector_store %arg21[%c64, %c0_60], %94 {strides = array<i32>} : memref<96x128xbf16, #tpu.memory_space<vmem>>, vector<32x128xbf16>,
    } else {
    }
    %c1_i32_13 = arith.constant 1 : i32
    %24 = arith.cmpi eq, %20, %c1_i32_13 : i32
    %25 = arith.extui %24 : i1 to i32
    %c0_i32_14 = arith.constant 0 : i32
    %26 = arith.cmpi ne, %25, %c0_i32_14 : i32
    scf.if %26 {
      %c2_i32_53 = arith.constant 2 : i32
      %78 = tpu.dynamic_rotate %7 by %c2_i32_53 dim 1 : vector<32x128xf32>, i32 -> vector<32x128xf32>
      %c126_i32 = arith.constant 126 : i32
      %79 = tpu.dynamic_rotate %7 by %c126_i32 dim 1 : vector<32x128xf32>, i32 -> vector<32x128xf32>
      %c2_i32_54 = arith.constant 2 : i32
      %80 = vector.broadcast %c2_i32_54 : i32 to vector<1x128xi32>
      %81 = arith.cmpi sge, %10, %80 : vector<1x128xi32>
      %cst_55 = arith.constant 0.000000e+00 : f32
      %82 = vector.shape_cast %81 : vector<1x128xi1> to vector<1x128xi1>
      %83 = vector.broadcast %82 : vector<1x128xi1> to vector<32x128xi1>
      %84 = vector.broadcast %cst_55 : f32 to vector<32x128xf32>
      %85 = arith.select %83, %78, %84 : vector<32x128xi1>, vector<32x128xf32>
      %86 = arith.truncf %85 : vector<32x128xf32> to vector<32x128xbf16>
      %c0_56 = arith.constant 0 : index
      %c0_57 = arith.constant 0 : index
      %87 = vector.load %arg21[%c0_56, %c0_57] : memref<96x128xbf16, #tpu.memory_space<vmem>>, vector<32x128xbf16>
      tpu.vector_store %arg21[%c0_56, %c0_57], %86 {strides = array<i32>} : memref<96x128xbf16, #tpu.memory_space<vmem>>, vector<32x128xbf16>,
      %c126_i32_58 = arith.constant 126 : i32
      %88 = vector.broadcast %c126_i32_58 : i32 to vector<1x128xi32>
      %89 = arith.cmpi slt, %10, %88 : vector<1x128xi32>
      %cst_59 = arith.constant 0.000000e+00 : f32
      %90 = vector.shape_cast %89 : vector<1x128xi1> to vector<1x128xi1>
      %91 = vector.broadcast %90 : vector<1x128xi1> to vector<32x128xi1>
      %92 = vector.broadcast %cst_59 : f32 to vector<32x128xf32>
      %93 = arith.select %91, %79, %92 : vector<32x128xi1>, vector<32x128xf32>
      %94 = arith.truncf %93 : vector<32x128xf32> to vector<32x128xbf16>
      %c64 = arith.constant 64 : index
      %c0_60 = arith.constant 0 : index
      %95 = vector.load %arg21[%c64, %c0_60] : memref<96x128xbf16, #tpu.memory_space<vmem>>, vector<32x128xbf16>
      tpu.vector_store %arg21[%c64, %c0_60], %94 {strides = array<i32>} : memref<96x128xbf16, #tpu.memory_space<vmem>>, vector<32x128xbf16>,
    } else {
    }
    %c2_i32 = arith.constant 2 : i32
    %27 = arith.cmpi eq, %20, %c2_i32 : i32
    %28 = arith.extui %27 : i1 to i32
    %c0_i32_15 = arith.constant 0 : i32
    %29 = arith.cmpi ne, %28, %c0_i32_15 : i32
    scf.if %29 {
      %c4_i32 = arith.constant 4 : i32
      %78 = tpu.dynamic_rotate %7 by %c4_i32 dim 1 : vector<32x128xf32>, i32 -> vector<32x128xf32>
      %c124_i32 = arith.constant 124 : i32
      %79 = tpu.dynamic_rotate %7 by %c124_i32 dim 1 : vector<32x128xf32>, i32 -> vector<32x128xf32>
      %c4_i32_53 = arith.constant 4 : i32
      %80 = vector.broadcast %c4_i32_53 : i32 to vector<1x128xi32>
      %81 = arith.cmpi sge, %10, %80 : vector<1x128xi32>
      %cst_54 = arith.constant 0.000000e+00 : f32
      %82 = vector.shape_cast %81 : vector<1x128xi1> to vector<1x128xi1>
      %83 = vector.broadcast %82 : vector<1x128xi1> to vector<32x128xi1>
      %84 = vector.broadcast %cst_54 : f32 to vector<32x128xf32>
      %85 = arith.select %83, %78, %84 : vector<32x128xi1>, vector<32x128xf32>
      %86 = arith.truncf %85 : vector<32x128xf32> to vector<32x128xbf16>
      %c0_55 = arith.constant 0 : index
      %c0_56 = arith.constant 0 : index
      %87 = vector.load %arg21[%c0_55, %c0_56] : memref<96x128xbf16, #tpu.memory_space<vmem>>, vector<32x128xbf16>
      tpu.vector_store %arg21[%c0_55, %c0_56], %86 {strides = array<i32>} : memref<96x128xbf16, #tpu.memory_space<vmem>>, vector<32x128xbf16>,
      %c124_i32_57 = arith.constant 124 : i32
      %88 = vector.broadcast %c124_i32_57 : i32 to vector<1x128xi32>
      %89 = arith.cmpi slt, %10, %88 : vector<1x128xi32>
      %cst_58 = arith.constant 0.000000e+00 : f32
      %90 = vector.shape_cast %89 : vector<1x128xi1> to vector<1x128xi1>
      %91 = vector.broadcast %90 : vector<1x128xi1> to vector<32x128xi1>
      %92 = vector.broadcast %cst_58 : f32 to vector<32x128xf32>
      %93 = arith.select %91, %79, %92 : vector<32x128xi1>, vector<32x128xf32>
      %94 = arith.truncf %93 : vector<32x128xf32> to vector<32x128xbf16>
      %c64 = arith.constant 64 : index
      %c0_59 = arith.constant 0 : index
      %95 = vector.load %arg21[%c64, %c0_59] : memref<96x128xbf16, #tpu.memory_space<vmem>>, vector<32x128xbf16>
      tpu.vector_store %arg21[%c64, %c0_59], %94 {strides = array<i32>} : memref<96x128xbf16, #tpu.memory_space<vmem>>, vector<32x128xbf16>,
    } else {
    }
    %c0_16 = arith.constant 0 : index
    %c0_17 = arith.constant 0 : index
    %c0_18 = arith.constant 0 : index
    %30 = vector.load %arg8[%c0_16, %c0_17, %c0_18] : memref<1x64x96xbf16, #tpu.memory_space<vmem>>, vector<1x64x96xbf16>
    %31 = vector.shape_cast %30 : vector<1x64x96xbf16> to vector<64x96xbf16>
    %c0_19 = arith.constant 0 : index
    %c0_20 = arith.constant 0 : index
    %32 = vector.load %arg21[%c0_19, %c0_20] : memref<96x128xbf16, #tpu.memory_space<vmem>>, vector<96x128xbf16>
    %cst = arith.constant dense<0.000000e+00> : vector<64x128xf32>
    %33 = tpu.matmul %31, %32, %cst {dimension_numbers = #tpu.dot_dimension_numbers<[1], [0], [0], [1], [0, 0, 1, 1], [], []>} : vector<64x96xbf16>, vector<96x128xbf16>, vector<64x128xf32> -> vector<64x128xf32>
    %c0_21 = arith.constant 0 : index
    %c0_22 = arith.constant 0 : index
    %c0_23 = arith.constant 0 : index
    %34 = vector.load %arg9[%c0_21, %c0_22, %c0_23] : memref<1x64x1xf32, #tpu.memory_space<vmem>>, vector<1x64x1xf32>
    %35 = vector.shape_cast %34 : vector<1x64x1xf32> to vector<64x1xf32>
    %36 = vector.broadcast %35 : vector<64x1xf32> to vector<64x128xf32>
    %37 = arith.addf %33, %36 : vector<64x128xf32>
    %c0_24 = arith.constant 0 : index
    %c0_25 = arith.constant 0 : index
    %c0_26 = arith.constant 0 : index
    %38 = vector.load %arg10[%c0_24, %c0_25, %c0_26] : memref<1x64x32xbf16, #tpu.memory_space<vmem>>, vector<1x64x32xbf16>
    %39 = vector.shape_cast %38 : vector<1x64x32xbf16> to vector<64x32xbf16>
    %c0_27 = arith.constant 0 : index
    %c0_28 = arith.constant 0 : index
    %c0_29 = arith.constant 0 : index
    %40 = vector.load %arg3[%c0_27, %c0_28, %c0_29] : memref<1x32x128xbf16, #tpu.memory_space<vmem>>, vector<1x32x128xbf16>
    %41 = vector.shape_cast %40 : vector<1x32x128xbf16> to vector<32x128xbf16>
    %cst_30 = arith.constant dense<0.000000e+00> : vector<64x128xf32>
    %42 = tpu.matmul %39, %41, %cst_30 {dimension_numbers = #tpu.dot_dimension_numbers<[1], [0], [0], [1], [0, 0, 1, 1], [], []>} : vector<64x32xbf16>, vector<32x128xbf16>, vector<64x128xf32> -> vector<64x128xf32>
    %43 = arith.addf %37, %42 : vector<64x128xf32>
    %c0_31 = arith.constant 0 : index
    %c0_32 = arith.constant 0 : index
    %c0_33 = arith.constant 0 : index
    %44 = vector.load %arg11[%c0_31, %c0_32, %c0_33] : memref<1x64x1xf32, #tpu.memory_space<vmem>>, vector<1x64x1xf32>
    %45 = vector.shape_cast %44 : vector<1x64x1xf32> to vector<64x1xf32>
    %46 = vector.broadcast %45 : vector<64x1xf32> to vector<64x128xf32>
    %47 = arith.addf %43, %46 : vector<64x128xf32>
    %48 = vector.extract_strided_slice %47 {offsets = [0, 0], sizes = [32, 128], strides = [1, 1]} : vector<64x128xf32> to vector<32x128xf32>
    %49 = arith.negf %48 : vector<32x128xf32>
    %50 = math.exp %49 : vector<32x128xf32>
    %cst_34 = arith.constant 1.000000e+00 : f32
    %51 = vector.broadcast %cst_34 : f32 to vector<32x128xf32>
    %52 = arith.addf %51, %50 : vector<32x128xf32>
    %53 = arith.divf %51, %52 : vector<32x128xf32>
    %54 = vector.extract_strided_slice %47 {offsets = [32, 0], sizes = [32, 128], strides = [1, 1]} : vector<64x128xf32> to vector<32x128xf32>
    %55 = math.tanh %54 : vector<32x128xf32>
    %56 = arith.mulf %53, %55 : vector<32x128xf32>
    %c0_35 = arith.constant 0 : index
    %c0_36 = arith.constant 0 : index
    %c0_37 = arith.constant 0 : index
    %57 = vector.load %arg12[%c0_35, %c0_36, %c0_37] : memref<1x64x32xbf16, #tpu.memory_space<vmem>>, vector<1x64x32xbf16>
    %58 = vector.shape_cast %57 : vector<1x64x32xbf16> to vector<64x32xbf16>
    %59 = arith.truncf %56 : vector<32x128xf32> to vector<32x128xbf16>
    %cst_38 = arith.constant dense<0.000000e+00> : vector<64x128xf32>
    %60 = tpu.matmul %58, %59, %cst_38 {dimension_numbers = #tpu.dot_dimension_numbers<[1], [0], [0], [1], [0, 0, 1, 1], [], []>} : vector<64x32xbf16>, vector<32x128xbf16>, vector<64x128xf32> -> vector<64x128xf32>
    %c0_39 = arith.constant 0 : index
    %c0_40 = arith.constant 0 : index
    %c0_41 = arith.constant 0 : index
    %61 = vector.load %arg13[%c0_39, %c0_40, %c0_41] : memref<1x64x1xf32, #tpu.memory_space<vmem>>, vector<1x64x1xf32>
    %62 = vector.shape_cast %61 : vector<1x64x1xf32> to vector<64x1xf32>
    %63 = vector.broadcast %62 : vector<64x1xf32> to vector<64x128xf32>
    %64 = arith.addf %60, %63 : vector<64x128xf32>
    %c0_42 = arith.constant 0 : index
    %c0_43 = arith.constant 0 : index
    %65 = vector.load %arg19[%c0_42, %c0_43] : memref<32x128xf32, #tpu.memory_space<vmem>>, vector<32x128xf32>
    %66 = vector.extract_strided_slice %64 {offsets = [0, 0], sizes = [32, 128], strides = [1, 1]} : vector<64x128xf32> to vector<32x128xf32>
    %67 = arith.addf %65, %66 : vector<32x128xf32>
    %cst_44 = arith.constant 0.707106769 : f32
    %68 = vector.broadcast %cst_44 : f32 to vector<32x128xf32>
    %69 = arith.mulf %67, %68 : vector<32x128xf32>
    %c0_45 = arith.constant 0 : index
    %c0_46 = arith.constant 0 : index
    %70 = vector.load %arg19[%c0_45, %c0_46] : memref<32x128xf32, #tpu.memory_space<vmem>>, vector<32x128xf32>
    tpu.vector_store %arg19[%c0_45, %c0_46], %69 {strides = array<i32>} : memref<32x128xf32, #tpu.memory_space<vmem>>, vector<32x128xf32>,
    %c0_47 = arith.constant 0 : index
    %c0_48 = arith.constant 0 : index
    %71 = vector.load %arg20[%c0_47, %c0_48] : memref<32x128xf32, #tpu.memory_space<vmem>>, vector<32x128xf32>
    %72 = vector.extract_strided_slice %64 {offsets = [32, 0], sizes = [32, 128], strides = [1, 1]} : vector<64x128xf32> to vector<32x128xf32>
    %73 = arith.addf %71, %72 : vector<32x128xf32>
    %c0_49 = arith.constant 0 : index
    %c0_50 = arith.constant 0 : index
    %74 = vector.load %arg20[%c0_49, %c0_50] : memref<32x128xf32, #tpu.memory_space<vmem>>, vector<32x128xf32>
    tpu.vector_store %arg20[%c0_49, %c0_50], %73 {strides = array<i32>} : memref<32x128xf32, #tpu.memory_space<vmem>>, vector<32x128xf32>,
    %c2_i32_51 = arith.constant 2 : i32
    %75 = arith.cmpi eq, %arg1, %c2_i32_51 : i32
    %76 = arith.extui %75 : i1 to i32
    %c0_i32_52 = arith.constant 0 : i32
    %77 = arith.cmpi ne, %76, %c0_i32_52 : i32
    scf.if %77 {
      %c0_53 = arith.constant 0 : index
      %c0_54 = arith.constant 0 : index
      %78 = vector.load %arg20[%c0_53, %c0_54] : memref<32x128xf32, #tpu.memory_space<vmem>>, vector<32x128xf32>
      %cst_55 = arith.constant 0.577350259 : f32
      %79 = vector.broadcast %cst_55 : f32 to vector<32x128xf32>
      %80 = arith.mulf %78, %79 : vector<32x128xf32>
      %c0_56 = arith.constant 0 : index
      %c0_57 = arith.constant 0 : index
      %81 = vector.load %arg14[%c0_56, %c0_57] : memref<32x32xbf16, #tpu.memory_space<vmem>>, vector<32x32xbf16>
      %82 = arith.truncf %80 : vector<32x128xf32> to vector<32x128xbf16>
      %cst_58 = arith.constant dense<0.000000e+00> : vector<32x128xf32>
      %83 = tpu.matmul %81, %82, %cst_58 {dimension_numbers = #tpu.dot_dimension_numbers<[1], [0], [0], [1], [0, 0, 1, 1], [], []>} : vector<32x32xbf16>, vector<32x128xbf16>, vector<32x128xf32> -> vector<32x128xf32>
      %c0_59 = arith.constant 0 : index
      %c0_60 = arith.constant 0 : index
      %84 = vector.load %arg15[%c0_59, %c0_60] : memref<32x1xf32, #tpu.memory_space<vmem>>, vector<32x1xf32>
      %85 = vector.broadcast %84 : vector<32x1xf32> to vector<32x128xf32>
      %86 = arith.addf %83, %85 : vector<32x128xf32>
      %cst_61 = arith.constant 0.000000e+00 : f32
      %87 = vector.broadcast %cst_61 : f32 to vector<32x128xf32>
      %88 = arith.maximumf %86, %87 : vector<32x128xf32>
      %c0_62 = arith.constant 0 : index
      %c0_63 = arith.constant 0 : index
      %89 = vector.load %arg16[%c0_62, %c0_63] : memref<16x32xbf16, #tpu.memory_space<vmem>>, vector<16x32xbf16>
      %90 = arith.truncf %88 : vector<32x128xf32> to vector<32x128xbf16>
      %cst_64 = arith.constant dense<0.000000e+00> : vector<16x128xf32>
      %91 = tpu.matmul %89, %90, %cst_64 {dimension_numbers = #tpu.dot_dimension_numbers<[1], [0], [0], [1], [0, 0, 1, 1], [], []>} : vector<16x32xbf16>, vector<32x128xbf16>, vector<16x128xf32> -> vector<16x128xf32>
      %c0_65 = arith.constant 0 : index
      %c0_66 = arith.constant 0 : index
      %92 = vector.load %arg17[%c0_65, %c0_66] : memref<16x1xf32, #tpu.memory_space<vmem>>, vector<16x1xf32>
      %93 = vector.broadcast %92 : vector<16x1xf32> to vector<16x128xf32>
      %94 = arith.addf %91, %93 : vector<16x128xf32>
      %c0_67 = arith.constant 0 : index
      %c0_68 = arith.constant 0 : index
      %c0_69 = arith.constant 0 : index
      %95 = vector.load %arg4[%c0_67, %c0_68, %c0_69] : memref<1x16x128xf32, #tpu.memory_space<vmem>>, vector<1x16x128xf32>
      %96 = vector.shape_cast %95 : vector<1x16x128xf32> to vector<16x128xf32>
      %97 = arith.subf %94, %96 : vector<16x128xf32>
      %98 = math.absf %97 : vector<16x128xf32>
      %cst_70 = arith.constant 1.000000e+00 : f32
      %99 = vector.broadcast %cst_70 : f32 to vector<16x128xf32>
      %100 = arith.cmpf olt, %98, %99 : vector<16x128xf32>
      %cst_71 = arith.constant 5.000000e-01 : f32
      %101 = vector.broadcast %cst_71 : f32 to vector<16x128xf32>
      %102 = arith.mulf %101, %97 : vector<16x128xf32>
      %103 = arith.mulf %102, %97 : vector<16x128xf32>
      %cst_72 = arith.constant 5.000000e-01 : f32
      %104 = vector.broadcast %cst_72 : f32 to vector<16x128xf32>
      %105 = arith.subf %98, %104 : vector<16x128xf32>
      %106 = arith.select %100, %103, %105 : vector<16x128xi1>, vector<16x128xf32>
      %107 = vector.shape_cast %106 : vector<16x128xf32> to vector<1x16x128xf32>
      %cst_73 = arith.constant dense<0.000000e+00> : vector<1xf32>
      %108 = vector.multi_reduction <add>, %107, %cst_73 [1, 2] : vector<1x16x128xf32> to vector<1xf32>
      %109 = vector.shape_cast %108 : vector<1xf32> to vector<1x1x1xf32>
      %110 = vector.extract %109[0, 0, 0] : f32 from vector<1x1x1xf32>
      %cst_74 = arith.constant 0.000000e+00 : f32
      %111 = vector.broadcast %cst_74 : f32 to vector<1x8x128xf32>
      %112 = vector.broadcast %110 : f32 to vector<1x8x128xf32>
      %113 = arith.addf %112, %111 : vector<1x8x128xf32>
      %c0_75 = arith.constant 0 : index
      %c0_76 = arith.constant 0 : index
      %c0_77 = arith.constant 0 : index
      %114 = vector.load %arg18[%c0_75, %c0_76, %c0_77] : memref<1x8x128xf32, #tpu.memory_space<vmem>>, vector<1x8x128xf32>
      tpu.vector_store %arg18[%c0_75, %c0_76, %c0_77], %113 {strides = array<i32>} : memref<1x8x128xf32, #tpu.memory_space<vmem>>, vector<1x8x128xf32>,
    } else {
    }
    return
  }
  func.func @transform_0(%arg0: i32, %arg1: i32) -> (i32, i32, i32) {
    %c0_i32 = arith.constant 0 : i32
    %c0_i32_0 = arith.constant 0 : i32
    %c0_i32_1 = arith.constant 0 : i32
    return %arg0, %c0_i32, %c0_i32_0 : i32, i32, i32
  }
  func.func @transform_1(%arg0: i32, %arg1: i32) -> (i32, i32, i32) {
    %c0_i32 = arith.constant 0 : i32
    %c0_i32_0 = arith.constant 0 : i32
    %c0_i32_1 = arith.constant 0 : i32
    return %arg0, %c0_i32, %c0_i32_0 : i32, i32, i32
  }
  func.func @transform_2(%arg0: i32, %arg1: i32) -> (i32, i32, i32) {
    %c0_i32 = arith.constant 0 : i32
    %c0_i32_0 = arith.constant 0 : i32
    %c0_i32_1 = arith.constant 0 : i32
    return %arg0, %c0_i32, %c0_i32_0 : i32, i32, i32
  }
  func.func @transform_3(%arg0: i32, %arg1: i32) -> (i32, i32, i32, i32) {
    %c0_i32 = arith.constant 0 : i32
    %c0_i32_0 = arith.constant 0 : i32
    %c0_i32_1 = arith.constant 0 : i32
    return %arg0, %arg1, %c0_i32, %c0_i32_0 : i32, i32, i32, i32
  }
  func.func @transform_4(%arg0: i32, %arg1: i32) -> (i32, i32) {
    %c0_i32 = arith.constant 0 : i32
    %c0_i32_0 = arith.constant 0 : i32
    %c0_i32_1 = arith.constant 0 : i32
    return %c0_i32, %c0_i32_0 : i32, i32
  }
  func.func @transform_5(%arg0: i32, %arg1: i32) -> (i32, i32) {
    %c0_i32 = arith.constant 0 : i32
    %c0_i32_0 = arith.constant 0 : i32
    %c0_i32_1 = arith.constant 0 : i32
    return %c0_i32, %c0_i32_0 : i32, i32
  }
  func.func @transform_6(%arg0: i32, %arg1: i32) -> (i32, i32, i32) {
    %c0_i32 = arith.constant 0 : i32
    %c0_i32_0 = arith.constant 0 : i32
    %c0_i32_1 = arith.constant 0 : i32
    return %arg1, %c0_i32, %c0_i32_0 : i32, i32, i32
  }
  func.func @transform_7(%arg0: i32, %arg1: i32) -> (i32, i32, i32) {
    %c0_i32 = arith.constant 0 : i32
    %c0_i32_0 = arith.constant 0 : i32
    %c0_i32_1 = arith.constant 0 : i32
    return %arg1, %c0_i32, %c0_i32_0 : i32, i32, i32
  }
  func.func @transform_8(%arg0: i32, %arg1: i32) -> (i32, i32, i32) {
    %c0_i32 = arith.constant 0 : i32
    %c0_i32_0 = arith.constant 0 : i32
    %c0_i32_1 = arith.constant 0 : i32
    return %arg1, %c0_i32, %c0_i32_0 : i32, i32, i32
  }
  func.func @transform_9(%arg0: i32, %arg1: i32) -> (i32, i32, i32) {
    %c0_i32 = arith.constant 0 : i32
    %c0_i32_0 = arith.constant 0 : i32
    %c0_i32_1 = arith.constant 0 : i32
    return %arg1, %c0_i32, %c0_i32_0 : i32, i32, i32
  }
  func.func @transform_10(%arg0: i32, %arg1: i32) -> (i32, i32, i32) {
    %c0_i32 = arith.constant 0 : i32
    %c0_i32_0 = arith.constant 0 : i32
    %c0_i32_1 = arith.constant 0 : i32
    return %arg1, %c0_i32, %c0_i32_0 : i32, i32, i32
  }
  func.func @transform_11(%arg0: i32, %arg1: i32) -> (i32, i32, i32) {
    %c0_i32 = arith.constant 0 : i32
    %c0_i32_0 = arith.constant 0 : i32
    %c0_i32_1 = arith.constant 0 : i32
    return %arg1, %c0_i32, %c0_i32_0 : i32, i32, i32
  }
  func.func @transform_12(%arg0: i32, %arg1: i32) -> (i32, i32) {
    %c0_i32 = arith.constant 0 : i32
    %c0_i32_0 = arith.constant 0 : i32
    %c0_i32_1 = arith.constant 0 : i32
    return %c0_i32, %c0_i32_0 : i32, i32
  }
  func.func @transform_13(%arg0: i32, %arg1: i32) -> (i32, i32) {
    %c0_i32 = arith.constant 0 : i32
    %c0_i32_0 = arith.constant 0 : i32
    %c0_i32_1 = arith.constant 0 : i32
    return %c0_i32, %c0_i32_0 : i32, i32
  }
  func.func @transform_14(%arg0: i32, %arg1: i32) -> (i32, i32) {
    %c0_i32 = arith.constant 0 : i32
    %c0_i32_0 = arith.constant 0 : i32
    %c0_i32_1 = arith.constant 0 : i32
    return %c0_i32, %c0_i32_0 : i32, i32
  }
  func.func @transform_15(%arg0: i32, %arg1: i32) -> (i32, i32) {
    %c0_i32 = arith.constant 0 : i32
    %c0_i32_0 = arith.constant 0 : i32
    %c0_i32_1 = arith.constant 0 : i32
    return %c0_i32, %c0_i32_0 : i32, i32
  }
  func.func @transform_16(%arg0: i32, %arg1: i32) -> (i32, i32, i32) {
    %c0_i32 = arith.constant 0 : i32
    %c0_i32_0 = arith.constant 0 : i32
    %c0_i32_1 = arith.constant 0 : i32
    return %arg0, %c0_i32, %c0_i32_0 : i32, i32, i32
  }
}

</mosaic_0001>

<llo_original>
// kernel: model_forward.3
$region0: #{model_forward.3}
  #allocation0 [shape = 'u32[]', space=smem, size = 0x4, offset = 0x4, fixed_abs, tag = 'smem constant byte address 0x4 - core index']
  #allocation1 [shape = 'u32[144,128]{1,0:T(1,128)}', space=vmem, size = 0x12000, scoped, tag = 'internal scratch']
  #allocation2 [shape = 'f32[32,128]{1,0:T(8,128)}', space=vmem, size = 0x4000, scoped, tag = 'scratch operand']
  #allocation3 [shape = 'f32[32,128]{1,0:T(8,128)}', space=vmem, size = 0x4000, scoped, tag = 'scratch operand']
  #allocation4 [shape = 'bf16[96,128]{1,0:T(16,128)(2,1)}', space=vmem, size = 0x6000, scoped, tag = 'scratch operand']
  %s0 = inlined_call_operand.vmem [shape: bf16[2,16,128], index: 0, kind: input, shape index: {}]
  %s1 = inlined_call_operand.vmem [shape: bf16[2,32,128], index: 1, kind: input, shape index: {}]
  %s2 = inlined_call_operand.vmem [shape: f32[2,16,128], index: 2, kind: input, shape index: {}]
  %s3 = inlined_call_operand.vmem [shape: f32[2,3,32,1], index: 3, kind: input, shape index: {}]
  %s4 = inlined_call_operand.vmem [shape: bf16[32,16], index: 4, kind: input, shape index: {}]
  %s5 = inlined_call_operand.vmem [shape: f32[32,1], index: 5, kind: input, shape index: {}]
  %s6 = inlined_call_operand.vmem [shape: bf16[3,64,96], index: 6, kind: input, shape index: {}]
  %s7 = inlined_call_operand.vmem [shape: f32[3,64,1], index: 7, kind: input, shape index: {}]
  %s8 = inlined_call_operand.vmem [shape: bf16[3,64,32], index: 8, kind: input, shape index: {}]
  %s9 = inlined_call_operand.vmem [shape: f32[3,64,1], index: 9, kind: input, shape index: {}]
  %s10 = inlined_call_operand.vmem [shape: bf16[3,64,32], index: 10, kind: input, shape index: {}]
  %s11 = inlined_call_operand.vmem [shape: f32[3,64,1], index: 11, kind: input, shape index: {}]
  %s12 = inlined_call_operand.vmem [shape: bf16[32,32], index: 12, kind: input, shape index: {}]
  %s13 = inlined_call_operand.vmem [shape: f32[32,1], index: 13, kind: input, shape index: {}]
  %s14 = inlined_call_operand.vmem [shape: bf16[16,32], index: 14, kind: input, shape index: {}]
  %s15 = inlined_call_operand.vmem [shape: f32[16,1], index: 15, kind: input, shape index: {}]
  %s16 = inlined_call_operand.vmem [shape: f32[2,8,128], index: 16, kind: output, shape index: {}]
  %s17 = sld [smem:[#allocation0]]
  $region117: #{model_forward.3} parent=0
    _
  %s19 = ssub.s32 1, %s17
  %s20 = scalar_select 0, %s19, %s17
  loop: start=0, step=1, limit=8
  $region2: #{model_forward.3} parent=0 // loop_pre_header
    _
  $region3: #{model_forward.3} parent=0 // loop_header
    %s22 = sphi 0, %s26
    %p23 = scmp.ge.s32.totalorder %s22, 8
    %s29 = sphi 0, %s41
    %s30 = sphi 0, %s37
    %s31 = sphi 0, %s29
    %s32 = sphi 0, %s30
    %s33 = sphi 0, %s31
    %s34 = sphi 0, %s32
    %s44 = sphi 0, %s46
    %s47 = sphi 0, %s44
    %s48 = sphi 0, %s47
    %s64 = sphi 0, %s48
    %s70 = sphi 0, %s72
    %s73 = sphi 0, %s70
    %s74 = sphi 0, %s73
    %s90 = sphi 0, %s74
    %s96 = sphi 0, %s98
    %s99 = sphi 0, %s96
    %s100 = sphi 0, %s99
    %s116 = sphi 0, %s100
    %s124 = sphi 0, %s126
    %s127 = sphi 0, %s124
    %s128 = sphi 0, %s127
    %s144 = sphi 0, %s128
    %s148 = sphi 0, %s148
    %s150 = sphi 0, %s148
    %s151 = sphi 0, %s150
    %s165 = sphi 0, %s151
    %s169 = sphi 0, %s169
    %s171 = sphi 0, %s169
    %s172 = sphi 0, %s171
    %s186 = sphi 0, %s172
    %s192 = sphi 0, %s194
    %s195 = sphi 0, %s192
    %s196 = sphi 0, %s195
    %s212 = sphi 0, %s196
    %s218 = sphi 0, %s220
    %s221 = sphi 0, %s218
    %s222 = sphi 0, %s221
    %s238 = sphi 0, %s222
    %s244 = sphi 0, %s246
    %s247 = sphi 0, %s244
    %s248 = sphi 0, %s247
    %s264 = sphi 0, %s248
    %s270 = sphi 0, %s272
    %s273 = sphi 0, %s270
    %s274 = sphi 0, %s273
    %s290 = sphi 0, %s274
    %s296 = sphi 0, %s298
    %s299 = sphi 0, %s296
    %s300 = sphi 0, %s299
    %s316 = sphi 0, %s300
    %s322 = sphi 0, %s324
    %s325 = sphi 0, %s322
    %s326 = sphi 0, %s325
    %s342 = sphi 0, %s326
    %s346 = sphi 0, %s346
    %s348 = sphi 0, %s346
    %s349 = sphi 0, %s348
    %s363 = sphi 0, %s349
    %s367 = sphi 0, %s367
    %s369 = sphi 0, %s367
    %s370 = sphi 0, %s369
    %s384 = sphi 0, %s370
    %s388 = sphi 0, %s388
    %s390 = sphi 0, %s388
    %s391 = sphi 0, %s390
    %s405 = sphi 0, %s391
    %s409 = sphi 0, %s409
    %s411 = sphi 0, %s409
    %s412 = sphi 0, %s411
    %s426 = sphi 0, %s412
    %s432 = sphi 0, %s434
    %s435 = sphi 0, %s432
    %s436 = sphi 0, %s435
    %s452 = sphi 0, %s436
  $region4: #{model_forward.3} parent=0 // loop_header_branch
    %25 = sbr.rel (%p23) target = $region8
  $region5: #{model_forward.3} parent=0 // loop_body
    %s27 = ssub.s32 %s22, 1
    %s28 = ssub.s32 %s22, 2
    %s35 = sadd.s32 1, %s30
    %p36 = scmp.ge.s32.totalorder %s35, 3
    %s37 = scalar_select %p36, 0, %s35
    %s38 = sadd.s32 1, %s29
    %s39 = scalar_select %p36, %s38, %s29
    %p40 = scmp.ge.s32.totalorder %s39, 2
    %s41 = scalar_select %p40, 0, %s39
    %s42 = ssub.s32 %s29, %s41
    %p43 = scmp.eq.s32.totalorder %s42, 0
    %s45 = sadd.s32 %s44, 1
    %s46 = scalar_select %p43, %s44, %s45
    %p49 = pneg %p43
    %p50 = scmp.eq.s32.totalorder %s22, 5
    %p51 = por %p49, %p50
    %p52 = scmp.ne.s32.totalorder %s44, %s47
    %p53 = scmp.eq.s32.totalorder %s22, 0
    %p54 = por %p52, %p53
    %p55 = scmp.ne.s32.totalorder %s44, %s47
    %p56 = scmp.eq.s32.totalorder %s27, 5
    %p57 = por %p55, %p56
    %p58 = scmp.ne.s32.totalorder %s47, %s48
    %p59 = scmp.eq.s32.totalorder %s27, 0
    %p60 = por %p58, %p59
    %p61 = scmp.ne.s32.totalorder %s47, %s48
    %p62 = scmp.eq.s32.totalorder %s28, 5
    %p63 = por %p61, %p62
    %p65 = scmp.ne.s32.totalorder %s48, %s64
    %p66 = scmp.eq.s32.totalorder %s28, 0
    %p67 = por %p65, %p66
    %s68 = ssub.s32 %s29, %s41
    %p69 = scmp.eq.s32.totalorder %s68, 0
    %s71 = sadd.s32 %s70, 1
    %s72 = scalar_select %p69, %s70, %s71
    %p75 = pneg %p69
    %p76 = scmp.eq.s32.totalorder %s22, 5
    %p77 = por %p75, %p76
    %p78 = scmp.ne.s32.totalorder %s70, %s73
    %p79 = scmp.eq.s32.totalorder %s22, 0
    %p80 = por %p78, %p79
    %p81 = scmp.ne.s32.totalorder %s70, %s73
    %p82 = scmp.eq.s32.totalorder %s27, 5
    %p83 = por %p81, %p82
    %p84 = scmp.ne.s32.totalorder %s73, %s74
    %p85 = scmp.eq.s32.totalorder %s27, 0
    %p86 = por %p84, %p85
    %p87 = scmp.ne.s32.totalorder %s73, %s74
    %p88 = scmp.eq.s32.totalorder %s28, 5
    %p89 = por %p87, %p88
    %p91 = scmp.ne.s32.totalorder %s74, %s90
    %p92 = scmp.eq.s32.totalorder %s28, 0
    %p93 = por %p91, %p92
    %s94 = ssub.s32 %s29, %s41
    %p95 = scmp.eq.s32.totalorder %s94, 0
    %s97 = sadd.s32 %s96, 1
    %s98 = scalar_select %p95, %s96, %s97
    %p101 = pneg %p95
    %p102 = scmp.eq.s32.totalorder %s22, 5
    %p103 = por %p101, %p102
    %p104 = scmp.ne.s32.totalorder %s96, %s99
    %p105 = scmp.eq.s32.totalorder %s22, 0
    %p106 = por %p104, %p105
    %p107 = scmp.ne.s32.totalorder %s96, %s99
    %p108 = scmp.eq.s32.totalorder %s27, 5
    %p109 = por %p107, %p108
    %p110 = scmp.ne.s32.totalorder %s99, %s100
    %p111 = scmp.eq.s32.totalorder %s27, 0
    %p112 = por %p110, %p111
    %p113 = scmp.ne.s32.totalorder %s99, %s100
    %p114 = scmp.eq.s32.totalorder %s28, 5
    %p115 = por %p113, %p114
    %p117 = scmp.ne.s32.totalorder %s100, %s116
    %p118 = scmp.eq.s32.totalorder %s28, 0
    %p119 = por %p117, %p118
    %s120 = ssub.s32 %s29, %s41
    %s121 = ssub.s32 %s30, %s37
    %s122 = sor.u32 %s120, %s121
    %p123 = scmp.eq.s32.totalorder %s122, 0
    %s125 = sadd.s32 %s124, 1
    %s126 = scalar_select %p123, %s124, %s125
    %p129 = pneg %p123
    %p130 = scmp.eq.s32.totalorder %s22, 5
    %p131 = por %p129, %p130
    %p132 = scmp.ne.s32.totalorder %s124, %s127
    %p133 = scmp.eq.s32.totalorder %s22, 0
    %p134 = por %p132, %p133
    %p135 = scmp.ne.s32.totalorder %s124, %s127
    %p136 = scmp.eq.s32.totalorder %s27, 5
    %p137 = por %p135, %p136
    %p138 = scmp.ne.s32.totalorder %s127, %s128
    %p139 = scmp.eq.s32.totalorder %s27, 0
    %p140 = por %p138, %p139
    %p141 = scmp.ne.s32.totalorder %s127, %s128
    %p142 = scmp.eq.s32.totalorder %s28, 5
    %p143 = por %p141, %p142
    %p145 = scmp.ne.s32.totalorder %s128, %s144
    %p146 = scmp.eq.s32.totalorder %s28, 0
    %p147 = por %p145, %p146
    %s149 = sadd.s32 %s148, 1
    %p152 = scmp.eq.s32.totalorder %s22, 5
    %p153 = scmp.ne.s32.totalorder %s148, %s150
    %p154 = scmp.eq.s32.totalorder %s22, 0
    %p155 = por %p153, %p154
    %p156 = scmp.ne.s32.totalorder %s148, %s150
    %p157 = scmp.eq.s32.totalorder %s27, 5
    %p158 = por %p156, %p157
    %p159 = scmp.ne.s32.totalorder %s150, %s151
    %p160 = scmp.eq.s32.totalorder %s27, 0
    %p161 = por %p159, %p160
    %p162 = scmp.ne.s32.totalorder %s150, %s151
    %p163 = scmp.eq.s32.totalorder %s28, 5
    %p164 = por %p162, %p163
    %p166 = scmp.ne.s32.totalorder %s151, %s165
    %p167 = scmp.eq.s32.totalorder %s28, 0
    %p168 = por %p166, %p167
    %s170 = sadd.s32 %s169, 1
    %p173 = scmp.eq.s32.totalorder %s22, 5
    %p174 = scmp.ne.s32.totalorder %s169, %s171
    %p175 = scmp.eq.s32.totalorder %s22, 0
    %p176 = por %p174, %p175
    %p177 = scmp.ne.s32.totalorder %s169, %s171
    %p178 = scmp.eq.s32.totalorder %s27, 5
    %p179 = por %p177, %p178
    %p180 = scmp.ne.s32.totalorder %s171, %s172
    %p181 = scmp.eq.s32.totalorder %s27, 0
    %p182 = por %p180, %p181
    %p183 = scmp.ne.s32.totalorder %s171, %s172
    %p184 = scmp.eq.s32.totalorder %s28, 5
    %p185 = por %p183, %p184
    %p187 = scmp.ne.s32.totalorder %s172, %s186
    %p188 = scmp.eq.s32.totalorder %s28, 0
    %p189 = por %p187, %p188
    %s190 = ssub.s32 %s30, %s37
    %p191 = scmp.eq.s32.totalorder %s190, 0
    %s193 = sadd.s32 %s192, 1
    %s194 = scalar_select %p191, %s192, %s193
    %p197 = pneg %p191
    %p198 = scmp.eq.s32.totalorder %s22, 5
    %p199 = por %p197, %p198
    %p200 = scmp.ne.s32.totalorder %s192, %s195
    %p201 = scmp.eq.s32.totalorder %s22, 0
    %p202 = por %p200, %p201
    %p203 = scmp.ne.s32.totalorder %s192, %s195
    %p204 = scmp.eq.s32.totalorder %s27, 5
    %p205 = por %p203, %p204
    %p206 = scmp.ne.s32.totalorder %s195, %s196
    %p207 = scmp.eq.s32.totalorder %s27, 0
    %p208 = por %p206, %p207
    %p209 = scmp.ne.s32.totalorder %s195, %s196
    %p210 = scmp.eq.s32.totalorder %s28, 5
    %p211 = por %p209, %p210
    %p213 = scmp.ne.s32.totalorder %s196, %s212
    %p214 = scmp.eq.s32.totalorder %s28, 0
    %p215 = por %p213, %p214
    %s216 = ssub.s32 %s30, %s37
    %p217 = scmp.eq.s32.totalorder %s216, 0
    %s219 = sadd.s32 %s218, 1
    %s220 = scalar_select %p217, %s218, %s219
    %p223 = pneg %p217
    %p224 = scmp.eq.s32.totalorder %s22, 5
    %p225 = por %p223, %p224
    %p226 = scmp.ne.s32.totalorder %s218, %s221
    %p227 = scmp.eq.s32.totalorder %s22, 0
    %p228 = por %p226, %p227
    %p229 = scmp.ne.s32.totalorder %s218, %s221
    %p230 = scmp.eq.s32.totalorder %s27, 5
    %p231 = por %p229, %p230
    %p232 = scmp.ne.s32.totalorder %s221, %s222
    %p233 = scmp.eq.s32.totalorder %s27, 0
    %p234 = por %p232, %p233
    %p235 = scmp.ne.s32.totalorder %s221, %s222
    %p236 = scmp.eq.s32.totalorder %s28, 5
    %p237 = por %p235, %p236
    %p239 = scmp.ne.s32.totalorder %s222, %s238
    %p240 = scmp.eq.s32.totalorder %s28, 0
    %p241 = por %p239, %p240
    %s242 = ssub.s32 %s30, %s37
    %p243 = scmp.eq.s32.totalorder %s242, 0
    %s245 = sadd.s32 %s244, 1
    %s246 = scalar_select %p243, %s244, %s245
    %p249 = pneg %p243
    %p250 = scmp.eq.s32.totalorder %s22, 5
    %p251 = por %p249, %p250
    %p252 = scmp.ne.s32.totalorder %s244, %s247
    %p253 = scmp.eq.s32.totalorder %s22, 0
    %p254 = por %p252, %p253
    %p255 = scmp.ne.s32.totalorder %s244, %s247
    %p256 = scmp.eq.s32.totalorder %s27, 5
    %p257 = por %p255, %p256
    %p258 = scmp.ne.s32.totalorder %s247, %s248
    %p259 = scmp.eq.s32.totalorder %s27, 0
    %p260 = por %p258, %p259
    %p261 = scmp.ne.s32.totalorder %s247, %s248
    %p262 = scmp.eq.s32.totalorder %s28, 5
    %p263 = por %p261, %p262
    %p265 = scmp.ne.s32.totalorder %s248, %s264
    %p266 = scmp.eq.s32.totalorder %s28, 0
    %p267 = por %p265, %p266
    %s268 = ssub.s32 %s30, %s37
    %p269 = scmp.eq.s32.totalorder %s268, 0
    %s271 = sadd.s32 %s270, 1
    %s272 = scalar_select %p269, %s270, %s271
    %p275 = pneg %p269
    %p276 = scmp.eq.s32.totalorder %s22, 5
    %p277 = por %p275, %p276
    %p278 = scmp.ne.s32.totalorder %s270, %s273
    %p279 = scmp.eq.s32.totalorder %s22, 0
    %p280 = por %p278, %p279
    %p281 = scmp.ne.s32.totalorder %s270, %s273
    %p282 = scmp.eq.s32.totalorder %s27, 5
    %p283 = por %p281, %p282
    %p284 = scmp.ne.s32.totalorder %s273, %s274
    %p285 = scmp.eq.s32.totalorder %s27, 0
    %p286 = por %p284, %p285
    %p287 = scmp.ne.s32.totalorder %s273, %s274
    %p288 = scmp.eq.s32.totalorder %s28, 5
    %p289 = por %p287, %p288
    %p291 = scmp.ne.s32.totalorder %s274, %s290
    %p292 = scmp.eq.s32.totalorder %s28, 0
    %p293 = por %p291, %p292
    %s294 = ssub.s32 %s30, %s37
    %p295 = scmp.eq.s32.totalorder %s294, 0
    %s297 = sadd.s32 %s296, 1
    %s298 = scalar_select %p295, %s296, %s297
    %p301 = pneg %p295
    %p302 = scmp.eq.s32.totalorder %s22, 5
    %p303 = por %p301, %p302
    %p304 = scmp.ne.s32.totalorder %s296, %s299
    %p305 = scmp.eq.s32.totalorder %s22, 0
    %p306 = por %p304, %p305
    %p307 = scmp.ne.s32.totalorder %s296, %s299
    %p308 = scmp.eq.s32.totalorder %s27, 5
    %p309 = por %p307, %p308
    %p310 = scmp.ne.s32.totalorder %s299, %s300
    %p311 = scmp.eq.s32.totalorder %s27, 0
    %p312 = por %p310, %p311
    %p313 = scmp.ne.s32.totalorder %s299, %s300
    %p314 = scmp.eq.s32.totalorder %s28, 5
    %p315 = por %p313, %p314
    %p317 = scmp.ne.s32.totalorder %s300, %s316
    %p318 = scmp.eq.s32.totalorder %s28, 0
    %p319 = por %p317, %p318
    %s320 = ssub.s32 %s30, %s37
    %p321 = scmp.eq.s32.totalorder %s320, 0
    %s323 = sadd.s32 %s322, 1
    %s324 = scalar_select %p321, %s322, %s323
    %p327 = pneg %p321
    %p328 = scmp.eq.s32.totalorder %s22, 5
    %p329 = por %p327, %p328
    %p330 = scmp.ne.s32.totalorder %s322, %s325
    %p331 = scmp.eq.s32.totalorder %s22, 0
    %p332 = por %p330, %p331
    %p333 = scmp.ne.s32.totalorder %s322, %s325
    %p334 = scmp.eq.s32.totalorder %s27, 5
    %p335 = por %p333, %p334
    %p336 = scmp.ne.s32.totalorder %s325, %s326
    %p337 = scmp.eq.s32.totalorder %s27, 0
    %p338 = por %p336, %p337
    %p339 = scmp.ne.s32.totalorder %s325, %s326
    %p340 = scmp.eq.s32.totalorder %s28, 5
    %p341 = por %p339, %p340
    %p343 = scmp.ne.s32.totalorder %s326, %s342
    %p344 = scmp.eq.s32.totalorder %s28, 0
    %p345 = por %p343, %p344
    %s347 = sadd.s32 %s346, 1
    %p350 = scmp.eq.s32.totalorder %s22, 5
    %p351 = scmp.ne.s32.totalorder %s346, %s348
    %p352 = scmp.eq.s32.totalorder %s22, 0
    %p353 = por %p351, %p352
    %p354 = scmp.ne.s32.totalorder %s346, %s348
    %p355 = scmp.eq.s32.totalorder %s27, 5
    %p356 = por %p354, %p355
    %p357 = scmp.ne.s32.totalorder %s348, %s349
    %p358 = scmp.eq.s32.totalorder %s27, 0
    %p359 = por %p357, %p358
    %p360 = scmp.ne.s32.totalorder %s348, %s349
    %p361 = scmp.eq.s32.totalorder %s28, 5
    %p362 = por %p360, %p361
    %p364 = scmp.ne.s32.totalorder %s349, %s363
    %p365 = scmp.eq.s32.totalorder %s28, 0
    %p366 = por %p364, %p365
    %s368 = sadd.s32 %s367, 1
    %p371 = scmp.eq.s32.totalorder %s22, 5
    %p372 = scmp.ne.s32.totalorder %s367, %s369
    %p373 = scmp.eq.s32.totalorder %s22, 0
    %p374 = por %p372, %p373
    %p375 = scmp.ne.s32.totalorder %s367, %s369
    %p376 = scmp.eq.s32.totalorder %s27, 5
    %p377 = por %p375, %p376
    %p378 = scmp.ne.s32.totalorder %s369, %s370
    %p379 = scmp.eq.s32.totalorder %s27, 0
    %p380 = por %p378, %p379
    %p381 = scmp.ne.s32.totalorder %s369, %s370
    %p382 = scmp.eq.s32.totalorder %s28, 5
    %p383 = por %p381, %p382
    %p385 = scmp.ne.s32.totalorder %s370, %s384
    %p386 = scmp.eq.s32.totalorder %s28, 0
    %p387 = por %p385, %p386
    %s389 = sadd.s32 %s388, 1
    %p392 = scmp.eq.s32.totalorder %s22, 5
    %p393 = scmp.ne.s32.totalorder %s388, %s390
    %p394 = scmp.eq.s32.totalorder %s22, 0
    %p395 = por %p393, %p394
    %p396 = scmp.ne.s32.totalorder %s388, %s390
    %p397 = scmp.eq.s32.totalorder %s27, 5
    %p398 = por %p396, %p397
    %p399 = scmp.ne.s32.totalorder %s390, %s391
    %p400 = scmp.eq.s32.totalorder %s27, 0
    %p401 = por %p399, %p400
    %p402 = scmp.ne.s32.totalorder %s390, %s391
    %p403 = scmp.eq.s32.totalorder %s28, 5
    %p404 = por %p402, %p403
    %p406 = scmp.ne.s32.totalorder %s391, %s405
    %p407 = scmp.eq.s32.totalorder %s28, 0
    %p408 = por %p406, %p407
    %s410 = sadd.s32 %s409, 1
    %p413 = scmp.eq.s32.totalorder %s22, 5
    %p414 = scmp.ne.s32.totalorder %s409, %s411
    %p415 = scmp.eq.s32.totalorder %s22, 0
    %p416 = por %p414, %p415
    %p417 = scmp.ne.s32.totalorder %s409, %s411
    %p418 = scmp.eq.s32.totalorder %s27, 5
    %p419 = por %p417, %p418
    %p420 = scmp.ne.s32.totalorder %s411, %s412
    %p421 = scmp.eq.s32.totalorder %s27, 0
    %p422 = por %p420, %p421
    %p423 = scmp.ne.s32.totalorder %s411, %s412
    %p424 = scmp.eq.s32.totalorder %s28, 5
    %p425 = por %p423, %p424
    %p427 = scmp.ne.s32.totalorder %s412, %s426
    %p428 = scmp.eq.s32.totalorder %s28, 0
    %p429 = por %p427, %p428
    %s430 = ssub.s32 %s29, %s41
    %p431 = scmp.eq.s32.totalorder %s430, 0
    %s433 = sadd.s32 %s432, 1
    %s434 = scalar_select %p431, %s432, %s433
    %p437 = pneg %p431
    %p438 = scmp.eq.s32.totalorder %s22, 5
    %p439 = por %p437, %p438
    %p440 = scmp.ne.s32.totalorder %s432, %s435
    %p441 = scmp.eq.s32.totalorder %s22, 0
    %p442 = por %p440, %p441
    %p443 = scmp.ne.s32.totalorder %s432, %s435
    %p444 = scmp.eq.s32.totalorder %s27, 5
    %p445 = por %p443, %p444
    %p446 = scmp.ne.s32.totalorder %s435, %s436
    %p447 = scmp.eq.s32.totalorder %s27, 0
    %p448 = por %p446, %p447
    %p449 = scmp.ne.s32.totalorder %s435, %s436
    %p450 = scmp.eq.s32.totalorder %s28, 5
    %p451 = por %p449, %p450
    %p453 = scmp.ne.s32.totalorder %s436, %s452
    %p454 = scmp.eq.s32.totalorder %s28, 0
    %p455 = por %p453, %p454
    %p456 = scmp.le.s32.totalorder 1, %s22
    %p457 = scmp.lt.s32.totalorder %s22, 7
    %p458 = pnand %p456, %p457
    %p459 = pneg %p458
    // Predicated region
    $region9: #{model_forward.3} parent=5 // pred_check
      _
    $region10: #{model_forward.3} parent=5 // pred_check_branch
      %461 = sbr.rel (%p458) target = $region12
    $region11: #{model_forward.3} parent=5 // pred_region
      %s462 = ssub.s32 %s22, 1
      // Predicated region
      $region13: #{model_forward.3} parent=11 // pred_check
        %p463 = pneg %p161
      $region14: #{model_forward.3} parent=11 // pred_check_branch
        %465 = sbr.rel (%p463) target = $region16
      $region15: #{model_forward.3} parent=11 // pred_region
        _
      $region16: #{model_forward.3} parent=11 // pred_fallthru
        _
      // Predicated region
      $region17: #{model_forward.3} parent=11 // pred_check
        %p466 = pneg %p182
      $region18: #{model_forward.3} parent=11 // pred_check_branch
        %468 = sbr.rel (%p466) target = $region20
      $region19: #{model_forward.3} parent=11 // pred_region
        _
      $region20: #{model_forward.3} parent=11 // pred_fallthru
        _
      // Predicated region
      $region21: #{model_forward.3} parent=11 // pred_check
        %p469 = pneg %p359
      $region22: #{model_forward.3} parent=11 // pred_check_branch
        %471 = sbr.rel (%p469) target = $region24
      $region23: #{model_forward.3} parent=11 // pred_region
        _
      $region24: #{model_forward.3} parent=11 // pred_fallthru
        _
      // Predicated region
      $region25: #{model_forward.3} parent=11 // pred_check
        %p472 = pneg %p380
      $region26: #{model_forward.3} parent=11 // pred_check_branch
        %474 = sbr.rel (%p472) target = $region28
      $region27: #{model_forward.3} parent=11 // pred_region
        _
      $region28: #{model_forward.3} parent=11 // pred_fallthru
        _
      // Predicated region
      $region29: #{model_forward.3} parent=11 // pred_check
        %p475 = pneg %p401
      $region30: #{model_forward.3} parent=11 // pred_check_branch
        %477 = sbr.rel (%p475) target = $region32
      $region31: #{model_forward.3} parent=11 // pred_region
        _
      $region32: #{model_forward.3} parent=11 // pred_fallthru
        _
      // Predicated region
      $region33: #{model_forward.3} parent=11 // pred_check
        %p478 = pneg %p422
      $region34: #{model_forward.3} parent=11 // pred_check_branch
        %480 = sbr.rel (%p478) target = $region36
      $region35: #{model_forward.3} parent=11 // pred_region
        _
      $region36: #{model_forward.3} parent=11 // pred_fallthru
        _
    $region12: #{model_forward.3} parent=5 // pred_fallthru
      _
    %p481 = scmp.lt.s32.totalorder %s22, 6
    // Predicated region
    $region37: #{model_forward.3} parent=5 // pred_check
      %p482 = pneg %p481
    $region38: #{model_forward.3} parent=5 // pred_check_branch
      %484 = sbr.rel (%p482) target = $region40
    $region39: #{model_forward.3} parent=5 // pred_region
      // Predicated region
      $region41: #{model_forward.3} parent=39 // pred_check
        %p485 = pneg %p54
      $region42: #{model_forward.3} parent=39 // pred_check_branch
        %487 = sbr.rel (%p485) target = $region44
      $region43: #{model_forward.3} parent=39 // pred_region
        %p488 = scmp.lt.s32.totalorder %s29, 1
        %s489 = scalar_select %p488, %s29, 1
        %s490 = smul.addr %s489, 2
        %s491 = smul.addr %s490, 4
        %s492 = scalar_lea.vmem %s0, %s491
      $region44: #{model_forward.3} parent=39 // pred_fallthru
        _
      // Predicated region
      $region45: #{model_forward.3} parent=39 // pred_check
        %p493 = pneg %p80
      $region46: #{model_forward.3} parent=39 // pred_check_branch
        %495 = sbr.rel (%p493) target = $region48
      $region47: #{model_forward.3} parent=39 // pred_region
        %p496 = scmp.lt.s32.totalorder %s29, 1
        %s497 = scalar_select %p496, %s29, 1
        %s498 = smul.addr %s497, 4
        %s499 = smul.addr %s498, 4
        %s500 = scalar_lea.vmem %s1, %s499
      $region48: #{model_forward.3} parent=39 // pred_fallthru
        _
      // Predicated region
      $region49: #{model_forward.3} parent=39 // pred_check
        %p501 = pneg %p106
      $region50: #{model_forward.3} parent=39 // pred_check_branch
        %503 = sbr.rel (%p501) target = $region52
      $region51: #{model_forward.3} parent=39 // pred_region
        %p504 = scmp.lt.s32.totalorder %s29, 1
        %s505 = scalar_select %p504, %s29, 1
        %s506 = smul.addr %s505, 2
        %s507 = smul.addr %s506, 8
        %s508 = scalar_lea.vmem %s2, %s507
      $region52: #{model_forward.3} parent=39 // pred_fallthru
        _
      // Predicated region
      $region53: #{model_forward.3} parent=39 // pred_check
        %p509 = pneg %p134
      $region54: #{model_forward.3} parent=39 // pred_check_branch
        %511 = sbr.rel (%p509) target = $region56
      $region55: #{model_forward.3} parent=39 // pred_region
        %p512 = scmp.lt.s32.totalorder %s29, 1
        %s513 = scalar_select %p512, %s29, 1
        %p514 = scmp.lt.s32.totalorder %s30, 2
        %s515 = scalar_select %p514, %s30, 2
        %s516 = smul.addr %s515, 4
        %s517 = smul.addr %s513, 12
        %s518 = sadd.s32 %s516, %s517
        %s519 = smul.addr %s518, 8
        %s520 = scalar_lea.vmem %s3, %s519
      $region56: #{model_forward.3} parent=39 // pred_fallthru
        _
      // Predicated region
      $region57: #{model_forward.3} parent=39 // pred_check
        %p521 = pneg %p202
      $region58: #{model_forward.3} parent=39 // pred_check_branch
        %523 = sbr.rel (%p521) target = $region60
      $region59: #{model_forward.3} parent=39 // pred_region
        %p524 = scmp.lt.s32.totalorder %s30, 2
        %s525 = scalar_select %p524, %s30, 2
        %s526 = smul.addr %s525, 8
        %s527 = smul.addr %s526, 4
        %s528 = scalar_lea.vmem %s6, %s527
      $region60: #{model_forward.3} parent=39 // pred_fallthru
        _
      // Predicated region
      $region61: #{model_forward.3} parent=39 // pred_check
        %p529 = pneg %p228
      $region62: #{model_forward.3} parent=39 // pred_check_branch
        %531 = sbr.rel (%p529) target = $region64
      $region63: #{model_forward.3} parent=39 // pred_region
        %p532 = scmp.lt.s32.totalorder %s30, 2
        %s533 = scalar_select %p532, %s30, 2
        %s534 = smul.addr %s533, 8
        %s535 = smul.addr %s534, 8
        %s536 = scalar_lea.vmem %s7, %s535
      $region64: #{model_forward.3} parent=39 // pred_fallthru
        _
      // Predicated region
      $region65: #{model_forward.3} parent=39 // pred_check
        %p537 = pneg %p254
      $region66: #{model_forward.3} parent=39 // pred_check_branch
        %539 = sbr.rel (%p537) target = $region68
      $region67: #{model_forward.3} parent=39 // pred_region
        %p540 = scmp.lt.s32.totalorder %s30, 2
        %s541 = scalar_select %p540, %s30, 2
        %s542 = smul.addr %s541, 8
        %s543 = smul.addr %s542, 4
        %s544 = scalar_lea.vmem %s8, %s543
      $region68: #{model_forward.3} parent=39 // pred_fallthru
        _
      // Predicated region
      $region69: #{model_forward.3} parent=39 // pred_check
        %p545 = pneg %p280
      $region70: #{model_forward.3} parent=39 // pred_check_branch
        %547 = sbr.rel (%p545) target = $region72
      $region71: #{model_forward.3} parent=39 // pred_region
        %p548 = scmp.lt.s32.totalorder %s30, 2
        %s549 = scalar_select %p548, %s30, 2
        %s550 = smul.addr %s549, 8
        %s551 = smul.addr %s550, 8
        %s552 = scalar_lea.vmem %s9, %s551
      $region72: #{model_forward.3} parent=39 // pred_fallthru
        _
      // Predicated region
      $region73: #{model_forward.3} parent=39 // pred_check
        %p553 = pneg %p306
      $region74: #{model_forward.3} parent=39 // pred_check_branch
        %555 = sbr.rel (%p553) target = $region76
      $region75: #{model_forward.3} parent=39 // pred_region
        %p556 = scmp.lt.s32.totalorder %s30, 2
        %s557 = scalar_select %p556, %s30, 2
        %s558 = smul.addr %s557, 8
        %s559 = smul.addr %s558, 4
        %s560 = scalar_lea.vmem %s10, %s559
      $region76: #{model_forward.3} parent=39 // pred_fallthru
        _
      // Predicated region
      $region77: #{model_forward.3} parent=39 // pred_check
        %p561 = pneg %p332
      $region78: #{model_forward.3} parent=39 // pred_check_branch
        %563 = sbr.rel (%p561) target = $region80
      $region79: #{model_forward.3} parent=39 // pred_region
        %p564 = scmp.lt.s32.totalorder %s30, 2
        %s565 = scalar_select %p564, %s30, 2
        %s566 = smul.addr %s565, 8
        %s567 = smul.addr %s566, 8
        %s568 = scalar_lea.vmem %s11, %s567
      $region80: #{model_forward.3} parent=39 // pred_fallthru
        _
    $region40: #{model_forward.3} parent=5 // pred_fallthru
      _
    %p569 = scmp.le.s32.totalorder 1, %s22
    %p570 = scmp.lt.s32.totalorder %s22, 7
    %p571 = pnand %p569, %p570
    %p572 = pneg %p571
    // Predicated region
    $region81: #{model_forward.3} parent=5 // pred_check
      _
    $region82: #{model_forward.3} parent=5 // pred_check_branch
      %574 = sbr.rel (%p571) target = $region84
    $region83: #{model_forward.3} parent=5 // pred_region
      %s575 = ssub.s32 %s22, 1
      %p576 = scmp.lt.s32.totalorder %s31, 1
      %s577 = scalar_select %p576, %s31, 1
      %s578 = smul.addr %s577, 2
      %s579 = smul.addr %s578, 4
      %s580 = scalar_lea.vmem %s0, %s579
      %p581 = pneg %p60
      %p582 = pneg %p57
      %p583 = scmp.lt.s32.totalorder %s31, 1
      %s584 = scalar_select %p583, %s31, 1
      %s585 = smul.addr %s584, 4
      %s586 = smul.addr %s585, 4
      %s587 = scalar_lea.vmem %s1, %s586
      %p588 = pneg %p86
      %p589 = pneg %p83
      %p590 = scmp.lt.s32.totalorder %s31, 1
      %s591 = scalar_select %p590, %s31, 1
      %s592 = smul.addr %s591, 2
      %s593 = smul.addr %s592, 8
      %s594 = scalar_lea.vmem %s2, %s593
      %p595 = pneg %p112
      %p596 = pneg %p109
      %p597 = scmp.lt.s32.totalorder %s31, 1
      %s598 = scalar_select %p597, %s31, 1
      %p599 = scmp.lt.s32.totalorder %s32, 2
      %s600 = scalar_select %p599, %s32, 2
      %s601 = smul.addr %s600, 4
      %s602 = smul.addr %s598, 12
      %s603 = sadd.s32 %s601, %s602
      %s604 = smul.addr %s603, 8
      %s605 = scalar_lea.vmem %s3, %s604
      %p606 = pneg %p140
      %p607 = pneg %p137
      %p608 = pneg %p161
      %p609 = pneg %p158
      %p610 = pneg %p182
      %p611 = pneg %p179
      %p612 = scmp.lt.s32.totalorder %s32, 2
      %s613 = scalar_select %p612, %s32, 2
      %s614 = smul.addr %s613, 8
      %s615 = smul.addr %s614, 4
      %s616 = scalar_lea.vmem %s6, %s615
      %p617 = pneg %p208
      %p618 = pneg %p205
      %p619 = scmp.lt.s32.totalorder %s32, 2
      %s620 = scalar_select %p619, %s32, 2
      %s621 = smul.addr %s620, 8
      %s622 = smul.addr %s621, 8
      %s623 = scalar_lea.vmem %s7, %s622
      %p624 = pneg %p234
      %p625 = pneg %p231
      %p626 = scmp.lt.s32.totalorder %s32, 2
      %s627 = scalar_select %p626, %s32, 2
      %s628 = smul.addr %s627, 8
      %s629 = smul.addr %s628, 4
      %s630 = scalar_lea.vmem %s8, %s629
      %p631 = pneg %p260
      %p632 = pneg %p257
      %p633 = scmp.lt.s32.totalorder %s32, 2
      %s634 = scalar_select %p633, %s32, 2
      %s635 = smul.addr %s634, 8
      %s636 = smul.addr %s635, 8
      %s637 = scalar_lea.vmem %s9, %s636
      %p638 = pneg %p286
      %p639 = pneg %p283
      %p640 = scmp.lt.s32.totalorder %s32, 2
      %s641 = scalar_select %p640, %s32, 2
      %s642 = smul.addr %s641, 8
      %s643 = smul.addr %s642, 4
      %s644 = scalar_lea.vmem %s10, %s643
      %p645 = pneg %p312
      %p646 = pneg %p309
      %p647 = scmp.lt.s32.totalorder %s32, 2
      %s648 = scalar_select %p647, %s32, 2
      %s649 = smul.addr %s648, 8
      %s650 = smul.addr %s649, 8
      %s651 = scalar_lea.vmem %s11, %s650
      %p652 = pneg %p338
      %p653 = pneg %p335
      %p654 = pneg %p359
      %p655 = pneg %p356
      %p656 = pneg %p380
      %p657 = pneg %p377
      %p658 = pneg %p401
      %p659 = pneg %p398
      %p660 = pneg %p422
      %p661 = pneg %p419
      %p662 = pneg %p448
      %p663 = pneg %p445
      %p664 = scmp.lt.s32.totalorder %s31, 1
      %s665 = scalar_select %p664, %s31, 1
      %s666 = smul.addr %s665, 8
      %s667 = scalar_lea.vmem %s16, %s666
      %p668 = scmp.lt.s32.totalorder %s31, 1
      %s669 = scalar_select %p668, %s31, 1
      %s670 = smul.addr %s669, 2
      %s671 = smul.addr %s670, 4
      %s672 = scalar_lea.vmem %s0, %s671
      %p673 = scmp.lt.s32.totalorder %s31, 1
      %s674 = scalar_select %p673, %s31, 1
      %s675 = smul.addr %s674, 4
      %s676 = smul.addr %s675, 4
      %s677 = scalar_lea.vmem %s1, %s676
      %p678 = scmp.lt.s32.totalorder %s31, 1
      %s679 = scalar_select %p678, %s31, 1
      %s680 = smul.addr %s679, 2
      %s681 = smul.addr %s680, 8
      %s682 = scalar_lea.vmem %s2, %s681
      %p683 = scmp.lt.s32.totalorder %s31, 1
      %s684 = scalar_select %p683, %s31, 1
      %p685 = scmp.lt.s32.totalorder %s32, 2
      %s686 = scalar_select %p685, %s32, 2
      %s687 = smul.addr %s686, 4
      %s688 = smul.addr %s684, 12
      %s689 = sadd.s32 %s687, %s688
      %s690 = smul.addr %s689, 8
      %s691 = scalar_lea.vmem %s3, %s690
      %p692 = scmp.lt.s32.totalorder %s32, 2
      %s693 = scalar_select %p692, %s32, 2
      %s694 = smul.addr %s693, 8
      %s695 = smul.addr %s694, 4
      %s696 = scalar_lea.vmem %s6, %s695
      %p697 = scmp.lt.s32.totalorder %s32, 2
      %s698 = scalar_select %p697, %s32, 2
      %s699 = smul.addr %s698, 8
      %s700 = smul.addr %s699, 8
      %s701 = scalar_lea.vmem %s7, %s700
      %p702 = scmp.lt.s32.totalorder %s32, 2
      %s703 = scalar_select %p702, %s32, 2
      %s704 = smul.addr %s703, 8
      %s705 = smul.addr %s704, 4
      %s706 = scalar_lea.vmem %s8, %s705
      %p707 = scmp.lt.s32.totalorder %s32, 2
      %s708 = scalar_select %p707, %s32, 2
      %s709 = smul.addr %s708, 8
      %s710 = smul.addr %s709, 8
      %s711 = scalar_lea.vmem %s9, %s710
      %p712 = scmp.lt.s32.totalorder %s32, 2
      %s713 = scalar_select %p712, %s32, 2
      %s714 = smul.addr %s713, 8
      %s715 = smul.addr %s714, 4
      %s716 = scalar_lea.vmem %s10, %s715
      %p717 = scmp.lt.s32.totalorder %s32, 2
      %s718 = scalar_select %p717, %s32, 2
      %s719 = smul.addr %s718, 8
      %s720 = smul.addr %s719, 8
      %s721 = scalar_lea.vmem %s11, %s720
      %p722 = scmp.lt.s32.totalorder %s31, 1
      %s723 = scalar_select %p722, %s31, 1
      %s724 = smul.addr %s723, 8
      %s725 = scalar_lea.vmem %s16, %s724
      %p727 = scmp.eq.s32.totalorder %s32, 0
      // Predicated region
      $region85: #{model_forward.3} parent=83 // pred_check
        %p728 = pneg %p727
      $region86: #{model_forward.3} parent=83 // pred_check_branch
        %730 = sbr.rel (%p728) target = $region88
      $region87: #{model_forward.3} parent=83 // pred_region
        %v731 = vld [vmem:[%s4] sm:$0xf]
        %v732 = vld [vmem:[%s4 + $0x4] sm:$0xf]
        %v733 = vld [vmem:[%s4 + $0x8] sm:$0xf]
        %v734 = vld [vmem:[%s4 + $0xc] sm:$0xf]
        %v735 = vld [vmem:[%s672] sm:$0xf]
        %v736 = vld [vmem:[%s672 + $0x4] sm:$0xf]
        %v737 = vld [vmem:[%s5] sm:$0xff]
        %v738 = vld [vmem:[%s5 + $0x8] sm:$0xff]
        %v739 = vld [vmem:[%s5 + $0x10] sm:$0xff]
        %v740 = vld [vmem:[%s5 + $0x18] sm:$0xff]
        %742 = vset.pattern.permute.xlu0 0
        %743 = vperm.xlu0 %742, %v737
        %v744 = vpop.permute.xlu0 %743
        %747 = vset.pattern.permute.xlu0 0
        %748 = vperm.xlu0 %747, %v738
        %v749 = vpop.permute.xlu0 %748
        %752 = vset.pattern.permute.xlu0 0
        %753 = vperm.xlu0 %752, %v739
        %v754 = vpop.permute.xlu0 %753
        %757 = vset.pattern.permute.xlu0 0
        %758 = vperm.xlu0 %757, %v740
        %v759 = vpop.permute.xlu0 %758
        %v765 = vunpack.c.l.b16 %v731
        %v766 = vunpack.c.l.b16 %v732
        %v767 = vunpack.c.l.b16 %v733
        %v768 = vunpack.c.l.b16 %v734
        %v769 = vpack.c.b16 %v766, %v765
        %v770 = vpack.c.b16 %v768, %v767
        %v773 = vunpack.c.l.b16 %v735
        %v774 = vunpack.c.l.b16 %v736
        %v775 = vpack.c.b16 %v774, %v773
        %vm777 = vcmask 130048
        %v779 = vsel %vm777, %v769, 0
        %v782 = vsel %vm777, %v770, 0
        %784 = vmatprep.subr.bf16.mxu0 0
        %785 = vmatpush1.bf16.msra.mxu0 %v775
        %786 = vmatprep.subr.bf16.mxu0 0
        %787 = vmatpush1.bf16.msra.mxu0 0
        %788 = vmatprep.subr.bf16.mxu0 0
        %789 = vmatpush1.bf16.msra.mxu0 0
        %790 = vmatprep.subr.bf16.mxu0 0
        %791 = vmatpush1.bf16.msra.mxu0 0
        %792 = vmatprep.subr.bf16.mxu0 0
        %793 = vmatpush1.bf16.msra.mxu0 0
        %794 = vmatprep.subr.bf16.mxu0 0
        %795 = vmatpush1.bf16.msra.mxu0 0
        %796 = vmatprep.subr.bf16.mxu0 0
        %797 = vmatpush1.bf16.msra.mxu0 0
        %798 = vmatprep.subr.bf16.mxu0 0
        %799 = vmatpush1.bf16.msra.mxu0 0
        %800 = vmatprep.subr.bf16.mxu0 0
        %801 = vmatpush1.bf16.msra.mxu0 0
        %802 = vmatprep.subr.bf16.mxu0 0
        %803 = vmatpush1.bf16.msra.mxu0 0
        %804 = vmatprep.subr.bf16.mxu0 0
        %805 = vmatpush1.bf16.msra.mxu0 0
        %806 = vmatprep.subr.bf16.mxu0 0
        %807 = vmatpush1.bf16.msra.mxu0 0
        %808 = vmatprep.subr.bf16.mxu0 0
        %809 = vmatpush1.bf16.msra.mxu0 0
        %810 = vmatprep.subr.bf16.mxu0 0
        %811 = vmatpush1.bf16.msra.mxu0 0
        %812 = vmatprep.subr.bf16.mxu0 0
        %813 = vmatpush1.bf16.msra.mxu0 0
        %814 = vmatprep.subr.bf16.mxu0 0
        %815 = vmatpush1.bf16.msra.mxu0 0
        %816 = vmatprep.mubr.bf16.mxu0 0
        %817 = vmatmul.mubr.bf16.gmra.mrb[0].mxu0 %v779
        %v818 = vpop.f32.mrb[0].mxu0
        %v819 = vadd.f32 %v744, %v818
        %v820 = vpop.f32.mrb[0].mxu0
        %v821 = vpop.f32.mrb[0].mxu0
        %v822 = vadd.f32 %v749, %v821
        %v823 = vpop.f32.mrb[0].mxu0
        %824 = vmatprep.mubr.bf16.mxu0 0
        %825 = vmatmul.mubr.bf16.gmra.mrb[0].mxu0 %v782
        %v826 = vpop.f32.mrb[0].mxu0
        %v827 = vadd.f32 %v754, %v826
        %v828 = vpop.f32.mrb[0].mxu0
        %v829 = vpop.f32.mrb[0].mxu0
        %v830 = vadd.f32 %v759, %v829
        %v831 = vpop.f32.mrb[0].mxu0
        %832 = vdwg.mxu0
        %v833 = vmax.f32 %v819, 0.0
        %v834 = vmax.f32 %v822, 0.0
        %v835 = vmax.f32 %v827, 0.0
        %v836 = vmax.f32 %v830, 0.0
        %837 = vst [vmem:[#allocation2] sm:$0xff] %v833
        %838 = vst [vmem:[#allocation2 + $0x8] sm:$0xff] %v834
        %839 = vst [vmem:[#allocation2 + $0x10] sm:$0xff] %v835
        %840 = vst [vmem:[#allocation2 + $0x18] sm:$0xff] %v836
        %841 = vst [vmem:[#allocation3] sm:$0xff] 0.0
        %842 = vst [vmem:[#allocation3 + $0x8] sm:$0xff] 0.0
        %843 = vst [vmem:[#allocation3 + $0x10] sm:$0xff] 0.0
        %844 = vst [vmem:[#allocation3 + $0x18] sm:$0xff] 0.0
        %845 = vst [vmem:[%s725] sm:$0xff] 0.0
      $region88: #{model_forward.3} parent=83 // pred_fallthru
        _
      %v846 = vld [vmem:[#allocation2] sm:$0xff]
      %v847 = vld [vmem:[#allocation2 + $0x8] sm:$0xff]
      %v848 = vld [vmem:[#allocation2 + $0x10] sm:$0xff]
      %v849 = vld [vmem:[#allocation2 + $0x18] sm:$0xff]
      %v850 = vld [vmem:[%s691] sm:$0xff]
      %v851 = vld [vmem:[%s691 + $0x8] sm:$0xff]
      %v852 = vld [vmem:[%s691 + $0x10] sm:$0xff]
      %v853 = vld [vmem:[%s691 + $0x18] sm:$0xff]
      %855 = vset.pattern.permute.xlu0 0
      %856 = vperm.xlu0 %855, %v850
      %v857 = vpop.permute.xlu0 %856
      %860 = vset.pattern.permute.xlu0 0
      %861 = vperm.xlu0 %860, %v851
      %v862 = vpop.permute.xlu0 %861
      %865 = vset.pattern.permute.xlu0 0
      %866 = vperm.xlu0 %865, %v852
      %v867 = vpop.permute.xlu0 %866
      %870 = vset.pattern.permute.xlu0 0
      %871 = vperm.xlu0 %870, %v853
      %v872 = vpop.permute.xlu0 %871
      %v874 = vadd.f32 %v846, %v857
      %v875 = vadd.f32 %v847, %v862
      %v876 = vadd.f32 %v848, %v867
      %v877 = vadd.f32 %v849, %v872
      %v878 = vpack.c.bf16 %v875, %v874
      %v879 = vpack.c.bf16 %v877, %v876
      %880 = vst [vmem:[#allocation4 + $0x10] sm:$0xff] %v878
      %881 = vst [vmem:[#allocation4 + $0x18] sm:$0xff] %v879
      %v882 = vlaneseq
      %v883 = vand.u32 %v882, 127
      %p884 = scmp.lt.s32.totalorder %s32, 0
      %s885 = ssub.s32 0, %s32
      %s886 = scalar_select %p884, %s885, %s32
      %s887 = sdiv.u32.pop %s886, 3
      %s888 = srem.u32.pop %s886, 3
      %s889 = ssub.s32 0, %s888
      %s890 = scalar_select %p884, %s889, %s888
      %p891 = scmp.ne.s32.totalorder %s890, 0
      %p892 = scmp.lt.s32.totalorder %s890, 0
      %p893 = pnand %p892, %p891
      %p894 = pneg %p893
      %s895 = sadd.s32 %s890, 3
      %s896 = scalar_select %p894, %s895, %s890
      %p897 = scmp.eq.s32.totalorder %s896, 0
      // Predicated region
      $region89: #{model_forward.3} parent=83 // pred_check
        %p898 = pneg %p897
      $region90: #{model_forward.3} parent=83 // pred_check_branch
        %900 = sbr.rel (%p898) target = $region92
      $region91: #{model_forward.3} parent=83 // pred_region
        %901 = vrot.lane.b32.xlu0 %v874, 1
        %v902 = vpop.permute.xlu0 %901
        %903 = vrot.lane.b32.xlu0 %v875, 1
        %v904 = vpop.permute.xlu0 %903
        %905 = vrot.lane.b32.xlu0 %v876, 1
        %v906 = vpop.permute.xlu0 %905
        %907 = vrot.lane.b32.xlu0 %v877, 1
        %v908 = vpop.permute.xlu0 %907
        %909 = vrot.lane.b32.xlu0 %v874, 127
        %v910 = vpop.permute.xlu0 %909
        %911 = vrot.lane.b32.xlu0 %v875, 127
        %v912 = vpop.permute.xlu0 %911
        %913 = vrot.lane.b32.xlu0 %v876, 127
        %v914 = vpop.permute.xlu0 %913
        %915 = vrot.lane.b32.xlu0 %v877, 127
        %v916 = vpop.permute.xlu0 %915
        %vm917 = vcmp.ge.s32.totalorder %v883, 1
        %v918 = vsel %vm917, 1, 0
        %vm919 = vcmp.eq.s32.totalorder %v918, 1
        %v920 = vsel %vm919, %v902, 0.0
        %v921 = vsel %vm919, %v904, 0.0
        %v922 = vsel %vm919, %v906, 0.0
        %v923 = vsel %vm919, %v908, 0.0
        %v924 = vpack.c.bf16 %v921, %v920
        %v925 = vpack.c.bf16 %v923, %v922
        %926 = vst [vmem:[#allocation4] sm:$0xff] %v924
        %927 = vst [vmem:[#allocation4 + $0x8] sm:$0xff] %v925
        %vm928 = vcmp.lt.s32.totalorder %v883, 127
        %v929 = vsel %vm928, 1, 0
        %vm930 = vcmp.eq.s32.totalorder %v929, 1
        %v931 = vsel %vm930, %v910, 0.0
        %v932 = vsel %vm930, %v912, 0.0
        %v933 = vsel %vm930, %v914, 0.0
        %v934 = vsel %vm930, %v916, 0.0
        %v935 = vpack.c.bf16 %v932, %v931
        %v936 = vpack.c.bf16 %v934, %v933
        %937 = vst [vmem:[#allocation4 + $0x20] sm:$0xff] %v935
        %938 = vst [vmem:[#allocation4 + $0x28] sm:$0xff] %v936
      $region92: #{model_forward.3} parent=83 // pred_fallthru
        _
      %p939 = scmp.eq.s32.totalorder %s896, 1
      // Predicated region
      $region93: #{model_forward.3} parent=83 // pred_check
        %p940 = pneg %p939
      $region94: #{model_forward.3} parent=83 // pred_check_branch
        %942 = sbr.rel (%p940) target = $region96
      $region95: #{model_forward.3} parent=83 // pred_region
        %943 = vrot.lane.b32.xlu0 %v874, 2
        %v944 = vpop.permute.xlu0 %943
        %945 = vrot.lane.b32.xlu0 %v875, 2
        %v946 = vpop.permute.xlu0 %945
        %947 = vrot.lane.b32.xlu0 %v876, 2
        %v948 = vpop.permute.xlu0 %947
        %949 = vrot.lane.b32.xlu0 %v877, 2
        %v950 = vpop.permute.xlu0 %949
        %951 = vrot.lane.b32.xlu0 %v874, 126
        %v952 = vpop.permute.xlu0 %951
        %953 = vrot.lane.b32.xlu0 %v875, 126
        %v954 = vpop.permute.xlu0 %953
        %955 = vrot.lane.b32.xlu0 %v876, 126
        %v956 = vpop.permute.xlu0 %955
        %957 = vrot.lane.b32.xlu0 %v877, 126
        %v958 = vpop.permute.xlu0 %957
        %vm959 = vcmp.ge.s32.totalorder %v883, 2
        %v960 = vsel %vm959, 1, 0
        %vm961 = vcmp.eq.s32.totalorder %v960, 1
        %v962 = vsel %vm961, %v944, 0.0
        %v963 = vsel %vm961, %v946, 0.0
        %v964 = vsel %vm961, %v948, 0.0
        %v965 = vsel %vm961, %v950, 0.0
        %v966 = vpack.c.bf16 %v963, %v962
        %v967 = vpack.c.bf16 %v965, %v964
        %968 = vst [vmem:[#allocation4] sm:$0xff] %v966
        %969 = vst [vmem:[#allocation4 + $0x8] sm:$0xff] %v967
        %vm970 = vcmp.lt.s32.totalorder %v883, 126
        %v971 = vsel %vm970, 1, 0
        %vm972 = vcmp.eq.s32.totalorder %v971, 1
        %v973 = vsel %vm972, %v952, 0.0
        %v974 = vsel %vm972, %v954, 0.0
        %v975 = vsel %vm972, %v956, 0.0
        %v976 = vsel %vm972, %v958, 0.0
        %v977 = vpack.c.bf16 %v974, %v973
        %v978 = vpack.c.bf16 %v976, %v975
        %979 = vst [vmem:[#allocation4 + $0x20] sm:$0xff] %v977
        %980 = vst [vmem:[#allocation4 + $0x28] sm:$0xff] %v978
      $region96: #{model_forward.3} parent=83 // pred_fallthru
        _
      %p981 = scmp.eq.s32.totalorder %s896, 2
      // Predicated region
      $region97: #{model_forward.3} parent=83 // pred_check
        %p982 = pneg %p981
      $region98: #{model_forward.3} parent=83 // pred_check_branch
        %984 = sbr.rel (%p982) target = $region100
      $region99: #{model_forward.3} parent=83 // pred_region
        %985 = vrot.lane.b32.xlu0 %v874, 4
        %v986 = vpop.permute.xlu0 %985
        %987 = vrot.lane.b32.xlu0 %v875, 4
        %v988 = vpop.permute.xlu0 %987
        %989 = vrot.lane.b32.xlu0 %v876, 4
        %v990 = vpop.permute.xlu0 %989
        %991 = vrot.lane.b32.xlu0 %v877, 4
        %v992 = vpop.permute.xlu0 %991
        %993 = vrot.lane.b32.xlu0 %v874, 124
        %v994 = vpop.permute.xlu0 %993
        %995 = vrot.lane.b32.xlu0 %v875, 124
        %v996 = vpop.permute.xlu0 %995
        %997 = vrot.lane.b32.xlu0 %v876, 124
        %v998 = vpop.permute.xlu0 %997
        %999 = vrot.lane.b32.xlu0 %v877, 124
        %v1000 = vpop.permute.xlu0 %999
        %vm1001 = vcmp.ge.s32.totalorder %v883, 4
        %v1002 = vsel %vm1001, 1, 0
        %vm1003 = vcmp.eq.s32.totalorder %v1002, 1
        %v1004 = vsel %vm1003, %v986, 0.0
        %v1005 = vsel %vm1003, %v988, 0.0
        %v1006 = vsel %vm1003, %v990, 0.0
        %v1007 = vsel %vm1003, %v992, 0.0
        %v1008 = vpack.c.bf16 %v1005, %v1004
        %v1009 = vpack.c.bf16 %v1007, %v1006
        %1010 = vst [vmem:[#allocation4] sm:$0xff] %v1008
        %1011 = vst [vmem:[#allocation4 + $0x8] sm:$0xff] %v1009
        %vm1012 = vcmp.lt.s32.totalorder %v883, 124
        %v1013 = vsel %vm1012, 1, 0
        %vm1014 = vcmp.eq.s32.totalorder %v1013, 1
        %v1015 = vsel %vm1014, %v994, 0.0
        %v1016 = vsel %vm1014, %v996, 0.0
        %v1017 = vsel %vm1014, %v998, 0.0
        %v1018 = vsel %vm1014, %v1000, 0.0
        %v1019 = vpack.c.bf16 %v1016, %v1015
        %v1020 = vpack.c.bf16 %v1018, %v1017
        %1021 = vst [vmem:[#allocation4 + $0x20] sm:$0xff] %v1019
        %1022 = vst [vmem:[#allocation4 + $0x28] sm:$0xff] %v1020
      $region100: #{model_forward.3} parent=83 // pred_fallthru
        _
      %v1023 = vld [vmem:[%s696] sm:$0xf]
      %v1024 = vld [vmem:[%s696 + $0x4] sm:$0xf]
      %v1025 = vld [vmem:[%s696 + $0x8] sm:$0xf]
      %v1026 = vld [vmem:[%s696 + $0xc] sm:$0xf]
      %v1027 = vld [vmem:[%s696 + $0x10] sm:$0xf]
      %v1028 = vld [vmem:[%s696 + $0x14] sm:$0xf]
      %v1029 = vld [vmem:[%s696 + $0x18] sm:$0xf]
      %v1030 = vld [vmem:[%s696 + $0x1c] sm:$0xf]
      %v1031 = vld [vmem:[#allocation4] sm:$0xff]
      %v1032 = vld [vmem:[#allocation4 + $0x8] sm:$0xff]
      %v1033 = vld [vmem:[#allocation4 + $0x10] sm:$0xff]
      %v1034 = vld [vmem:[#allocation4 + $0x18] sm:$0xff]
      %v1035 = vld [vmem:[#allocation4 + $0x20] sm:$0xff]
      %v1036 = vld [vmem:[#allocation4 + $0x28] sm:$0xff]
      %v1037 = vld [vmem:[%s701] sm:$0xff]
      %v1038 = vld [vmem:[%s701 + $0x8] sm:$0xff]
      %v1039 = vld [vmem:[%s701 + $0x10] sm:$0xff]
      %v1040 = vld [vmem:[%s701 + $0x18] sm:$0xff]
      %v1041 = vld [vmem:[%s701 + $0x20] sm:$0xff]
      %v1042 = vld [vmem:[%s701 + $0x28] sm:$0xff]
      %v1043 = vld [vmem:[%s701 + $0x30] sm:$0xff]
      %v1044 = vld [vmem:[%s701 + $0x38] sm:$0xff]
      %1046 = vset.pattern.permute.xlu0 0
      %1047 = vperm.xlu0 %1046, %v1037
      %v1048 = vpop.permute.xlu0 %1047
      %1051 = vset.pattern.permute.xlu0 0
      %1052 = vperm.xlu0 %1051, %v1038
      %v1053 = vpop.permute.xlu0 %1052
      %1056 = vset.pattern.permute.xlu0 0
      %1057 = vperm.xlu0 %1056, %v1039
      %v1058 = vpop.permute.xlu0 %1057
      %1061 = vset.pattern.permute.xlu0 0
      %1062 = vperm.xlu0 %1061, %v1040
      %v1063 = vpop.permute.xlu0 %1062
      %1066 = vset.pattern.permute.xlu0 0
      %1067 = vperm.xlu0 %1066, %v1041
      %v1068 = vpop.permute.xlu0 %1067
      %1071 = vset.pattern.permute.xlu0 0
      %1072 = vperm.xlu0 %1071, %v1042
      %v1073 = vpop.permute.xlu0 %1072
      %1076 = vset.pattern.permute.xlu0 0
      %1077 = vperm.xlu0 %1076, %v1043
      %v1078 = vpop.permute.xlu0 %1077
      %1081 = vset.pattern.permute.xlu0 0
      %1082 = vperm.xlu0 %1081, %v1044
      %v1083 = vpop.permute.xlu0 %1082
      %v1093 = vunpack.c.l.b16 %v1023
      %v1094 = vunpack.c.l.b16 %v1024
      %v1095 = vunpack.c.l.b16 %v1025
      %v1096 = vunpack.c.l.b16 %v1026
      %v1097 = vunpack.c.l.b16 %v1027
      %v1098 = vunpack.c.l.b16 %v1028
      %v1099 = vunpack.c.l.b16 %v1029
      %v1100 = vunpack.c.l.b16 %v1030
      %v1101 = vpack.c.b16 %v1094, %v1093
      %v1102 = vpack.c.b16 %v1096, %v1095
      %v1103 = vpack.c.b16 %v1098, %v1097
      %v1104 = vpack.c.b16 %v1100, %v1099
      %vm1105 = vcmask 785408
      %v1107 = vsel %vm1105, %v1101, 0
      %v1110 = vsel %vm1105, %v1102, 0
      %v1113 = vsel %vm1105, %v1103, 0
      %v1116 = vsel %vm1105, %v1104, 0
      %1118 = vmatprep.subr.bf16.mxu0 0
      %1119 = vmatpush1.bf16.msra.mxu0 %v1031
      %1120 = vmatprep.subr.bf16.mxu0 0
      %1121 = vmatpush1.bf16.msra.mxu0 %v1032
      %1122 = vmatprep.subr.bf16.mxu0 0
      %1123 = vmatpush1.bf16.msra.mxu0 %v1033
      %1124 = vmatprep.subr.bf16.mxu0 0
      %1125 = vmatpush1.bf16.msra.mxu0 %v1034
      %1126 = vmatprep.subr.bf16.mxu0 0
      %1127 = vmatpush1.bf16.msra.mxu0 %v1035
      %1128 = vmatprep.subr.bf16.mxu0 0
      %1129 = vmatpush1.bf16.msra.mxu0 %v1036
      %1130 = vmatprep.subr.bf16.mxu0 0
      %1131 = vmatpush1.bf16.msra.mxu0 0
      %1132 = vmatprep.subr.bf16.mxu0 0
      %1133 = vmatpush1.bf16.msra.mxu0 0
      %1134 = vmatprep.subr.bf16.mxu0 0
      %1135 = vmatpush1.bf16.msra.mxu0 0
      %1136 = vmatprep.subr.bf16.mxu0 0
      %1137 = vmatpush1.bf16.msra.mxu0 0
      %1138 = vmatprep.subr.bf16.mxu0 0
      %1139 = vmatpush1.bf16.msra.mxu0 0
      %1140 = vmatprep.subr.bf16.mxu0 0
      %1141 = vmatpush1.bf16.msra.mxu0 0
      %1142 = vmatprep.subr.bf16.mxu0 0
      %1143 = vmatpush1.bf16.msra.mxu0 0
      %1144 = vmatprep.subr.bf16.mxu0 0
      %1145 = vmatpush1.bf16.msra.mxu0 0
      %1146 = vmatprep.subr.bf16.mxu0 0
      %1147 = vmatpush1.bf16.msra.mxu0 0
      %1148 = vmatprep.subr.bf16.mxu0 0
      %1149 = vmatpush1.bf16.msra.mxu0 0
      %1150 = vmatprep.mubr.bf16.mxu0 0
      %1151 = vmatmul.mubr.bf16.gmra.mrb[0].mxu0 %v1107
      %v1152 = vpop.f32.mrb[0].mxu0
      %v1153 = vadd.f32 %v1048, %v1152
      %v1154 = vpop.f32.mrb[0].mxu0
      %v1155 = vpop.f32.mrb[0].mxu0
      %v1156 = vadd.f32 %v1053, %v1155
      %v1157 = vpop.f32.mrb[0].mxu0
      %1158 = vmatprep.mubr.bf16.mxu0 0
      %1159 = vmatmul.mubr.bf16.gmra.mrb[0].mxu0 %v1110
      %v1160 = vpop.f32.mrb[0].mxu0
      %v1161 = vadd.f32 %v1058, %v1160
      %v1162 = vpop.f32.mrb[0].mxu0
      %v1163 = vpop.f32.mrb[0].mxu0
      %v1164 = vadd.f32 %v1063, %v1163
      %v1165 = vpop.f32.mrb[0].mxu0
      %1166 = vmatprep.mubr.bf16.mxu0 0
      %1167 = vmatmul.mubr.bf16.gmra.mrb[0].mxu0 %v1113
      %v1168 = vpop.f32.mrb[0].mxu0
      %v1169 = vadd.f32 %v1068, %v1168
      %v1170 = vpop.f32.mrb[0].mxu0
      %v1171 = vpop.f32.mrb[0].mxu0
      %v1172 = vadd.f32 %v1073, %v1171
      %v1173 = vpop.f32.mrb[0].mxu0
      %1174 = vmatprep.mubr.bf16.mxu0 0
      %1175 = vmatmul.mubr.bf16.gmra.mrb[0].mxu0 %v1116
      %v1176 = vpop.f32.mrb[0].mxu0
      %v1177 = vadd.f32 %v1078, %v1176
      %v1178 = vpop.f32.mrb[0].mxu0
      %v1179 = vpop.f32.mrb[0].mxu0
      %v1180 = vadd.f32 %v1083, %v1179
      %v1181 = vpop.f32.mrb[0].mxu0
      %1182 = vdwg.mxu0
      %v1183 = vld [vmem:[%s706] sm:$0xf]
      %v1184 = vld [vmem:[%s706 + $0x4] sm:$0xf]
      %v1185 = vld [vmem:[%s706 + $0x8] sm:$0xf]
      %v1186 = vld [vmem:[%s706 + $0xc] sm:$0xf]
      %v1187 = vld [vmem:[%s706 + $0x10] sm:$0xf]
      %v1188 = vld [vmem:[%s706 + $0x14] sm:$0xf]
      %v1189 = vld [vmem:[%s706 + $0x18] sm:$0xf]
      %v1190 = vld [vmem:[%s706 + $0x1c] sm:$0xf]
      %v1191 = vld [vmem:[%s677] sm:$0xf]
      %v1192 = vld [vmem:[%s677 + $0x4] sm:$0xf]
      %v1193 = vld [vmem:[%s677 + $0x8] sm:$0xf]
      %v1194 = vld [vmem:[%s677 + $0xc] sm:$0xf]
      %v1203 = vunpack.c.l.b16 %v1183
      %v1204 = vunpack.c.l.b16 %v1184
      %v1205 = vunpack.c.l.b16 %v1185
      %v1206 = vunpack.c.l.b16 %v1186
      %v1207 = vunpack.c.l.b16 %v1187
      %v1208 = vunpack.c.l.b16 %v1188
      %v1209 = vunpack.c.l.b16 %v1189
      %v1210 = vunpack.c.l.b16 %v1190
      %v1211 = vpack.c.b16 %v1204, %v1203
      %v1212 = vpack.c.b16 %v1206, %v1205
      %v1213 = vpack.c.b16 %v1208, %v1207
      %v1214 = vpack.c.b16 %v1210, %v1209
      %v1219 = vunpack.c.l.b16 %v1191
      %v1220 = vunpack.c.l.b16 %v1192
      %v1221 = vunpack.c.l.b16 %v1193
      %v1222 = vunpack.c.l.b16 %v1194
      %v1223 = vpack.c.b16 %v1220, %v1219
      %v1224 = vpack.c.b16 %v1222, %v1221
      %vm1227 = vcmask 261120
      %v1229 = vsel %vm1227, %v1211, 0
      %v1232 = vsel %vm1227, %v1212, 0
      %v1235 = vsel %vm1227, %v1213, 0
      %v1238 = vsel %vm1227, %v1214, 0
      %1240 = vmatprep.subr.bf16.mxu0 0
      %1241 = vmatpush1.bf16.msra.mxu0 %v1223
      %1242 = vmatprep.subr.bf16.mxu0 0
      %1243 = vmatpush1.bf16.msra.mxu0 %v1224
      %1244 = vmatprep.subr.bf16.mxu0 0
      %1245 = vmatpush1.bf16.msra.mxu0 0
      %1246 = vmatprep.subr.bf16.mxu0 0
      %1247 = vmatpush1.bf16.msra.mxu0 0
      %1248 = vmatprep.subr.bf16.mxu0 0
      %1249 = vmatpush1.bf16.msra.mxu0 0
      %1250 = vmatprep.subr.bf16.mxu0 0
      %1251 = vmatpush1.bf16.msra.mxu0 0
      %1252 = vmatprep.subr.bf16.mxu0 0
      %1253 = vmatpush1.bf16.msra.mxu0 0
      %1254 = vmatprep.subr.bf16.mxu0 0
      %1255 = vmatpush1.bf16.msra.mxu0 0
      %1256 = vmatprep.subr.bf16.mxu0 0
      %1257 = vmatpush1.bf16.msra.mxu0 0
      %1258 = vmatprep.subr.bf16.mxu0 0
      %1259 = vmatpush1.bf16.msra.mxu0 0
      %1260 = vmatprep.subr.bf16.mxu0 0
      %1261 = vmatpush1.bf16.msra.mxu0 0
      %1262 = vmatprep.subr.bf16.mxu0 0
      %1263 = vmatpush1.bf16.msra.mxu0 0
      %1264 = vmatprep.subr.bf16.mxu0 0
      %1265 = vmatpush1.bf16.msra.mxu0 0
      %1266 = vmatprep.subr.bf16.mxu0 0
      %1267 = vmatpush1.bf16.msra.mxu0 0
      %1268 = vmatprep.subr.bf16.mxu0 0
      %1269 = vmatpush1.bf16.msra.mxu0 0
      %1270 = vmatprep.subr.bf16.mxu0 0
      %1271 = vmatpush1.bf16.msra.mxu0 0
      %1272 = vmatprep.mubr.bf16.mxu0 0
      %1273 = vmatmul.mubr.bf16.gmra.mrb[0].mxu0 %v1229
      %v1274 = vpop.f32.mrb[0].mxu0
      %v1275 = vadd.f32 0.0, %v1274
      %v1276 = vpop.f32.mrb[0].mxu0
      %v1277 = vpop.f32.mrb[0].mxu0
      %v1278 = vadd.f32 0.0, %v1277
      %v1279 = vpop.f32.mrb[0].mxu0
      %1280 = vmatprep.mubr.bf16.mxu0 0
      %1281 = vmatmul.mubr.bf16.gmra.mrb[0].mxu0 %v1232
      %v1282 = vpop.f32.mrb[0].mxu0
      %v1283 = vadd.f32 0.0, %v1282
      %v1284 = vpop.f32.mrb[0].mxu0
      %v1285 = vpop.f32.mrb[0].mxu0
      %v1286 = vadd.f32 0.0, %v1285
      %v1287 = vpop.f32.mrb[0].mxu0
      %1288 = vmatprep.mubr.bf16.mxu0 0
      %1289 = vmatmul.mubr.bf16.gmra.mrb[0].mxu0 %v1235
      %v1290 = vpop.f32.mrb[0].mxu0
      %v1291 = vadd.f32 0.0, %v1290
      %v1292 = vpop.f32.mrb[0].mxu0
      %v1293 = vpop.f32.mrb[0].mxu0
      %v1294 = vadd.f32 0.0, %v1293
      %v1295 = vpop.f32.mrb[0].mxu0
      %1296 = vmatprep.mubr.bf16.mxu0 0
      %1297 = vmatmul.mubr.bf16.gmra.mrb[0].mxu0 %v1238
      %v1298 = vpop.f32.mrb[0].mxu0
      %v1299 = vadd.f32 0.0, %v1298
      %v1300 = vpop.f32.mrb[0].mxu0
      %v1301 = vpop.f32.mrb[0].mxu0
      %v1302 = vadd.f32 0.0, %v1301
      %v1303 = vpop.f32.mrb[0].mxu0
      %1304 = vdwg.mxu0
      %v1305 = vadd.f32 %v1153, %v1275
      %v1306 = vadd.f32 %v1156, %v1278
      %v1307 = vadd.f32 %v1161, %v1283
      %v1308 = vadd.f32 %v1164, %v1286
      %v1309 = vadd.f32 %v1169, %v1291
      %v1310 = vadd.f32 %v1172, %v1294
      %v1311 = vadd.f32 %v1177, %v1299
      %v1312 = vadd.f32 %v1180, %v1302
      %v1313 = vld [vmem:[%s711] sm:$0xff]
      %v1314 = vld [vmem:[%s711 + $0x8] sm:$0xff]
      %v1315 = vld [vmem:[%s711 + $0x10] sm:$0xff]
      %v1316 = vld [vmem:[%s711 + $0x18] sm:$0xff]
      %v1317 = vld [vmem:[%s711 + $0x20] sm:$0xff]
      %v1318 = vld [vmem:[%s711 + $0x28] sm:$0xff]
      %v1319 = vld [vmem:[%s711 + $0x30] sm:$0xff]
      %v1320 = vld [vmem:[%s711 + $0x38] sm:$0xff]
      %1322 = vset.pattern.permute.xlu0 0
      %1323 = vperm.xlu0 %1322, %v1313
      %v1324 = vpop.permute.xlu0 %1323
      %1327 = vset.pattern.permute.xlu0 0
      %1328 = vperm.xlu0 %1327, %v1314
      %v1329 = vpop.permute.xlu0 %1328
      %1332 = vset.pattern.permute.xlu0 0
      %1333 = vperm.xlu0 %1332, %v1315
      %v1334 = vpop.permute.xlu0 %1333
      %1337 = vset.pattern.permute.xlu0 0
      %1338 = vperm.xlu0 %1337, %v1316
      %v1339 = vpop.permute.xlu0 %1338
      %1342 = vset.pattern.permute.xlu0 0
      %1343 = vperm.xlu0 %1342, %v1317
      %v1344 = vpop.permute.xlu0 %1343
      %1347 = vset.pattern.permute.xlu0 0
      %1348 = vperm.xlu0 %1347, %v1318
      %v1349 = vpop.permute.xlu0 %1348
      %1352 = vset.pattern.permute.xlu0 0
      %1353 = vperm.xlu0 %1352, %v1319
      %v1354 = vpop.permute.xlu0 %1353
      %1357 = vset.pattern.permute.xlu0 0
      %1358 = vperm.xlu0 %1357, %v1320
      %v1359 = vpop.permute.xlu0 %1358
      %v1361 = vadd.f32 %v1305, %v1324
      %v1362 = vadd.f32 %v1306, %v1329
      %v1363 = vadd.f32 %v1307, %v1334
      %v1364 = vadd.f32 %v1308, %v1339
      %v1365 = vadd.f32 %v1309, %v1344
      %v1366 = vadd.f32 %v1310, %v1349
      %v1367 = vadd.f32 %v1311, %v1354
      %v1368 = vadd.f32 %v1312, %v1359
      %v1369 = vxor.u32 %v1361, 2147483648
      %v1370 = vxor.u32 %v1362, 2147483648
      %v1371 = vxor.u32 %v1363, 2147483648
      %v1372 = vxor.u32 %v1364, 2147483648
      %v1373 = vmul.f32 %v1369, 1.442695
      %v1374 = vpow.pop %v1373
      %v1375 = vmul.f32 %v1370, 1.442695
      %v1376 = vpow.pop %v1375
      %v1377 = vmul.f32 %v1371, 1.442695
      %v1378 = vpow.pop %v1377
      %v1379 = vmul.f32 %v1372, 1.442695
      %v1380 = vpow.pop %v1379
      %v1381 = vadd.f32 %v1374, 1.0
      %v1382 = vadd.f32 %v1376, 1.0
      %v1383 = vadd.f32 %v1378, 1.0
      %v1384 = vadd.f32 %v1380, 1.0
      %v1385 = vrcp.pop %v1381
      %v1386 = vmul.f32 1.0, %v1385
      %v1387 = vrcp.pop %v1382
      %v1388 = vmul.f32 1.0, %v1387
      %v1389 = vrcp.pop %v1383
      %v1390 = vmul.f32 1.0, %v1389
      %v1391 = vrcp.pop %v1384
      %v1392 = vmul.f32 1.0, %v1391
      %v1393 = vtanh.pop %v1365
      %v1394 = vtanh.pop %v1366
      %v1395 = vtanh.pop %v1367
      %v1396 = vtanh.pop %v1368
      %v1397 = vmul.f32 %v1386, %v1393
      %v1398 = vmul.f32 %v1388, %v1394
      %v1399 = vmul.f32 %v1390, %v1395
      %v1400 = vmul.f32 %v1392, %v1396
      %v1401 = vld [vmem:[%s716] sm:$0xf]
      %v1402 = vld [vmem:[%s716 + $0x4] sm:$0xf]
      %v1403 = vld [vmem:[%s716 + $0x8] sm:$0xf]
      %v1404 = vld [vmem:[%s716 + $0xc] sm:$0xf]
      %v1405 = vld [vmem:[%s716 + $0x10] sm:$0xf]
      %v1406 = vld [vmem:[%s716 + $0x14] sm:$0xf]
      %v1407 = vld [vmem:[%s716 + $0x18] sm:$0xf]
      %v1408 = vld [vmem:[%s716 + $0x1c] sm:$0xf]
      %v1409 = vpack.c.bf16 %v1398, %v1397
      %v1410 = vpack.c.bf16 %v1400, %v1399
      %v1411 = vld [vmem:[%s721] sm:$0xff]
      %v1412 = vld [vmem:[%s721 + $0x8] sm:$0xff]
      %v1413 = vld [vmem:[%s721 + $0x10] sm:$0xff]
      %v1414 = vld [vmem:[%s721 + $0x18] sm:$0xff]
      %v1415 = vld [vmem:[%s721 + $0x20] sm:$0xff]
      %v1416 = vld [vmem:[%s721 + $0x28] sm:$0xff]
      %v1417 = vld [vmem:[%s721 + $0x30] sm:$0xff]
      %v1418 = vld [vmem:[%s721 + $0x38] sm:$0xff]
      %1420 = vset.pattern.permute.xlu0 0
      %1421 = vperm.xlu0 %1420, %v1411
      %v1422 = vpop.permute.xlu0 %1421
      %1425 = vset.pattern.permute.xlu0 0
      %1426 = vperm.xlu0 %1425, %v1412
      %v1427 = vpop.permute.xlu0 %1426
      %1430 = vset.pattern.permute.xlu0 0
      %1431 = vperm.xlu0 %1430, %v1413
      %v1432 = vpop.permute.xlu0 %1431
      %1435 = vset.pattern.permute.xlu0 0
      %1436 = vperm.xlu0 %1435, %v1414
      %v1437 = vpop.permute.xlu0 %1436
      %1440 = vset.pattern.permute.xlu0 0
      %1441 = vperm.xlu0 %1440, %v1415
      %v1442 = vpop.permute.xlu0 %1441
      %1445 = vset.pattern.permute.xlu0 0
      %1446 = vperm.xlu0 %1445, %v1416
      %v1447 = vpop.permute.xlu0 %1446
      %1450 = vset.pattern.permute.xlu0 0
      %1451 = vperm.xlu0 %1450, %v1417
      %v1452 = vpop.permute.xlu0 %1451
      %1455 = vset.pattern.permute.xlu0 0
      %1456 = vperm.xlu0 %1455, %v1418
      %v1457 = vpop.permute.xlu0 %1456
      %v1467 = vunpack.c.l.b16 %v1401
      %v1468 = vunpack.c.l.b16 %v1402
      %v1469 = vunpack.c.l.b16 %v1403
      %v1470 = vunpack.c.l.b16 %v1404
      %v1471 = vunpack.c.l.b16 %v1405
      %v1472 = vunpack.c.l.b16 %v1406
      %v1473 = vunpack.c.l.b16 %v1407
      %v1474 = vunpack.c.l.b16 %v1408
      %v1475 = vpack.c.b16 %v1468, %v1467
      %v1476 = vpack.c.b16 %v1470, %v1469
      %v1477 = vpack.c.b16 %v1472, %v1471
      %v1478 = vpack.c.b16 %v1474, %v1473
      %v1480 = vsel %vm1227, %v1475, 0
      %v1483 = vsel %vm1227, %v1476, 0
      %v1486 = vsel %vm1227, %v1477, 0
      %v1489 = vsel %vm1227, %v1478, 0
      %1491 = vmatprep.subr.bf16.mxu0 0
      %1492 = vmatpush1.bf16.msra.mxu0 %v1409
      %1493 = vmatprep.subr.bf16.mxu0 0
      %1494 = vmatpush1.bf16.msra.mxu0 %v1410
      %1495 = vmatprep.subr.bf16.mxu0 0
      %1496 = vmatpush1.bf16.msra.mxu0 0
      %1497 = vmatprep.subr.bf16.mxu0 0
      %1498 = vmatpush1.bf16.msra.mxu0 0
      %1499 = vmatprep.subr.bf16.mxu0 0
      %1500 = vmatpush1.bf16.msra.mxu0 0
      %1501 = vmatprep.subr.bf16.mxu0 0
      %1502 = vmatpush1.bf16.msra.mxu0 0
      %1503 = vmatprep.subr.bf16.mxu0 0
      %1504 = vmatpush1.bf16.msra.mxu0 0
      %1505 = vmatprep.subr.bf16.mxu0 0
      %1506 = vmatpush1.bf16.msra.mxu0 0
      %1507 = vmatprep.subr.bf16.mxu0 0
      %1508 = vmatpush1.bf16.msra.mxu0 0
      %1509 = vmatprep.subr.bf16.mxu0 0
      %1510 = vmatpush1.bf16.msra.mxu0 0
      %1511 = vmatprep.subr.bf16.mxu0 0
      %1512 = vmatpush1.bf16.msra.mxu0 0
      %1513 = vmatprep.subr.bf16.mxu0 0
      %1514 = vmatpush1.bf16.msra.mxu0 0
      %1515 = vmatprep.subr.bf16.mxu0 0
      %1516 = vmatpush1.bf16.msra.mxu0 0
      %1517 = vmatprep.subr.bf16.mxu0 0
      %1518 = vmatpush1.bf16.msra.mxu0 0
      %1519 = vmatprep.subr.bf16.mxu0 0
      %1520 = vmatpush1.bf16.msra.mxu0 0
      %1521 = vmatprep.subr.bf16.mxu0 0
      %1522 = vmatpush1.bf16.msra.mxu0 0
      %1523 = vmatprep.mubr.bf16.mxu0 0
      %1524 = vmatmul.mubr.bf16.gmra.mrb[0].mxu0 %v1480
      %v1525 = vpop.f32.mrb[0].mxu0
      %v1526 = vadd.f32 %v1422, %v1525
      %v1527 = vpop.f32.mrb[0].mxu0
      %v1528 = vpop.f32.mrb[0].mxu0
      %v1529 = vadd.f32 %v1427, %v1528
      %v1530 = vpop.f32.mrb[0].mxu0
      %1531 = vmatprep.mubr.bf16.mxu0 0
      %1532 = vmatmul.mubr.bf16.gmra.mrb[0].mxu0 %v1483
      %v1533 = vpop.f32.mrb[0].mxu0
      %v1534 = vadd.f32 %v1432, %v1533
      %v1535 = vpop.f32.mrb[0].mxu0
      %v1536 = vpop.f32.mrb[0].mxu0
      %v1537 = vadd.f32 %v1437, %v1536
      %v1538 = vpop.f32.mrb[0].mxu0
      %1539 = vmatprep.mubr.bf16.mxu0 0
      %1540 = vmatmul.mubr.bf16.gmra.mrb[0].mxu0 %v1486
      %v1541 = vpop.f32.mrb[0].mxu0
      %v1542 = vadd.f32 %v1442, %v1541
      %v1543 = vpop.f32.mrb[0].mxu0
      %v1544 = vpop.f32.mrb[0].mxu0
      %v1545 = vadd.f32 %v1447, %v1544
      %v1546 = vpop.f32.mrb[0].mxu0
      %1547 = vmatprep.mubr.bf16.mxu0 0
      %1548 = vmatmul.mubr.bf16.gmra.mrb[0].mxu0 %v1489
      %v1549 = vpop.f32.mrb[0].mxu0
      %v1550 = vadd.f32 %v1452, %v1549
      %v1551 = vpop.f32.mrb[0].mxu0
      %v1552 = vpop.f32.mrb[0].mxu0
      %v1553 = vadd.f32 %v1457, %v1552
      %v1554 = vpop.f32.mrb[0].mxu0
      %1555 = vdwg.mxu0
      %v1556 = vld [vmem:[#allocation2] sm:$0xff]
      %v1557 = vld [vmem:[#allocation2 + $0x8] sm:$0xff]
      %v1558 = vld [vmem:[#allocation2 + $0x10] sm:$0xff]
      %v1559 = vld [vmem:[#allocation2 + $0x18] sm:$0xff]
      %v1560 = vadd.f32 %v1556, %v1526
      %v1561 = vadd.f32 %v1557, %v1529
      %v1562 = vadd.f32 %v1558, %v1534
      %v1563 = vadd.f32 %v1559, %v1537
      %v1564 = vmul.f32 %v1560, 0.70710677
      %v1565 = vmul.f32 %v1561, 0.70710677
      %v1566 = vmul.f32 %v1562, 0.70710677
      %v1567 = vmul.f32 %v1563, 0.70710677
      %1568 = vst [vmem:[#allocation2] sm:$0xff] %v1564
      %1569 = vst [vmem:[#allocation2 + $0x8] sm:$0xff] %v1565
      %1570 = vst [vmem:[#allocation2 + $0x10] sm:$0xff] %v1566
      %1571 = vst [vmem:[#allocation2 + $0x18] sm:$0xff] %v1567
      %v1572 = vld [vmem:[#allocation3] sm:$0xff]
      %v1573 = vld [vmem:[#allocation3 + $0x8] sm:$0xff]
      %v1574 = vld [vmem:[#allocation3 + $0x10] sm:$0xff]
      %v1575 = vld [vmem:[#allocation3 + $0x18] sm:$0xff]
      %v1576 = vadd.f32 %v1572, %v1542
      %v1577 = vadd.f32 %v1573, %v1545
      %v1578 = vadd.f32 %v1574, %v1550
      %v1579 = vadd.f32 %v1575, %v1553
      %1580 = vst [vmem:[#allocation3] sm:$0xff] %v1576
      %1581 = vst [vmem:[#allocation3 + $0x8] sm:$0xff] %v1577
      %1582 = vst [vmem:[#allocation3 + $0x10] sm:$0xff] %v1578
      %1583 = vst [vmem:[#allocation3 + $0x18] sm:$0xff] %v1579
      %p1584 = scmp.eq.s32.totalorder %s32, 2
      // Predicated region
      $region101: #{model_forward.3} parent=83 // pred_check
        %p1585 = pneg %p1584
      $region102: #{model_forward.3} parent=83 // pred_check_branch
        %1587 = sbr.rel (%p1585) target = $region104
      $region103: #{model_forward.3} parent=83 // pred_region
        %v1588 = vld [vmem:[#allocation3] sm:$0xff]
        %v1589 = vld [vmem:[#allocation3 + $0x8] sm:$0xff]
        %v1590 = vld [vmem:[#allocation3 + $0x10] sm:$0xff]
        %v1591 = vld [vmem:[#allocation3 + $0x18] sm:$0xff]
        %v1592 = vmul.f32 %v1588, 0.57735026
        %v1593 = vmul.f32 %v1589, 0.57735026
        %v1594 = vmul.f32 %v1590, 0.57735026
        %v1595 = vmul.f32 %v1591, 0.57735026
        %v1596 = vld [vmem:[%s12] sm:$0xf]
        %v1597 = vld [vmem:[%s12 + $0x4] sm:$0xf]
        %v1598 = vld [vmem:[%s12 + $0x8] sm:$0xf]
        %v1599 = vld [vmem:[%s12 + $0xc] sm:$0xf]
        %v1600 = vpack.c.bf16 %v1593, %v1592
        %v1601 = vpack.c.bf16 %v1595, %v1594
        %v1602 = vld [vmem:[%s13] sm:$0xff]
        %v1603 = vld [vmem:[%s13 + $0x8] sm:$0xff]
        %v1604 = vld [vmem:[%s13 + $0x10] sm:$0xff]
        %v1605 = vld [vmem:[%s13 + $0x18] sm:$0xff]
        %1607 = vset.pattern.permute.xlu0 0
        %1608 = vperm.xlu0 %1607, %v1602
        %v1609 = vpop.permute.xlu0 %1608
        %1612 = vset.pattern.permute.xlu0 0
        %1613 = vperm.xlu0 %1612, %v1603
        %v1614 = vpop.permute.xlu0 %1613
        %1617 = vset.pattern.permute.xlu0 0
        %1618 = vperm.xlu0 %1617, %v1604
        %v1619 = vpop.permute.xlu0 %1618
        %1622 = vset.pattern.permute.xlu0 0
        %1623 = vperm.xlu0 %1622, %v1605
        %v1624 = vpop.permute.xlu0 %1623
        %v1630 = vunpack.c.l.b16 %v1596
        %v1631 = vunpack.c.l.b16 %v1597
        %v1632 = vunpack.c.l.b16 %v1598
        %v1633 = vunpack.c.l.b16 %v1599
        %v1634 = vpack.c.b16 %v1631, %v1630
        %v1635 = vpack.c.b16 %v1633, %v1632
        %v1637 = vsel %vm1227, %v1634, 0
        %v1640 = vsel %vm1227, %v1635, 0
        %1642 = vmatprep.subr.bf16.mxu0 0
        %1643 = vmatpush1.bf16.msra.mxu0 %v1600
        %1644 = vmatprep.subr.bf16.mxu0 0
        %1645 = vmatpush1.bf16.msra.mxu0 %v1601
        %1646 = vmatprep.subr.bf16.mxu0 0
        %1647 = vmatpush1.bf16.msra.mxu0 0
        %1648 = vmatprep.subr.bf16.mxu0 0
        %1649 = vmatpush1.bf16.msra.mxu0 0
        %1650 = vmatprep.subr.bf16.mxu0 0
        %1651 = vmatpush1.bf16.msra.mxu0 0
        %1652 = vmatprep.subr.bf16.mxu0 0
        %1653 = vmatpush1.bf16.msra.mxu0 0
        %1654 = vmatprep.subr.bf16.mxu0 0
        %1655 = vmatpush1.bf16.msra.mxu0 0
        %1656 = vmatprep.subr.bf16.mxu0 0
        %1657 = vmatpush1.bf16.msra.mxu0 0
        %1658 = vmatprep.subr.bf16.mxu0 0
        %1659 = vmatpush1.bf16.msra.mxu0 0
        %1660 = vmatprep.subr.bf16.mxu0 0
        %1661 = vmatpush1.bf16.msra.mxu0 0
        %1662 = vmatprep.subr.bf16.mxu0 0
        %1663 = vmatpush1.bf16.msra.mxu0 0
        %1664 = vmatprep.subr.bf16.mxu0 0
        %1665 = vmatpush1.bf16.msra.mxu0 0
        %1666 = vmatprep.subr.bf16.mxu0 0
        %1667 = vmatpush1.bf16.msra.mxu0 0
        %1668 = vmatprep.subr.bf16.mxu0 0
        %1669 = vmatpush1.bf16.msra.mxu0 0
        %1670 = vmatprep.subr.bf16.mxu0 0
        %1671 = vmatpush1.bf16.msra.mxu0 0
        %1672 = vmatprep.subr.bf16.mxu0 0
        %1673 = vmatpush1.bf16.msra.mxu0 0
        %1674 = vmatprep.mubr.bf16.mxu0 0
        %1675 = vmatmul.mubr.bf16.gmra.mrb[0].mxu0 %v1637
        %v1676 = vpop.f32.mrb[0].mxu0
        %v1677 = vadd.f32 %v1609, %v1676
        %v1678 = vpop.f32.mrb[0].mxu0
        %v1679 = vpop.f32.mrb[0].mxu0
        %v1680 = vadd.f32 %v1614, %v1679
        %v1681 = vpop.f32.mrb[0].mxu0
        %1682 = vmatprep.mubr.bf16.mxu0 0
        %1683 = vmatmul.mubr.bf16.gmra.mrb[0].mxu0 %v1640
        %v1684 = vpop.f32.mrb[0].mxu0
        %v1685 = vadd.f32 %v1619, %v1684
        %v1686 = vpop.f32.mrb[0].mxu0
        %v1687 = vpop.f32.mrb[0].mxu0
        %v1688 = vadd.f32 %v1624, %v1687
        %v1689 = vpop.f32.mrb[0].mxu0
        %1690 = vdwg.mxu0
        %v1691 = vmax.f32 %v1677, 0.0
        %v1692 = vmax.f32 %v1680, 0.0
        %v1693 = vmax.f32 %v1685, 0.0
        %v1694 = vmax.f32 %v1688, 0.0
        %v1695 = vld [vmem:[%s14] sm:$0xf]
        %v1696 = vld [vmem:[%s14 + $0x4] sm:$0xf]
        %v1697 = vpack.c.bf16 %v1692, %v1691
        %v1698 = vpack.c.bf16 %v1694, %v1693
        %v1699 = vld [vmem:[%s15] sm:$0xff]
        %v1700 = vld [vmem:[%s15 + $0x8] sm:$0xff]
        %1702 = vset.pattern.permute.xlu0 0
        %1703 = vperm.xlu0 %1702, %v1699
        %v1704 = vpop.permute.xlu0 %1703
        %1707 = vset.pattern.permute.xlu0 0
        %1708 = vperm.xlu0 %1707, %v1700
        %v1709 = vpop.permute.xlu0 %1708
        %v1713 = vunpack.c.l.b16 %v1695
        %v1714 = vunpack.c.l.b16 %v1696
        %v1715 = vpack.c.b16 %v1714, %v1713
        %v1717 = vsel %vm1227, %v1715, 0
        %1719 = vmatprep.subr.bf16.mxu0 0
        %1720 = vmatpush1.bf16.msra.mxu0 %v1697
        %1721 = vmatprep.subr.bf16.mxu0 0
        %1722 = vmatpush1.bf16.msra.mxu0 %v1698
        %1723 = vmatprep.subr.bf16.mxu0 0
        %1724 = vmatpush1.bf16.msra.mxu0 0
        %1725 = vmatprep.subr.bf16.mxu0 0
        %1726 = vmatpush1.bf16.msra.mxu0 0
        %1727 = vmatprep.subr.bf16.mxu0 0
        %1728 = vmatpush1.bf16.msra.mxu0 0
        %1729 = vmatprep.subr.bf16.mxu0 0
        %1730 = vmatpush1.bf16.msra.mxu0 0
        %1731 = vmatprep.subr.bf16.mxu0 0
        %1732 = vmatpush1.bf16.msra.mxu0 0
        %1733 = vmatprep.subr.bf16.mxu0 0
        %1734 = vmatpush1.bf16.msra.mxu0 0
        %1735 = vmatprep.subr.bf16.mxu0 0
        %1736 = vmatpush1.bf16.msra.mxu0 0
        %1737 = vmatprep.subr.bf16.mxu0 0
        %1738 = vmatpush1.bf16.msra.mxu0 0
        %1739 = vmatprep.subr.bf16.mxu0 0
        %1740 = vmatpush1.bf16.msra.mxu0 0
        %1741 = vmatprep.subr.bf16.mxu0 0
        %1742 = vmatpush1.bf16.msra.mxu0 0
        %1743 = vmatprep.subr.bf16.mxu0 0
        %1744 = vmatpush1.bf16.msra.mxu0 0
        %1745 = vmatprep.subr.bf16.mxu0 0
        %1746 = vmatpush1.bf16.msra.mxu0 0
        %1747 = vmatprep.subr.bf16.mxu0 0
        %1748 = vmatpush1.bf16.msra.mxu0 0
        %1749 = vmatprep.subr.bf16.mxu0 0
        %1750 = vmatpush1.bf16.msra.mxu0 0
        %1751 = vmatprep.mubr.bf16.mxu0 0
        %1752 = vmatmul.mubr.bf16.gmra.mrb[0].mxu0 %v1717
        %v1753 = vpop.f32.mrb[0].mxu0
        %v1754 = vadd.f32 %v1704, %v1753
        %v1755 = vpop.f32.mrb[0].mxu0
        %v1756 = vpop.f32.mrb[0].mxu0
        %v1757 = vadd.f32 %v1709, %v1756
        %v1758 = vpop.f32.mrb[0].mxu0
        %1759 = vdwg.mxu0
        %v1760 = vld [vmem:[%s682] sm:$0xff]
        %v1761 = vld [vmem:[%s682 + $0x8] sm:$0xff]
        %v1762 = vsub.f32 %v1754, %v1760
        %v1763 = vsub.f32 %v1757, %v1761
        %v1764 = vand.u32 2147483647, %v1762
        %v1765 = vand.u32 2147483647, %v1763
        %vm1766 = vcmp.lt.f32.partialorder %v1764, 1.0
        %vm1767 = vcmp.lt.f32.partialorder %v1765, 1.0
        %v1768 = vmul.f32 %v1762, 0.5
        %v1769 = vmul.f32 %v1763, 0.5
        %v1770 = vmul.f32 %v1768, %v1762
        %v1771 = vmul.f32 %v1769, %v1763
        %v1772 = vsub.f32 %v1764, 0.5
        %v1773 = vsub.f32 %v1765, 0.5
        %v1774 = vsel %vm1766, %v1770, %v1772
        %v1775 = vsel %vm1767, %v1771, %v1773
        %v1776 = vadd.f32 %v1774, %v1775
        %1777 = vadd.xlane.f32.xlu0 %v1776
        %v1778 = vpop.xlane.xlu0 %1777
        %v1779 = vrot.slane %v1778, 4
        %v1780 = vadd.f32 %v1778, %v1779
        %v1781 = vrot.slane %v1780, 2
        %v1782 = vadd.f32 %v1780, %v1781
        %v1783 = vrot.slane %v1782, 1
        %v1784 = vadd.f32 %v1782, %v1783
        %s1785 = vtos %v1784
        %v1786 = vstv %s1785
        %v1787 = vadd.f32 %v1786, 0.0
        %1788 = vst [vmem:[%s725] sm:$0xff] %v1787
      $region104: #{model_forward.3} parent=83 // pred_fallthru
        _
      %p1789 = scmp.lt.s32.totalorder %s31, 1
      %s1790 = scalar_select %p1789, %s31, 1
      %s1791 = smul.addr %s1790, 8
      %s1792 = scalar_lea.vmem %s16, %s1791
      // Predicated region
      $region105: #{model_forward.3} parent=83 // pred_check
        %p1793 = pneg %p445
      $region106: #{model_forward.3} parent=83 // pred_check_branch
        %1795 = sbr.rel (%p1793) target = $region108
      $region107: #{model_forward.3} parent=83 // pred_region
        _
      $region108: #{model_forward.3} parent=83 // pred_fallthru
        _
    $region84: #{model_forward.3} parent=5 // pred_fallthru
      _
    %p1796 = scmp.le.s32.totalorder 2, %s22
    // Predicated region
    $region109: #{model_forward.3} parent=5 // pred_check
      %p1797 = pneg %p1796
    $region110: #{model_forward.3} parent=5 // pred_check_branch
      %1799 = sbr.rel (%p1797) target = $region112
    $region111: #{model_forward.3} parent=5 // pred_region
      %s1800 = ssub.s32 %s22, 2
      // Predicated region
      $region113: #{model_forward.3} parent=111 // pred_check
        %p1801 = pneg %p451
      $region114: #{model_forward.3} parent=111 // pred_check_branch
        %1803 = sbr.rel (%p1801) target = $region116
      $region115: #{model_forward.3} parent=111 // pred_region
        %p1804 = scmp.lt.s32.totalorder %s33, 1
        %s1805 = scalar_select %p1804, %s33, 1
        %s1806 = smul.addr %s1805, 8
        %s1807 = scalar_lea.vmem %s16, %s1806
      $region116: #{model_forward.3} parent=111 // pred_fallthru
        _
    $region112: #{model_forward.3} parent=5 // pred_fallthru
      _
  $region6: #{model_forward.3} parent=0 // loop_footer
    %s26 = sadd.s32 1, %s22
  $region7: #{model_forward.3} parent=0 // loop_footer_branch
    %21 = sbr.rel target = $region3
  $region8: #{model_forward.3} parent=0 // loop_exit
    _

// kernel: model_forward.2
$region0: #{model_forward.2}
  #allocation0 [shape = 'u32[]', space=smem, size = 0x4, offset = 0x4, fixed_abs, tag = 'smem constant byte address 0x4 - core index']
  #allocation1 [shape = 'u32[144,128]{1,0:T(1,128)}', space=vmem, size = 0x12000, scoped, tag = 'internal scratch']
  %s0 = inlined_call_operand.vmem [shape: f32[1,2048], index: 0, kind: input, shape index: {}]
  %s1 = inlined_call_operand.vmem [shape: bf16[16,5], index: 1, kind: input, shape index: {}]
  %s2 = inlined_call_operand.vmem [shape: f32[16,1], index: 2, kind: input, shape index: {}]
  %s3 = inlined_call_operand.vmem [shape: f32[16,1], index: 3, kind: input, shape index: {}]
  %s4 = inlined_call_operand.vmem [shape: f32[16,1], index: 4, kind: input, shape index: {}]
  %s5 = inlined_call_operand.vmem [shape: bf16[32,80], index: 5, kind: input, shape index: {}]
  %s6 = inlined_call_operand.vmem [shape: f32[32,1], index: 6, kind: input, shape index: {}]
  %s7 = inlined_call_operand.vmem [shape: f32[32,1], index: 7, kind: input, shape index: {}]
  %s8 = inlined_call_operand.vmem [shape: f32[32,1], index: 8, kind: input, shape index: {}]
  %s9 = inlined_call_operand.vmem [shape: bf16[32,160], index: 9, kind: input, shape index: {}]
  %s10 = inlined_call_operand.vmem [shape: f32[32,1], index: 10, kind: input, shape index: {}]
  %s11 = inlined_call_operand.vmem [shape: f32[32,2048], index: 11, kind: output, shape index: {}]
  %s12 = sld [smem:[#allocation0]]
  $region54: #{model_forward.2} parent=0
    _
  %s14 = ssub.s32 1, %s12
  %s15 = scalar_select 0, %s14, %s12
  // Predicated region
  $region2: #{model_forward.2} parent=0 // pred_check
    _
  $region3: #{model_forward.2} parent=0 // pred_check_branch
    %17 = sbr.rel (0) target = $region5
  $region4: #{model_forward.2} parent=0 // pred_region
    _
  $region5: #{model_forward.2} parent=0 // pred_fallthru
    _
  // Predicated region
  $region6: #{model_forward.2} parent=0 // pred_check
    _
  $region7: #{model_forward.2} parent=0 // pred_check_branch
    %19 = sbr.rel (0) target = $region9
  $region8: #{model_forward.2} parent=0 // pred_region
    _
  $region9: #{model_forward.2} parent=0 // pred_fallthru
    _
  // Predicated region
  $region10: #{model_forward.2} parent=0 // pred_check
    _
  $region11: #{model_forward.2} parent=0 // pred_check_branch
    %21 = sbr.rel (0) target = $region13
  $region12: #{model_forward.2} parent=0 // pred_region
    _
  $region13: #{model_forward.2} parent=0 // pred_fallthru
    _
  // Predicated region
  $region14: #{model_forward.2} parent=0 // pred_check
    _
  $region15: #{model_forward.2} parent=0 // pred_check_branch
    %23 = sbr.rel (0) target = $region17
  $region16: #{model_forward.2} parent=0 // pred_region
    _
  $region17: #{model_forward.2} parent=0 // pred_fallthru
    _
  // Predicated region
  $region18: #{model_forward.2} parent=0 // pred_check
    _
  $region19: #{model_forward.2} parent=0 // pred_check_branch
    %25 = sbr.rel (0) target = $region21
  $region20: #{model_forward.2} parent=0 // pred_region
    _
  $region21: #{model_forward.2} parent=0 // pred_fallthru
    _
  // Predicated region
  $region22: #{model_forward.2} parent=0 // pred_check
    _
  $region23: #{model_forward.2} parent=0 // pred_check_branch
    %27 = sbr.rel (0) target = $region25
  $region24: #{model_forward.2} parent=0 // pred_region
    _
  $region25: #{model_forward.2} parent=0 // pred_fallthru
    _
  // Predicated region
  $region26: #{model_forward.2} parent=0 // pred_check
    _
  $region27: #{model_forward.2} parent=0 // pred_check_branch
    %29 = sbr.rel (0) target = $region29
  $region28: #{model_forward.2} parent=0 // pred_region
    _
  $region29: #{model_forward.2} parent=0 // pred_fallthru
    _
  // Predicated region
  $region30: #{model_forward.2} parent=0 // pred_check
    _
  $region31: #{model_forward.2} parent=0 // pred_check_branch
    %31 = sbr.rel (0) target = $region33
  $region32: #{model_forward.2} parent=0 // pred_region
    _
  $region33: #{model_forward.2} parent=0 // pred_fallthru
    _
  // Predicated region
  $region34: #{model_forward.2} parent=0 // pred_check
    _
  $region35: #{model_forward.2} parent=0 // pred_check_branch
    %33 = sbr.rel (0) target = $region37
  $region36: #{model_forward.2} parent=0 // pred_region
    _
  $region37: #{model_forward.2} parent=0 // pred_fallthru
    _
  // Predicated region
  $region38: #{model_forward.2} parent=0 // pred_check
    _
  $region39: #{model_forward.2} parent=0 // pred_check_branch
    %35 = sbr.rel (0) target = $region41
  $region40: #{model_forward.2} parent=0 // pred_region
    _
  $region41: #{model_forward.2} parent=0 // pred_fallthru
    _
  // Predicated region
  $region42: #{model_forward.2} parent=0 // pred_check
    _
  $region43: #{model_forward.2} parent=0 // pred_check_branch
    %37 = sbr.rel (0) target = $region45
  $region44: #{model_forward.2} parent=0 // pred_region
    _
  $region45: #{model_forward.2} parent=0 // pred_fallthru
    _
  %v39 = vlaneseq
  %v40 = vand.u32 %v39, 127
  %v41 = vadd.s32 %v40, 128
  %v42 = vadd.s32 %v40, 256
  %v43 = vadd.s32 %v40, 384
  %v44 = vadd.s32 %v40, 512
  %v45 = vadd.s32 %v40, 640
  %v46 = vadd.s32 %v40, 768
  %v47 = vadd.s32 %v40, 896
  %v48 = vadd.s32 %v40, 1024
  %v49 = vadd.s32 %v40, 1152
  %v50 = vadd.s32 %v40, 1280
  %v51 = vadd.s32 %v40, 1408
  %v52 = vadd.s32 %v40, 1536
  %v53 = vadd.s32 %v40, 1664
  %v54 = vadd.s32 %v40, 1792
  %v55 = vadd.s32 %v40, 1920
  %vm56 = vcmp.lt.s32.totalorder %v40, 0
  %v57 = vsub.s32 0, %v40
  %v58 = vsel %vm56, %v57, %v40
  %v59 = vshrl.u32 %v58, 10
  %v60 = vand.u32 %v58, 1023
  %v61 = vsub.s32 0, %v60
  %v62 = vsel %vm56, %v61, %v60
  %vm63 = vcmp.lt.s32.totalorder %v41, 0
  %v64 = vsub.s32 0, %v41
  %v65 = vsel %vm63, %v64, %v41
  %v66 = vshrl.u32 %v65, 10
  %v67 = vand.u32 %v65, 1023
  %v68 = vsub.s32 0, %v67
  %v69 = vsel %vm63, %v68, %v67
  %vm70 = vcmp.lt.s32.totalorder %v42, 0
  %v71 = vsub.s32 0, %v42
  %v72 = vsel %vm70, %v71, %v42
  %v73 = vshrl.u32 %v72, 10
  %v74 = vand.u32 %v72, 1023
  %v75 = vsub.s32 0, %v74
  %v76 = vsel %vm70, %v75, %v74
  %vm77 = vcmp.lt.s32.totalorder %v43, 0
  %v78 = vsub.s32 0, %v43
  %v79 = vsel %vm77, %v78, %v43
  %v80 = vshrl.u32 %v79, 10
  %v81 = vand.u32 %v79, 1023
  %v82 = vsub.s32 0, %v81
  %v83 = vsel %vm77, %v82, %v81
  %vm84 = vcmp.lt.s32.totalorder %v44, 0
  %v85 = vsub.s32 0, %v44
  %v86 = vsel %vm84, %v85, %v44
  %v87 = vshrl.u32 %v86, 10
  %v88 = vand.u32 %v86, 1023
  %v89 = vsub.s32 0, %v88
  %v90 = vsel %vm84, %v89, %v88
  %vm91 = vcmp.lt.s32.totalorder %v45, 0
  %v92 = vsub.s32 0, %v45
  %v93 = vsel %vm91, %v92, %v45
  %v94 = vshrl.u32 %v93, 10
  %v95 = vand.u32 %v93, 1023
  %v96 = vsub.s32 0, %v95
  %v97 = vsel %vm91, %v96, %v95
  %vm98 = vcmp.lt.s32.totalorder %v46, 0
  %v99 = vsub.s32 0, %v46
  %v100 = vsel %vm98, %v99, %v46
  %v101 = vshrl.u32 %v100, 10
  %v102 = vand.u32 %v100, 1023
  %v103 = vsub.s32 0, %v102
  %v104 = vsel %vm98, %v103, %v102
  %vm105 = vcmp.lt.s32.totalorder %v47, 0
  %v106 = vsub.s32 0, %v47
  %v107 = vsel %vm105, %v106, %v47
  %v108 = vshrl.u32 %v107, 10
  %v109 = vand.u32 %v107, 1023
  %v110 = vsub.s32 0, %v109
  %v111 = vsel %vm105, %v110, %v109
  %vm112 = vcmp.lt.s32.totalorder %v48, 0
  %v113 = vsub.s32 0, %v48
  %v114 = vsel %vm112, %v113, %v48
  %v115 = vshrl.u32 %v114, 10
  %v116 = vand.u32 %v114, 1023
  %v117 = vsub.s32 0, %v116
  %v118 = vsel %vm112, %v117, %v116
  %vm119 = vcmp.lt.s32.totalorder %v49, 0
  %v120 = vsub.s32 0, %v49
  %v121 = vsel %vm119, %v120, %v49
  %v122 = vshrl.u32 %v121, 10
  %v123 = vand.u32 %v121, 1023
  %v124 = vsub.s32 0, %v123
  %v125 = vsel %vm119, %v124, %v123
  %vm126 = vcmp.lt.s32.totalorder %v50, 0
  %v127 = vsub.s32 0, %v50
  %v128 = vsel %vm126, %v127, %v50
  %v129 = vshrl.u32 %v128, 10
  %v130 = vand.u32 %v128, 1023
  %v131 = vsub.s32 0, %v130
  %v132 = vsel %vm126, %v131, %v130
  %vm133 = vcmp.lt.s32.totalorder %v51, 0
  %v134 = vsub.s32 0, %v51
  %v135 = vsel %vm133, %v134, %v51
  %v136 = vshrl.u32 %v135, 10
  %v137 = vand.u32 %v135, 1023
  %v138 = vsub.s32 0, %v137
  %v139 = vsel %vm133, %v138, %v137
  %vm140 = vcmp.lt.s32.totalorder %v52, 0
  %v141 = vsub.s32 0, %v52
  %v142 = vsel %vm140, %v141, %v52
  %v143 = vshrl.u32 %v142, 10
  %v144 = vand.u32 %v142, 1023
  %v145 = vsub.s32 0, %v144
  %v146 = vsel %vm140, %v145, %v144
  %vm147 = vcmp.lt.s32.totalorder %v53, 0
  %v148 = vsub.s32 0, %v53
  %v149 = vsel %vm147, %v148, %v53
  %v150 = vshrl.u32 %v149, 10
  %v151 = vand.u32 %v149, 1023
  %v152 = vsub.s32 0, %v151
  %v153 = vsel %vm147, %v152, %v151
  %vm154 = vcmp.lt.s32.totalorder %v54, 0
  %v155 = vsub.s32 0, %v54
  %v156 = vsel %vm154, %v155, %v54
  %v157 = vshrl.u32 %v156, 10
  %v158 = vand.u32 %v156, 1023
  %v159 = vsub.s32 0, %v158
  %v160 = vsel %vm154, %v159, %v158
  %vm161 = vcmp.lt.s32.totalorder %v55, 0
  %v162 = vsub.s32 0, %v55
  %v163 = vsel %vm161, %v162, %v55
  %v164 = vshrl.u32 %v163, 10
  %v165 = vand.u32 %v163, 1023
  %v166 = vsub.s32 0, %v165
  %v167 = vsel %vm161, %v166, %v165
  %vm168 = vcmp.ne.s32.totalorder %v62, 0
  %vm169 = vcmp.ne.s32.totalorder %v69, 0
  %vm170 = vcmp.ne.s32.totalorder %v76, 0
  %vm171 = vcmp.ne.s32.totalorder %v83, 0
  %vm172 = vcmp.ne.s32.totalorder %v90, 0
  %vm173 = vcmp.ne.s32.totalorder %v97, 0
  %vm174 = vcmp.ne.s32.totalorder %v104, 0
  %vm175 = vcmp.ne.s32.totalorder %v111, 0
  %vm176 = vcmp.ne.s32.totalorder %v118, 0
  %vm177 = vcmp.ne.s32.totalorder %v125, 0
  %vm178 = vcmp.ne.s32.totalorder %v132, 0
  %vm179 = vcmp.ne.s32.totalorder %v139, 0
  %vm180 = vcmp.ne.s32.totalorder %v146, 0
  %vm181 = vcmp.ne.s32.totalorder %v153, 0
  %vm182 = vcmp.ne.s32.totalorder %v160, 0
  %vm183 = vcmp.ne.s32.totalorder %v167, 0
  %vm184 = vcmp.lt.s32.totalorder %v62, 0
  %vm185 = vcmp.lt.s32.totalorder %v69, 0
  %vm186 = vcmp.lt.s32.totalorder %v76, 0
  %vm187 = vcmp.lt.s32.totalorder %v83, 0
  %vm188 = vcmp.lt.s32.totalorder %v90, 0
  %vm189 = vcmp.lt.s32.totalorder %v97, 0
  %vm190 = vcmp.lt.s32.totalorder %v104, 0
  %vm191 = vcmp.lt.s32.totalorder %v111, 0
  %vm192 = vcmp.lt.s32.totalorder %v118, 0
  %vm193 = vcmp.lt.s32.totalorder %v125, 0
  %vm194 = vcmp.lt.s32.totalorder %v132, 0
  %vm195 = vcmp.lt.s32.totalorder %v139, 0
  %vm196 = vcmp.lt.s32.totalorder %v146, 0
  %vm197 = vcmp.lt.s32.totalorder %v153, 0
  %vm198 = vcmp.lt.s32.totalorder %v160, 0
  %vm199 = vcmp.lt.s32.totalorder %v167, 0
  %vm200 = vmand %vm184, %vm168
  %vm201 = vmand %vm185, %vm169
  %vm202 = vmand %vm186, %vm170
  %vm203 = vmand %vm187, %vm171
  %vm204 = vmand %vm188, %vm172
  %vm205 = vmand %vm189, %vm173
  %vm206 = vmand %vm190, %vm174
  %vm207 = vmand %vm191, %vm175
  %vm208 = vmand %vm192, %vm176
  %vm209 = vmand %vm193, %vm177
  %vm210 = vmand %vm194, %vm178
  %vm211 = vmand %vm195, %vm179
  %vm212 = vmand %vm196, %vm180
  %vm213 = vmand %vm197, %vm181
  %vm214 = vmand %vm198, %vm182
  %vm215 = vmand %vm199, %vm183
  %v216 = vadd.s32 %v62, 1024
  %v217 = vadd.s32 %v69, 1024
  %v218 = vadd.s32 %v76, 1024
  %v219 = vadd.s32 %v83, 1024
  %v220 = vadd.s32 %v90, 1024
  %v221 = vadd.s32 %v97, 1024
  %v222 = vadd.s32 %v104, 1024
  %v223 = vadd.s32 %v111, 1024
  %v224 = vadd.s32 %v118, 1024
  %v225 = vadd.s32 %v125, 1024
  %v226 = vadd.s32 %v132, 1024
  %v227 = vadd.s32 %v139, 1024
  %v228 = vadd.s32 %v146, 1024
  %v229 = vadd.s32 %v153, 1024
  %v230 = vadd.s32 %v160, 1024
  %v231 = vadd.s32 %v167, 1024
  %v232 = vsel %vm200, %v216, %v62
  %v233 = vsel %vm201, %v217, %v69
  %v234 = vsel %vm202, %v218, %v76
  %v235 = vsel %vm203, %v219, %v83
  %v236 = vsel %vm204, %v220, %v90
  %v237 = vsel %vm205, %v221, %v97
  %v238 = vsel %vm206, %v222, %v104
  %v239 = vsel %vm207, %v223, %v111
  %v240 = vsel %vm208, %v224, %v118
  %v241 = vsel %vm209, %v225, %v125
  %v242 = vsel %vm210, %v226, %v132
  %v243 = vsel %vm211, %v227, %v139
  %v244 = vsel %vm212, %v228, %v146
  %v245 = vsel %vm213, %v229, %v153
  %v246 = vsel %vm214, %v230, %v160
  %v247 = vsel %vm215, %v231, %v167
  %vm248 = vcmp.lt.s32.totalorder %v232, 0
  %v249 = vsub.s32 0, %v232
  %v250 = vsel %vm248, %v249, %v232
  %v251 = vshrl.u32 %v250, 1
  %v252 = vand.u32 %v250, 1
  %v253 = vsub.s32 0, %v252
  %v254 = vsel %vm248, %v253, %v252
  %vm255 = vcmp.lt.s32.totalorder %v233, 0
  %v256 = vsub.s32 0, %v233
  %v257 = vsel %vm255, %v256, %v233
  %v258 = vshrl.u32 %v257, 1
  %v259 = vand.u32 %v257, 1
  %v260 = vsub.s32 0, %v259
  %v261 = vsel %vm255, %v260, %v259
  %vm262 = vcmp.lt.s32.totalorder %v234, 0
  %v263 = vsub.s32 0, %v234
  %v264 = vsel %vm262, %v263, %v234
  %v265 = vshrl.u32 %v264, 1
  %v266 = vand.u32 %v264, 1
  %v267 = vsub.s32 0, %v266
  %v268 = vsel %vm262, %v267, %v266
  %vm269 = vcmp.lt.s32.totalorder %v235, 0
  %v270 = vsub.s32 0, %v235
  %v271 = vsel %vm269, %v270, %v235
  %v272 = vshrl.u32 %v271, 1
  %v273 = vand.u32 %v271, 1
  %v274 = vsub.s32 0, %v273
  %v275 = vsel %vm269, %v274, %v273
  %vm276 = vcmp.lt.s32.totalorder %v236, 0
  %v277 = vsub.s32 0, %v236
  %v278 = vsel %vm276, %v277, %v236
  %v279 = vshrl.u32 %v278, 1
  %v280 = vand.u32 %v278, 1
  %v281 = vsub.s32 0, %v280
  %v282 = vsel %vm276, %v281, %v280
  %vm283 = vcmp.lt.s32.totalorder %v237, 0
  %v284 = vsub.s32 0, %v237
  %v285 = vsel %vm283, %v284, %v237
  %v286 = vshrl.u32 %v285, 1
  %v287 = vand.u32 %v285, 1
  %v288 = vsub.s32 0, %v287
  %v289 = vsel %vm283, %v288, %v287
  %vm290 = vcmp.lt.s32.totalorder %v238, 0
  %v291 = vsub.s32 0, %v238
  %v292 = vsel %vm290, %v291, %v238
  %v293 = vshrl.u32 %v292, 1
  %v294 = vand.u32 %v292, 1
  %v295 = vsub.s32 0, %v294
  %v296 = vsel %vm290, %v295, %v294
  %vm297 = vcmp.lt.s32.totalorder %v239, 0
  %v298 = vsub.s32 0, %v239
  %v299 = vsel %vm297, %v298, %v239
  %v300 = vshrl.u32 %v299, 1
  %v301 = vand.u32 %v299, 1
  %v302 = vsub.s32 0, %v301
  %v303 = vsel %vm297, %v302, %v301
  %vm304 = vcmp.lt.s32.totalorder %v240, 0
  %v305 = vsub.s32 0, %v240
  %v306 = vsel %vm304, %v305, %v240
  %v307 = vshrl.u32 %v306, 1
  %v308 = vand.u32 %v306, 1
  %v309 = vsub.s32 0, %v308
  %v310 = vsel %vm304, %v309, %v308
  %vm311 = vcmp.lt.s32.totalorder %v241, 0
  %v312 = vsub.s32 0, %v241
  %v313 = vsel %vm311, %v312, %v241
  %v314 = vshrl.u32 %v313, 1
  %v315 = vand.u32 %v313, 1
  %v316 = vsub.s32 0, %v315
  %v317 = vsel %vm311, %v316, %v315
  %vm318 = vcmp.lt.s32.totalorder %v242, 0
  %v319 = vsub.s32 0, %v242
  %v320 = vsel %vm318, %v319, %v242
  %v321 = vshrl.u32 %v320, 1
  %v322 = vand.u32 %v320, 1
  %v323 = vsub.s32 0, %v322
  %v324 = vsel %vm318, %v323, %v322
  %vm325 = vcmp.lt.s32.totalorder %v243, 0
  %v326 = vsub.s32 0, %v243
  %v327 = vsel %vm325, %v326, %v243
  %v328 = vshrl.u32 %v327, 1
  %v329 = vand.u32 %v327, 1
  %v330 = vsub.s32 0, %v329
  %v331 = vsel %vm325, %v330, %v329
  %vm332 = vcmp.lt.s32.totalorder %v244, 0
  %v333 = vsub.s32 0, %v244
  %v334 = vsel %vm332, %v333, %v244
  %v335 = vshrl.u32 %v334, 1
  %v336 = vand.u32 %v334, 1
  %v337 = vsub.s32 0, %v336
  %v338 = vsel %vm332, %v337, %v336
  %vm339 = vcmp.lt.s32.totalorder %v245, 0
  %v340 = vsub.s32 0, %v245
  %v341 = vsel %vm339, %v340, %v245
  %v342 = vshrl.u32 %v341, 1
  %v343 = vand.u32 %v341, 1
  %v344 = vsub.s32 0, %v343
  %v345 = vsel %vm339, %v344, %v343
  %vm346 = vcmp.lt.s32.totalorder %v246, 0
  %v347 = vsub.s32 0, %v246
  %v348 = vsel %vm346, %v347, %v246
  %v349 = vshrl.u32 %v348, 1
  %v350 = vand.u32 %v348, 1
  %v351 = vsub.s32 0, %v350
  %v352 = vsel %vm346, %v351, %v350
  %vm353 = vcmp.lt.s32.totalorder %v247, 0
  %v354 = vsub.s32 0, %v247
  %v355 = vsel %vm353, %v354, %v247
  %v356 = vshrl.u32 %v355, 1
  %v357 = vand.u32 %v355, 1
  %v358 = vsub.s32 0, %v357
  %v359 = vsel %vm353, %v358, %v357
  %vm360 = vcmp.ne.s32.totalorder %v254, 0
  %vm361 = vcmp.ne.s32.totalorder %v261, 0
  %vm362 = vcmp.ne.s32.totalorder %v268, 0
  %vm363 = vcmp.ne.s32.totalorder %v275, 0
  %vm364 = vcmp.ne.s32.totalorder %v282, 0
  %vm365 = vcmp.ne.s32.totalorder %v289, 0
  %vm366 = vcmp.ne.s32.totalorder %v296, 0
  %vm367 = vcmp.ne.s32.totalorder %v303, 0
  %vm368 = vcmp.ne.s32.totalorder %v310, 0
  %vm369 = vcmp.ne.s32.totalorder %v317, 0
  %vm370 = vcmp.ne.s32.totalorder %v324, 0
  %vm371 = vcmp.ne.s32.totalorder %v331, 0
  %vm372 = vcmp.ne.s32.totalorder %v338, 0
  %vm373 = vcmp.ne.s32.totalorder %v345, 0
  %vm374 = vcmp.ne.s32.totalorder %v352, 0
  %vm375 = vcmp.ne.s32.totalorder %v359, 0
  %vm376 = vcmp.lt.s32.totalorder %v254, 0
  %vm377 = vcmp.lt.s32.totalorder %v261, 0
  %vm378 = vcmp.lt.s32.totalorder %v268, 0
  %vm379 = vcmp.lt.s32.totalorder %v275, 0
  %vm380 = vcmp.lt.s32.totalorder %v282, 0
  %vm381 = vcmp.lt.s32.totalorder %v289, 0
  %vm382 = vcmp.lt.s32.totalorder %v296, 0
  %vm383 = vcmp.lt.s32.totalorder %v303, 0
  %vm384 = vcmp.lt.s32.totalorder %v310, 0
  %vm385 = vcmp.lt.s32.totalorder %v317, 0
  %vm386 = vcmp.lt.s32.totalorder %v324, 0
  %vm387 = vcmp.lt.s32.totalorder %v331, 0
  %vm388 = vcmp.lt.s32.totalorder %v338, 0
  %vm389 = vcmp.lt.s32.totalorder %v345, 0
  %vm390 = vcmp.lt.s32.totalorder %v352, 0
  %vm391 = vcmp.lt.s32.totalorder %v359, 0
  %vm392 = vmand %vm376, %vm360
  %vm393 = vmand %vm377, %vm361
  %vm394 = vmand %vm378, %vm362
  %vm395 = vmand %vm379, %vm363
  %vm396 = vmand %vm380, %vm364
  %vm397 = vmand %vm381, %vm365
  %vm398 = vmand %vm382, %vm366
  %vm399 = vmand %vm383, %vm367
  %vm400 = vmand %vm384, %vm368
  %vm401 = vmand %vm385, %vm369
  %vm402 = vmand %vm386, %vm370
  %vm403 = vmand %vm387, %vm371
  %vm404 = vmand %vm388, %vm372
  %vm405 = vmand %vm389, %vm373
  %vm406 = vmand %vm390, %vm374
  %vm407 = vmand %vm391, %vm375
  %v408 = vadd.s32 %v254, 2
  %v409 = vadd.s32 %v261, 2
  %v410 = vadd.s32 %v268, 2
  %v411 = vadd.s32 %v275, 2
  %v412 = vadd.s32 %v282, 2
  %v413 = vadd.s32 %v289, 2
  %v414 = vadd.s32 %v296, 2
  %v415 = vadd.s32 %v303, 2
  %v416 = vadd.s32 %v310, 2
  %v417 = vadd.s32 %v317, 2
  %v418 = vadd.s32 %v324, 2
  %v419 = vadd.s32 %v331, 2
  %v420 = vadd.s32 %v338, 2
  %v421 = vadd.s32 %v345, 2
  %v422 = vadd.s32 %v352, 2
  %v423 = vadd.s32 %v359, 2
  %v424 = vsel %vm392, %v408, %v254
  %v425 = vsel %vm393, %v409, %v261
  %v426 = vsel %vm394, %v410, %v268
  %v427 = vsel %vm395, %v411, %v275
  %v428 = vsel %vm396, %v412, %v282
  %v429 = vsel %vm397, %v413, %v289
  %v430 = vsel %vm398, %v414, %v296
  %v431 = vsel %vm399, %v415, %v303
  %v432 = vsel %vm400, %v416, %v310
  %v433 = vsel %vm401, %v417, %v317
  %v434 = vsel %vm402, %v418, %v324
  %v435 = vsel %vm403, %v419, %v331
  %v436 = vsel %vm404, %v420, %v338
  %v437 = vsel %vm405, %v421, %v345
  %v438 = vsel %vm406, %v422, %v352
  %v439 = vsel %vm407, %v423, %v359
  %vm440 = vcmp.eq.s32.totalorder %v424, 0
  %vm441 = vcmp.eq.s32.totalorder %v425, 0
  %vm442 = vcmp.eq.s32.totalorder %v426, 0
  %vm443 = vcmp.eq.s32.totalorder %v427, 0
  %vm444 = vcmp.eq.s32.totalorder %v428, 0
  %vm445 = vcmp.eq.s32.totalorder %v429, 0
  %vm446 = vcmp.eq.s32.totalorder %v430, 0
  %vm447 = vcmp.eq.s32.totalorder %v431, 0
  %vm448 = vcmp.eq.s32.totalorder %v432, 0
  %vm449 = vcmp.eq.s32.totalorder %v433, 0
  %vm450 = vcmp.eq.s32.totalorder %v434, 0
  %vm451 = vcmp.eq.s32.totalorder %v435, 0
  %vm452 = vcmp.eq.s32.totalorder %v436, 0
  %vm453 = vcmp.eq.s32.totalorder %v437, 0
  %vm454 = vcmp.eq.s32.totalorder %v438, 0
  %vm455 = vcmp.eq.s32.totalorder %v439, 0
  %v456 = vsel %vm440, 1, 0
  %v457 = vsel %vm441, 1, 0
  %v458 = vsel %vm442, 1, 0
  %v459 = vsel %vm443, 1, 0
  %v460 = vsel %vm444, 1, 0
  %v461 = vsel %vm445, 1, 0
  %v462 = vsel %vm446, 1, 0
  %v463 = vsel %vm447, 1, 0
  %v464 = vsel %vm448, 1, 0
  %v465 = vsel %vm449, 1, 0
  %v466 = vsel %vm450, 1, 0
  %v467 = vsel %vm451, 1, 0
  %v468 = vsel %vm452, 1, 0
  %v469 = vsel %vm453, 1, 0
  %v470 = vsel %vm454, 1, 0
  %v471 = vsel %vm455, 1, 0
  %v472 = vcvt.s32.f32 %v456
  %v473 = vcvt.s32.f32 %v457
  %v474 = vcvt.s32.f32 %v458
  %v475 = vcvt.s32.f32 %v459
  %v476 = vcvt.s32.f32 %v460
  %v477 = vcvt.s32.f32 %v461
  %v478 = vcvt.s32.f32 %v462
  %v479 = vcvt.s32.f32 %v463
  %v480 = vcvt.s32.f32 %v464
  %v481 = vcvt.s32.f32 %v465
  %v482 = vcvt.s32.f32 %v466
  %v483 = vcvt.s32.f32 %v467
  %v484 = vcvt.s32.f32 %v468
  %v485 = vcvt.s32.f32 %v469
  %v486 = vcvt.s32.f32 %v470
  %v487 = vcvt.s32.f32 %v471
  %vm488 = vcmp.lt.s32.totalorder %v232, 0
  %v489 = vsub.s32 0, %v232
  %v490 = vsel %vm488, %v489, %v232
  %v491 = vshrl.u32 %v490, 2
  %v492 = vand.u32 %v490, 3
  %v493 = vsub.s32 0, %v492
  %v494 = vsel %vm488, %v493, %v492
  %vm495 = vcmp.lt.s32.totalorder %v233, 0
  %v496 = vsub.s32 0, %v233
  %v497 = vsel %vm495, %v496, %v233
  %v498 = vshrl.u32 %v497, 2
  %v499 = vand.u32 %v497, 3
  %v500 = vsub.s32 0, %v499
  %v501 = vsel %vm495, %v500, %v499
  %vm502 = vcmp.lt.s32.totalorder %v234, 0
  %v503 = vsub.s32 0, %v234
  %v504 = vsel %vm502, %v503, %v234
  %v505 = vshrl.u32 %v504, 2
  %v506 = vand.u32 %v504, 3
  %v507 = vsub.s32 0, %v506
  %v508 = vsel %vm502, %v507, %v506
  %vm509 = vcmp.lt.s32.totalorder %v235, 0
  %v510 = vsub.s32 0, %v235
  %v511 = vsel %vm509, %v510, %v235
  %v512 = vshrl.u32 %v511, 2
  %v513 = vand.u32 %v511, 3
  %v514 = vsub.s32 0, %v513
  %v515 = vsel %vm509, %v514, %v513
  %vm516 = vcmp.lt.s32.totalorder %v236, 0
  %v517 = vsub.s32 0, %v236
  %v518 = vsel %vm516, %v517, %v236
  %v519 = vshrl.u32 %v518, 2
  %v520 = vand.u32 %v518, 3
  %v521 = vsub.s32 0, %v520
  %v522 = vsel %vm516, %v521, %v520
  %vm523 = vcmp.lt.s32.totalorder %v237, 0
  %v524 = vsub.s32 0, %v237
  %v525 = vsel %vm523, %v524, %v237
  %v526 = vshrl.u32 %v525, 2
  %v527 = vand.u32 %v525, 3
  %v528 = vsub.s32 0, %v527
  %v529 = vsel %vm523, %v528, %v527
  %vm530 = vcmp.lt.s32.totalorder %v238, 0
  %v531 = vsub.s32 0, %v238
  %v532 = vsel %vm530, %v531, %v238
  %v533 = vshrl.u32 %v532, 2
  %v534 = vand.u32 %v532, 3
  %v535 = vsub.s32 0, %v534
  %v536 = vsel %vm530, %v535, %v534
  %vm537 = vcmp.lt.s32.totalorder %v239, 0
  %v538 = vsub.s32 0, %v239
  %v539 = vsel %vm537, %v538, %v239
  %v540 = vshrl.u32 %v539, 2
  %v541 = vand.u32 %v539, 3
  %v542 = vsub.s32 0, %v541
  %v543 = vsel %vm537, %v542, %v541
  %vm544 = vcmp.lt.s32.totalorder %v240, 0
  %v545 = vsub.s32 0, %v240
  %v546 = vsel %vm544, %v545, %v240
  %v547 = vshrl.u32 %v546, 2
  %v548 = vand.u32 %v546, 3
  %v549 = vsub.s32 0, %v548
  %v550 = vsel %vm544, %v549, %v548
  %vm551 = vcmp.lt.s32.totalorder %v241, 0
  %v552 = vsub.s32 0, %v241
  %v553 = vsel %vm551, %v552, %v241
  %v554 = vshrl.u32 %v553, 2
  %v555 = vand.u32 %v553, 3
  %v556 = vsub.s32 0, %v555
  %v557 = vsel %vm551, %v556, %v555
  %vm558 = vcmp.lt.s32.totalorder %v242, 0
  %v559 = vsub.s32 0, %v242
  %v560 = vsel %vm558, %v559, %v242
  %v561 = vshrl.u32 %v560, 2
  %v562 = vand.u32 %v560, 3
  %v563 = vsub.s32 0, %v562
  %v564 = vsel %vm558, %v563, %v562
  %vm565 = vcmp.lt.s32.totalorder %v243, 0
  %v566 = vsub.s32 0, %v243
  %v567 = vsel %vm565, %v566, %v243
  %v568 = vshrl.u32 %v567, 2
  %v569 = vand.u32 %v567, 3
  %v570 = vsub.s32 0, %v569
  %v571 = vsel %vm565, %v570, %v569
  %vm572 = vcmp.lt.s32.totalorder %v244, 0
  %v573 = vsub.s32 0, %v244
  %v574 = vsel %vm572, %v573, %v244
  %v575 = vshrl.u32 %v574, 2
  %v576 = vand.u32 %v574, 3
  %v577 = vsub.s32 0, %v576
  %v578 = vsel %vm572, %v577, %v576
  %vm579 = vcmp.lt.s32.totalorder %v245, 0
  %v580 = vsub.s32 0, %v245
  %v581 = vsel %vm579, %v580, %v245
  %v582 = vshrl.u32 %v581, 2
  %v583 = vand.u32 %v581, 3
  %v584 = vsub.s32 0, %v583
  %v585 = vsel %vm579, %v584, %v583
  %vm586 = vcmp.lt.s32.totalorder %v246, 0
  %v587 = vsub.s32 0, %v246
  %v588 = vsel %vm586, %v587, %v246
  %v589 = vshrl.u32 %v588, 2
  %v590 = vand.u32 %v588, 3
  %v591 = vsub.s32 0, %v590
  %v592 = vsel %vm586, %v591, %v590
  %vm593 = vcmp.lt.s32.totalorder %v247, 0
  %v594 = vsub.s32 0, %v247
  %v595 = vsel %vm593, %v594, %v247
  %v596 = vshrl.u32 %v595, 2
  %v597 = vand.u32 %v595, 3
  %v598 = vsub.s32 0, %v597
  %v599 = vsel %vm593, %v598, %v597
  %vm600 = vcmp.ne.s32.totalorder %v494, 0
  %vm601 = vcmp.ne.s32.totalorder %v501, 0
  %vm602 = vcmp.ne.s32.totalorder %v508, 0
  %vm603 = vcmp.ne.s32.totalorder %v515, 0
  %vm604 = vcmp.ne.s32.totalorder %v522, 0
  %vm605 = vcmp.ne.s32.totalorder %v529, 0
  %vm606 = vcmp.ne.s32.totalorder %v536, 0
  %vm607 = vcmp.ne.s32.totalorder %v543, 0
  %vm608 = vcmp.ne.s32.totalorder %v550, 0
  %vm609 = vcmp.ne.s32.totalorder %v557, 0
  %vm610 = vcmp.ne.s32.totalorder %v564, 0
  %vm611 = vcmp.ne.s32.totalorder %v571, 0
  %vm612 = vcmp.ne.s32.totalorder %v578, 0
  %vm613 = vcmp.ne.s32.totalorder %v585, 0
  %vm614 = vcmp.ne.s32.totalorder %v592, 0
  %vm615 = vcmp.ne.s32.totalorder %v599, 0
  %vm616 = vcmp.lt.s32.totalorder %v494, 0
  %vm617 = vcmp.lt.s32.totalorder %v501, 0
  %vm618 = vcmp.lt.s32.totalorder %v508, 0
  %vm619 = vcmp.lt.s32.totalorder %v515, 0
  %vm620 = vcmp.lt.s32.totalorder %v522, 0
  %vm621 = vcmp.lt.s32.totalorder %v529, 0
  %vm622 = vcmp.lt.s32.totalorder %v536, 0
  %vm623 = vcmp.lt.s32.totalorder %v543, 0
  %vm624 = vcmp.lt.s32.totalorder %v550, 0
  %vm625 = vcmp.lt.s32.totalorder %v557, 0
  %vm626 = vcmp.lt.s32.totalorder %v564, 0
  %vm627 = vcmp.lt.s32.totalorder %v571, 0
  %vm628 = vcmp.lt.s32.totalorder %v578, 0
  %vm629 = vcmp.lt.s32.totalorder %v585, 0
  %vm630 = vcmp.lt.s32.totalorder %v592, 0
  %vm631 = vcmp.lt.s32.totalorder %v599, 0
  %vm632 = vmand %vm616, %vm600
  %vm633 = vmand %vm617, %vm601
  %vm634 = vmand %vm618, %vm602
  %vm635 = vmand %vm619, %vm603
  %vm636 = vmand %vm620, %vm604
  %vm637 = vmand %vm621, %vm605
  %vm638 = vmand %vm622, %vm606
  %vm639 = vmand %vm623, %vm607
  %vm640 = vmand %vm624, %vm608
  %vm641 = vmand %vm625, %vm609
  %vm642 = vmand %vm626, %vm610
  %vm643 = vmand %vm627, %vm611
  %vm644 = vmand %vm628, %vm612
  %vm645 = vmand %vm629, %vm613
  %vm646 = vmand %vm630, %vm614
  %vm647 = vmand %vm631, %vm615
  %v648 = vadd.s32 %v494, 4
  %v649 = vadd.s32 %v501, 4
  %v650 = vadd.s32 %v508, 4
  %v651 = vadd.s32 %v515, 4
  %v652 = vadd.s32 %v522, 4
  %v653 = vadd.s32 %v529, 4
  %v654 = vadd.s32 %v536, 4
  %v655 = vadd.s32 %v543, 4
  %v656 = vadd.s32 %v550, 4
  %v657 = vadd.s32 %v557, 4
  %v658 = vadd.s32 %v564, 4
  %v659 = vadd.s32 %v571, 4
  %v660 = vadd.s32 %v578, 4
  %v661 = vadd.s32 %v585, 4
  %v662 = vadd.s32 %v592, 4
  %v663 = vadd.s32 %v599, 4
  %v664 = vsel %vm632, %v648, %v494
  %v665 = vsel %vm633, %v649, %v501
  %v666 = vsel %vm634, %v650, %v508
  %v667 = vsel %vm635, %v651, %v515
  %v668 = vsel %vm636, %v652, %v522
  %v669 = vsel %vm637, %v653, %v529
  %v670 = vsel %vm638, %v654, %v536
  %v671 = vsel %vm639, %v655, %v543
  %v672 = vsel %vm640, %v656, %v550
  %v673 = vsel %vm641, %v657, %v557
  %v674 = vsel %vm642, %v658, %v564
  %v675 = vsel %vm643, %v659, %v571
  %v676 = vsel %vm644, %v660, %v578
  %v677 = vsel %vm645, %v661, %v585
  %v678 = vsel %vm646, %v662, %v592
  %v679 = vsel %vm647, %v663, %v599
  %vm680 = vcmp.eq.s32.totalorder %v664, 0
  %vm681 = vcmp.eq.s32.totalorder %v665, 0
  %vm682 = vcmp.eq.s32.totalorder %v666, 0
  %vm683 = vcmp.eq.s32.totalorder %v667, 0
  %vm684 = vcmp.eq.s32.totalorder %v668, 0
  %vm685 = vcmp.eq.s32.totalorder %v669, 0
  %vm686 = vcmp.eq.s32.totalorder %v670, 0
  %vm687 = vcmp.eq.s32.totalorder %v671, 0
  %vm688 = vcmp.eq.s32.totalorder %v672, 0
  %vm689 = vcmp.eq.s32.totalorder %v673, 0
  %vm690 = vcmp.eq.s32.totalorder %v674, 0
  %vm691 = vcmp.eq.s32.totalorder %v675, 0
  %vm692 = vcmp.eq.s32.totalorder %v676, 0
  %vm693 = vcmp.eq.s32.totalorder %v677, 0
  %vm694 = vcmp.eq.s32.totalorder %v678, 0
  %vm695 = vcmp.eq.s32.totalorder %v679, 0
  %v696 = vsel %vm680, 1, 0
  %v697 = vsel %vm681, 1, 0
  %v698 = vsel %vm682, 1, 0
  %v699 = vsel %vm683, 1, 0
  %v700 = vsel %vm684, 1, 0
  %v701 = vsel %vm685, 1, 0
  %v702 = vsel %vm686, 1, 0
  %v703 = vsel %vm687, 1, 0
  %v704 = vsel %vm688, 1, 0
  %v705 = vsel %vm689, 1, 0
  %v706 = vsel %vm690, 1, 0
  %v707 = vsel %vm691, 1, 0
  %v708 = vsel %vm692, 1, 0
  %v709 = vsel %vm693, 1, 0
  %v710 = vsel %vm694, 1, 0
  %v711 = vsel %vm695, 1, 0
  %v712 = vcvt.s32.f32 %v696
  %v713 = vcvt.s32.f32 %v697
  %v714 = vcvt.s32.f32 %v698
  %v715 = vcvt.s32.f32 %v699
  %v716 = vcvt.s32.f32 %v700
  %v717 = vcvt.s32.f32 %v701
  %v718 = vcvt.s32.f32 %v702
  %v719 = vcvt.s32.f32 %v703
  %v720 = vcvt.s32.f32 %v704
  %v721 = vcvt.s32.f32 %v705
  %v722 = vcvt.s32.f32 %v706
  %v723 = vcvt.s32.f32 %v707
  %v724 = vcvt.s32.f32 %v708
  %v725 = vcvt.s32.f32 %v709
  %v726 = vcvt.s32.f32 %v710
  %v727 = vcvt.s32.f32 %v711
  %v728 = vld [vmem:[%s0] sm:$0xff]
  %v729 = vld [vmem:[%s0 + $0x8] sm:$0xff]
  %v730 = vld [vmem:[%s1] sm:$0xf]
  %v731 = vld [vmem:[%s1 + $0x4] sm:$0xf]
  %v734 = vlaneseq
  %v735 = vshrl.u32 %v734, 7
  %v736 = vsub.s32 0, %v735
  %v737 = vrot.slane %v728, %v736
  %v738 = vlaneseq
  %v739 = vshrl.u32 %v738, 7
  %v740 = vsub.s32 1, %v739
  %v741 = vrot.slane %v728, %v740
  %v742 = vlaneseq
  %v743 = vshrl.u32 %v742, 7
  %v744 = vsub.s32 2, %v743
  %v745 = vrot.slane %v728, %v744
  %v746 = vlaneseq
  %v747 = vshrl.u32 %v746, 7
  %v748 = vsub.s32 3, %v747
  %v749 = vrot.slane %v728, %v748
  %v750 = vlaneseq
  %v751 = vshrl.u32 %v750, 7
  %v752 = vsub.s32 4, %v751
  %v753 = vrot.slane %v728, %v752
  %v754 = vlaneseq
  %v755 = vshrl.u32 %v754, 7
  %v756 = vsub.s32 5, %v755
  %v757 = vrot.slane %v728, %v756
  %v758 = vlaneseq
  %v759 = vshrl.u32 %v758, 7
  %v760 = vsub.s32 6, %v759
  %v761 = vrot.slane %v728, %v760
  %v762 = vlaneseq
  %v763 = vshrl.u32 %v762, 7
  %v764 = vsub.s32 7, %v763
  %v765 = vrot.slane %v728, %v764
  %v766 = vlaneseq
  %v767 = vshrl.u32 %v766, 7
  %v768 = vsub.s32 0, %v767
  %v769 = vrot.slane %v729, %v768
  %v770 = vlaneseq
  %v771 = vshrl.u32 %v770, 7
  %v772 = vsub.s32 1, %v771
  %v773 = vrot.slane %v729, %v772
  %v774 = vlaneseq
  %v775 = vshrl.u32 %v774, 7
  %v776 = vsub.s32 2, %v775
  %v777 = vrot.slane %v729, %v776
  %v778 = vlaneseq
  %v779 = vshrl.u32 %v778, 7
  %v780 = vsub.s32 3, %v779
  %v781 = vrot.slane %v729, %v780
  %v782 = vlaneseq
  %v783 = vshrl.u32 %v782, 7
  %v784 = vsub.s32 4, %v783
  %v785 = vrot.slane %v729, %v784
  %v786 = vlaneseq
  %v787 = vshrl.u32 %v786, 7
  %v788 = vsub.s32 5, %v787
  %v789 = vrot.slane %v729, %v788
  %v790 = vlaneseq
  %v791 = vshrl.u32 %v790, 7
  %v792 = vsub.s32 6, %v791
  %v793 = vrot.slane %v729, %v792
  %v794 = vlaneseq
  %v795 = vshrl.u32 %v794, 7
  %v796 = vsub.s32 7, %v795
  %v797 = vrot.slane %v729, %v796
  %814 = vrot.lane.b32.xlu0 %v737, 2
  %v815 = vpop.permute.xlu0 %814
  %816 = vrot.lane.b32.xlu0 %v741, 2
  %v817 = vpop.permute.xlu0 %816
  %818 = vrot.lane.b32.xlu0 %v745, 2
  %v819 = vpop.permute.xlu0 %818
  %820 = vrot.lane.b32.xlu0 %v749, 2
  %v821 = vpop.permute.xlu0 %820
  %822 = vrot.lane.b32.xlu0 %v753, 2
  %v823 = vpop.permute.xlu0 %822
  %824 = vrot.lane.b32.xlu0 %v757, 2
  %v825 = vpop.permute.xlu0 %824
  %826 = vrot.lane.b32.xlu0 %v761, 2
  %v827 = vpop.permute.xlu0 %826
  %828 = vrot.lane.b32.xlu0 %v765, 2
  %v829 = vpop.permute.xlu0 %828
  %830 = vrot.lane.b32.xlu0 %v769, 2
  %v831 = vpop.permute.xlu0 %830
  %832 = vrot.lane.b32.xlu0 %v773, 2
  %v833 = vpop.permute.xlu0 %832
  %834 = vrot.lane.b32.xlu0 %v777, 2
  %v835 = vpop.permute.xlu0 %834
  %836 = vrot.lane.b32.xlu0 %v781, 2
  %v837 = vpop.permute.xlu0 %836
  %838 = vrot.lane.b32.xlu0 %v785, 2
  %v839 = vpop.permute.xlu0 %838
  %840 = vrot.lane.b32.xlu0 %v789, 2
  %v841 = vpop.permute.xlu0 %840
  %842 = vrot.lane.b32.xlu0 %v793, 2
  %v843 = vpop.permute.xlu0 %842
  %844 = vrot.lane.b32.xlu0 %v797, 2
  %v845 = vpop.permute.xlu0 %844
  %vm846 = vcmp.lt.s32.totalorder %v40, 2
  %v847 = vsel %vm846, %v843, %v845
  %v848 = vsel %vm846, %v841, %v843
  %v849 = vsel %vm846, %v839, %v841
  %v850 = vsel %vm846, %v837, %v839
  %v851 = vsel %vm846, %v835, %v837
  %v852 = vsel %vm846, %v833, %v835
  %v853 = vsel %vm846, %v831, %v833
  %v854 = vsel %vm846, %v829, %v831
  %v855 = vsel %vm846, %v827, %v829
  %v856 = vsel %vm846, %v825, %v827
  %v857 = vsel %vm846, %v823, %v825
  %v858 = vsel %vm846, %v821, %v823
  %v859 = vsel %vm846, %v819, %v821
  %v860 = vsel %vm846, %v817, %v819
  %v861 = vsel %vm846, %v815, %v817
  %v862 = vsel %vm846, %v845, %v815
  %v863 = vadd.s32 %v232, 4294967294
  %v864 = vadd.s32 %v233, 4294967294
  %v865 = vadd.s32 %v234, 4294967294
  %v866 = vadd.s32 %v235, 4294967294
  %v867 = vadd.s32 %v236, 4294967294
  %v868 = vadd.s32 %v237, 4294967294
  %v869 = vadd.s32 %v238, 4294967294
  %v870 = vadd.s32 %v239, 4294967294
  %v871 = vadd.s32 %v240, 4294967294
  %v872 = vadd.s32 %v241, 4294967294
  %v873 = vadd.s32 %v242, 4294967294
  %v874 = vadd.s32 %v243, 4294967294
  %v875 = vadd.s32 %v244, 4294967294
  %v876 = vadd.s32 %v245, 4294967294
  %v877 = vadd.s32 %v246, 4294967294
  %v878 = vadd.s32 %v247, 4294967294
  %vm879 = vcmp.ge.s32.totalorder %v863, 0
  %vm880 = vcmp.ge.s32.totalorder %v864, 0
  %vm881 = vcmp.ge.s32.totalorder %v865, 0
  %vm882 = vcmp.ge.s32.totalorder %v866, 0
  %vm883 = vcmp.ge.s32.totalorder %v867, 0
  %vm884 = vcmp.ge.s32.totalorder %v868, 0
  %vm885 = vcmp.ge.s32.totalorder %v869, 0
  %vm886 = vcmp.ge.s32.totalorder %v870, 0
  %vm887 = vcmp.ge.s32.totalorder %v871, 0
  %vm888 = vcmp.ge.s32.totalorder %v872, 0
  %vm889 = vcmp.ge.s32.totalorder %v873, 0
  %vm890 = vcmp.ge.s32.totalorder %v874, 0
  %vm891 = vcmp.ge.s32.totalorder %v875, 0
  %vm892 = vcmp.ge.s32.totalorder %v876, 0
  %vm893 = vcmp.ge.s32.totalorder %v877, 0
  %vm894 = vcmp.ge.s32.totalorder %v878, 0
  %vm895 = vcmp.lt.s32.totalorder %v863, 1024
  %vm896 = vcmp.lt.s32.totalorder %v864, 1024
  %vm897 = vcmp.lt.s32.totalorder %v865, 1024
  %vm898 = vcmp.lt.s32.totalorder %v866, 1024
  %vm899 = vcmp.lt.s32.totalorder %v867, 1024
  %vm900 = vcmp.lt.s32.totalorder %v868, 1024
  %vm901 = vcmp.lt.s32.totalorder %v869, 1024
  %vm902 = vcmp.lt.s32.totalorder %v870, 1024
  %vm903 = vcmp.lt.s32.totalorder %v871, 1024
  %vm904 = vcmp.lt.s32.totalorder %v872, 1024
  %vm905 = vcmp.lt.s32.totalorder %v873, 1024
  %vm906 = vcmp.lt.s32.totalorder %v874, 1024
  %vm907 = vcmp.lt.s32.totalorder %v875, 1024
  %vm908 = vcmp.lt.s32.totalorder %v876, 1024
  %vm909 = vcmp.lt.s32.totalorder %v877, 1024
  %vm910 = vcmp.lt.s32.totalorder %v878, 1024
  %vm911 = vmand %vm879, %vm895
  %vm912 = vmand %vm880, %vm896
  %vm913 = vmand %vm881, %vm897
  %vm914 = vmand %vm882, %vm898
  %vm915 = vmand %vm883, %vm899
  %vm916 = vmand %vm884, %vm900
  %vm917 = vmand %vm885, %vm901
  %vm918 = vmand %vm886, %vm902
  %vm919 = vmand %vm887, %vm903
  %vm920 = vmand %vm888, %vm904
  %vm921 = vmand %vm889, %vm905
  %vm922 = vmand %vm890, %vm906
  %vm923 = vmand %vm891, %vm907
  %vm924 = vmand %vm892, %vm908
  %vm925 = vmand %vm893, %vm909
  %vm926 = vmand %vm894, %vm910
  %v927 = vsel %vm911, %v862, 0.0
  %v928 = vsel %vm912, %v861, 0.0
  %v929 = vsel %vm913, %v860, 0.0
  %v930 = vsel %vm914, %v859, 0.0
  %v931 = vsel %vm915, %v858, 0.0
  %v932 = vsel %vm916, %v857, 0.0
  %v933 = vsel %vm917, %v856, 0.0
  %v934 = vsel %vm918, %v855, 0.0
  %v935 = vsel %vm919, %v854, 0.0
  %v936 = vsel %vm920, %v853, 0.0
  %v937 = vsel %vm921, %v852, 0.0
  %v938 = vsel %vm922, %v851, 0.0
  %v939 = vsel %vm923, %v850, 0.0
  %v940 = vsel %vm924, %v849, 0.0
  %v941 = vsel %vm925, %v848, 0.0
  %v942 = vsel %vm926, %v847, 0.0
  %943 = vrot.lane.b32.xlu0 %v737, 1
  %v944 = vpop.permute.xlu0 %943
  %945 = vrot.lane.b32.xlu0 %v741, 1
  %v946 = vpop.permute.xlu0 %945
  %947 = vrot.lane.b32.xlu0 %v745, 1
  %v948 = vpop.permute.xlu0 %947
  %949 = vrot.lane.b32.xlu0 %v749, 1
  %v950 = vpop.permute.xlu0 %949
  %951 = vrot.lane.b32.xlu0 %v753, 1
  %v952 = vpop.permute.xlu0 %951
  %953 = vrot.lane.b32.xlu0 %v757, 1
  %v954 = vpop.permute.xlu0 %953
  %955 = vrot.lane.b32.xlu0 %v761, 1
  %v956 = vpop.permute.xlu0 %955
  %957 = vrot.lane.b32.xlu0 %v765, 1
  %v958 = vpop.permute.xlu0 %957
  %959 = vrot.lane.b32.xlu0 %v769, 1
  %v960 = vpop.permute.xlu0 %959
  %961 = vrot.lane.b32.xlu0 %v773, 1
  %v962 = vpop.permute.xlu0 %961
  %963 = vrot.lane.b32.xlu0 %v777, 1
  %v964 = vpop.permute.xlu0 %963
  %965 = vrot.lane.b32.xlu0 %v781, 1
  %v966 = vpop.permute.xlu0 %965
  %967 = vrot.lane.b32.xlu0 %v785, 1
  %v968 = vpop.permute.xlu0 %967
  %969 = vrot.lane.b32.xlu0 %v789, 1
  %v970 = vpop.permute.xlu0 %969
  %971 = vrot.lane.b32.xlu0 %v793, 1
  %v972 = vpop.permute.xlu0 %971
  %973 = vrot.lane.b32.xlu0 %v797, 1
  %v974 = vpop.permute.xlu0 %973
  %vm975 = vcmp.lt.s32.totalorder %v40, 1
  %v976 = vsel %vm975, %v972, %v974
  %v977 = vsel %vm975, %v970, %v972
  %v978 = vsel %vm975, %v968, %v970
  %v979 = vsel %vm975, %v966, %v968
  %v980 = vsel %vm975, %v964, %v966
  %v981 = vsel %vm975, %v962, %v964
  %v982 = vsel %vm975, %v960, %v962
  %v983 = vsel %vm975, %v958, %v960
  %v984 = vsel %vm975, %v956, %v958
  %v985 = vsel %vm975, %v954, %v956
  %v986 = vsel %vm975, %v952, %v954
  %v987 = vsel %vm975, %v950, %v952
  %v988 = vsel %vm975, %v948, %v950
  %v989 = vsel %vm975, %v946, %v948
  %v990 = vsel %vm975, %v944, %v946
  %v991 = vsel %vm975, %v974, %v944
  %v992 = vadd.s32 %v232, 4294967295
  %v993 = vadd.s32 %v233, 4294967295
  %v994 = vadd.s32 %v234, 4294967295
  %v995 = vadd.s32 %v235, 4294967295
  %v996 = vadd.s32 %v236, 4294967295
  %v997 = vadd.s32 %v237, 4294967295
  %v998 = vadd.s32 %v238, 4294967295
  %v999 = vadd.s32 %v239, 4294967295
  %v1000 = vadd.s32 %v240, 4294967295
  %v1001 = vadd.s32 %v241, 4294967295
  %v1002 = vadd.s32 %v242, 4294967295
  %v1003 = vadd.s32 %v243, 4294967295
  %v1004 = vadd.s32 %v244, 4294967295
  %v1005 = vadd.s32 %v245, 4294967295
  %v1006 = vadd.s32 %v246, 4294967295
  %v1007 = vadd.s32 %v247, 4294967295
  %vm1008 = vcmp.ge.s32.totalorder %v992, 0
  %vm1009 = vcmp.ge.s32.totalorder %v993, 0
  %vm1010 = vcmp.ge.s32.totalorder %v994, 0
  %vm1011 = vcmp.ge.s32.totalorder %v995, 0
  %vm1012 = vcmp.ge.s32.totalorder %v996, 0
  %vm1013 = vcmp.ge.s32.totalorder %v997, 0
  %vm1014 = vcmp.ge.s32.totalorder %v998, 0
  %vm1015 = vcmp.ge.s32.totalorder %v999, 0
  %vm1016 = vcmp.ge.s32.totalorder %v1000, 0
  %vm1017 = vcmp.ge.s32.totalorder %v1001, 0
  %vm1018 = vcmp.ge.s32.totalorder %v1002, 0
  %vm1019 = vcmp.ge.s32.totalorder %v1003, 0
  %vm1020 = vcmp.ge.s32.totalorder %v1004, 0
  %vm1021 = vcmp.ge.s32.totalorder %v1005, 0
  %vm1022 = vcmp.ge.s32.totalorder %v1006, 0
  %vm1023 = vcmp.ge.s32.totalorder %v1007, 0
  %vm1024 = vcmp.lt.s32.totalorder %v992, 1024
  %vm1025 = vcmp.lt.s32.totalorder %v993, 1024
  %vm1026 = vcmp.lt.s32.totalorder %v994, 1024
  %vm1027 = vcmp.lt.s32.totalorder %v995, 1024
  %vm1028 = vcmp.lt.s32.totalorder %v996, 1024
  %vm1029 = vcmp.lt.s32.totalorder %v997, 1024
  %vm1030 = vcmp.lt.s32.totalorder %v998, 1024
  %vm1031 = vcmp.lt.s32.totalorder %v999, 1024
  %vm1032 = vcmp.lt.s32.totalorder %v1000, 1024
  %vm1033 = vcmp.lt.s32.totalorder %v1001, 1024
  %vm1034 = vcmp.lt.s32.totalorder %v1002, 1024
  %vm1035 = vcmp.lt.s32.totalorder %v1003, 1024
  %vm1036 = vcmp.lt.s32.totalorder %v1004, 1024
  %vm1037 = vcmp.lt.s32.totalorder %v1005, 1024
  %vm1038 = vcmp.lt.s32.totalorder %v1006, 1024
  %vm1039 = vcmp.lt.s32.totalorder %v1007, 1024
  %vm1040 = vmand %vm1008, %vm1024
  %vm1041 = vmand %vm1009, %vm1025
  %vm1042 = vmand %vm1010, %vm1026
  %vm1043 = vmand %vm1011, %vm1027
  %vm1044 = vmand %vm1012, %vm1028
  %vm1045 = vmand %vm1013, %vm1029
  %vm1046 = vmand %vm1014, %vm1030
  %vm1047 = vmand %vm1015, %vm1031
  %vm1048 = vmand %vm1016, %vm1032
  %vm1049 = vmand %vm1017, %vm1033
  %vm1050 = vmand %vm1018, %vm1034
  %vm1051 = vmand %vm1019, %vm1035
  %vm1052 = vmand %vm1020, %vm1036
  %vm1053 = vmand %vm1021, %vm1037
  %vm1054 = vmand %vm1022, %vm1038
  %vm1055 = vmand %vm1023, %vm1039
  %v1056 = vsel %vm1040, %v991, 0.0
  %v1057 = vsel %vm1041, %v990, 0.0
  %v1058 = vsel %vm1042, %v989, 0.0
  %v1059 = vsel %vm1043, %v988, 0.0
  %v1060 = vsel %vm1044, %v987, 0.0
  %v1061 = vsel %vm1045, %v986, 0.0
  %v1062 = vsel %vm1046, %v985, 0.0
  %v1063 = vsel %vm1047, %v984, 0.0
  %v1064 = vsel %vm1048, %v983, 0.0
  %v1065 = vsel %vm1049, %v982, 0.0
  %v1066 = vsel %vm1050, %v981, 0.0
  %v1067 = vsel %vm1051, %v980, 0.0
  %v1068 = vsel %vm1052, %v979, 0.0
  %v1069 = vsel %vm1053, %v978, 0.0
  %v1070 = vsel %vm1054, %v977, 0.0
  %v1071 = vsel %vm1055, %v976, 0.0
  %vm1072 = vcmp.ge.s32.totalorder %v232, 0
  %vm1073 = vcmp.ge.s32.totalorder %v233, 0
  %vm1074 = vcmp.ge.s32.totalorder %v234, 0
  %vm1075 = vcmp.ge.s32.totalorder %v235, 0
  %vm1076 = vcmp.ge.s32.totalorder %v236, 0
  %vm1077 = vcmp.ge.s32.totalorder %v237, 0
  %vm1078 = vcmp.ge.s32.totalorder %v238, 0
  %vm1079 = vcmp.ge.s32.totalorder %v239, 0
  %vm1080 = vcmp.ge.s32.totalorder %v240, 0
  %vm1081 = vcmp.ge.s32.totalorder %v241, 0
  %vm1082 = vcmp.ge.s32.totalorder %v242, 0
  %vm1083 = vcmp.ge.s32.totalorder %v243, 0
  %vm1084 = vcmp.ge.s32.totalorder %v244, 0
  %vm1085 = vcmp.ge.s32.totalorder %v245, 0
  %vm1086 = vcmp.ge.s32.totalorder %v246, 0
  %vm1087 = vcmp.ge.s32.totalorder %v247, 0
  %vm1088 = vcmp.lt.s32.totalorder %v232, 1024
  %vm1089 = vcmp.lt.s32.totalorder %v233, 1024
  %vm1090 = vcmp.lt.s32.totalorder %v234, 1024
  %vm1091 = vcmp.lt.s32.totalorder %v235, 1024
  %vm1092 = vcmp.lt.s32.totalorder %v236, 1024
  %vm1093 = vcmp.lt.s32.totalorder %v237, 1024
  %vm1094 = vcmp.lt.s32.totalorder %v238, 1024
  %vm1095 = vcmp.lt.s32.totalorder %v239, 1024
  %vm1096 = vcmp.lt.s32.totalorder %v240, 1024
  %vm1097 = vcmp.lt.s32.totalorder %v241, 1024
  %vm1098 = vcmp.lt.s32.totalorder %v242, 1024
  %vm1099 = vcmp.lt.s32.totalorder %v243, 1024
  %vm1100 = vcmp.lt.s32.totalorder %v244, 1024
  %vm1101 = vcmp.lt.s32.totalorder %v245, 1024
  %vm1102 = vcmp.lt.s32.totalorder %v246, 1024
  %vm1103 = vcmp.lt.s32.totalorder %v247, 1024
  %vm1104 = vmand %vm1072, %vm1088
  %vm1105 = vmand %vm1073, %vm1089
  %vm1106 = vmand %vm1074, %vm1090
  %vm1107 = vmand %vm1075, %vm1091
  %vm1108 = vmand %vm1076, %vm1092
  %vm1109 = vmand %vm1077, %vm1093
  %vm1110 = vmand %vm1078, %vm1094
  %vm1111 = vmand %vm1079, %vm1095
  %vm1112 = vmand %vm1080, %vm1096
  %vm1113 = vmand %vm1081, %vm1097
  %vm1114 = vmand %vm1082, %vm1098
  %vm1115 = vmand %vm1083, %vm1099
  %vm1116 = vmand %vm1084, %vm1100
  %vm1117 = vmand %vm1085, %vm1101
  %vm1118 = vmand %vm1086, %vm1102
  %vm1119 = vmand %vm1087, %vm1103
  %v1120 = vsel %vm1104, %v737, 0.0
  %v1121 = vsel %vm1105, %v741, 0.0
  %v1122 = vsel %vm1106, %v745, 0.0
  %v1123 = vsel %vm1107, %v749, 0.0
  %v1124 = vsel %vm1108, %v753, 0.0
  %v1125 = vsel %vm1109, %v757, 0.0
  %v1126 = vsel %vm1110, %v761, 0.0
  %v1127 = vsel %vm1111, %v765, 0.0
  %v1128 = vsel %vm1112, %v769, 0.0
  %v1129 = vsel %vm1113, %v773, 0.0
  %v1130 = vsel %vm1114, %v777, 0.0
  %v1131 = vsel %vm1115, %v781, 0.0
  %v1132 = vsel %vm1116, %v785, 0.0
  %v1133 = vsel %vm1117, %v789, 0.0
  %v1134 = vsel %vm1118, %v793, 0.0
  %v1135 = vsel %vm1119, %v797, 0.0
  %1136 = vrot.lane.b32.xlu0 %v737, 127
  %v1137 = vpop.permute.xlu0 %1136
  %1138 = vrot.lane.b32.xlu0 %v741, 127
  %v1139 = vpop.permute.xlu0 %1138
  %1140 = vrot.lane.b32.xlu0 %v745, 127
  %v1141 = vpop.permute.xlu0 %1140
  %1142 = vrot.lane.b32.xlu0 %v749, 127
  %v1143 = vpop.permute.xlu0 %1142
  %1144 = vrot.lane.b32.xlu0 %v753, 127
  %v1145 = vpop.permute.xlu0 %1144
  %1146 = vrot.lane.b32.xlu0 %v757, 127
  %v1147 = vpop.permute.xlu0 %1146
  %1148 = vrot.lane.b32.xlu0 %v761, 127
  %v1149 = vpop.permute.xlu0 %1148
  %1150 = vrot.lane.b32.xlu0 %v765, 127
  %v1151 = vpop.permute.xlu0 %1150
  %1152 = vrot.lane.b32.xlu0 %v769, 127
  %v1153 = vpop.permute.xlu0 %1152
  %1154 = vrot.lane.b32.xlu0 %v773, 127
  %v1155 = vpop.permute.xlu0 %1154
  %1156 = vrot.lane.b32.xlu0 %v777, 127
  %v1157 = vpop.permute.xlu0 %1156
  %1158 = vrot.lane.b32.xlu0 %v781, 127
  %v1159 = vpop.permute.xlu0 %1158
  %1160 = vrot.lane.b32.xlu0 %v785, 127
  %v1161 = vpop.permute.xlu0 %1160
  %1162 = vrot.lane.b32.xlu0 %v789, 127
  %v1163 = vpop.permute.xlu0 %1162
  %1164 = vrot.lane.b32.xlu0 %v793, 127
  %v1165 = vpop.permute.xlu0 %1164
  %1166 = vrot.lane.b32.xlu0 %v797, 127
  %v1167 = vpop.permute.xlu0 %1166
  %vm1168 = vcmp.lt.s32.totalorder %v40, 127
  %v1169 = vsel %vm1168, %v1165, %v1167
  %v1170 = vsel %vm1168, %v1163, %v1165
  %v1171 = vsel %vm1168, %v1161, %v1163
  %v1172 = vsel %vm1168, %v1159, %v1161
  %v1173 = vsel %vm1168, %v1157, %v1159
  %v1174 = vsel %vm1168, %v1155, %v1157
  %v1175 = vsel %vm1168, %v1153, %v1155
  %v1176 = vsel %vm1168, %v1151, %v1153
  %v1177 = vsel %vm1168, %v1149, %v1151
  %v1178 = vsel %vm1168, %v1147, %v1149
  %v1179 = vsel %vm1168, %v1145, %v1147
  %v1180 = vsel %vm1168, %v1143, %v1145
  %v1181 = vsel %vm1168, %v1141, %v1143
  %v1182 = vsel %vm1168, %v1139, %v1141
  %v1183 = vsel %vm1168, %v1137, %v1139
  %v1184 = vsel %vm1168, %v1167, %v1137
  %v1185 = vadd.s32 %v232, 1
  %v1186 = vadd.s32 %v233, 1
  %v1187 = vadd.s32 %v234, 1
  %v1188 = vadd.s32 %v235, 1
  %v1189 = vadd.s32 %v236, 1
  %v1190 = vadd.s32 %v237, 1
  %v1191 = vadd.s32 %v238, 1
  %v1192 = vadd.s32 %v239, 1
  %v1193 = vadd.s32 %v240, 1
  %v1194 = vadd.s32 %v241, 1
  %v1195 = vadd.s32 %v242, 1
  %v1196 = vadd.s32 %v243, 1
  %v1197 = vadd.s32 %v244, 1
  %v1198 = vadd.s32 %v245, 1
  %v1199 = vadd.s32 %v246, 1
  %v1200 = vadd.s32 %v247, 1
  %vm1201 = vcmp.ge.s32.totalorder %v1185, 0
  %vm1202 = vcmp.ge.s32.totalorder %v1186, 0
  %vm1203 = vcmp.ge.s32.totalorder %v1187, 0
  %vm1204 = vcmp.ge.s32.totalorder %v1188, 0
  %vm1205 = vcmp.ge.s32.totalorder %v1189, 0
  %vm1206 = vcmp.ge.s32.totalorder %v1190, 0
  %vm1207 = vcmp.ge.s32.totalorder %v1191, 0
  %vm1208 = vcmp.ge.s32.totalorder %v1192, 0
  %vm1209 = vcmp.ge.s32.totalorder %v1193, 0
  %vm1210 = vcmp.ge.s32.totalorder %v1194, 0
  %vm1211 = vcmp.ge.s32.totalorder %v1195, 0
  %vm1212 = vcmp.ge.s32.totalorder %v1196, 0
  %vm1213 = vcmp.ge.s32.totalorder %v1197, 0
  %vm1214 = vcmp.ge.s32.totalorder %v1198, 0
  %vm1215 = vcmp.ge.s32.totalorder %v1199, 0
  %vm1216 = vcmp.ge.s32.totalorder %v1200, 0
  %vm1217 = vcmp.lt.s32.totalorder %v1185, 1024
  %vm1218 = vcmp.lt.s32.totalorder %v1186, 1024
  %vm1219 = vcmp.lt.s32.totalorder %v1187, 1024
  %vm1220 = vcmp.lt.s32.totalorder %v1188, 1024
  %vm1221 = vcmp.lt.s32.totalorder %v1189, 1024
  %vm1222 = vcmp.lt.s32.totalorder %v1190, 1024
  %vm1223 = vcmp.lt.s32.totalorder %v1191, 1024
  %vm1224 = vcmp.lt.s32.totalorder %v1192, 1024
  %vm1225 = vcmp.lt.s32.totalorder %v1193, 1024
  %vm1226 = vcmp.lt.s32.totalorder %v1194, 1024
  %vm1227 = vcmp.lt.s32.totalorder %v1195, 1024
  %vm1228 = vcmp.lt.s32.totalorder %v1196, 1024
  %vm1229 = vcmp.lt.s32.totalorder %v1197, 1024
  %vm1230 = vcmp.lt.s32.totalorder %v1198, 1024
  %vm1231 = vcmp.lt.s32.totalorder %v1199, 1024
  %vm1232 = vcmp.lt.s32.totalorder %v1200, 1024
  %vm1233 = vmand %vm1201, %vm1217
  %vm1234 = vmand %vm1202, %vm1218
  %vm1235 = vmand %vm1203, %vm1219
  %vm1236 = vmand %vm1204, %vm1220
  %vm1237 = vmand %vm1205, %vm1221
  %vm1238 = vmand %vm1206, %vm1222
  %vm1239 = vmand %vm1207, %vm1223
  %vm1240 = vmand %vm1208, %vm1224
  %vm1241 = vmand %vm1209, %vm1225
  %vm1242 = vmand %vm1210, %vm1226
  %vm1243 = vmand %vm1211, %vm1227
  %vm1244 = vmand %vm1212, %vm1228
  %vm1245 = vmand %vm1213, %vm1229
  %vm1246 = vmand %vm1214, %vm1230
  %vm1247 = vmand %vm1215, %vm1231
  %vm1248 = vmand %vm1216, %vm1232
  %v1249 = vsel %vm1233, %v1183, 0.0
  %v1250 = vsel %vm1234, %v1182, 0.0
  %v1251 = vsel %vm1235, %v1181, 0.0
  %v1252 = vsel %vm1236, %v1180, 0.0
  %v1253 = vsel %vm1237, %v1179, 0.0
  %v1254 = vsel %vm1238, %v1178, 0.0
  %v1255 = vsel %vm1239, %v1177, 0.0
  %v1256 = vsel %vm1240, %v1176, 0.0
  %v1257 = vsel %vm1241, %v1175, 0.0
  %v1258 = vsel %vm1242, %v1174, 0.0
  %v1259 = vsel %vm1243, %v1173, 0.0
  %v1260 = vsel %vm1244, %v1172, 0.0
  %v1261 = vsel %vm1245, %v1171, 0.0
  %v1262 = vsel %vm1246, %v1170, 0.0
  %v1263 = vsel %vm1247, %v1169, 0.0
  %v1264 = vsel %vm1248, %v1184, 0.0
  %1265 = vrot.lane.b32.xlu0 %v737, 126
  %v1266 = vpop.permute.xlu0 %1265
  %1267 = vrot.lane.b32.xlu0 %v741, 126
  %v1268 = vpop.permute.xlu0 %1267
  %1269 = vrot.lane.b32.xlu0 %v745, 126
  %v1270 = vpop.permute.xlu0 %1269
  %1271 = vrot.lane.b32.xlu0 %v749, 126
  %v1272 = vpop.permute.xlu0 %1271
  %1273 = vrot.lane.b32.xlu0 %v753, 126
  %v1274 = vpop.permute.xlu0 %1273
  %1275 = vrot.lane.b32.xlu0 %v757, 126
  %v1276 = vpop.permute.xlu0 %1275
  %1277 = vrot.lane.b32.xlu0 %v761, 126
  %v1278 = vpop.permute.xlu0 %1277
  %1279 = vrot.lane.b32.xlu0 %v765, 126
  %v1280 = vpop.permute.xlu0 %1279
  %1281 = vrot.lane.b32.xlu0 %v769, 126
  %v1282 = vpop.permute.xlu0 %1281
  %1283 = vrot.lane.b32.xlu0 %v773, 126
  %v1284 = vpop.permute.xlu0 %1283
  %1285 = vrot.lane.b32.xlu0 %v777, 126
  %v1286 = vpop.permute.xlu0 %1285
  %1287 = vrot.lane.b32.xlu0 %v781, 126
  %v1288 = vpop.permute.xlu0 %1287
  %1289 = vrot.lane.b32.xlu0 %v785, 126
  %v1290 = vpop.permute.xlu0 %1289
  %1291 = vrot.lane.b32.xlu0 %v789, 126
  %v1292 = vpop.permute.xlu0 %1291
  %1293 = vrot.lane.b32.xlu0 %v793, 126
  %v1294 = vpop.permute.xlu0 %1293
  %1295 = vrot.lane.b32.xlu0 %v797, 126
  %v1296 = vpop.permute.xlu0 %1295
  %vm1297 = vcmp.lt.s32.totalorder %v40, 126
  %v1298 = vsel %vm1297, %v1294, %v1296
  %v1299 = vsel %vm1297, %v1292, %v1294
  %v1300 = vsel %vm1297, %v1290, %v1292
  %v1301 = vsel %vm1297, %v1288, %v1290
  %v1302 = vsel %vm1297, %v1286, %v1288
  %v1303 = vsel %vm1297, %v1284, %v1286
  %v1304 = vsel %vm1297, %v1282, %v1284
  %v1305 = vsel %vm1297, %v1280, %v1282
  %v1306 = vsel %vm1297, %v1278, %v1280
  %v1307 = vsel %vm1297, %v1276, %v1278
  %v1308 = vsel %vm1297, %v1274, %v1276
  %v1309 = vsel %vm1297, %v1272, %v1274
  %v1310 = vsel %vm1297, %v1270, %v1272
  %v1311 = vsel %vm1297, %v1268, %v1270
  %v1312 = vsel %vm1297, %v1266, %v1268
  %v1313 = vsel %vm1297, %v1296, %v1266
  %v1314 = vadd.s32 %v232, 2
  %v1315 = vadd.s32 %v233, 2
  %v1316 = vadd.s32 %v234, 2
  %v1317 = vadd.s32 %v235, 2
  %v1318 = vadd.s32 %v236, 2
  %v1319 = vadd.s32 %v237, 2
  %v1320 = vadd.s32 %v238, 2
  %v1321 = vadd.s32 %v239, 2
  %v1322 = vadd.s32 %v240, 2
  %v1323 = vadd.s32 %v241, 2
  %v1324 = vadd.s32 %v242, 2
  %v1325 = vadd.s32 %v243, 2
  %v1326 = vadd.s32 %v244, 2
  %v1327 = vadd.s32 %v245, 2
  %v1328 = vadd.s32 %v246, 2
  %v1329 = vadd.s32 %v247, 2
  %vm1330 = vcmp.ge.s32.totalorder %v1314, 0
  %vm1331 = vcmp.ge.s32.totalorder %v1315, 0
  %vm1332 = vcmp.ge.s32.totalorder %v1316, 0
  %vm1333 = vcmp.ge.s32.totalorder %v1317, 0
  %vm1334 = vcmp.ge.s32.totalorder %v1318, 0
  %vm1335 = vcmp.ge.s32.totalorder %v1319, 0
  %vm1336 = vcmp.ge.s32.totalorder %v1320, 0
  %vm1337 = vcmp.ge.s32.totalorder %v1321, 0
  %vm1338 = vcmp.ge.s32.totalorder %v1322, 0
  %vm1339 = vcmp.ge.s32.totalorder %v1323, 0
  %vm1340 = vcmp.ge.s32.totalorder %v1324, 0
  %vm1341 = vcmp.ge.s32.totalorder %v1325, 0
  %vm1342 = vcmp.ge.s32.totalorder %v1326, 0
  %vm1343 = vcmp.ge.s32.totalorder %v1327, 0
  %vm1344 = vcmp.ge.s32.totalorder %v1328, 0
  %vm1345 = vcmp.ge.s32.totalorder %v1329, 0
  %vm1346 = vcmp.lt.s32.totalorder %v1314, 1024
  %vm1347 = vcmp.lt.s32.totalorder %v1315, 1024
  %vm1348 = vcmp.lt.s32.totalorder %v1316, 1024
  %vm1349 = vcmp.lt.s32.totalorder %v1317, 1024
  %vm1350 = vcmp.lt.s32.totalorder %v1318, 1024
  %vm1351 = vcmp.lt.s32.totalorder %v1319, 1024
  %vm1352 = vcmp.lt.s32.totalorder %v1320, 1024
  %vm1353 = vcmp.lt.s32.totalorder %v1321, 1024
  %vm1354 = vcmp.lt.s32.totalorder %v1322, 1024
  %vm1355 = vcmp.lt.s32.totalorder %v1323, 1024
  %vm1356 = vcmp.lt.s32.totalorder %v1324, 1024
  %vm1357 = vcmp.lt.s32.totalorder %v1325, 1024
  %vm1358 = vcmp.lt.s32.totalorder %v1326, 1024
  %vm1359 = vcmp.lt.s32.totalorder %v1327, 1024
  %vm1360 = vcmp.lt.s32.totalorder %v1328, 1024
  %vm1361 = vcmp.lt.s32.totalorder %v1329, 1024
  %vm1362 = vmand %vm1330, %vm1346
  %vm1363 = vmand %vm1331, %vm1347
  %vm1364 = vmand %vm1332, %vm1348
  %vm1365 = vmand %vm1333, %vm1349
  %vm1366 = vmand %vm1334, %vm1350
  %vm1367 = vmand %vm1335, %vm1351
  %vm1368 = vmand %vm1336, %vm1352
  %vm1369 = vmand %vm1337, %vm1353
  %vm1370 = vmand %vm1338, %vm1354
  %vm1371 = vmand %vm1339, %vm1355
  %vm1372 = vmand %vm1340, %vm1356
  %vm1373 = vmand %vm1341, %vm1357
  %vm1374 = vmand %vm1342, %vm1358
  %vm1375 = vmand %vm1343, %vm1359
  %vm1376 = vmand %vm1344, %vm1360
  %vm1377 = vmand %vm1345, %vm1361
  %v1378 = vsel %vm1362, %v1312, 0.0
  %v1379 = vsel %vm1363, %v1311, 0.0
  %v1380 = vsel %vm1364, %v1310, 0.0
  %v1381 = vsel %vm1365, %v1309, 0.0
  %v1382 = vsel %vm1366, %v1308, 0.0
  %v1383 = vsel %vm1367, %v1307, 0.0
  %v1384 = vsel %vm1368, %v1306, 0.0
  %v1385 = vsel %vm1369, %v1305, 0.0
  %v1386 = vsel %vm1370, %v1304, 0.0
  %v1387 = vsel %vm1371, %v1303, 0.0
  %v1388 = vsel %vm1372, %v1302, 0.0
  %v1389 = vsel %vm1373, %v1301, 0.0
  %v1390 = vsel %vm1374, %v1300, 0.0
  %v1391 = vsel %vm1375, %v1299, 0.0
  %v1392 = vsel %vm1376, %v1298, 0.0
  %v1393 = vsel %vm1377, %v1313, 0.0
  %v1410 = vrot.slane %v1056, 7
  %v1411 = vrot.slane %v1057, 7
  %v1412 = vrot.slane %v1058, 7
  %v1413 = vrot.slane %v1059, 7
  %v1414 = vrot.slane %v1060, 7
  %v1415 = vrot.slane %v1061, 7
  %v1416 = vrot.slane %v1062, 7
  %v1417 = vrot.slane %v1063, 7
  %v1418 = vrot.slane %v1064, 7
  %v1419 = vrot.slane %v1065, 7
  %v1420 = vrot.slane %v1066, 7
  %v1421 = vrot.slane %v1067, 7
  %v1422 = vrot.slane %v1068, 7
  %v1423 = vrot.slane %v1069, 7
  %v1424 = vrot.slane %v1070, 7
  %v1425 = vrot.slane %v1071, 7
  %v1458 = vrot.slane %v1120, 6
  %v1459 = vrot.slane %v1121, 6
  %v1460 = vrot.slane %v1122, 6
  %v1461 = vrot.slane %v1123, 6
  %v1462 = vrot.slane %v1124, 6
  %v1463 = vrot.slane %v1125, 6
  %v1464 = vrot.slane %v1126, 6
  %v1465 = vrot.slane %v1127, 6
  %v1466 = vrot.slane %v1128, 6
  %v1467 = vrot.slane %v1129, 6
  %v1468 = vrot.slane %v1130, 6
  %v1469 = vrot.slane %v1131, 6
  %v1470 = vrot.slane %v1132, 6
  %v1471 = vrot.slane %v1133, 6
  %v1472 = vrot.slane %v1134, 6
  %v1473 = vrot.slane %v1135, 6
  %v1506 = vrot.slane %v1249, 5
  %v1507 = vrot.slane %v1250, 5
  %v1508 = vrot.slane %v1251, 5
  %v1509 = vrot.slane %v1252, 5
  %v1510 = vrot.slane %v1253, 5
  %v1511 = vrot.slane %v1254, 5
  %v1512 = vrot.slane %v1255, 5
  %v1513 = vrot.slane %v1256, 5
  %v1514 = vrot.slane %v1257, 5
  %v1515 = vrot.slane %v1258, 5
  %v1516 = vrot.slane %v1259, 5
  %v1517 = vrot.slane %v1260, 5
  %v1518 = vrot.slane %v1261, 5
  %v1519 = vrot.slane %v1262, 5
  %v1520 = vrot.slane %v1263, 5
  %v1521 = vrot.slane %v1264, 5
  %v1554 = vrot.slane %v1378, 4
  %v1555 = vrot.slane %v1379, 4
  %v1556 = vrot.slane %v1380, 4
  %v1557 = vrot.slane %v1381, 4
  %v1558 = vrot.slane %v1382, 4
  %v1559 = vrot.slane %v1383, 4
  %v1560 = vrot.slane %v1384, 4
  %v1561 = vrot.slane %v1385, 4
  %v1562 = vrot.slane %v1386, 4
  %v1563 = vrot.slane %v1387, 4
  %v1564 = vrot.slane %v1388, 4
  %v1565 = vrot.slane %v1389, 4
  %v1566 = vrot.slane %v1390, 4
  %v1567 = vrot.slane %v1391, 4
  %v1568 = vrot.slane %v1392, 4
  %v1569 = vrot.slane %v1393, 4
  %vm1586 = vcmask 1040384
  %v1587 = vsel %vm1586, %v927, %v1410
  %v1588 = vsel %vm1586, %v928, %v1411
  %v1589 = vsel %vm1586, %v929, %v1412
  %v1590 = vsel %vm1586, %v930, %v1413
  %v1591 = vsel %vm1586, %v931, %v1414
  %v1592 = vsel %vm1586, %v932, %v1415
  %v1593 = vsel %vm1586, %v933, %v1416
  %v1594 = vsel %vm1586, %v934, %v1417
  %v1595 = vsel %vm1586, %v935, %v1418
  %v1596 = vsel %vm1586, %v936, %v1419
  %v1597 = vsel %vm1586, %v937, %v1420
  %v1598 = vsel %vm1586, %v938, %v1421
  %v1599 = vsel %vm1586, %v939, %v1422
  %v1600 = vsel %vm1586, %v940, %v1423
  %v1601 = vsel %vm1586, %v941, %v1424
  %v1602 = vsel %vm1586, %v942, %v1425
  %vm1603 = vcmask 1041408
  %v1604 = vsel %vm1603, %v1587, %v1458
  %v1605 = vsel %vm1603, %v1588, %v1459
  %v1606 = vsel %vm1603, %v1589, %v1460
  %v1607 = vsel %vm1603, %v1590, %v1461
  %v1608 = vsel %vm1603, %v1591, %v1462
  %v1609 = vsel %vm1603, %v1592, %v1463
  %v1610 = vsel %vm1603, %v1593, %v1464
  %v1611 = vsel %vm1603, %v1594, %v1465
  %v1612 = vsel %vm1603, %v1595, %v1466
  %v1613 = vsel %vm1603, %v1596, %v1467
  %v1614 = vsel %vm1603, %v1597, %v1468
  %v1615 = vsel %vm1603, %v1598, %v1469
  %v1616 = vsel %vm1603, %v1599, %v1470
  %v1617 = vsel %vm1603, %v1600, %v1471
  %v1618 = vsel %vm1603, %v1601, %v1472
  %v1619 = vsel %vm1603, %v1602, %v1473
  %vm1620 = vcmask 1042432
  %v1621 = vsel %vm1620, %v1604, %v1506
  %v1622 = vsel %vm1620, %v1605, %v1507
  %v1623 = vsel %vm1620, %v1606, %v1508
  %v1624 = vsel %vm1620, %v1607, %v1509
  %v1625 = vsel %vm1620, %v1608, %v1510
  %v1626 = vsel %vm1620, %v1609, %v1511
  %v1627 = vsel %vm1620, %v1610, %v1512
  %v1628 = vsel %vm1620, %v1611, %v1513
  %v1629 = vsel %vm1620, %v1612, %v1514
  %v1630 = vsel %vm1620, %v1613, %v1515
  %v1631 = vsel %vm1620, %v1614, %v1516
  %v1632 = vsel %vm1620, %v1615, %v1517
  %v1633 = vsel %vm1620, %v1616, %v1518
  %v1634 = vsel %vm1620, %v1617, %v1519
  %v1635 = vsel %vm1620, %v1618, %v1520
  %v1636 = vsel %vm1620, %v1619, %v1521
  %vm1637 = vcmask 1043456
  %v1638 = vsel %vm1637, %v1621, %v1554
  %v1639 = vsel %vm1637, %v1622, %v1555
  %v1640 = vsel %vm1637, %v1623, %v1556
  %v1641 = vsel %vm1637, %v1624, %v1557
  %v1642 = vsel %vm1637, %v1625, %v1558
  %v1643 = vsel %vm1637, %v1626, %v1559
  %v1644 = vsel %vm1637, %v1627, %v1560
  %v1645 = vsel %vm1637, %v1628, %v1561
  %v1646 = vsel %vm1637, %v1629, %v1562
  %v1647 = vsel %vm1637, %v1630, %v1563
  %v1648 = vsel %vm1637, %v1631, %v1564
  %v1649 = vsel %vm1637, %v1632, %v1565
  %v1650 = vsel %vm1637, %v1633, %v1566
  %v1651 = vsel %vm1637, %v1634, %v1567
  %v1652 = vsel %vm1637, %v1635, %v1568
  %v1653 = vsel %vm1637, %v1636, %v1569
  %v1654 = vpack.c.bf16 %v1638, %v1638
  %v1655 = vpack.c.bf16 %v1639, %v1639
  %v1656 = vpack.c.bf16 %v1640, %v1640
  %v1657 = vpack.c.bf16 %v1641, %v1641
  %v1658 = vpack.c.bf16 %v1642, %v1642
  %v1659 = vpack.c.bf16 %v1643, %v1643
  %v1660 = vpack.c.bf16 %v1644, %v1644
  %v1661 = vpack.c.bf16 %v1645, %v1645
  %v1662 = vpack.c.bf16 %v1646, %v1646
  %v1663 = vpack.c.bf16 %v1647, %v1647
  %v1664 = vpack.c.bf16 %v1648, %v1648
  %v1665 = vpack.c.bf16 %v1649, %v1649
  %v1666 = vpack.c.bf16 %v1650, %v1650
  %v1667 = vpack.c.bf16 %v1651, %v1651
  %v1668 = vpack.c.bf16 %v1652, %v1652
  %v1669 = vpack.c.bf16 %v1653, %v1653
  %v1670 = vld [vmem:[%s2] sm:$0xff]
  %v1671 = vld [vmem:[%s2 + $0x8] sm:$0xff]
  %1673 = vset.pattern.permute.xlu0 0
  %1674 = vperm.xlu0 %1673, %v1670
  %v1675 = vpop.permute.xlu0 %1674
  %1678 = vset.pattern.permute.xlu0 0
  %1679 = vperm.xlu0 %1678, %v1671
  %v1680 = vpop.permute.xlu0 %1679
  %v1684 = vunpack.c.l.b16 %v730
  %v1685 = vunpack.c.l.b16 %v731
  %v1686 = vpack.c.b16 %v1685, %v1684
  %vm1687 = vcmask 39936
  %v1689 = vsel %vm1687, %v1686, 0
  %v1691 = vsel %vm1603, 4294967295, 65535
  %v1692 = vsel %vm1620, %v1691, 0
  %v1694 = vand.u32 %v1654, %v1692
  %v1697 = vand.u32 %v1655, %v1692
  %v1700 = vand.u32 %v1656, %v1692
  %v1703 = vand.u32 %v1657, %v1692
  %v1706 = vand.u32 %v1658, %v1692
  %v1709 = vand.u32 %v1659, %v1692
  %v1712 = vand.u32 %v1660, %v1692
  %v1715 = vand.u32 %v1661, %v1692
  %v1718 = vand.u32 %v1662, %v1692
  %v1721 = vand.u32 %v1663, %v1692
  %v1724 = vand.u32 %v1664, %v1692
  %v1727 = vand.u32 %v1665, %v1692
  %v1730 = vand.u32 %v1666, %v1692
  %v1733 = vand.u32 %v1667, %v1692
  %v1736 = vand.u32 %v1668, %v1692
  %v1739 = vand.u32 %v1669, %v1692
  %1741 = vmatprep.subr.bf16.mxu0 %v1697
  %1742 = vmatpush1.bf16.msra.mxu0 %v1694
  %1743 = vmatprep.subr.bf16.mxu0 0
  %1744 = vmatpush1.bf16.msra.mxu0 0
  %1745 = vmatprep.subr.bf16.mxu0 0
  %1746 = vmatpush1.bf16.msra.mxu0 0
  %1747 = vmatprep.subr.bf16.mxu0 0
  %1748 = vmatpush1.bf16.msra.mxu0 0
  %1749 = vmatprep.subr.bf16.mxu0 0
  %1750 = vmatpush1.bf16.msra.mxu0 0
  %1751 = vmatprep.subr.bf16.mxu0 0
  %1752 = vmatpush1.bf16.msra.mxu0 0
  %1753 = vmatprep.subr.bf16.mxu0 0
  %1754 = vmatpush1.bf16.msra.mxu0 0
  %1755 = vmatprep.subr.bf16.mxu0 0
  %1756 = vmatpush1.bf16.msra.mxu0 0
  %1757 = vmatprep.subr.bf16.mxu0 0
  %1758 = vmatpush1.bf16.msra.mxu0 0
  %1759 = vmatprep.subr.bf16.mxu0 0
  %1760 = vmatpush1.bf16.msra.mxu0 0
  %1761 = vmatprep.subr.bf16.mxu0 0
  %1762 = vmatpush1.bf16.msra.mxu0 0
  %1763 = vmatprep.subr.bf16.mxu0 0
  %1764 = vmatpush1.bf16.msra.mxu0 0
  %1765 = vmatprep.subr.bf16.mxu0 0
  %1766 = vmatpush1.bf16.msra.mxu0 0
  %1767 = vmatprep.subr.bf16.mxu0 0
  %1768 = vmatpush1.bf16.msra.mxu0 0
  %1769 = vmatprep.subr.bf16.mxu0 0
  %1770 = vmatpush1.bf16.msra.mxu0 0
  %1771 = vmatprep.subr.bf16.mxu0 0
  %1772 = vmatpush1.bf16.msra.mxu0 0
  %1773 = vmatprep.mubr.bf16.mxu0 0
  %1774 = vmatmul.mubr.bf16.gmra.mrb[0].mxu0 %v1689
  %v1775 = vpop.f32.mrb[0].mxu0
  %v1776 = vadd.f32 %v1675, %v1775
  %v1777 = vpop.f32.mrb[0].mxu0
  %v1778 = vadd.f32 %v1675, %v1777
  %v1779 = vpop.f32.mrb[0].mxu0
  %v1780 = vadd.f32 %v1680, %v1779
  %v1781 = vpop.f32.mrb[0].mxu0
  %v1782 = vadd.f32 %v1680, %v1781
  %1783 = vdwg.mxu0
  %1784 = vmatprep.subr.bf16.mxu0 %v1703
  %1785 = vmatpush1.bf16.msra.mxu0 %v1700
  %1786 = vmatprep.subr.bf16.mxu0 0
  %1787 = vmatpush1.bf16.msra.mxu0 0
  %1788 = vmatprep.subr.bf16.mxu0 0
  %1789 = vmatpush1.bf16.msra.mxu0 0
  %1790 = vmatprep.subr.bf16.mxu0 0
  %1791 = vmatpush1.bf16.msra.mxu0 0
  %1792 = vmatprep.subr.bf16.mxu0 0
  %1793 = vmatpush1.bf16.msra.mxu0 0
  %1794 = vmatprep.subr.bf16.mxu0 0
  %1795 = vmatpush1.bf16.msra.mxu0 0
  %1796 = vmatprep.subr.bf16.mxu0 0
  %1797 = vmatpush1.bf16.msra.mxu0 0
  %1798 = vmatprep.subr.bf16.mxu0 0
  %1799 = vmatpush1.bf16.msra.mxu0 0
  %1800 = vmatprep.subr.bf16.mxu0 0
  %1801 = vmatpush1.bf16.msra.mxu0 0
  %1802 = vmatprep.subr.bf16.mxu0 0
  %1803 = vmatpush1.bf16.msra.mxu0 0
  %1804 = vmatprep.subr.bf16.mxu0 0
  %1805 = vmatpush1.bf16.msra.mxu0 0
  %1806 = vmatprep.subr.bf16.mxu0 0
  %1807 = vmatpush1.bf16.msra.mxu0 0
  %1808 = vmatprep.subr.bf16.mxu0 0
  %1809 = vmatpush1.bf16.msra.mxu0 0
  %1810 = vmatprep.subr.bf16.mxu0 0
  %1811 = vmatpush1.bf16.msra.mxu0 0
  %1812 = vmatprep.subr.bf16.mxu0 0
  %1813 = vmatpush1.bf16.msra.mxu0 0
  %1814 = vmatprep.subr.bf16.mxu0 0
  %1815 = vmatpush1.bf16.msra.mxu0 0
  %1816 = vmatprep.mubr.bf16.mxu0 0
  %1817 = vmatmul.mubr.bf16.gmra.mrb[0].mxu0 %v1689
  %v1818 = vpop.f32.mrb[0].mxu0
  %v1819 = vadd.f32 %v1675, %v1818
  %v1820 = vpop.f32.mrb[0].mxu0
  %v1821 = vadd.f32 %v1675, %v1820
  %v1822 = vpop.f32.mrb[0].mxu0
  %v1823 = vadd.f32 %v1680, %v1822
  %v1824 = vpop.f32.mrb[0].mxu0
  %v1825 = vadd.f32 %v1680, %v1824
  %1826 = vdwg.mxu0
  %1827 = vmatprep.subr.bf16.mxu0 %v1709
  %1828 = vmatpush1.bf16.msra.mxu0 %v1706
  %1829 = vmatprep.subr.bf16.mxu0 0
  %1830 = vmatpush1.bf16.msra.mxu0 0
  %1831 = vmatprep.subr.bf16.mxu0 0
  %1832 = vmatpush1.bf16.msra.mxu0 0
  %1833 = vmatprep.subr.bf16.mxu0 0
  %1834 = vmatpush1.bf16.msra.mxu0 0
  %1835 = vmatprep.subr.bf16.mxu0 0
  %1836 = vmatpush1.bf16.msra.mxu0 0
  %1837 = vmatprep.subr.bf16.mxu0 0
  %1838 = vmatpush1.bf16.msra.mxu0 0
  %1839 = vmatprep.subr.bf16.mxu0 0
  %1840 = vmatpush1.bf16.msra.mxu0 0
  %1841 = vmatprep.subr.bf16.mxu0 0
  %1842 = vmatpush1.bf16.msra.mxu0 0
  %1843 = vmatprep.subr.bf16.mxu0 0
  %1844 = vmatpush1.bf16.msra.mxu0 0
  %1845 = vmatprep.subr.bf16.mxu0 0
  %1846 = vmatpush1.bf16.msra.mxu0 0
  %1847 = vmatprep.subr.bf16.mxu0 0
  %1848 = vmatpush1.bf16.msra.mxu0 0
  %1849 = vmatprep.subr.bf16.mxu0 0
  %1850 = vmatpush1.bf16.msra.mxu0 0
  %1851 = vmatprep.subr.bf16.mxu0 0
  %1852 = vmatpush1.bf16.msra.mxu0 0
  %1853 = vmatprep.subr.bf16.mxu0 0
  %1854 = vmatpush1.bf16.msra.mxu0 0
  %1855 = vmatprep.subr.bf16.mxu0 0
  %1856 = vmatpush1.bf16.msra.mxu0 0
  %1857 = vmatprep.subr.bf16.mxu0 0
  %1858 = vmatpush1.bf16.msra.mxu0 0
  %1859 = vmatprep.mubr.bf16.mxu0 0
  %1860 = vmatmul.mubr.bf16.gmra.mrb[0].mxu0 %v1689
  %v1861 = vpop.f32.mrb[0].mxu0
  %v1862 = vadd.f32 %v1675, %v1861
  %v1863 = vpop.f32.mrb[0].mxu0
  %v1864 = vadd.f32 %v1675, %v1863
  %v1865 = vpop.f32.mrb[0].mxu0
  %v1866 = vadd.f32 %v1680, %v1865
  %v1867 = vpop.f32.mrb[0].mxu0
  %v1868 = vadd.f32 %v1680, %v1867
  %1869 = vdwg.mxu0
  %1870 = vmatprep.subr.bf16.mxu0 %v1715
  %1871 = vmatpush1.bf16.msra.mxu0 %v1712
  %1872 = vmatprep.subr.bf16.mxu0 0
  %1873 = vmatpush1.bf16.msra.mxu0 0
  %1874 = vmatprep.subr.bf16.mxu0 0
  %1875 = vmatpush1.bf16.msra.mxu0 0
  %1876 = vmatprep.subr.bf16.mxu0 0
  %1877 = vmatpush1.bf16.msra.mxu0 0
  %1878 = vmatprep.subr.bf16.mxu0 0
  %1879 = vmatpush1.bf16.msra.mxu0 0
  %1880 = vmatprep.subr.bf16.mxu0 0
  %1881 = vmatpush1.bf16.msra.mxu0 0
  %1882 = vmatprep.subr.bf16.mxu0 0
  %1883 = vmatpush1.bf16.msra.mxu0 0
  %1884 = vmatprep.subr.bf16.mxu0 0
  %1885 = vmatpush1.bf16.msra.mxu0 0
  %1886 = vmatprep.subr.bf16.mxu0 0
  %1887 = vmatpush1.bf16.msra.mxu0 0
  %1888 = vmatprep.subr.bf16.mxu0 0
  %1889 = vmatpush1.bf16.msra.mxu0 0
  %1890 = vmatprep.subr.bf16.mxu0 0
  %1891 = vmatpush1.bf16.msra.mxu0 0
  %1892 = vmatprep.subr.bf16.mxu0 0
  %1893 = vmatpush1.bf16.msra.mxu0 0
  %1894 = vmatprep.subr.bf16.mxu0 0
  %1895 = vmatpush1.bf16.msra.mxu0 0
  %1896 = vmatprep.subr.bf16.mxu0 0
  %1897 = vmatpush1.bf16.msra.mxu0 0
  %1898 = vmatprep.subr.bf16.mxu0 0
  %1899 = vmatpush1.bf16.msra.mxu0 0
  %1900 = vmatprep.subr.bf16.mxu0 0
  %1901 = vmatpush1.bf16.msra.mxu0 0
  %1902 = vmatprep.mubr.bf16.mxu0 0
  %1903 = vmatmul.mubr.bf16.gmra.mrb[0].mxu0 %v1689
  %v1904 = vpop.f32.mrb[0].mxu0
  %v1905 = vadd.f32 %v1675, %v1904
  %v1906 = vpop.f32.mrb[0].mxu0
  %v1907 = vadd.f32 %v1675, %v1906
  %v1908 = vpop.f32.mrb[0].mxu0
  %v1909 = vadd.f32 %v1680, %v1908
  %v1910 = vpop.f32.mrb[0].mxu0
  %v1911 = vadd.f32 %v1680, %v1910
  %1912 = vdwg.mxu0
  %1913 = vmatprep.subr.bf16.mxu0 %v1721
  %1914 = vmatpush1.bf16.msra.mxu0 %v1718
  %1915 = vmatprep.subr.bf16.mxu0 0
  %1916 = vmatpush1.bf16.msra.mxu0 0
  %1917 = vmatprep.subr.bf16.mxu0 0
  %1918 = vmatpush1.bf16.msra.mxu0 0
  %1919 = vmatprep.subr.bf16.mxu0 0
  %1920 = vmatpush1.bf16.msra.mxu0 0
  %1921 = vmatprep.subr.bf16.mxu0 0
  %1922 = vmatpush1.bf16.msra.mxu0 0
  %1923 = vmatprep.subr.bf16.mxu0 0
  %1924 = vmatpush1.bf16.msra.mxu0 0
  %1925 = vmatprep.subr.bf16.mxu0 0
  %1926 = vmatpush1.bf16.msra.mxu0 0
  %1927 = vmatprep.subr.bf16.mxu0 0
  %1928 = vmatpush1.bf16.msra.mxu0 0
  %1929 = vmatprep.subr.bf16.mxu0 0
  %1930 = vmatpush1.bf16.msra.mxu0 0
  %1931 = vmatprep.subr.bf16.mxu0 0
  %1932 = vmatpush1.bf16.msra.mxu0 0
  %1933 = vmatprep.subr.bf16.mxu0 0
  %1934 = vmatpush1.bf16.msra.mxu0 0
  %1935 = vmatprep.subr.bf16.mxu0 0
  %1936 = vmatpush1.bf16.msra.mxu0 0
  %1937 = vmatprep.subr.bf16.mxu0 0
  %1938 = vmatpush1.bf16.msra.mxu0 0
  %1939 = vmatprep.subr.bf16.mxu0 0
  %1940 = vmatpush1.bf16.msra.mxu0 0
  %1941 = vmatprep.subr.bf16.mxu0 0
  %1942 = vmatpush1.bf16.msra.mxu0 0
  %1943 = vmatprep.subr.bf16.mxu0 0
  %1944 = vmatpush1.bf16.msra.mxu0 0
  %1945 = vmatprep.mubr.bf16.mxu0 0
  %1946 = vmatmul.mubr.bf16.gmra.mrb[0].mxu0 %v1689
  %v1947 = vpop.f32.mrb[0].mxu0
  %v1948 = vadd.f32 %v1675, %v1947
  %v1949 = vpop.f32.mrb[0].mxu0
  %v1950 = vadd.f32 %v1675, %v1949
  %v1951 = vpop.f32.mrb[0].mxu0
  %v1952 = vadd.f32 %v1680, %v1951
  %v1953 = vpop.f32.mrb[0].mxu0
  %v1954 = vadd.f32 %v1680, %v1953
  %1955 = vdwg.mxu0
  %1956 = vmatprep.subr.bf16.mxu0 %v1727
  %1957 = vmatpush1.bf16.msra.mxu0 %v1724
  %1958 = vmatprep.subr.bf16.mxu0 0
  %1959 = vmatpush1.bf16.msra.mxu0 0
  %1960 = vmatprep.subr.bf16.mxu0 0
  %1961 = vmatpush1.bf16.msra.mxu0 0
  %1962 = vmatprep.subr.bf16.mxu0 0
  %1963 = vmatpush1.bf16.msra.mxu0 0
  %1964 = vmatprep.subr.bf16.mxu0 0
  %1965 = vmatpush1.bf16.msra.mxu0 0
  %1966 = vmatprep.subr.bf16.mxu0 0
  %1967 = vmatpush1.bf16.msra.mxu0 0
  %1968 = vmatprep.subr.bf16.mxu0 0
  %1969 = vmatpush1.bf16.msra.mxu0 0
  %1970 = vmatprep.subr.bf16.mxu0 0
  %1971 = vmatpush1.bf16.msra.mxu0 0
  %1972 = vmatprep.subr.bf16.mxu0 0
  %1973 = vmatpush1.bf16.msra.mxu0 0
  %1974 = vmatprep.subr.bf16.mxu0 0
  %1975 = vmatpush1.bf16.msra.mxu0 0
  %1976 = vmatprep.subr.bf16.mxu0 0
  %1977 = vmatpush1.bf16.msra.mxu0 0
  %1978 = vmatprep.subr.bf16.mxu0 0
  %1979 = vmatpush1.bf16.msra.mxu0 0
  %1980 = vmatprep.subr.bf16.mxu0 0
  %1981 = vmatpush1.bf16.msra.mxu0 0
  %1982 = vmatprep.subr.bf16.mxu0 0
  %1983 = vmatpush1.bf16.msra.mxu0 0
  %1984 = vmatprep.subr.bf16.mxu0 0
  %1985 = vmatpush1.bf16.msra.mxu0 0
  %1986 = vmatprep.subr.bf16.mxu0 0
  %1987 = vmatpush1.bf16.msra.mxu0 0
  %1988 = vmatprep.mubr.bf16.mxu0 0
  %1989 = vmatmul.mubr.bf16.gmra.mrb[0].mxu0 %v1689
  %v1990 = vpop.f32.mrb[0].mxu0
  %v1991 = vadd.f32 %v1675, %v1990
  %v1992 = vpop.f32.mrb[0].mxu0
  %v1993 = vadd.f32 %v1675, %v1992
  %v1994 = vpop.f32.mrb[0].mxu0
  %v1995 = vadd.f32 %v1680, %v1994
  %v1996 = vpop.f32.mrb[0].mxu0
  %v1997 = vadd.f32 %v1680, %v1996
  %1998 = vdwg.mxu0
  %1999 = vmatprep.subr.bf16.mxu0 %v1733
  %2000 = vmatpush1.bf16.msra.mxu0 %v1730
  %2001 = vmatprep.subr.bf16.mxu0 0
  %2002 = vmatpush1.bf16.msra.mxu0 0
  %2003 = vmatprep.subr.bf16.mxu0 0
  %2004 = vmatpush1.bf16.msra.mxu0 0
  %2005 = vmatprep.subr.bf16.mxu0 0
  %2006 = vmatpush1.bf16.msra.mxu0 0
  %2007 = vmatprep.subr.bf16.mxu0 0
  %2008 = vmatpush1.bf16.msra.mxu0 0
  %2009 = vmatprep.subr.bf16.mxu0 0
  %2010 = vmatpush1.bf16.msra.mxu0 0
  %2011 = vmatprep.subr.bf16.mxu0 0
  %2012 = vmatpush1.bf16.msra.mxu0 0
  %2013 = vmatprep.subr.bf16.mxu0 0
  %2014 = vmatpush1.bf16.msra.mxu0 0
  %2015 = vmatprep.subr.bf16.mxu0 0
  %2016 = vmatpush1.bf16.msra.mxu0 0
  %2017 = vmatprep.subr.bf16.mxu0 0
  %2018 = vmatpush1.bf16.msra.mxu0 0
  %2019 = vmatprep.subr.bf16.mxu0 0
  %2020 = vmatpush1.bf16.msra.mxu0 0
  %2021 = vmatprep.subr.bf16.mxu0 0
  %2022 = vmatpush1.bf16.msra.mxu0 0
  %2023 = vmatprep.subr.bf16.mxu0 0
  %2024 = vmatpush1.bf16.msra.mxu0 0
  %2025 = vmatprep.subr.bf16.mxu0 0
  %2026 = vmatpush1.bf16.msra.mxu0 0
  %2027 = vmatprep.subr.bf16.mxu0 0
  %2028 = vmatpush1.bf16.msra.mxu0 0
  %2029 = vmatprep.subr.bf16.mxu0 0
  %2030 = vmatpush1.bf16.msra.mxu0 0
  %2031 = vmatprep.mubr.bf16.mxu0 0
  %2032 = vmatmul.mubr.bf16.gmra.mrb[0].mxu0 %v1689
  %v2033 = vpop.f32.mrb[0].mxu0
  %v2034 = vadd.f32 %v1675, %v2033
  %v2035 = vpop.f32.mrb[0].mxu0
  %v2036 = vadd.f32 %v1675, %v2035
  %v2037 = vpop.f32.mrb[0].mxu0
  %v2038 = vadd.f32 %v1680, %v2037
  %v2039 = vpop.f32.mrb[0].mxu0
  %v2040 = vadd.f32 %v1680, %v2039
  %2041 = vdwg.mxu0
  %2042 = vmatprep.subr.bf16.mxu0 %v1739
  %2043 = vmatpush1.bf16.msra.mxu0 %v1736
  %2044 = vmatprep.subr.bf16.mxu0 0
  %2045 = vmatpush1.bf16.msra.mxu0 0
  %2046 = vmatprep.subr.bf16.mxu0 0
  %2047 = vmatpush1.bf16.msra.mxu0 0
  %2048 = vmatprep.subr.bf16.mxu0 0
  %2049 = vmatpush1.bf16.msra.mxu0 0
  %2050 = vmatprep.subr.bf16.mxu0 0
  %2051 = vmatpush1.bf16.msra.mxu0 0
  %2052 = vmatprep.subr.bf16.mxu0 0
  %2053 = vmatpush1.bf16.msra.mxu0 0
  %2054 = vmatprep.subr.bf16.mxu0 0
  %2055 = vmatpush1.bf16.msra.mxu0 0
  %2056 = vmatprep.subr.bf16.mxu0 0
  %2057 = vmatpush1.bf16.msra.mxu0 0
  %2058 = vmatprep.subr.bf16.mxu0 0
  %2059 = vmatpush1.bf16.msra.mxu0 0
  %2060 = vmatprep.subr.bf16.mxu0 0
  %2061 = vmatpush1.bf16.msra.mxu0 0
  %2062 = vmatprep.subr.bf16.mxu0 0
  %2063 = vmatpush1.bf16.msra.mxu0 0
  %2064 = vmatprep.subr.bf16.mxu0 0
  %2065 = vmatpush1.bf16.msra.mxu0 0
  %2066 = vmatprep.subr.bf16.mxu0 0
  %2067 = vmatpush1.bf16.msra.mxu0 0
  %2068 = vmatprep.subr.bf16.mxu0 0
  %2069 = vmatpush1.bf16.msra.mxu0 0
  %2070 = vmatprep.subr.bf16.mxu0 0
  %2071 = vmatpush1.bf16.msra.mxu0 0
  %2072 = vmatprep.subr.bf16.mxu0 0
  %2073 = vmatpush1.bf16.msra.mxu0 0
  %2074 = vmatprep.mubr.bf16.mxu0 0
  %2075 = vmatmul.mubr.bf16.gmra.mrb[0].mxu0 %v1689
  %v2076 = vpop.f32.mrb[0].mxu0
  %v2077 = vadd.f32 %v1675, %v2076
  %v2078 = vpop.f32.mrb[0].mxu0
  %v2079 = vadd.f32 %v1675, %v2078
  %v2080 = vpop.f32.mrb[0].mxu0
  %v2081 = vadd.f32 %v1680, %v2080
  %v2082 = vpop.f32.mrb[0].mxu0
  %v2083 = vadd.f32 %v1680, %v2082
  %2084 = vdwg.mxu0
  %v2085 = vld [vmem:[%s3] sm:$0xff]
  %v2086 = vld [vmem:[%s3 + $0x8] sm:$0xff]
  %v2087 = vld [vmem:[%s4] sm:$0xff]
  %v2088 = vld [vmem:[%s4 + $0x8] sm:$0xff]
  %v2089 = vmul.f32 %v1776, %v472
  %v2090 = vmul.f32 %v1778, %v473
  %v2091 = vmul.f32 %v1819, %v474
  %v2092 = vmul.f32 %v1821, %v475
  %v2093 = vmul.f32 %v1862, %v476
  %v2094 = vmul.f32 %v1864, %v477
  %v2095 = vmul.f32 %v1905, %v478
  %v2096 = vmul.f32 %v1907, %v479
  %v2097 = vmul.f32 %v1948, %v480
  %v2098 = vmul.f32 %v1950, %v481
  %v2099 = vmul.f32 %v1991, %v482
  %v2100 = vmul.f32 %v1993, %v483
  %v2101 = vmul.f32 %v2034, %v484
  %v2102 = vmul.f32 %v2036, %v485
  %v2103 = vmul.f32 %v2077, %v486
  %v2104 = vmul.f32 %v2079, %v487
  %v2105 = vmul.f32 %v1780, %v472
  %v2106 = vmul.f32 %v1782, %v473
  %v2107 = vmul.f32 %v1823, %v474
  %v2108 = vmul.f32 %v1825, %v475
  %v2109 = vmul.f32 %v1866, %v476
  %v2110 = vmul.f32 %v1868, %v477
  %v2111 = vmul.f32 %v1909, %v478
  %v2112 = vmul.f32 %v1911, %v479
  %v2113 = vmul.f32 %v1952, %v480
  %v2114 = vmul.f32 %v1954, %v481
  %v2115 = vmul.f32 %v1995, %v482
  %v2116 = vmul.f32 %v1997, %v483
  %v2117 = vmul.f32 %v2038, %v484
  %v2118 = vmul.f32 %v2040, %v485
  %v2119 = vmul.f32 %v2081, %v486
  %v2120 = vmul.f32 %v2083, %v487
  %v2121 = vadd.f32 %v2089, %v2090
  %v2122 = vadd.f32 %v2121, %v2091
  %v2123 = vadd.f32 %v2122, %v2092
  %v2124 = vadd.f32 %v2123, %v2093
  %v2125 = vadd.f32 %v2124, %v2094
  %v2126 = vadd.f32 %v2125, %v2095
  %v2127 = vadd.f32 %v2126, %v2096
  %v2128 = vadd.f32 %v2127, %v2097
  %v2129 = vadd.f32 %v2128, %v2098
  %v2130 = vadd.f32 %v2129, %v2099
  %v2131 = vadd.f32 %v2130, %v2100
  %v2132 = vadd.f32 %v2131, %v2101
  %v2133 = vadd.f32 %v2132, %v2102
  %v2134 = vadd.f32 %v2133, %v2103
  %v2135 = vadd.f32 %v2134, %v2104
  %2136 = vadd.xlane.f32.xlu0 %v2135
  %v2137 = vpop.xlane.xlu0 %2136
  %v2138 = vadd.f32 %v2105, %v2106
  %v2139 = vadd.f32 %v2138, %v2107
  %v2140 = vadd.f32 %v2139, %v2108
  %v2141 = vadd.f32 %v2140, %v2109
  %v2142 = vadd.f32 %v2141, %v2110
  %v2143 = vadd.f32 %v2142, %v2111
  %v2144 = vadd.f32 %v2143, %v2112
  %v2145 = vadd.f32 %v2144, %v2113
  %v2146 = vadd.f32 %v2145, %v2114
  %v2147 = vadd.f32 %v2146, %v2115
  %v2148 = vadd.f32 %v2147, %v2116
  %v2149 = vadd.f32 %v2148, %v2117
  %v2150 = vadd.f32 %v2149, %v2118
  %v2151 = vadd.f32 %v2150, %v2119
  %v2152 = vadd.f32 %v2151, %v2120
  %2153 = vadd.xlane.f32.xlu0 %v2152
  %v2154 = vpop.xlane.xlu0 %2153
  %v2155 = vmul.f32 %v2137, 0.0009765625
  %v2156 = vmul.f32 %v2154, 0.0009765625
  %v2157 = vsub.f32 %v1776, %v2155
  %v2158 = vsub.f32 %v1778, %v2155
  %v2159 = vsub.f32 %v1819, %v2155
  %v2160 = vsub.f32 %v1821, %v2155
  %v2161 = vsub.f32 %v1862, %v2155
  %v2162 = vsub.f32 %v1864, %v2155
  %v2163 = vsub.f32 %v1905, %v2155
  %v2164 = vsub.f32 %v1907, %v2155
  %v2165 = vsub.f32 %v1948, %v2155
  %v2166 = vsub.f32 %v1950, %v2155
  %v2167 = vsub.f32 %v1991, %v2155
  %v2168 = vsub.f32 %v1993, %v2155
  %v2169 = vsub.f32 %v2034, %v2155
  %v2170 = vsub.f32 %v2036, %v2155
  %v2171 = vsub.f32 %v2077, %v2155
  %v2172 = vsub.f32 %v2079, %v2155
  %v2173 = vsub.f32 %v1780, %v2156
  %v2174 = vsub.f32 %v1782, %v2156
  %v2175 = vsub.f32 %v1823, %v2156
  %v2176 = vsub.f32 %v1825, %v2156
  %v2177 = vsub.f32 %v1866, %v2156
  %v2178 = vsub.f32 %v1868, %v2156
  %v2179 = vsub.f32 %v1909, %v2156
  %v2180 = vsub.f32 %v1911, %v2156
  %v2181 = vsub.f32 %v1952, %v2156
  %v2182 = vsub.f32 %v1954, %v2156
  %v2183 = vsub.f32 %v1995, %v2156
  %v2184 = vsub.f32 %v1997, %v2156
  %v2185 = vsub.f32 %v2038, %v2156
  %v2186 = vsub.f32 %v2040, %v2156
  %v2187 = vsub.f32 %v2081, %v2156
  %v2188 = vsub.f32 %v2083, %v2156
  %v2189 = vmul.f32 %v2157, %v2157
  %v2190 = vmul.f32 %v2158, %v2158
  %v2191 = vmul.f32 %v2159, %v2159
  %v2192 = vmul.f32 %v2160, %v2160
  %v2193 = vmul.f32 %v2161, %v2161
  %v2194 = vmul.f32 %v2162, %v2162
  %v2195 = vmul.f32 %v2163, %v2163
  %v2196 = vmul.f32 %v2164, %v2164
  %v2197 = vmul.f32 %v2165, %v2165
  %v2198 = vmul.f32 %v2166, %v2166
  %v2199 = vmul.f32 %v2167, %v2167
  %v2200 = vmul.f32 %v2168, %v2168
  %v2201 = vmul.f32 %v2169, %v2169
  %v2202 = vmul.f32 %v2170, %v2170
  %v2203 = vmul.f32 %v2171, %v2171
  %v2204 = vmul.f32 %v2172, %v2172
  %v2205 = vmul.f32 %v2173, %v2173
  %v2206 = vmul.f32 %v2174, %v2174
  %v2207 = vmul.f32 %v2175, %v2175
  %v2208 = vmul.f32 %v2176, %v2176
  %v2209 = vmul.f32 %v2177, %v2177
  %v2210 = vmul.f32 %v2178, %v2178
  %v2211 = vmul.f32 %v2179, %v2179
  %v2212 = vmul.f32 %v2180, %v2180
  %v2213 = vmul.f32 %v2181, %v2181
  %v2214 = vmul.f32 %v2182, %v2182
  %v2215 = vmul.f32 %v2183, %v2183
  %v2216 = vmul.f32 %v2184, %v2184
  %v2217 = vmul.f32 %v2185, %v2185
  %v2218 = vmul.f32 %v2186, %v2186
  %v2219 = vmul.f32 %v2187, %v2187
  %v2220 = vmul.f32 %v2188, %v2188
  %v2221 = vmul.f32 %v2189, %v472
  %v2222 = vmul.f32 %v2190, %v473
  %v2223 = vmul.f32 %v2191, %v474
  %v2224 = vmul.f32 %v2192, %v475
  %v2225 = vmul.f32 %v2193, %v476
  %v2226 = vmul.f32 %v2194, %v477
  %v2227 = vmul.f32 %v2195, %v478
  %v2228 = vmul.f32 %v2196, %v479
  %v2229 = vmul.f32 %v2197, %v480
  %v2230 = vmul.f32 %v2198, %v481
  %v2231 = vmul.f32 %v2199, %v482
  %v2232 = vmul.f32 %v2200, %v483
  %v2233 = vmul.f32 %v2201, %v484
  %v2234 = vmul.f32 %v2202, %v485
  %v2235 = vmul.f32 %v2203, %v486
  %v2236 = vmul.f32 %v2204, %v487
  %v2237 = vmul.f32 %v2205, %v472
  %v2238 = vmul.f32 %v2206, %v473
  %v2239 = vmul.f32 %v2207, %v474
  %v2240 = vmul.f32 %v2208, %v475
  %v2241 = vmul.f32 %v2209, %v476
  %v2242 = vmul.f32 %v2210, %v477
  %v2243 = vmul.f32 %v2211, %v478
  %v2244 = vmul.f32 %v2212, %v479
  %v2245 = vmul.f32 %v2213, %v480
  %v2246 = vmul.f32 %v2214, %v481
  %v2247 = vmul.f32 %v2215, %v482
  %v2248 = vmul.f32 %v2216, %v483
  %v2249 = vmul.f32 %v2217, %v484
  %v2250 = vmul.f32 %v2218, %v485
  %v2251 = vmul.f32 %v2219, %v486
  %v2252 = vmul.f32 %v2220, %v487
  %v2253 = vadd.f32 %v2221, %v2222
  %v2254 = vadd.f32 %v2253, %v2223
  %v2255 = vadd.f32 %v2254, %v2224
  %v2256 = vadd.f32 %v2255, %v2225
  %v2257 = vadd.f32 %v2256, %v2226
  %v2258 = vadd.f32 %v2257, %v2227
  %v2259 = vadd.f32 %v2258, %v2228
  %v2260 = vadd.f32 %v2259, %v2229
  %v2261 = vadd.f32 %v2260, %v2230
  %v2262 = vadd.f32 %v2261, %v2231
  %v2263 = vadd.f32 %v2262, %v2232
  %v2264 = vadd.f32 %v2263, %v2233
  %v2265 = vadd.f32 %v2264, %v2234
  %v2266 = vadd.f32 %v2265, %v2235
  %v2267 = vadd.f32 %v2266, %v2236
  %2268 = vadd.xlane.f32.xlu0 %v2267
  %v2269 = vpop.xlane.xlu0 %2268
  %v2270 = vadd.f32 %v2237, %v2238
  %v2271 = vadd.f32 %v2270, %v2239
  %v2272 = vadd.f32 %v2271, %v2240
  %v2273 = vadd.f32 %v2272, %v2241
  %v2274 = vadd.f32 %v2273, %v2242
  %v2275 = vadd.f32 %v2274, %v2243
  %v2276 = vadd.f32 %v2275, %v2244
  %v2277 = vadd.f32 %v2276, %v2245
  %v2278 = vadd.f32 %v2277, %v2246
  %v2279 = vadd.f32 %v2278, %v2247
  %v2280 = vadd.f32 %v2279, %v2248
  %v2281 = vadd.f32 %v2280, %v2249
  %v2282 = vadd.f32 %v2281, %v2250
  %v2283 = vadd.f32 %v2282, %v2251
  %v2284 = vadd.f32 %v2283, %v2252
  %2285 = vadd.xlane.f32.xlu0 %v2284
  %v2286 = vpop.xlane.xlu0 %2285
  %v2287 = vmul.f32 %v2269, 0.0009765625
  %v2288 = vmul.f32 %v2286, 0.0009765625
  %v2289 = vadd.f32 %v2287, 1e-05
  %v2290 = vadd.f32 %v2288, 1e-05
  %v2291 = vrsqrt.pop %v2289
  %v2292 = vrsqrt.pop %v2290
  %v2293 = vmul.f32 %v2157, %v2291
  %v2294 = vmul.f32 %v2158, %v2291
  %v2295 = vmul.f32 %v2159, %v2291
  %v2296 = vmul.f32 %v2160, %v2291
  %v2297 = vmul.f32 %v2161, %v2291
  %v2298 = vmul.f32 %v2162, %v2291
  %v2299 = vmul.f32 %v2163, %v2291
  %v2300 = vmul.f32 %v2164, %v2291
  %v2301 = vmul.f32 %v2165, %v2291
  %v2302 = vmul.f32 %v2166, %v2291
  %v2303 = vmul.f32 %v2167, %v2291
  %v2304 = vmul.f32 %v2168, %v2291
  %v2305 = vmul.f32 %v2169, %v2291
  %v2306 = vmul.f32 %v2170, %v2291
  %v2307 = vmul.f32 %v2171, %v2291
  %v2308 = vmul.f32 %v2172, %v2291
  %v2309 = vmul.f32 %v2173, %v2292
  %v2310 = vmul.f32 %v2174, %v2292
  %v2311 = vmul.f32 %v2175, %v2292
  %v2312 = vmul.f32 %v2176, %v2292
  %v2313 = vmul.f32 %v2177, %v2292
  %v2314 = vmul.f32 %v2178, %v2292
  %v2315 = vmul.f32 %v2179, %v2292
  %v2316 = vmul.f32 %v2180, %v2292
  %v2317 = vmul.f32 %v2181, %v2292
  %v2318 = vmul.f32 %v2182, %v2292
  %v2319 = vmul.f32 %v2183, %v2292
  %v2320 = vmul.f32 %v2184, %v2292
  %v2321 = vmul.f32 %v2185, %v2292
  %v2322 = vmul.f32 %v2186, %v2292
  %v2323 = vmul.f32 %v2187, %v2292
  %v2324 = vmul.f32 %v2188, %v2292
  %2326 = vset.pattern.permute.xlu0 0
  %2327 = vperm.xlu0 %2326, %v2085
  %v2328 = vpop.permute.xlu0 %2327
  %2331 = vset.pattern.permute.xlu0 0
  %2332 = vperm.xlu0 %2331, %v2086
  %v2333 = vpop.permute.xlu0 %2332
  %v2335 = vmul.f32 %v2293, %v2328
  %v2336 = vmul.f32 %v2294, %v2328
  %v2337 = vmul.f32 %v2295, %v2328
  %v2338 = vmul.f32 %v2296, %v2328
  %v2339 = vmul.f32 %v2297, %v2328
  %v2340 = vmul.f32 %v2298, %v2328
  %v2341 = vmul.f32 %v2299, %v2328
  %v2342 = vmul.f32 %v2300, %v2328
  %v2343 = vmul.f32 %v2301, %v2328
  %v2344 = vmul.f32 %v2302, %v2328
  %v2345 = vmul.f32 %v2303, %v2328
  %v2346 = vmul.f32 %v2304, %v2328
  %v2347 = vmul.f32 %v2305, %v2328
  %v2348 = vmul.f32 %v2306, %v2328
  %v2349 = vmul.f32 %v2307, %v2328
  %v2350 = vmul.f32 %v2308, %v2328
  %v2351 = vmul.f32 %v2309, %v2333
  %v2352 = vmul.f32 %v2310, %v2333
  %v2353 = vmul.f32 %v2311, %v2333
  %v2354 = vmul.f32 %v2312, %v2333
  %v2355 = vmul.f32 %v2313, %v2333
  %v2356 = vmul.f32 %v2314, %v2333
  %v2357 = vmul.f32 %v2315, %v2333
  %v2358 = vmul.f32 %v2316, %v2333
  %v2359 = vmul.f32 %v2317, %v2333
  %v2360 = vmul.f32 %v2318, %v2333
  %v2361 = vmul.f32 %v2319, %v2333
  %v2362 = vmul.f32 %v2320, %v2333
  %v2363 = vmul.f32 %v2321, %v2333
  %v2364 = vmul.f32 %v2322, %v2333
  %v2365 = vmul.f32 %v2323, %v2333
  %v2366 = vmul.f32 %v2324, %v2333
  %2368 = vset.pattern.permute.xlu0 0
  %2369 = vperm.xlu0 %2368, %v2087
  %v2370 = vpop.permute.xlu0 %2369
  %2373 = vset.pattern.permute.xlu0 0
  %2374 = vperm.xlu0 %2373, %v2088
  %v2375 = vpop.permute.xlu0 %2374
  %v2377 = vadd.f32 %v2335, %v2370
  %v2378 = vadd.f32 %v2336, %v2370
  %v2379 = vadd.f32 %v2337, %v2370
  %v2380 = vadd.f32 %v2338, %v2370
  %v2381 = vadd.f32 %v2339, %v2370
  %v2382 = vadd.f32 %v2340, %v2370
  %v2383 = vadd.f32 %v2341, %v2370
  %v2384 = vadd.f32 %v2342, %v2370
  %v2385 = vadd.f32 %v2343, %v2370
  %v2386 = vadd.f32 %v2344, %v2370
  %v2387 = vadd.f32 %v2345, %v2370
  %v2388 = vadd.f32 %v2346, %v2370
  %v2389 = vadd.f32 %v2347, %v2370
  %v2390 = vadd.f32 %v2348, %v2370
  %v2391 = vadd.f32 %v2349, %v2370
  %v2392 = vadd.f32 %v2350, %v2370
  %v2393 = vadd.f32 %v2351, %v2375
  %v2394 = vadd.f32 %v2352, %v2375
  %v2395 = vadd.f32 %v2353, %v2375
  %v2396 = vadd.f32 %v2354, %v2375
  %v2397 = vadd.f32 %v2355, %v2375
  %v2398 = vadd.f32 %v2356, %v2375
  %v2399 = vadd.f32 %v2357, %v2375
  %v2400 = vadd.f32 %v2358, %v2375
  %v2401 = vadd.f32 %v2359, %v2375
  %v2402 = vadd.f32 %v2360, %v2375
  %v2403 = vadd.f32 %v2361, %v2375
  %v2404 = vadd.f32 %v2362, %v2375
  %v2405 = vadd.f32 %v2363, %v2375
  %v2406 = vadd.f32 %v2364, %v2375
  %v2407 = vadd.f32 %v2365, %v2375
  %v2408 = vadd.f32 %v2366, %v2375
  %vm2409 = vcmp.ge.f32.partialorder %v2377, 0.0
  %vm2410 = vcmp.ge.f32.partialorder %v2378, 0.0
  %vm2411 = vcmp.ge.f32.partialorder %v2379, 0.0
  %vm2412 = vcmp.ge.f32.partialorder %v2380, 0.0
  %vm2413 = vcmp.ge.f32.partialorder %v2381, 0.0
  %vm2414 = vcmp.ge.f32.partialorder %v2382, 0.0
  %vm2415 = vcmp.ge.f32.partialorder %v2383, 0.0
  %vm2416 = vcmp.ge.f32.partialorder %v2384, 0.0
  %vm2417 = vcmp.ge.f32.partialorder %v2385, 0.0
  %vm2418 = vcmp.ge.f32.partialorder %v2386, 0.0
  %vm2419 = vcmp.ge.f32.partialorder %v2387, 0.0
  %vm2420 = vcmp.ge.f32.partialorder %v2388, 0.0
  %vm2421 = vcmp.ge.f32.partialorder %v2389, 0.0
  %vm2422 = vcmp.ge.f32.partialorder %v2390, 0.0
  %vm2423 = vcmp.ge.f32.partialorder %v2391, 0.0
  %vm2424 = vcmp.ge.f32.partialorder %v2392, 0.0
  %vm2425 = vcmp.ge.f32.partialorder %v2393, 0.0
  %vm2426 = vcmp.ge.f32.partialorder %v2394, 0.0
  %vm2427 = vcmp.ge.f32.partialorder %v2395, 0.0
  %vm2428 = vcmp.ge.f32.partialorder %v2396, 0.0
  %vm2429 = vcmp.ge.f32.partialorder %v2397, 0.0
  %vm2430 = vcmp.ge.f32.partialorder %v2398, 0.0
  %vm2431 = vcmp.ge.f32.partialorder %v2399, 0.0
  %vm2432 = vcmp.ge.f32.partialorder %v2400, 0.0
  %vm2433 = vcmp.ge.f32.partialorder %v2401, 0.0
  %vm2434 = vcmp.ge.f32.partialorder %v2402, 0.0
  %vm2435 = vcmp.ge.f32.partialorder %v2403, 0.0
  %vm2436 = vcmp.ge.f32.partialorder %v2404, 0.0
  %vm2437 = vcmp.ge.f32.partialorder %v2405, 0.0
  %vm2438 = vcmp.ge.f32.partialorder %v2406, 0.0
  %vm2439 = vcmp.ge.f32.partialorder %v2407, 0.0
  %vm2440 = vcmp.ge.f32.partialorder %v2408, 0.0
  %v2441 = vmul.f32 %v2377, 0.3
  %v2442 = vmul.f32 %v2378, 0.3
  %v2443 = vmul.f32 %v2379, 0.3
  %v2444 = vmul.f32 %v2380, 0.3
  %v2445 = vmul.f32 %v2381, 0.3
  %v2446 = vmul.f32 %v2382, 0.3
  %v2447 = vmul.f32 %v2383, 0.3
  %v2448 = vmul.f32 %v2384, 0.3
  %v2449 = vmul.f32 %v2385, 0.3
  %v2450 = vmul.f32 %v2386, 0.3
  %v2451 = vmul.f32 %v2387, 0.3
  %v2452 = vmul.f32 %v2388, 0.3
  %v2453 = vmul.f32 %v2389, 0.3
  %v2454 = vmul.f32 %v2390, 0.3
  %v2455 = vmul.f32 %v2391, 0.3
  %v2456 = vmul.f32 %v2392, 0.3
  %v2457 = vmul.f32 %v2393, 0.3
  %v2458 = vmul.f32 %v2394, 0.3
  %v2459 = vmul.f32 %v2395, 0.3
  %v2460 = vmul.f32 %v2396, 0.3
  %v2461 = vmul.f32 %v2397, 0.3
  %v2462 = vmul.f32 %v2398, 0.3
  %v2463 = vmul.f32 %v2399, 0.3
  %v2464 = vmul.f32 %v2400, 0.3
  %v2465 = vmul.f32 %v2401, 0.3
  %v2466 = vmul.f32 %v2402, 0.3
  %v2467 = vmul.f32 %v2403, 0.3
  %v2468 = vmul.f32 %v2404, 0.3
  %v2469 = vmul.f32 %v2405, 0.3
  %v2470 = vmul.f32 %v2406, 0.3
  %v2471 = vmul.f32 %v2407, 0.3
  %v2472 = vmul.f32 %v2408, 0.3
  %v2473 = vsel %vm2409, %v2377, %v2441
  %v2474 = vsel %vm2410, %v2378, %v2442
  %v2475 = vsel %vm2411, %v2379, %v2443
  %v2476 = vsel %vm2412, %v2380, %v2444
  %v2477 = vsel %vm2413, %v2381, %v2445
  %v2478 = vsel %vm2414, %v2382, %v2446
  %v2479 = vsel %vm2415, %v2383, %v2447
  %v2480 = vsel %vm2416, %v2384, %v2448
  %v2481 = vsel %vm2417, %v2385, %v2449
  %v2482 = vsel %vm2418, %v2386, %v2450
  %v2483 = vsel %vm2419, %v2387, %v2451
  %v2484 = vsel %vm2420, %v2388, %v2452
  %v2485 = vsel %vm2421, %v2389, %v2453
  %v2486 = vsel %vm2422, %v2390, %v2454
  %v2487 = vsel %vm2423, %v2391, %v2455
  %v2488 = vsel %vm2424, %v2392, %v2456
  %v2489 = vsel %vm2425, %v2393, %v2457
  %v2490 = vsel %vm2426, %v2394, %v2458
  %v2491 = vsel %vm2427, %v2395, %v2459
  %v2492 = vsel %vm2428, %v2396, %v2460
  %v2493 = vsel %vm2429, %v2397, %v2461
  %v2494 = vsel %vm2430, %v2398, %v2462
  %v2495 = vsel %vm2431, %v2399, %v2463
  %v2496 = vsel %vm2432, %v2400, %v2464
  %v2497 = vsel %vm2433, %v2401, %v2465
  %v2498 = vsel %vm2434, %v2402, %v2466
  %v2499 = vsel %vm2435, %v2403, %v2467
  %v2500 = vsel %vm2436, %v2404, %v2468
  %v2501 = vsel %vm2437, %v2405, %v2469
  %v2502 = vsel %vm2438, %v2406, %v2470
  %v2503 = vsel %vm2439, %v2407, %v2471
  %v2504 = vsel %vm2440, %v2408, %v2472
  %v2505 = vld [vmem:[%s5] sm:$0xf]
  %v2506 = vld [vmem:[%s5 + $0x4] sm:$0xf]
  %v2507 = vld [vmem:[%s5 + $0x8] sm:$0xf]
  %v2508 = vld [vmem:[%s5 + $0xc] sm:$0xf]
  %2509 = vrot.lane.b32.xlu0 %v2473, 4
  %v2510 = vpop.permute.xlu0 %2509
  %2511 = vrot.lane.b32.xlu0 %v2489, 4
  %v2512 = vpop.permute.xlu0 %2511
  %2513 = vrot.lane.b32.xlu0 %v2474, 4
  %v2514 = vpop.permute.xlu0 %2513
  %2515 = vrot.lane.b32.xlu0 %v2490, 4
  %v2516 = vpop.permute.xlu0 %2515
  %2517 = vrot.lane.b32.xlu0 %v2475, 4
  %v2518 = vpop.permute.xlu0 %2517
  %2519 = vrot.lane.b32.xlu0 %v2491, 4
  %v2520 = vpop.permute.xlu0 %2519
  %2521 = vrot.lane.b32.xlu0 %v2476, 4
  %v2522 = vpop.permute.xlu0 %2521
  %2523 = vrot.lane.b32.xlu0 %v2492, 4
  %v2524 = vpop.permute.xlu0 %2523
  %2525 = vrot.lane.b32.xlu0 %v2477, 4
  %v2526 = vpop.permute.xlu0 %2525
  %2527 = vrot.lane.b32.xlu0 %v2493, 4
  %v2528 = vpop.permute.xlu0 %2527
  %2529 = vrot.lane.b32.xlu0 %v2478, 4
  %v2530 = vpop.permute.xlu0 %2529
  %2531 = vrot.lane.b32.xlu0 %v2494, 4
  %v2532 = vpop.permute.xlu0 %2531
  %2533 = vrot.lane.b32.xlu0 %v2479, 4
  %v2534 = vpop.permute.xlu0 %2533
  %2535 = vrot.lane.b32.xlu0 %v2495, 4
  %v2536 = vpop.permute.xlu0 %2535
  %2537 = vrot.lane.b32.xlu0 %v2480, 4
  %v2538 = vpop.permute.xlu0 %2537
  %2539 = vrot.lane.b32.xlu0 %v2496, 4
  %v2540 = vpop.permute.xlu0 %2539
  %2541 = vrot.lane.b32.xlu0 %v2481, 4
  %v2542 = vpop.permute.xlu0 %2541
  %2543 = vrot.lane.b32.xlu0 %v2497, 4
  %v2544 = vpop.permute.xlu0 %2543
  %2545 = vrot.lane.b32.xlu0 %v2482, 4
  %v2546 = vpop.permute.xlu0 %2545
  %2547 = vrot.lane.b32.xlu0 %v2498, 4
  %v2548 = vpop.permute.xlu0 %2547
  %2549 = vrot.lane.b32.xlu0 %v2483, 4
  %v2550 = vpop.permute.xlu0 %2549
  %2551 = vrot.lane.b32.xlu0 %v2499, 4
  %v2552 = vpop.permute.xlu0 %2551
  %2553 = vrot.lane.b32.xlu0 %v2484, 4
  %v2554 = vpop.permute.xlu0 %2553
  %2555 = vrot.lane.b32.xlu0 %v2500, 4
  %v2556 = vpop.permute.xlu0 %2555
  %2557 = vrot.lane.b32.xlu0 %v2485, 4
  %v2558 = vpop.permute.xlu0 %2557
  %2559 = vrot.lane.b32.xlu0 %v2501, 4
  %v2560 = vpop.permute.xlu0 %2559
  %2561 = vrot.lane.b32.xlu0 %v2486, 4
  %v2562 = vpop.permute.xlu0 %2561
  %2563 = vrot.lane.b32.xlu0 %v2502, 4
  %v2564 = vpop.permute.xlu0 %2563
  %2565 = vrot.lane.b32.xlu0 %v2487, 4
  %v2566 = vpop.permute.xlu0 %2565
  %2567 = vrot.lane.b32.xlu0 %v2503, 4
  %v2568 = vpop.permute.xlu0 %2567
  %2569 = vrot.lane.b32.xlu0 %v2488, 4
  %v2570 = vpop.permute.xlu0 %2569
  %2571 = vrot.lane.b32.xlu0 %v2504, 4
  %v2572 = vpop.permute.xlu0 %2571
  %vm2573 = vcmp.lt.s32.totalorder %v40, 4
  %v2574 = vsel %vm2573, %v2566, %v2570
  %v2575 = vsel %vm2573, %v2568, %v2572
  %v2576 = vsel %vm2573, %v2562, %v2566
  %v2577 = vsel %vm2573, %v2564, %v2568
  %v2578 = vsel %vm2573, %v2558, %v2562
  %v2579 = vsel %vm2573, %v2560, %v2564
  %v2580 = vsel %vm2573, %v2554, %v2558
  %v2581 = vsel %vm2573, %v2556, %v2560
  %v2582 = vsel %vm2573, %v2550, %v2554
  %v2583 = vsel %vm2573, %v2552, %v2556
  %v2584 = vsel %vm2573, %v2546, %v2550
  %v2585 = vsel %vm2573, %v2548, %v2552
  %v2586 = vsel %vm2573, %v2542, %v2546
  %v2587 = vsel %vm2573, %v2544, %v2548
  %v2588 = vsel %vm2573, %v2538, %v2542
  %v2589 = vsel %vm2573, %v2540, %v2544
  %v2590 = vsel %vm2573, %v2534, %v2538
  %v2591 = vsel %vm2573, %v2536, %v2540
  %v2592 = vsel %vm2573, %v2530, %v2534
  %v2593 = vsel %vm2573, %v2532, %v2536
  %v2594 = vsel %vm2573, %v2526, %v2530
  %v2595 = vsel %vm2573, %v2528, %v2532
  %v2596 = vsel %vm2573, %v2522, %v2526
  %v2597 = vsel %vm2573, %v2524, %v2528
  %v2598 = vsel %vm2573, %v2518, %v2522
  %v2599 = vsel %vm2573, %v2520, %v2524
  %v2600 = vsel %vm2573, %v2514, %v2518
  %v2601 = vsel %vm2573, %v2516, %v2520
  %v2602 = vsel %vm2573, %v2510, %v2514
  %v2603 = vsel %vm2573, %v2512, %v2516
  %v2604 = vsel %vm2573, %v2570, %v2510
  %v2605 = vsel %vm2573, %v2572, %v2512
  %v2606 = vadd.s32 %v232, 4294967292
  %v2607 = vadd.s32 %v233, 4294967292
  %v2608 = vadd.s32 %v234, 4294967292
  %v2609 = vadd.s32 %v235, 4294967292
  %v2610 = vadd.s32 %v236, 4294967292
  %v2611 = vadd.s32 %v237, 4294967292
  %v2612 = vadd.s32 %v238, 4294967292
  %v2613 = vadd.s32 %v239, 4294967292
  %v2614 = vadd.s32 %v240, 4294967292
  %v2615 = vadd.s32 %v241, 4294967292
  %v2616 = vadd.s32 %v242, 4294967292
  %v2617 = vadd.s32 %v243, 4294967292
  %v2618 = vadd.s32 %v244, 4294967292
  %v2619 = vadd.s32 %v245, 4294967292
  %v2620 = vadd.s32 %v246, 4294967292
  %v2621 = vadd.s32 %v247, 4294967292
  %vm2622 = vcmp.ge.s32.totalorder %v2606, 0
  %vm2623 = vcmp.ge.s32.totalorder %v2607, 0
  %vm2624 = vcmp.ge.s32.totalorder %v2608, 0
  %vm2625 = vcmp.ge.s32.totalorder %v2609, 0
  %vm2626 = vcmp.ge.s32.totalorder %v2610, 0
  %vm2627 = vcmp.ge.s32.totalorder %v2611, 0
  %vm2628 = vcmp.ge.s32.totalorder %v2612, 0
  %vm2629 = vcmp.ge.s32.totalorder %v2613, 0
  %vm2630 = vcmp.ge.s32.totalorder %v2614, 0
  %vm2631 = vcmp.ge.s32.totalorder %v2615, 0
  %vm2632 = vcmp.ge.s32.totalorder %v2616, 0
  %vm2633 = vcmp.ge.s32.totalorder %v2617, 0
  %vm2634 = vcmp.ge.s32.totalorder %v2618, 0
  %vm2635 = vcmp.ge.s32.totalorder %v2619, 0
  %vm2636 = vcmp.ge.s32.totalorder %v2620, 0
  %vm2637 = vcmp.ge.s32.totalorder %v2621, 0
  %vm2638 = vcmp.lt.s32.totalorder %v2606, 1024
  %vm2639 = vcmp.lt.s32.totalorder %v2607, 1024
  %vm2640 = vcmp.lt.s32.totalorder %v2608, 1024
  %vm2641 = vcmp.lt.s32.totalorder %v2609, 1024
  %vm2642 = vcmp.lt.s32.totalorder %v2610, 1024
  %vm2643 = vcmp.lt.s32.totalorder %v2611, 1024
  %vm2644 = vcmp.lt.s32.totalorder %v2612, 1024
  %vm2645 = vcmp.lt.s32.totalorder %v2613, 1024
  %vm2646 = vcmp.lt.s32.totalorder %v2614, 1024
  %vm2647 = vcmp.lt.s32.totalorder %v2615, 1024
  %vm2648 = vcmp.lt.s32.totalorder %v2616, 1024
  %vm2649 = vcmp.lt.s32.totalorder %v2617, 1024
  %vm2650 = vcmp.lt.s32.totalorder %v2618, 1024
  %vm2651 = vcmp.lt.s32.totalorder %v2619, 1024
  %vm2652 = vcmp.lt.s32.totalorder %v2620, 1024
  %vm2653 = vcmp.lt.s32.totalorder %v2621, 1024
  %vm2654 = vmand %vm2622, %vm2638
  %vm2655 = vmand %vm2623, %vm2639
  %vm2656 = vmand %vm2624, %vm2640
  %vm2657 = vmand %vm2625, %vm2641
  %vm2658 = vmand %vm2626, %vm2642
  %vm2659 = vmand %vm2627, %vm2643
  %vm2660 = vmand %vm2628, %vm2644
  %vm2661 = vmand %vm2629, %vm2645
  %vm2662 = vmand %vm2630, %vm2646
  %vm2663 = vmand %vm2631, %vm2647
  %vm2664 = vmand %vm2632, %vm2648
  %vm2665 = vmand %vm2633, %vm2649
  %vm2666 = vmand %vm2634, %vm2650
  %vm2667 = vmand %vm2635, %vm2651
  %vm2668 = vmand %vm2636, %vm2652
  %vm2669 = vmand %vm2637, %vm2653
  %v2670 = vsel %vm2654, 1, 0
  %v2671 = vsel %vm2655, 1, 0
  %v2672 = vsel %vm2656, 1, 0
  %v2673 = vsel %vm2657, 1, 0
  %v2674 = vsel %vm2658, 1, 0
  %v2675 = vsel %vm2659, 1, 0
  %v2676 = vsel %vm2660, 1, 0
  %v2677 = vsel %vm2661, 1, 0
  %v2678 = vsel %vm2662, 1, 0
  %v2679 = vsel %vm2663, 1, 0
  %v2680 = vsel %vm2664, 1, 0
  %v2681 = vsel %vm2665, 1, 0
  %v2682 = vsel %vm2666, 1, 0
  %v2683 = vsel %vm2667, 1, 0
  %v2684 = vsel %vm2668, 1, 0
  %v2685 = vsel %vm2669, 1, 0
  %vm2686 = vcmp.eq.s32.totalorder %v2670, 1
  %vm2687 = vcmp.eq.s32.totalorder %v2671, 1
  %vm2688 = vcmp.eq.s32.totalorder %v2672, 1
  %vm2689 = vcmp.eq.s32.totalorder %v2673, 1
  %vm2690 = vcmp.eq.s32.totalorder %v2674, 1
  %vm2691 = vcmp.eq.s32.totalorder %v2675, 1
  %vm2692 = vcmp.eq.s32.totalorder %v2676, 1
  %vm2693 = vcmp.eq.s32.totalorder %v2677, 1
  %vm2694 = vcmp.eq.s32.totalorder %v2678, 1
  %vm2695 = vcmp.eq.s32.totalorder %v2679, 1
  %vm2696 = vcmp.eq.s32.totalorder %v2680, 1
  %vm2697 = vcmp.eq.s32.totalorder %v2681, 1
  %vm2698 = vcmp.eq.s32.totalorder %v2682, 1
  %vm2699 = vcmp.eq.s32.totalorder %v2683, 1
  %vm2700 = vcmp.eq.s32.totalorder %v2684, 1
  %vm2701 = vcmp.eq.s32.totalorder %v2685, 1
  %v2702 = vsel %vm2686, %v2604, 0.0
  %v2703 = vsel %vm2687, %v2602, 0.0
  %v2704 = vsel %vm2688, %v2600, 0.0
  %v2705 = vsel %vm2689, %v2598, 0.0
  %v2706 = vsel %vm2690, %v2596, 0.0
  %v2707 = vsel %vm2691, %v2594, 0.0
  %v2708 = vsel %vm2692, %v2592, 0.0
  %v2709 = vsel %vm2693, %v2590, 0.0
  %v2710 = vsel %vm2694, %v2588, 0.0
  %v2711 = vsel %vm2695, %v2586, 0.0
  %v2712 = vsel %vm2696, %v2584, 0.0
  %v2713 = vsel %vm2697, %v2582, 0.0
  %v2714 = vsel %vm2698, %v2580, 0.0
  %v2715 = vsel %vm2699, %v2578, 0.0
  %v2716 = vsel %vm2700, %v2576, 0.0
  %v2717 = vsel %vm2701, %v2574, 0.0
  %v2718 = vsel %vm2686, %v2605, 0.0
  %v2719 = vsel %vm2687, %v2603, 0.0
  %v2720 = vsel %vm2688, %v2601, 0.0
  %v2721 = vsel %vm2689, %v2599, 0.0
  %v2722 = vsel %vm2690, %v2597, 0.0
  %v2723 = vsel %vm2691, %v2595, 0.0
  %v2724 = vsel %vm2692, %v2593, 0.0
  %v2725 = vsel %vm2693, %v2591, 0.0
  %v2726 = vsel %vm2694, %v2589, 0.0
  %v2727 = vsel %vm2695, %v2587, 0.0
  %v2728 = vsel %vm2696, %v2585, 0.0
  %v2729 = vsel %vm2697, %v2583, 0.0
  %v2730 = vsel %vm2698, %v2581, 0.0
  %v2731 = vsel %vm2699, %v2579, 0.0
  %v2732 = vsel %vm2700, %v2577, 0.0
  %v2733 = vsel %vm2701, %v2575, 0.0
  %2734 = vrot.lane.b32.xlu0 %v2473, 2
  %v2735 = vpop.permute.xlu0 %2734
  %2736 = vrot.lane.b32.xlu0 %v2489, 2
  %v2737 = vpop.permute.xlu0 %2736
  %2738 = vrot.lane.b32.xlu0 %v2474, 2
  %v2739 = vpop.permute.xlu0 %2738
  %2740 = vrot.lane.b32.xlu0 %v2490, 2
  %v2741 = vpop.permute.xlu0 %2740
  %2742 = vrot.lane.b32.xlu0 %v2475, 2
  %v2743 = vpop.permute.xlu0 %2742
  %2744 = vrot.lane.b32.xlu0 %v2491, 2
  %v2745 = vpop.permute.xlu0 %2744
  %2746 = vrot.lane.b32.xlu0 %v2476, 2
  %v2747 = vpop.permute.xlu0 %2746
  %2748 = vrot.lane.b32.xlu0 %v2492, 2
  %v2749 = vpop.permute.xlu0 %2748
  %2750 = vrot.lane.b32.xlu0 %v2477, 2
  %v2751 = vpop.permute.xlu0 %2750
  %2752 = vrot.lane.b32.xlu0 %v2493, 2
  %v2753 = vpop.permute.xlu0 %2752
  %2754 = vrot.lane.b32.xlu0 %v2478, 2
  %v2755 = vpop.permute.xlu0 %2754
  %2756 = vrot.lane.b32.xlu0 %v2494, 2
  %v2757 = vpop.permute.xlu0 %2756
  %2758 = vrot.lane.b32.xlu0 %v2479, 2
  %v2759 = vpop.permute.xlu0 %2758
  %2760 = vrot.lane.b32.xlu0 %v2495, 2
  %v2761 = vpop.permute.xlu0 %2760
  %2762 = vrot.lane.b32.xlu0 %v2480, 2
  %v2763 = vpop.permute.xlu0 %2762
  %2764 = vrot.lane.b32.xlu0 %v2496, 2
  %v2765 = vpop.permute.xlu0 %2764
  %2766 = vrot.lane.b32.xlu0 %v2481, 2
  %v2767 = vpop.permute.xlu0 %2766
  %2768 = vrot.lane.b32.xlu0 %v2497, 2
  %v2769 = vpop.permute.xlu0 %2768
  %2770 = vrot.lane.b32.xlu0 %v2482, 2
  %v2771 = vpop.permute.xlu0 %2770
  %2772 = vrot.lane.b32.xlu0 %v2498, 2
  %v2773 = vpop.permute.xlu0 %2772
  %2774 = vrot.lane.b32.xlu0 %v2483, 2
  %v2775 = vpop.permute.xlu0 %2774
  %2776 = vrot.lane.b32.xlu0 %v2499, 2
  %v2777 = vpop.permute.xlu0 %2776
  %2778 = vrot.lane.b32.xlu0 %v2484, 2
  %v2779 = vpop.permute.xlu0 %2778
  %2780 = vrot.lane.b32.xlu0 %v2500, 2
  %v2781 = vpop.permute.xlu0 %2780
  %2782 = vrot.lane.b32.xlu0 %v2485, 2
  %v2783 = vpop.permute.xlu0 %2782
  %2784 = vrot.lane.b32.xlu0 %v2501, 2
  %v2785 = vpop.permute.xlu0 %2784
  %2786 = vrot.lane.b32.xlu0 %v2486, 2
  %v2787 = vpop.permute.xlu0 %2786
  %2788 = vrot.lane.b32.xlu0 %v2502, 2
  %v2789 = vpop.permute.xlu0 %2788
  %2790 = vrot.lane.b32.xlu0 %v2487, 2
  %v2791 = vpop.permute.xlu0 %2790
  %2792 = vrot.lane.b32.xlu0 %v2503, 2
  %v2793 = vpop.permute.xlu0 %2792
  %2794 = vrot.lane.b32.xlu0 %v2488, 2
  %v2795 = vpop.permute.xlu0 %2794
  %2796 = vrot.lane.b32.xlu0 %v2504, 2
  %v2797 = vpop.permute.xlu0 %2796
  %v2798 = vsel %vm846, %v2791, %v2795
  %v2799 = vsel %vm846, %v2793, %v2797
  %v2800 = vsel %vm846, %v2787, %v2791
  %v2801 = vsel %vm846, %v2789, %v2793
  %v2802 = vsel %vm846, %v2783, %v2787
  %v2803 = vsel %vm846, %v2785, %v2789
  %v2804 = vsel %vm846, %v2779, %v2783
  %v2805 = vsel %vm846, %v2781, %v2785
  %v2806 = vsel %vm846, %v2775, %v2779
  %v2807 = vsel %vm846, %v2777, %v2781
  %v2808 = vsel %vm846, %v2771, %v2775
  %v2809 = vsel %vm846, %v2773, %v2777
  %v2810 = vsel %vm846, %v2767, %v2771
  %v2811 = vsel %vm846, %v2769, %v2773
  %v2812 = vsel %vm846, %v2763, %v2767
  %v2813 = vsel %vm846, %v2765, %v2769
  %v2814 = vsel %vm846, %v2759, %v2763
  %v2815 = vsel %vm846, %v2761, %v2765
  %v2816 = vsel %vm846, %v2755, %v2759
  %v2817 = vsel %vm846, %v2757, %v2761
  %v2818 = vsel %vm846, %v2751, %v2755
  %v2819 = vsel %vm846, %v2753, %v2757
  %v2820 = vsel %vm846, %v2747, %v2751
  %v2821 = vsel %vm846, %v2749, %v2753
  %v2822 = vsel %vm846, %v2743, %v2747
  %v2823 = vsel %vm846, %v2745, %v2749
  %v2824 = vsel %vm846, %v2739, %v2743
  %v2825 = vsel %vm846, %v2741, %v2745
  %v2826 = vsel %vm846, %v2735, %v2739
  %v2827 = vsel %vm846, %v2737, %v2741
  %v2828 = vsel %vm846, %v2795, %v2735
  %v2829 = vsel %vm846, %v2797, %v2737
  %v2830 = vsel %vm911, 1, 0
  %v2831 = vsel %vm912, 1, 0
  %v2832 = vsel %vm913, 1, 0
  %v2833 = vsel %vm914, 1, 0
  %v2834 = vsel %vm915, 1, 0
  %v2835 = vsel %vm916, 1, 0
  %v2836 = vsel %vm917, 1, 0
  %v2837 = vsel %vm918, 1, 0
  %v2838 = vsel %vm919, 1, 0
  %v2839 = vsel %vm920, 1, 0
  %v2840 = vsel %vm921, 1, 0
  %v2841 = vsel %vm922, 1, 0
  %v2842 = vsel %vm923, 1, 0
  %v2843 = vsel %vm924, 1, 0
  %v2844 = vsel %vm925, 1, 0
  %v2845 = vsel %vm926, 1, 0
  %vm2846 = vcmp.eq.s32.totalorder %v2830, 1
  %vm2847 = vcmp.eq.s32.totalorder %v2831, 1
  %vm2848 = vcmp.eq.s32.totalorder %v2832, 1
  %vm2849 = vcmp.eq.s32.totalorder %v2833, 1
  %vm2850 = vcmp.eq.s32.totalorder %v2834, 1
  %vm2851 = vcmp.eq.s32.totalorder %v2835, 1
  %vm2852 = vcmp.eq.s32.totalorder %v2836, 1
  %vm2853 = vcmp.eq.s32.totalorder %v2837, 1
  %vm2854 = vcmp.eq.s32.totalorder %v2838, 1
  %vm2855 = vcmp.eq.s32.totalorder %v2839, 1
  %vm2856 = vcmp.eq.s32.totalorder %v2840, 1
  %vm2857 = vcmp.eq.s32.totalorder %v2841, 1
  %vm2858 = vcmp.eq.s32.totalorder %v2842, 1
  %vm2859 = vcmp.eq.s32.totalorder %v2843, 1
  %vm2860 = vcmp.eq.s32.totalorder %v2844, 1
  %vm2861 = vcmp.eq.s32.totalorder %v2845, 1
  %v2862 = vsel %vm2846, %v2828, 0.0
  %v2863 = vsel %vm2847, %v2826, 0.0
  %v2864 = vsel %vm2848, %v2824, 0.0
  %v2865 = vsel %vm2849, %v2822, 0.0
  %v2866 = vsel %vm2850, %v2820, 0.0
  %v2867 = vsel %vm2851, %v2818, 0.0
  %v2868 = vsel %vm2852, %v2816, 0.0
  %v2869 = vsel %vm2853, %v2814, 0.0
  %v2870 = vsel %vm2854, %v2812, 0.0
  %v2871 = vsel %vm2855, %v2810, 0.0
  %v2872 = vsel %vm2856, %v2808, 0.0
  %v2873 = vsel %vm2857, %v2806, 0.0
  %v2874 = vsel %vm2858, %v2804, 0.0
  %v2875 = vsel %vm2859, %v2802, 0.0
  %v2876 = vsel %vm2860, %v2800, 0.0
  %v2877 = vsel %vm2861, %v2798, 0.0
  %v2878 = vsel %vm2846, %v2829, 0.0
  %v2879 = vsel %vm2847, %v2827, 0.0
  %v2880 = vsel %vm2848, %v2825, 0.0
  %v2881 = vsel %vm2849, %v2823, 0.0
  %v2882 = vsel %vm2850, %v2821, 0.0
  %v2883 = vsel %vm2851, %v2819, 0.0
  %v2884 = vsel %vm2852, %v2817, 0.0
  %v2885 = vsel %vm2853, %v2815, 0.0
  %v2886 = vsel %vm2854, %v2813, 0.0
  %v2887 = vsel %vm2855, %v2811, 0.0
  %v2888 = vsel %vm2856, %v2809, 0.0
  %v2889 = vsel %vm2857, %v2807, 0.0
  %v2890 = vsel %vm2858, %v2805, 0.0
  %v2891 = vsel %vm2859, %v2803, 0.0
  %v2892 = vsel %vm2860, %v2801, 0.0
  %v2893 = vsel %vm2861, %v2799, 0.0
  %v2894 = vsel %vm1104, 1, 0
  %v2895 = vsel %vm1105, 1, 0
  %v2896 = vsel %vm1106, 1, 0
  %v2897 = vsel %vm1107, 1, 0
  %v2898 = vsel %vm1108, 1, 0
  %v2899 = vsel %vm1109, 1, 0
  %v2900 = vsel %vm1110, 1, 0
  %v2901 = vsel %vm1111, 1, 0
  %v2902 = vsel %vm1112, 1, 0
  %v2903 = vsel %vm1113, 1, 0
  %v2904 = vsel %vm1114, 1, 0
  %v2905 = vsel %vm1115, 1, 0
  %v2906 = vsel %vm1116, 1, 0
  %v2907 = vsel %vm1117, 1, 0
  %v2908 = vsel %vm1118, 1, 0
  %v2909 = vsel %vm1119, 1, 0
  %vm2910 = vcmp.eq.s32.totalorder %v2894, 1
  %vm2911 = vcmp.eq.s32.totalorder %v2895, 1
  %vm2912 = vcmp.eq.s32.totalorder %v2896, 1
  %vm2913 = vcmp.eq.s32.totalorder %v2897, 1
  %vm2914 = vcmp.eq.s32.totalorder %v2898, 1
  %vm2915 = vcmp.eq.s32.totalorder %v2899, 1
  %vm2916 = vcmp.eq.s32.totalorder %v2900, 1
  %vm2917 = vcmp.eq.s32.totalorder %v2901, 1
  %vm2918 = vcmp.eq.s32.totalorder %v2902, 1
  %vm2919 = vcmp.eq.s32.totalorder %v2903, 1
  %vm2920 = vcmp.eq.s32.totalorder %v2904, 1
  %vm2921 = vcmp.eq.s32.totalorder %v2905, 1
  %vm2922 = vcmp.eq.s32.totalorder %v2906, 1
  %vm2923 = vcmp.eq.s32.totalorder %v2907, 1
  %vm2924 = vcmp.eq.s32.totalorder %v2908, 1
  %vm2925 = vcmp.eq.s32.totalorder %v2909, 1
  %v2926 = vsel %vm2910, %v2473, 0.0
  %v2927 = vsel %vm2911, %v2474, 0.0
  %v2928 = vsel %vm2912, %v2475, 0.0
  %v2929 = vsel %vm2913, %v2476, 0.0
  %v2930 = vsel %vm2914, %v2477, 0.0
  %v2931 = vsel %vm2915, %v2478, 0.0
  %v2932 = vsel %vm2916, %v2479, 0.0
  %v2933 = vsel %vm2917, %v2480, 0.0
  %v2934 = vsel %vm2918, %v2481, 0.0
  %v2935 = vsel %vm2919, %v2482, 0.0
  %v2936 = vsel %vm2920, %v2483, 0.0
  %v2937 = vsel %vm2921, %v2484, 0.0
  %v2938 = vsel %vm2922, %v2485, 0.0
  %v2939 = vsel %vm2923, %v2486, 0.0
  %v2940 = vsel %vm2924, %v2487, 0.0
  %v2941 = vsel %vm2925, %v2488, 0.0
  %v2942 = vsel %vm2910, %v2489, 0.0
  %v2943 = vsel %vm2911, %v2490, 0.0
  %v2944 = vsel %vm2912, %v2491, 0.0
  %v2945 = vsel %vm2913, %v2492, 0.0
  %v2946 = vsel %vm2914, %v2493, 0.0
  %v2947 = vsel %vm2915, %v2494, 0.0
  %v2948 = vsel %vm2916, %v2495, 0.0
  %v2949 = vsel %vm2917, %v2496, 0.0
  %v2950 = vsel %vm2918, %v2497, 0.0
  %v2951 = vsel %vm2919, %v2498, 0.0
  %v2952 = vsel %vm2920, %v2499, 0.0
  %v2953 = vsel %vm2921, %v2500, 0.0
  %v2954 = vsel %vm2922, %v2501, 0.0
  %v2955 = vsel %vm2923, %v2502, 0.0
  %v2956 = vsel %vm2924, %v2503, 0.0
  %v2957 = vsel %vm2925, %v2504, 0.0
  %2958 = vrot.lane.b32.xlu0 %v2473, 126
  %v2959 = vpop.permute.xlu0 %2958
  %2960 = vrot.lane.b32.xlu0 %v2489, 126
  %v2961 = vpop.permute.xlu0 %2960
  %2962 = vrot.lane.b32.xlu0 %v2474, 126
  %v2963 = vpop.permute.xlu0 %2962
  %2964 = vrot.lane.b32.xlu0 %v2490, 126
  %v2965 = vpop.permute.xlu0 %2964
  %2966 = vrot.lane.b32.xlu0 %v2475, 126
  %v2967 = vpop.permute.xlu0 %2966
  %2968 = vrot.lane.b32.xlu0 %v2491, 126
  %v2969 = vpop.permute.xlu0 %2968
  %2970 = vrot.lane.b32.xlu0 %v2476, 126
  %v2971 = vpop.permute.xlu0 %2970
  %2972 = vrot.lane.b32.xlu0 %v2492, 126
  %v2973 = vpop.permute.xlu0 %2972
  %2974 = vrot.lane.b32.xlu0 %v2477, 126
  %v2975 = vpop.permute.xlu0 %2974
  %2976 = vrot.lane.b32.xlu0 %v2493, 126
  %v2977 = vpop.permute.xlu0 %2976
  %2978 = vrot.lane.b32.xlu0 %v2478, 126
  %v2979 = vpop.permute.xlu0 %2978
  %2980 = vrot.lane.b32.xlu0 %v2494, 126
  %v2981 = vpop.permute.xlu0 %2980
  %2982 = vrot.lane.b32.xlu0 %v2479, 126
  %v2983 = vpop.permute.xlu0 %2982
  %2984 = vrot.lane.b32.xlu0 %v2495, 126
  %v2985 = vpop.permute.xlu0 %2984
  %2986 = vrot.lane.b32.xlu0 %v2480, 126
  %v2987 = vpop.permute.xlu0 %2986
  %2988 = vrot.lane.b32.xlu0 %v2496, 126
  %v2989 = vpop.permute.xlu0 %2988
  %2990 = vrot.lane.b32.xlu0 %v2481, 126
  %v2991 = vpop.permute.xlu0 %2990
  %2992 = vrot.lane.b32.xlu0 %v2497, 126
  %v2993 = vpop.permute.xlu0 %2992
  %2994 = vrot.lane.b32.xlu0 %v2482, 126
  %v2995 = vpop.permute.xlu0 %2994
  %2996 = vrot.lane.b32.xlu0 %v2498, 126
  %v2997 = vpop.permute.xlu0 %2996
  %2998 = vrot.lane.b32.xlu0 %v2483, 126
  %v2999 = vpop.permute.xlu0 %2998
  %3000 = vrot.lane.b32.xlu0 %v2499, 126
  %v3001 = vpop.permute.xlu0 %3000
  %3002 = vrot.lane.b32.xlu0 %v2484, 126
  %v3003 = vpop.permute.xlu0 %3002
  %3004 = vrot.lane.b32.xlu0 %v2500, 126
  %v3005 = vpop.permute.xlu0 %3004
  %3006 = vrot.lane.b32.xlu0 %v2485, 126
  %v3007 = vpop.permute.xlu0 %3006
  %3008 = vrot.lane.b32.xlu0 %v2501, 126
  %v3009 = vpop.permute.xlu0 %3008
  %3010 = vrot.lane.b32.xlu0 %v2486, 126
  %v3011 = vpop.permute.xlu0 %3010
  %3012 = vrot.lane.b32.xlu0 %v2502, 126
  %v3013 = vpop.permute.xlu0 %3012
  %3014 = vrot.lane.b32.xlu0 %v2487, 126
  %v3015 = vpop.permute.xlu0 %3014
  %3016 = vrot.lane.b32.xlu0 %v2503, 126
  %v3017 = vpop.permute.xlu0 %3016
  %3018 = vrot.lane.b32.xlu0 %v2488, 126
  %v3019 = vpop.permute.xlu0 %3018
  %3020 = vrot.lane.b32.xlu0 %v2504, 126
  %v3021 = vpop.permute.xlu0 %3020
  %v3022 = vsel %vm1297, %v3015, %v3019
  %v3023 = vsel %vm1297, %v3017, %v3021
  %v3024 = vsel %vm1297, %v3011, %v3015
  %v3025 = vsel %vm1297, %v3013, %v3017
  %v3026 = vsel %vm1297, %v3007, %v3011
  %v3027 = vsel %vm1297, %v3009, %v3013
  %v3028 = vsel %vm1297, %v3003, %v3007
  %v3029 = vsel %vm1297, %v3005, %v3009
  %v3030 = vsel %vm1297, %v2999, %v3003
  %v3031 = vsel %vm1297, %v3001, %v3005
  %v3032 = vsel %vm1297, %v2995, %v2999
  %v3033 = vsel %vm1297, %v2997, %v3001
  %v3034 = vsel %vm1297, %v2991, %v2995
  %v3035 = vsel %vm1297, %v2993, %v2997
  %v3036 = vsel %vm1297, %v2987, %v2991
  %v3037 = vsel %vm1297, %v2989, %v2993
  %v3038 = vsel %vm1297, %v2983, %v2987
  %v3039 = vsel %vm1297, %v2985, %v2989
  %v3040 = vsel %vm1297, %v2979, %v2983
  %v3041 = vsel %vm1297, %v2981, %v2985
  %v3042 = vsel %vm1297, %v2975, %v2979
  %v3043 = vsel %vm1297, %v2977, %v2981
  %v3044 = vsel %vm1297, %v2971, %v2975
  %v3045 = vsel %vm1297, %v2973, %v2977
  %v3046 = vsel %vm1297, %v2967, %v2971
  %v3047 = vsel %vm1297, %v2969, %v2973
  %v3048 = vsel %vm1297, %v2963, %v2967
  %v3049 = vsel %vm1297, %v2965, %v2969
  %v3050 = vsel %vm1297, %v2959, %v2963
  %v3051 = vsel %vm1297, %v2961, %v2965
  %v3052 = vsel %vm1297, %v3019, %v2959
  %v3053 = vsel %vm1297, %v3021, %v2961
  %v3054 = vsel %vm1362, 1, 0
  %v3055 = vsel %vm1363, 1, 0
  %v3056 = vsel %vm1364, 1, 0
  %v3057 = vsel %vm1365, 1, 0
  %v3058 = vsel %vm1366, 1, 0
  %v3059 = vsel %vm1367, 1, 0
  %v3060 = vsel %vm1368, 1, 0
  %v3061 = vsel %vm1369, 1, 0
  %v3062 = vsel %vm1370, 1, 0
  %v3063 = vsel %vm1371, 1, 0
  %v3064 = vsel %vm1372, 1, 0
  %v3065 = vsel %vm1373, 1, 0
  %v3066 = vsel %vm1374, 1, 0
  %v3067 = vsel %vm1375, 1, 0
  %v3068 = vsel %vm1376, 1, 0
  %v3069 = vsel %vm1377, 1, 0
  %vm3070 = vcmp.eq.s32.totalorder %v3054, 1
  %vm3071 = vcmp.eq.s32.totalorder %v3055, 1
  %vm3072 = vcmp.eq.s32.totalorder %v3056, 1
  %vm3073 = vcmp.eq.s32.totalorder %v3057, 1
  %vm3074 = vcmp.eq.s32.totalorder %v3058, 1
  %vm3075 = vcmp.eq.s32.totalorder %v3059, 1
  %vm3076 = vcmp.eq.s32.totalorder %v3060, 1
  %vm3077 = vcmp.eq.s32.totalorder %v3061, 1
  %vm3078 = vcmp.eq.s32.totalorder %v3062, 1
  %vm3079 = vcmp.eq.s32.totalorder %v3063, 1
  %vm3080 = vcmp.eq.s32.totalorder %v3064, 1
  %vm3081 = vcmp.eq.s32.totalorder %v3065, 1
  %vm3082 = vcmp.eq.s32.totalorder %v3066, 1
  %vm3083 = vcmp.eq.s32.totalorder %v3067, 1
  %vm3084 = vcmp.eq.s32.totalorder %v3068, 1
  %vm3085 = vcmp.eq.s32.totalorder %v3069, 1
  %v3086 = vsel %vm3070, %v3050, 0.0
  %v3087 = vsel %vm3071, %v3048, 0.0
  %v3088 = vsel %vm3072, %v3046, 0.0
  %v3089 = vsel %vm3073, %v3044, 0.0
  %v3090 = vsel %vm3074, %v3042, 0.0
  %v3091 = vsel %vm3075, %v3040, 0.0
  %v3092 = vsel %vm3076, %v3038, 0.0
  %v3093 = vsel %vm3077, %v3036, 0.0
  %v3094 = vsel %vm3078, %v3034, 0.0
  %v3095 = vsel %vm3079, %v3032, 0.0
  %v3096 = vsel %vm3080, %v3030, 0.0
  %v3097 = vsel %vm3081, %v3028, 0.0
  %v3098 = vsel %vm3082, %v3026, 0.0
  %v3099 = vsel %vm3083, %v3024, 0.0
  %v3100 = vsel %vm3084, %v3022, 0.0
  %v3101 = vsel %vm3085, %v3052, 0.0
  %v3102 = vsel %vm3070, %v3051, 0.0
  %v3103 = vsel %vm3071, %v3049, 0.0
  %v3104 = vsel %vm3072, %v3047, 0.0
  %v3105 = vsel %vm3073, %v3045, 0.0
  %v3106 = vsel %vm3074, %v3043, 0.0
  %v3107 = vsel %vm3075, %v3041, 0.0
  %v3108 = vsel %vm3076, %v3039, 0.0
  %v3109 = vsel %vm3077, %v3037, 0.0
  %v3110 = vsel %vm3078, %v3035, 0.0
  %v3111 = vsel %vm3079, %v3033, 0.0
  %v3112 = vsel %vm3080, %v3031, 0.0
  %v3113 = vsel %vm3081, %v3029, 0.0
  %v3114 = vsel %vm3082, %v3027, 0.0
  %v3115 = vsel %vm3083, %v3025, 0.0
  %v3116 = vsel %vm3084, %v3023, 0.0
  %v3117 = vsel %vm3085, %v3053, 0.0
  %3118 = vrot.lane.b32.xlu0 %v2473, 124
  %v3119 = vpop.permute.xlu0 %3118
  %3120 = vrot.lane.b32.xlu0 %v2489, 124
  %v3121 = vpop.permute.xlu0 %3120
  %3122 = vrot.lane.b32.xlu0 %v2474, 124
  %v3123 = vpop.permute.xlu0 %3122
  %3124 = vrot.lane.b32.xlu0 %v2490, 124
  %v3125 = vpop.permute.xlu0 %3124
  %3126 = vrot.lane.b32.xlu0 %v2475, 124
  %v3127 = vpop.permute.xlu0 %3126
  %3128 = vrot.lane.b32.xlu0 %v2491, 124
  %v3129 = vpop.permute.xlu0 %3128
  %3130 = vrot.lane.b32.xlu0 %v2476, 124
  %v3131 = vpop.permute.xlu0 %3130
  %3132 = vrot.lane.b32.xlu0 %v2492, 124
  %v3133 = vpop.permute.xlu0 %3132
  %3134 = vrot.lane.b32.xlu0 %v2477, 124
  %v3135 = vpop.permute.xlu0 %3134
  %3136 = vrot.lane.b32.xlu0 %v2493, 124
  %v3137 = vpop.permute.xlu0 %3136
  %3138 = vrot.lane.b32.xlu0 %v2478, 124
  %v3139 = vpop.permute.xlu0 %3138
  %3140 = vrot.lane.b32.xlu0 %v2494, 124
  %v3141 = vpop.permute.xlu0 %3140
  %3142 = vrot.lane.b32.xlu0 %v2479, 124
  %v3143 = vpop.permute.xlu0 %3142
  %3144 = vrot.lane.b32.xlu0 %v2495, 124
  %v3145 = vpop.permute.xlu0 %3144
  %3146 = vrot.lane.b32.xlu0 %v2480, 124
  %v3147 = vpop.permute.xlu0 %3146
  %3148 = vrot.lane.b32.xlu0 %v2496, 124
  %v3149 = vpop.permute.xlu0 %3148
  %3150 = vrot.lane.b32.xlu0 %v2481, 124
  %v3151 = vpop.permute.xlu0 %3150
  %3152 = vrot.lane.b32.xlu0 %v2497, 124
  %v3153 = vpop.permute.xlu0 %3152
  %3154 = vrot.lane.b32.xlu0 %v2482, 124
  %v3155 = vpop.permute.xlu0 %3154
  %3156 = vrot.lane.b32.xlu0 %v2498, 124
  %v3157 = vpop.permute.xlu0 %3156
  %3158 = vrot.lane.b32.xlu0 %v2483, 124
  %v3159 = vpop.permute.xlu0 %3158
  %3160 = vrot.lane.b32.xlu0 %v2499, 124
  %v3161 = vpop.permute.xlu0 %3160
  %3162 = vrot.lane.b32.xlu0 %v2484, 124
  %v3163 = vpop.permute.xlu0 %3162
  %3164 = vrot.lane.b32.xlu0 %v2500, 124
  %v3165 = vpop.permute.xlu0 %3164
  %3166 = vrot.lane.b32.xlu0 %v2485, 124
  %v3167 = vpop.permute.xlu0 %3166
  %3168 = vrot.lane.b32.xlu0 %v2501, 124
  %v3169 = vpop.permute.xlu0 %3168
  %3170 = vrot.lane.b32.xlu0 %v2486, 124
  %v3171 = vpop.permute.xlu0 %3170
  %3172 = vrot.lane.b32.xlu0 %v2502, 124
  %v3173 = vpop.permute.xlu0 %3172
  %3174 = vrot.lane.b32.xlu0 %v2487, 124
  %v3175 = vpop.permute.xlu0 %3174
  %3176 = vrot.lane.b32.xlu0 %v2503, 124
  %v3177 = vpop.permute.xlu0 %3176
  %3178 = vrot.lane.b32.xlu0 %v2488, 124
  %v3179 = vpop.permute.xlu0 %3178
  %3180 = vrot.lane.b32.xlu0 %v2504, 124
  %v3181 = vpop.permute.xlu0 %3180
  %vm3182 = vcmp.lt.s32.totalorder %v40, 124
  %v3183 = vsel %vm3182, %v3175, %v3179
  %v3184 = vsel %vm3182, %v3177, %v3181
  %v3185 = vsel %vm3182, %v3171, %v3175
  %v3186 = vsel %vm3182, %v3173, %v3177
  %v3187 = vsel %vm3182, %v3167, %v3171
  %v3188 = vsel %vm3182, %v3169, %v3173
  %v3189 = vsel %vm3182, %v3163, %v3167
  %v3190 = vsel %vm3182, %v3165, %v3169
  %v3191 = vsel %vm3182, %v3159, %v3163
  %v3192 = vsel %vm3182, %v3161, %v3165
  %v3193 = vsel %vm3182, %v3155, %v3159
  %v3194 = vsel %vm3182, %v3157, %v3161
  %v3195 = vsel %vm3182, %v3151, %v3155
  %v3196 = vsel %vm3182, %v3153, %v3157
  %v3197 = vsel %vm3182, %v3147, %v3151
  %v3198 = vsel %vm3182, %v3149, %v3153
  %v3199 = vsel %vm3182, %v3143, %v3147
  %v3200 = vsel %vm3182, %v3145, %v3149
  %v3201 = vsel %vm3182, %v3139, %v3143
  %v3202 = vsel %vm3182, %v3141, %v3145
  %v3203 = vsel %vm3182, %v3135, %v3139
  %v3204 = vsel %vm3182, %v3137, %v3141
  %v3205 = vsel %vm3182, %v3131, %v3135
  %v3206 = vsel %vm3182, %v3133, %v3137
  %v3207 = vsel %vm3182, %v3127, %v3131
  %v3208 = vsel %vm3182, %v3129, %v3133
  %v3209 = vsel %vm3182, %v3123, %v3127
  %v3210 = vsel %vm3182, %v3125, %v3129
  %v3211 = vsel %vm3182, %v3119, %v3123
  %v3212 = vsel %vm3182, %v3121, %v3125
  %v3213 = vsel %vm3182, %v3179, %v3119
  %v3214 = vsel %vm3182, %v3181, %v3121
  %v3215 = vadd.s32 %v232, 4
  %v3216 = vadd.s32 %v233, 4
  %v3217 = vadd.s32 %v234, 4
  %v3218 = vadd.s32 %v235, 4
  %v3219 = vadd.s32 %v236, 4
  %v3220 = vadd.s32 %v237, 4
  %v3221 = vadd.s32 %v238, 4
  %v3222 = vadd.s32 %v239, 4
  %v3223 = vadd.s32 %v240, 4
  %v3224 = vadd.s32 %v241, 4
  %v3225 = vadd.s32 %v242, 4
  %v3226 = vadd.s32 %v243, 4
  %v3227 = vadd.s32 %v244, 4
  %v3228 = vadd.s32 %v245, 4
  %v3229 = vadd.s32 %v246, 4
  %v3230 = vadd.s32 %v247, 4
  %vm3231 = vcmp.ge.s32.totalorder %v3215, 0
  %vm3232 = vcmp.ge.s32.totalorder %v3216, 0
  %vm3233 = vcmp.ge.s32.totalorder %v3217, 0
  %vm3234 = vcmp.ge.s32.totalorder %v3218, 0
  %vm3235 = vcmp.ge.s32.totalorder %v3219, 0
  %vm3236 = vcmp.ge.s32.totalorder %v3220, 0
  %vm3237 = vcmp.ge.s32.totalorder %v3221, 0
  %vm3238 = vcmp.ge.s32.totalorder %v3222, 0
  %vm3239 = vcmp.ge.s32.totalorder %v3223, 0
  %vm3240 = vcmp.ge.s32.totalorder %v3224, 0
  %vm3241 = vcmp.ge.s32.totalorder %v3225, 0
  %vm3242 = vcmp.ge.s32.totalorder %v3226, 0
  %vm3243 = vcmp.ge.s32.totalorder %v3227, 0
  %vm3244 = vcmp.ge.s32.totalorder %v3228, 0
  %vm3245 = vcmp.ge.s32.totalorder %v3229, 0
  %vm3246 = vcmp.ge.s32.totalorder %v3230, 0
  %vm3247 = vcmp.lt.s32.totalorder %v3215, 1024
  %vm3248 = vcmp.lt.s32.totalorder %v3216, 1024
  %vm3249 = vcmp.lt.s32.totalorder %v3217, 1024
  %vm3250 = vcmp.lt.s32.totalorder %v3218, 1024
  %vm3251 = vcmp.lt.s32.totalorder %v3219, 1024
  %vm3252 = vcmp.lt.s32.totalorder %v3220, 1024
  %vm3253 = vcmp.lt.s32.totalorder %v3221, 1024
  %vm3254 = vcmp.lt.s32.totalorder %v3222, 1024
  %vm3255 = vcmp.lt.s32.totalorder %v3223, 1024
  %vm3256 = vcmp.lt.s32.totalorder %v3224, 1024
  %vm3257 = vcmp.lt.s32.totalorder %v3225, 1024
  %vm3258 = vcmp.lt.s32.totalorder %v3226, 1024
  %vm3259 = vcmp.lt.s32.totalorder %v3227, 1024
  %vm3260 = vcmp.lt.s32.totalorder %v3228, 1024
  %vm3261 = vcmp.lt.s32.totalorder %v3229, 1024
  %vm3262 = vcmp.lt.s32.totalorder %v3230, 1024
  %vm3263 = vmand %vm3231, %vm3247
  %vm3264 = vmand %vm3232, %vm3248
  %vm3265 = vmand %vm3233, %vm3249
  %vm3266 = vmand %vm3234, %vm3250
  %vm3267 = vmand %vm3235, %vm3251
  %vm3268 = vmand %vm3236, %vm3252
  %vm3269 = vmand %vm3237, %vm3253
  %vm3270 = vmand %vm3238, %vm3254
  %vm3271 = vmand %vm3239, %vm3255
  %vm3272 = vmand %vm3240, %vm3256
  %vm3273 = vmand %vm3241, %vm3257
  %vm3274 = vmand %vm3242, %vm3258
  %vm3275 = vmand %vm3243, %vm3259
  %vm3276 = vmand %vm3244, %vm3260
  %vm3277 = vmand %vm3245, %vm3261
  %vm3278 = vmand %vm3246, %vm3262
  %v3279 = vsel %vm3263, 1, 0
  %v3280 = vsel %vm3264, 1, 0
  %v3281 = vsel %vm3265, 1, 0
  %v3282 = vsel %vm3266, 1, 0
  %v3283 = vsel %vm3267, 1, 0
  %v3284 = vsel %vm3268, 1, 0
  %v3285 = vsel %vm3269, 1, 0
  %v3286 = vsel %vm3270, 1, 0
  %v3287 = vsel %vm3271, 1, 0
  %v3288 = vsel %vm3272, 1, 0
  %v3289 = vsel %vm3273, 1, 0
  %v3290 = vsel %vm3274, 1, 0
  %v3291 = vsel %vm3275, 1, 0
  %v3292 = vsel %vm3276, 1, 0
  %v3293 = vsel %vm3277, 1, 0
  %v3294 = vsel %vm3278, 1, 0
  %vm3295 = vcmp.eq.s32.totalorder %v3279, 1
  %vm3296 = vcmp.eq.s32.totalorder %v3280, 1
  %vm3297 = vcmp.eq.s32.totalorder %v3281, 1
  %vm3298 = vcmp.eq.s32.totalorder %v3282, 1
  %vm3299 = vcmp.eq.s32.totalorder %v3283, 1
  %vm3300 = vcmp.eq.s32.totalorder %v3284, 1
  %vm3301 = vcmp.eq.s32.totalorder %v3285, 1
  %vm3302 = vcmp.eq.s32.totalorder %v3286, 1
  %vm3303 = vcmp.eq.s32.totalorder %v3287, 1
  %vm3304 = vcmp.eq.s32.totalorder %v3288, 1
  %vm3305 = vcmp.eq.s32.totalorder %v3289, 1
  %vm3306 = vcmp.eq.s32.totalorder %v3290, 1
  %vm3307 = vcmp.eq.s32.totalorder %v3291, 1
  %vm3308 = vcmp.eq.s32.totalorder %v3292, 1
  %vm3309 = vcmp.eq.s32.totalorder %v3293, 1
  %vm3310 = vcmp.eq.s32.totalorder %v3294, 1
  %v3311 = vsel %vm3295, %v3211, 0.0
  %v3312 = vsel %vm3296, %v3209, 0.0
  %v3313 = vsel %vm3297, %v3207, 0.0
  %v3314 = vsel %vm3298, %v3205, 0.0
  %v3315 = vsel %vm3299, %v3203, 0.0
  %v3316 = vsel %vm3300, %v3201, 0.0
  %v3317 = vsel %vm3301, %v3199, 0.0
  %v3318 = vsel %vm3302, %v3197, 0.0
  %v3319 = vsel %vm3303, %v3195, 0.0
  %v3320 = vsel %vm3304, %v3193, 0.0
  %v3321 = vsel %vm3305, %v3191, 0.0
  %v3322 = vsel %vm3306, %v3189, 0.0
  %v3323 = vsel %vm3307, %v3187, 0.0
  %v3324 = vsel %vm3308, %v3185, 0.0
  %v3325 = vsel %vm3309, %v3183, 0.0
  %v3326 = vsel %vm3310, %v3213, 0.0
  %v3327 = vsel %vm3295, %v3212, 0.0
  %v3328 = vsel %vm3296, %v3210, 0.0
  %v3329 = vsel %vm3297, %v3208, 0.0
  %v3330 = vsel %vm3298, %v3206, 0.0
  %v3331 = vsel %vm3299, %v3204, 0.0
  %v3332 = vsel %vm3300, %v3202, 0.0
  %v3333 = vsel %vm3301, %v3200, 0.0
  %v3334 = vsel %vm3302, %v3198, 0.0
  %v3335 = vsel %vm3303, %v3196, 0.0
  %v3336 = vsel %vm3304, %v3194, 0.0
  %v3337 = vsel %vm3305, %v3192, 0.0
  %v3338 = vsel %vm3306, %v3190, 0.0
  %v3339 = vsel %vm3307, %v3188, 0.0
  %v3340 = vsel %vm3308, %v3186, 0.0
  %v3341 = vsel %vm3309, %v3184, 0.0
  %v3342 = vsel %vm3310, %v3214, 0.0
  %v3343 = vpack.c.bf16 %v2718, %v2702
  %v3344 = vpack.c.bf16 %v2719, %v2703
  %v3345 = vpack.c.bf16 %v2720, %v2704
  %v3346 = vpack.c.bf16 %v2721, %v2705
  %v3347 = vpack.c.bf16 %v2722, %v2706
  %v3348 = vpack.c.bf16 %v2723, %v2707
  %v3349 = vpack.c.bf16 %v2724, %v2708
  %v3350 = vpack.c.bf16 %v2725, %v2709
  %v3351 = vpack.c.bf16 %v2726, %v2710
  %v3352 = vpack.c.bf16 %v2727, %v2711
  %v3353 = vpack.c.bf16 %v2728, %v2712
  %v3354 = vpack.c.bf16 %v2729, %v2713
  %v3355 = vpack.c.bf16 %v2730, %v2714
  %v3356 = vpack.c.bf16 %v2731, %v2715
  %v3357 = vpack.c.bf16 %v2732, %v2716
  %v3358 = vpack.c.bf16 %v2733, %v2717
  %v3359 = vpack.c.bf16 %v2878, %v2862
  %v3360 = vpack.c.bf16 %v2879, %v2863
  %v3361 = vpack.c.bf16 %v2880, %v2864
  %v3362 = vpack.c.bf16 %v2881, %v2865
  %v3363 = vpack.c.bf16 %v2882, %v2866
  %v3364 = vpack.c.bf16 %v2883, %v2867
  %v3365 = vpack.c.bf16 %v2884, %v2868
  %v3366 = vpack.c.bf16 %v2885, %v2869
  %v3367 = vpack.c.bf16 %v2886, %v2870
  %v3368 = vpack.c.bf16 %v2887, %v2871
  %v3369 = vpack.c.bf16 %v2888, %v2872
  %v3370 = vpack.c.bf16 %v2889, %v2873
  %v3371 = vpack.c.bf16 %v2890, %v2874
  %v3372 = vpack.c.bf16 %v2891, %v2875
  %v3373 = vpack.c.bf16 %v2892, %v2876
  %v3374 = vpack.c.bf16 %v2893, %v2877
  %v3375 = vpack.c.bf16 %v2942, %v2926
  %v3376 = vpack.c.bf16 %v2943, %v2927
  %v3377 = vpack.c.bf16 %v2944, %v2928
  %v3378 = vpack.c.bf16 %v2945, %v2929
  %v3379 = vpack.c.bf16 %v2946, %v2930
  %v3380 = vpack.c.bf16 %v2947, %v2931
  %v3381 = vpack.c.bf16 %v2948, %v2932
  %v3382 = vpack.c.bf16 %v2949, %v2933
  %v3383 = vpack.c.bf16 %v2950, %v2934
  %v3384 = vpack.c.bf16 %v2951, %v2935
  %v3385 = vpack.c.bf16 %v2952, %v2936
  %v3386 = vpack.c.bf16 %v2953, %v2937
  %v3387 = vpack.c.bf16 %v2954, %v2938
  %v3388 = vpack.c.bf16 %v2955, %v2939
  %v3389 = vpack.c.bf16 %v2956, %v2940
  %v3390 = vpack.c.bf16 %v2957, %v2941
  %v3391 = vpack.c.bf16 %v3102, %v3086
  %v3392 = vpack.c.bf16 %v3103, %v3087
  %v3393 = vpack.c.bf16 %v3104, %v3088
  %v3394 = vpack.c.bf16 %v3105, %v3089
  %v3395 = vpack.c.bf16 %v3106, %v3090
  %v3396 = vpack.c.bf16 %v3107, %v3091
  %v3397 = vpack.c.bf16 %v3108, %v3092
  %v3398 = vpack.c.bf16 %v3109, %v3093
  %v3399 = vpack.c.bf16 %v3110, %v3094
  %v3400 = vpack.c.bf16 %v3111, %v3095
  %v3401 = vpack.c.bf16 %v3112, %v3096
  %v3402 = vpack.c.bf16 %v3113, %v3097
  %v3403 = vpack.c.bf16 %v3114, %v3098
  %v3404 = vpack.c.bf16 %v3115, %v3099
  %v3405 = vpack.c.bf16 %v3116, %v3100
  %v3406 = vpack.c.bf16 %v3117, %v3101
  %v3407 = vpack.c.bf16 %v3327, %v3311
  %v3408 = vpack.c.bf16 %v3328, %v3312
  %v3409 = vpack.c.bf16 %v3329, %v3313
  %v3410 = vpack.c.bf16 %v3330, %v3314
  %v3411 = vpack.c.bf16 %v3331, %v3315
  %v3412 = vpack.c.bf16 %v3332, %v3316
  %v3413 = vpack.c.bf16 %v3333, %v3317
  %v3414 = vpack.c.bf16 %v3334, %v3318
  %v3415 = vpack.c.bf16 %v3335, %v3319
  %v3416 = vpack.c.bf16 %v3336, %v3320
  %v3417 = vpack.c.bf16 %v3337, %v3321
  %v3418 = vpack.c.bf16 %v3338, %v3322
  %v3419 = vpack.c.bf16 %v3339, %v3323
  %v3420 = vpack.c.bf16 %v3340, %v3324
  %v3421 = vpack.c.bf16 %v3341, %v3325
  %v3422 = vpack.c.bf16 %v3342, %v3326
  %v3423 = vld [vmem:[%s6] sm:$0xff]
  %v3424 = vld [vmem:[%s6 + $0x8] sm:$0xff]
  %v3425 = vld [vmem:[%s6 + $0x10] sm:$0xff]
  %v3426 = vld [vmem:[%s6 + $0x18] sm:$0xff]
  %3428 = vset.pattern.permute.xlu0 0
  %3429 = vperm.xlu0 %3428, %v3423
  %v3430 = vpop.permute.xlu0 %3429
  %3433 = vset.pattern.permute.xlu0 0
  %3434 = vperm.xlu0 %3433, %v3424
  %v3435 = vpop.permute.xlu0 %3434
  %3438 = vset.pattern.permute.xlu0 0
  %3439 = vperm.xlu0 %3438, %v3425
  %v3440 = vpop.permute.xlu0 %3439
  %3443 = vset.pattern.permute.xlu0 0
  %3444 = vperm.xlu0 %3443, %v3426
  %v3445 = vpop.permute.xlu0 %3444
  %v3451 = vunpack.c.l.b16 %v2505
  %v3452 = vunpack.c.l.b16 %v2506
  %v3453 = vunpack.c.l.b16 %v2507
  %v3454 = vunpack.c.l.b16 %v2508
  %v3455 = vpack.c.b16 %v3452, %v3451
  %v3456 = vpack.c.b16 %v3454, %v3453
  %vm3457 = vcmask 654336
  %v3459 = vsel %vm3457, %v3455, 0
  %v3462 = vsel %vm3457, %v3456, 0
  %3464 = vmatprep.subr.bf16.mxu0 %v3344
  %3465 = vmatpush1.bf16.msra.mxu0 %v3343
  %3466 = vmatprep.subr.bf16.mxu0 %v3360
  %3467 = vmatpush1.bf16.msra.mxu0 %v3359
  %3468 = vmatprep.subr.bf16.mxu0 %v3376
  %3469 = vmatpush1.bf16.msra.mxu0 %v3375
  %3470 = vmatprep.subr.bf16.mxu0 %v3392
  %3471 = vmatpush1.bf16.msra.mxu0 %v3391
  %3472 = vmatprep.subr.bf16.mxu0 %v3408
  %3473 = vmatpush1.bf16.msra.mxu0 %v3407
  %3474 = vmatprep.subr.bf16.mxu0 0
  %3475 = vmatpush1.bf16.msra.mxu0 0
  %3476 = vmatprep.subr.bf16.mxu0 0
  %3477 = vmatpush1.bf16.msra.mxu0 0
  %3478 = vmatprep.subr.bf16.mxu0 0
  %3479 = vmatpush1.bf16.msra.mxu0 0
  %3480 = vmatprep.subr.bf16.mxu0 0
  %3481 = vmatpush1.bf16.msra.mxu0 0
  %3482 = vmatprep.subr.bf16.mxu0 0
  %3483 = vmatpush1.bf16.msra.mxu0 0
  %3484 = vmatprep.subr.bf16.mxu0 0
  %3485 = vmatpush1.bf16.msra.mxu0 0
  %3486 = vmatprep.subr.bf16.mxu0 0
  %3487 = vmatpush1.bf16.msra.mxu0 0
  %3488 = vmatprep.subr.bf16.mxu0 0
  %3489 = vmatpush1.bf16.msra.mxu0 0
  %3490 = vmatprep.subr.bf16.mxu0 0
  %3491 = vmatpush1.bf16.msra.mxu0 0
  %3492 = vmatprep.subr.bf16.mxu0 0
  %3493 = vmatpush1.bf16.msra.mxu0 0
  %3494 = vmatprep.subr.bf16.mxu0 0
  %3495 = vmatpush1.bf16.msra.mxu0 0
  %3496 = vmatprep.mubr.bf16.mxu0 0
  %3497 = vmatmul.mubr.bf16.gmra.mrb[0].mxu0 %v3459
  %v3498 = vpop.f32.mrb[0].mxu0
  %v3499 = vadd.f32 %v3430, %v3498
  %v3500 = vpop.f32.mrb[0].mxu0
  %v3501 = vadd.f32 %v3430, %v3500
  %v3502 = vpop.f32.mrb[0].mxu0
  %v3503 = vadd.f32 %v3435, %v3502
  %v3504 = vpop.f32.mrb[0].mxu0
  %v3505 = vadd.f32 %v3435, %v3504
  %3506 = vmatprep.mubr.bf16.mxu0 0
  %3507 = vmatmul.mubr.bf16.gmra.mrb[0].mxu0 %v3462
  %v3508 = vpop.f32.mrb[0].mxu0
  %v3509 = vadd.f32 %v3440, %v3508
  %v3510 = vpop.f32.mrb[0].mxu0
  %v3511 = vadd.f32 %v3440, %v3510
  %v3512 = vpop.f32.mrb[0].mxu0
  %v3513 = vadd.f32 %v3445, %v3512
  %v3514 = vpop.f32.mrb[0].mxu0
  %v3515 = vadd.f32 %v3445, %v3514
  %3516 = vdwg.mxu0
  %3517 = vmatprep.subr.bf16.mxu0 %v3346
  %3518 = vmatpush1.bf16.msra.mxu0 %v3345
  %3519 = vmatprep.subr.bf16.mxu0 %v3362
  %3520 = vmatpush1.bf16.msra.mxu0 %v3361
  %3521 = vmatprep.subr.bf16.mxu0 %v3378
  %3522 = vmatpush1.bf16.msra.mxu0 %v3377
  %3523 = vmatprep.subr.bf16.mxu0 %v3394
  %3524 = vmatpush1.bf16.msra.mxu0 %v3393
  %3525 = vmatprep.subr.bf16.mxu0 %v3410
  %3526 = vmatpush1.bf16.msra.mxu0 %v3409
  %3527 = vmatprep.subr.bf16.mxu0 0
  %3528 = vmatpush1.bf16.msra.mxu0 0
  %3529 = vmatprep.subr.bf16.mxu0 0
  %3530 = vmatpush1.bf16.msra.mxu0 0
  %3531 = vmatprep.subr.bf16.mxu0 0
  %3532 = vmatpush1.bf16.msra.mxu0 0
  %3533 = vmatprep.subr.bf16.mxu0 0
  %3534 = vmatpush1.bf16.msra.mxu0 0
  %3535 = vmatprep.subr.bf16.mxu0 0
  %3536 = vmatpush1.bf16.msra.mxu0 0
  %3537 = vmatprep.subr.bf16.mxu0 0
  %3538 = vmatpush1.bf16.msra.mxu0 0
  %3539 = vmatprep.subr.bf16.mxu0 0
  %3540 = vmatpush1.bf16.msra.mxu0 0
  %3541 = vmatprep.subr.bf16.mxu0 0
  %3542 = vmatpush1.bf16.msra.mxu0 0
  %3543 = vmatprep.subr.bf16.mxu0 0
  %3544 = vmatpush1.bf16.msra.mxu0 0
  %3545 = vmatprep.subr.bf16.mxu0 0
  %3546 = vmatpush1.bf16.msra.mxu0 0
  %3547 = vmatprep.subr.bf16.mxu0 0
  %3548 = vmatpush1.bf16.msra.mxu0 0
  %3549 = vmatprep.mubr.bf16.mxu0 0
  %3550 = vmatmul.mubr.bf16.gmra.mrb[0].mxu0 %v3459
  %v3551 = vpop.f32.mrb[0].mxu0
  %v3552 = vadd.f32 %v3430, %v3551
  %v3553 = vpop.f32.mrb[0].mxu0
  %v3554 = vadd.f32 %v3430, %v3553
  %v3555 = vpop.f32.mrb[0].mxu0
  %v3556 = vadd.f32 %v3435, %v3555
  %v3557 = vpop.f32.mrb[0].mxu0
  %v3558 = vadd.f32 %v3435, %v3557
  %3559 = vmatprep.mubr.bf16.mxu0 0
  %3560 = vmatmul.mubr.bf16.gmra.mrb[0].mxu0 %v3462
  %v3561 = vpop.f32.mrb[0].mxu0
  %v3562 = vadd.f32 %v3440, %v3561
  %v3563 = vpop.f32.mrb[0].mxu0
  %v3564 = vadd.f32 %v3440, %v3563
  %v3565 = vpop.f32.mrb[0].mxu0
  %v3566 = vadd.f32 %v3445, %v3565
  %v3567 = vpop.f32.mrb[0].mxu0
  %v3568 = vadd.f32 %v3445, %v3567
  %3569 = vdwg.mxu0
  %3570 = vmatprep.subr.bf16.mxu0 %v3348
  %3571 = vmatpush1.bf16.msra.mxu0 %v3347
  %3572 = vmatprep.subr.bf16.mxu0 %v3364
  %3573 = vmatpush1.bf16.msra.mxu0 %v3363
  %3574 = vmatprep.subr.bf16.mxu0 %v3380
  %3575 = vmatpush1.bf16.msra.mxu0 %v3379
  %3576 = vmatprep.subr.bf16.mxu0 %v3396
  %3577 = vmatpush1.bf16.msra.mxu0 %v3395
  %3578 = vmatprep.subr.bf16.mxu0 %v3412
  %3579 = vmatpush1.bf16.msra.mxu0 %v3411
  %3580 = vmatprep.subr.bf16.mxu0 0
  %3581 = vmatpush1.bf16.msra.mxu0 0
  %3582 = vmatprep.subr.bf16.mxu0 0
  %3583 = vmatpush1.bf16.msra.mxu0 0
  %3584 = vmatprep.subr.bf16.mxu0 0
  %3585 = vmatpush1.bf16.msra.mxu0 0
  %3586 = vmatprep.subr.bf16.mxu0 0
  %3587 = vmatpush1.bf16.msra.mxu0 0
  %3588 = vmatprep.subr.bf16.mxu0 0
  %3589 = vmatpush1.bf16.msra.mxu0 0
  %3590 = vmatprep.subr.bf16.mxu0 0
  %3591 = vmatpush1.bf16.msra.mxu0 0
  %3592 = vmatprep.subr.bf16.mxu0 0
  %3593 = vmatpush1.bf16.msra.mxu0 0
  %3594 = vmatprep.subr.bf16.mxu0 0
  %3595 = vmatpush1.bf16.msra.mxu0 0
  %3596 = vmatprep.subr.bf16.mxu0 0
  %3597 = vmatpush1.bf16.msra.mxu0 0
  %3598 = vmatprep.subr.bf16.mxu0 0
  %3599 = vmatpush1.bf16.msra.mxu0 0
  %3600 = vmatprep.subr.bf16.mxu0 0
  %3601 = vmatpush1.bf16.msra.mxu0 0
  %3602 = vmatprep.mubr.bf16.mxu0 0
  %3603 = vmatmul.mubr.bf16.gmra.mrb[0].mxu0 %v3459
  %v3604 = vpop.f32.mrb[0].mxu0
  %v3605 = vadd.f32 %v3430, %v3604
  %v3606 = vpop.f32.mrb[0].mxu0
  %v3607 = vadd.f32 %v3430, %v3606
  %v3608 = vpop.f32.mrb[0].mxu0
  %v3609 = vadd.f32 %v3435, %v3608
  %v3610 = vpop.f32.mrb[0].mxu0
  %v3611 = vadd.f32 %v3435, %v3610
  %3612 = vmatprep.mubr.bf16.mxu0 0
  %3613 = vmatmul.mubr.bf16.gmra.mrb[0].mxu0 %v3462
  %v3614 = vpop.f32.mrb[0].mxu0
  %v3615 = vadd.f32 %v3440, %v3614
  %v3616 = vpop.f32.mrb[0].mxu0
  %v3617 = vadd.f32 %v3440, %v3616
  %v3618 = vpop.f32.mrb[0].mxu0
  %v3619 = vadd.f32 %v3445, %v3618
  %v3620 = vpop.f32.mrb[0].mxu0
  %v3621 = vadd.f32 %v3445, %v3620
  %3622 = vdwg.mxu0
  %3623 = vmatprep.subr.bf16.mxu0 %v3350
  %3624 = vmatpush1.bf16.msra.mxu0 %v3349
  %3625 = vmatprep.subr.bf16.mxu0 %v3366
  %3626 = vmatpush1.bf16.msra.mxu0 %v3365
  %3627 = vmatprep.subr.bf16.mxu0 %v3382
  %3628 = vmatpush1.bf16.msra.mxu0 %v3381
  %3629 = vmatprep.subr.bf16.mxu0 %v3398
  %3630 = vmatpush1.bf16.msra.mxu0 %v3397
  %3631 = vmatprep.subr.bf16.mxu0 %v3414
  %3632 = vmatpush1.bf16.msra.mxu0 %v3413
  %3633 = vmatprep.subr.bf16.mxu0 0
  %3634 = vmatpush1.bf16.msra.mxu0 0
  %3635 = vmatprep.subr.bf16.mxu0 0
  %3636 = vmatpush1.bf16.msra.mxu0 0
  %3637 = vmatprep.subr.bf16.mxu0 0
  %3638 = vmatpush1.bf16.msra.mxu0 0
  %3639 = vmatprep.subr.bf16.mxu0 0
  %3640 = vmatpush1.bf16.msra.mxu0 0
  %3641 = vmatprep.subr.bf16.mxu0 0
  %3642 = vmatpush1.bf16.msra.mxu0 0
  %3643 = vmatprep.subr.bf16.mxu0 0
  %3644 = vmatpush1.bf16.msra.mxu0 0
  %3645 = vmatprep.subr.bf16.mxu0 0
  %3646 = vmatpush1.bf16.msra.mxu0 0
  %3647 = vmatprep.subr.bf16.mxu0 0
  %3648 = vmatpush1.bf16.msra.mxu0 0
  %3649 = vmatprep.subr.bf16.mxu0 0
  %3650 = vmatpush1.bf16.msra.mxu0 0
  %3651 = vmatprep.subr.bf16.mxu0 0
  %3652 = vmatpush1.bf16.msra.mxu0 0
  %3653 = vmatprep.subr.bf16.mxu0 0
  %3654 = vmatpush1.bf16.msra.mxu0 0
  %3655 = vmatprep.mubr.bf16.mxu0 0
  %3656 = vmatmul.mubr.bf16.gmra.mrb[0].mxu0 %v3459
  %v3657 = vpop.f32.mrb[0].mxu0
  %v3658 = vadd.f32 %v3430, %v3657
  %v3659 = vpop.f32.mrb[0].mxu0
  %v3660 = vadd.f32 %v3430, %v3659
  %v3661 = vpop.f32.mrb[0].mxu0
  %v3662 = vadd.f32 %v3435, %v3661
  %v3663 = vpop.f32.mrb[0].mxu0
  %v3664 = vadd.f32 %v3435, %v3663
  %3665 = vmatprep.mubr.bf16.mxu0 0
  %3666 = vmatmul.mubr.bf16.gmra.mrb[0].mxu0 %v3462
  %v3667 = vpop.f32.mrb[0].mxu0
  %v3668 = vadd.f32 %v3440, %v3667
  %v3669 = vpop.f32.mrb[0].mxu0
  %v3670 = vadd.f32 %v3440, %v3669
  %v3671 = vpop.f32.mrb[0].mxu0
  %v3672 = vadd.f32 %v3445, %v3671
  %v3673 = vpop.f32.mrb[0].mxu0
  %v3674 = vadd.f32 %v3445, %v3673
  %3675 = vdwg.mxu0
  %3676 = vmatprep.subr.bf16.mxu0 %v3352
  %3677 = vmatpush1.bf16.msra.mxu0 %v3351
  %3678 = vmatprep.subr.bf16.mxu0 %v3368
  %3679 = vmatpush1.bf16.msra.mxu0 %v3367
  %3680 = vmatprep.subr.bf16.mxu0 %v3384
  %3681 = vmatpush1.bf16.msra.mxu0 %v3383
  %3682 = vmatprep.subr.bf16.mxu0 %v3400
  %3683 = vmatpush1.bf16.msra.mxu0 %v3399
  %3684 = vmatprep.subr.bf16.mxu0 %v3416
  %3685 = vmatpush1.bf16.msra.mxu0 %v3415
  %3686 = vmatprep.subr.bf16.mxu0 0
  %3687 = vmatpush1.bf16.msra.mxu0 0
  %3688 = vmatprep.subr.bf16.mxu0 0
  %3689 = vmatpush1.bf16.msra.mxu0 0
  %3690 = vmatprep.subr.bf16.mxu0 0
  %3691 = vmatpush1.bf16.msra.mxu0 0
  %3692 = vmatprep.subr.bf16.mxu0 0
  %3693 = vmatpush1.bf16.msra.mxu0 0
  %3694 = vmatprep.subr.bf16.mxu0 0
  %3695 = vmatpush1.bf16.msra.mxu0 0
  %3696 = vmatprep.subr.bf16.mxu0 0
  %3697 = vmatpush1.bf16.msra.mxu0 0
  %3698 = vmatprep.subr.bf16.mxu0 0
  %3699 = vmatpush1.bf16.msra.mxu0 0
  %3700 = vmatprep.subr.bf16.mxu0 0
  %3701 = vmatpush1.bf16.msra.mxu0 0
  %3702 = vmatprep.subr.bf16.mxu0 0
  %3703 = vmatpush1.bf16.msra.mxu0 0
  %3704 = vmatprep.subr.bf16.mxu0 0
  %3705 = vmatpush1.bf16.msra.mxu0 0
  %3706 = vmatprep.subr.bf16.mxu0 0
  %3707 = vmatpush1.bf16.msra.mxu0 0
  %3708 = vmatprep.mubr.bf16.mxu0 0
  %3709 = vmatmul.mubr.bf16.gmra.mrb[0].mxu0 %v3459
  %v3710 = vpop.f32.mrb[0].mxu0
  %v3711 = vadd.f32 %v3430, %v3710
  %v3712 = vpop.f32.mrb[0].mxu0
  %v3713 = vadd.f32 %v3430, %v3712
  %v3714 = vpop.f32.mrb[0].mxu0
  %v3715 = vadd.f32 %v3435, %v3714
  %v3716 = vpop.f32.mrb[0].mxu0
  %v3717 = vadd.f32 %v3435, %v3716
  %3718 = vmatprep.mubr.bf16.mxu0 0
  %3719 = vmatmul.mubr.bf16.gmra.mrb[0].mxu0 %v3462
  %v3720 = vpop.f32.mrb[0].mxu0
  %v3721 = vadd.f32 %v3440, %v3720
  %v3722 = vpop.f32.mrb[0].mxu0
  %v3723 = vadd.f32 %v3440, %v3722
  %v3724 = vpop.f32.mrb[0].mxu0
  %v3725 = vadd.f32 %v3445, %v3724
  %v3726 = vpop.f32.mrb[0].mxu0
  %v3727 = vadd.f32 %v3445, %v3726
  %3728 = vdwg.mxu0
  %3729 = vmatprep.subr.bf16.mxu0 %v3354
  %3730 = vmatpush1.bf16.msra.mxu0 %v3353
  %3731 = vmatprep.subr.bf16.mxu0 %v3370
  %3732 = vmatpush1.bf16.msra.mxu0 %v3369
  %3733 = vmatprep.subr.bf16.mxu0 %v3386
  %3734 = vmatpush1.bf16.msra.mxu0 %v3385
  %3735 = vmatprep.subr.bf16.mxu0 %v3402
  %3736 = vmatpush1.bf16.msra.mxu0 %v3401
  %3737 = vmatprep.subr.bf16.mxu0 %v3418
  %3738 = vmatpush1.bf16.msra.mxu0 %v3417
  %3739 = vmatprep.subr.bf16.mxu0 0
  %3740 = vmatpush1.bf16.msra.mxu0 0
  %3741 = vmatprep.subr.bf16.mxu0 0
  %3742 = vmatpush1.bf16.msra.mxu0 0
  %3743 = vmatprep.subr.bf16.mxu0 0
  %3744 = vmatpush1.bf16.msra.mxu0 0
  %3745 = vmatprep.subr.bf16.mxu0 0
  %3746 = vmatpush1.bf16.msra.mxu0 0
  %3747 = vmatprep.subr.bf16.mxu0 0
  %3748 = vmatpush1.bf16.msra.mxu0 0
  %3749 = vmatprep.subr.bf16.mxu0 0
  %3750 = vmatpush1.bf16.msra.mxu0 0
  %3751 = vmatprep.subr.bf16.mxu0 0
  %3752 = vmatpush1.bf16.msra.mxu0 0
  %3753 = vmatprep.subr.bf16.mxu0 0
  %3754 = vmatpush1.bf16.msra.mxu0 0
  %3755 = vmatprep.subr.bf16.mxu0 0
  %3756 = vmatpush1.bf16.msra.mxu0 0
  %3757 = vmatprep.subr.bf16.mxu0 0
  %3758 = vmatpush1.bf16.msra.mxu0 0
  %3759 = vmatprep.subr.bf16.mxu0 0
  %3760 = vmatpush1.bf16.msra.mxu0 0
  %3761 = vmatprep.mubr.bf16.mxu0 0
  %3762 = vmatmul.mubr.bf16.gmra.mrb[0].mxu0 %v3459
  %v3763 = vpop.f32.mrb[0].mxu0
  %v3764 = vadd.f32 %v3430, %v3763
  %v3765 = vpop.f32.mrb[0].mxu0
  %v3766 = vadd.f32 %v3430, %v3765
  %v3767 = vpop.f32.mrb[0].mxu0
  %v3768 = vadd.f32 %v3435, %v3767
  %v3769 = vpop.f32.mrb[0].mxu0
  %v3770 = vadd.f32 %v3435, %v3769
  %3771 = vmatprep.mubr.bf16.mxu0 0
  %3772 = vmatmul.mubr.bf16.gmra.mrb[0].mxu0 %v3462
  %v3773 = vpop.f32.mrb[0].mxu0
  %v3774 = vadd.f32 %v3440, %v3773
  %v3775 = vpop.f32.mrb[0].mxu0
  %v3776 = vadd.f32 %v3440, %v3775
  %v3777 = vpop.f32.mrb[0].mxu0
  %v3778 = vadd.f32 %v3445, %v3777
  %v3779 = vpop.f32.mrb[0].mxu0
  %v3780 = vadd.f32 %v3445, %v3779
  %3781 = vdwg.mxu0
  %3782 = vmatprep.subr.bf16.mxu0 %v3356
  %3783 = vmatpush1.bf16.msra.mxu0 %v3355
  %3784 = vmatprep.subr.bf16.mxu0 %v3372
  %3785 = vmatpush1.bf16.msra.mxu0 %v3371
  %3786 = vmatprep.subr.bf16.mxu0 %v3388
  %3787 = vmatpush1.bf16.msra.mxu0 %v3387
  %3788 = vmatprep.subr.bf16.mxu0 %v3404
  %3789 = vmatpush1.bf16.msra.mxu0 %v3403
  %3790 = vmatprep.subr.bf16.mxu0 %v3420
  %3791 = vmatpush1.bf16.msra.mxu0 %v3419
  %3792 = vmatprep.subr.bf16.mxu0 0
  %3793 = vmatpush1.bf16.msra.mxu0 0
  %3794 = vmatprep.subr.bf16.mxu0 0
  %3795 = vmatpush1.bf16.msra.mxu0 0
  %3796 = vmatprep.subr.bf16.mxu0 0
  %3797 = vmatpush1.bf16.msra.mxu0 0
  %3798 = vmatprep.subr.bf16.mxu0 0
  %3799 = vmatpush1.bf16.msra.mxu0 0
  %3800 = vmatprep.subr.bf16.mxu0 0
  %3801 = vmatpush1.bf16.msra.mxu0 0
  %3802 = vmatprep.subr.bf16.mxu0 0
  %3803 = vmatpush1.bf16.msra.mxu0 0
  %3804 = vmatprep.subr.bf16.mxu0 0
  %3805 = vmatpush1.bf16.msra.mxu0 0
  %3806 = vmatprep.subr.bf16.mxu0 0
  %3807 = vmatpush1.bf16.msra.mxu0 0
  %3808 = vmatprep.subr.bf16.mxu0 0
  %3809 = vmatpush1.bf16.msra.mxu0 0
  %3810 = vmatprep.subr.bf16.mxu0 0
  %3811 = vmatpush1.bf16.msra.mxu0 0
  %3812 = vmatprep.subr.bf16.mxu0 0
  %3813 = vmatpush1.bf16.msra.mxu0 0
  %3814 = vmatprep.mubr.bf16.mxu0 0
  %3815 = vmatmul.mubr.bf16.gmra.mrb[0].mxu0 %v3459
  %v3816 = vpop.f32.mrb[0].mxu0
  %v3817 = vadd.f32 %v3430, %v3816
  %v3818 = vpop.f32.mrb[0].mxu0
  %v3819 = vadd.f32 %v3430, %v3818
  %v3820 = vpop.f32.mrb[0].mxu0
  %v3821 = vadd.f32 %v3435, %v3820
  %v3822 = vpop.f32.mrb[0].mxu0
  %v3823 = vadd.f32 %v3435, %v3822
  %3824 = vmatprep.mubr.bf16.mxu0 0
  %3825 = vmatmul.mubr.bf16.gmra.mrb[0].mxu0 %v3462
  %v3826 = vpop.f32.mrb[0].mxu0
  %v3827 = vadd.f32 %v3440, %v3826
  %v3828 = vpop.f32.mrb[0].mxu0
  %v3829 = vadd.f32 %v3440, %v3828
  %v3830 = vpop.f32.mrb[0].mxu0
  %v3831 = vadd.f32 %v3445, %v3830
  %v3832 = vpop.f32.mrb[0].mxu0
  %v3833 = vadd.f32 %v3445, %v3832
  %3834 = vdwg.mxu0
  %3835 = vmatprep.subr.bf16.mxu0 %v3358
  %3836 = vmatpush1.bf16.msra.mxu0 %v3357
  %3837 = vmatprep.subr.bf16.mxu0 %v3374
  %3838 = vmatpush1.bf16.msra.mxu0 %v3373
  %3839 = vmatprep.subr.bf16.mxu0 %v3390
  %3840 = vmatpush1.bf16.msra.mxu0 %v3389
  %3841 = vmatprep.subr.bf16.mxu0 %v3406
  %3842 = vmatpush1.bf16.msra.mxu0 %v3405
  %3843 = vmatprep.subr.bf16.mxu0 %v3422
  %3844 = vmatpush1.bf16.msra.mxu0 %v3421
  %3845 = vmatprep.subr.bf16.mxu0 0
  %3846 = vmatpush1.bf16.msra.mxu0 0
  %3847 = vmatprep.subr.bf16.mxu0 0
  %3848 = vmatpush1.bf16.msra.mxu0 0
  %3849 = vmatprep.subr.bf16.mxu0 0
  %3850 = vmatpush1.bf16.msra.mxu0 0
  %3851 = vmatprep.subr.bf16.mxu0 0
  %3852 = vmatpush1.bf16.msra.mxu0 0
  %3853 = vmatprep.subr.bf16.mxu0 0
  %3854 = vmatpush1.bf16.msra.mxu0 0
  %3855 = vmatprep.subr.bf16.mxu0 0
  %3856 = vmatpush1.bf16.msra.mxu0 0
  %3857 = vmatprep.subr.bf16.mxu0 0
  %3858 = vmatpush1.bf16.msra.mxu0 0
  %3859 = vmatprep.subr.bf16.mxu0 0
  %3860 = vmatpush1.bf16.msra.mxu0 0
  %3861 = vmatprep.subr.bf16.mxu0 0
  %3862 = vmatpush1.bf16.msra.mxu0 0
  %3863 = vmatprep.subr.bf16.mxu0 0
  %3864 = vmatpush1.bf16.msra.mxu0 0
  %3865 = vmatprep.subr.bf16.mxu0 0
  %3866 = vmatpush1.bf16.msra.mxu0 0
  %3867 = vmatprep.mubr.bf16.mxu0 0
  %3868 = vmatmul.mubr.bf16.gmra.mrb[0].mxu0 %v3459
  %v3869 = vpop.f32.mrb[0].mxu0
  %v3870 = vadd.f32 %v3430, %v3869
  %v3871 = vpop.f32.mrb[0].mxu0
  %v3872 = vadd.f32 %v3430, %v3871
  %v3873 = vpop.f32.mrb[0].mxu0
  %v3874 = vadd.f32 %v3435, %v3873
  %v3875 = vpop.f32.mrb[0].mxu0
  %v3876 = vadd.f32 %v3435, %v3875
  %3877 = vmatprep.mubr.bf16.mxu0 0
  %3878 = vmatmul.mubr.bf16.gmra.mrb[0].mxu0 %v3462
  %v3879 = vpop.f32.mrb[0].mxu0
  %v3880 = vadd.f32 %v3440, %v3879
  %v3881 = vpop.f32.mrb[0].mxu0
  %v3882 = vadd.f32 %v3440, %v3881
  %v3883 = vpop.f32.mrb[0].mxu0
  %v3884 = vadd.f32 %v3445, %v3883
  %v3885 = vpop.f32.mrb[0].mxu0
  %v3886 = vadd.f32 %v3445, %v3885
  %3887 = vdwg.mxu0
  %v3888 = vld [vmem:[%s7] sm:$0xff]
  %v3889 = vld [vmem:[%s7 + $0x8] sm:$0xff]
  %v3890 = vld [vmem:[%s7 + $0x10] sm:$0xff]
  %v3891 = vld [vmem:[%s7 + $0x18] sm:$0xff]
  %v3892 = vld [vmem:[%s8] sm:$0xff]
  %v3893 = vld [vmem:[%s8 + $0x8] sm:$0xff]
  %v3894 = vld [vmem:[%s8 + $0x10] sm:$0xff]
  %v3895 = vld [vmem:[%s8 + $0x18] sm:$0xff]
  %v3896 = vmul.f32 %v3499, %v712
  %v3897 = vmul.f32 %v3501, %v713
  %v3898 = vmul.f32 %v3552, %v714
  %v3899 = vmul.f32 %v3554, %v715
  %v3900 = vmul.f32 %v3605, %v716
  %v3901 = vmul.f32 %v3607, %v717
  %v3902 = vmul.f32 %v3658, %v718
  %v3903 = vmul.f32 %v3660, %v719
  %v3904 = vmul.f32 %v3711, %v720
  %v3905 = vmul.f32 %v3713, %v721
  %v3906 = vmul.f32 %v3764, %v722
  %v3907 = vmul.f32 %v3766, %v723
  %v3908 = vmul.f32 %v3817, %v724
  %v3909 = vmul.f32 %v3819, %v725
  %v3910 = vmul.f32 %v3870, %v726
  %v3911 = vmul.f32 %v3872, %v727
  %v3912 = vmul.f32 %v3503, %v712
  %v3913 = vmul.f32 %v3505, %v713
  %v3914 = vmul.f32 %v3556, %v714
  %v3915 = vmul.f32 %v3558, %v715
  %v3916 = vmul.f32 %v3609, %v716
  %v3917 = vmul.f32 %v3611, %v717
  %v3918 = vmul.f32 %v3662, %v718
  %v3919 = vmul.f32 %v3664, %v719
  %v3920 = vmul.f32 %v3715, %v720
  %v3921 = vmul.f32 %v3717, %v721
  %v3922 = vmul.f32 %v3768, %v722
  %v3923 = vmul.f32 %v3770, %v723
  %v3924 = vmul.f32 %v3821, %v724
  %v3925 = vmul.f32 %v3823, %v725
  %v3926 = vmul.f32 %v3874, %v726
  %v3927 = vmul.f32 %v3876, %v727
  %v3928 = vmul.f32 %v3509, %v712
  %v3929 = vmul.f32 %v3511, %v713
  %v3930 = vmul.f32 %v3562, %v714
  %v3931 = vmul.f32 %v3564, %v715
  %v3932 = vmul.f32 %v3615, %v716
  %v3933 = vmul.f32 %v3617, %v717
  %v3934 = vmul.f32 %v3668, %v718
  %v3935 = vmul.f32 %v3670, %v719
  %v3936 = vmul.f32 %v3721, %v720
  %v3937 = vmul.f32 %v3723, %v721
  %v3938 = vmul.f32 %v3774, %v722
  %v3939 = vmul.f32 %v3776, %v723
  %v3940 = vmul.f32 %v3827, %v724
  %v3941 = vmul.f32 %v3829, %v725
  %v3942 = vmul.f32 %v3880, %v726
  %v3943 = vmul.f32 %v3882, %v727
  %v3944 = vmul.f32 %v3513, %v712
  %v3945 = vmul.f32 %v3515, %v713
  %v3946 = vmul.f32 %v3566, %v714
  %v3947 = vmul.f32 %v3568, %v715
  %v3948 = vmul.f32 %v3619, %v716
  %v3949 = vmul.f32 %v3621, %v717
  %v3950 = vmul.f32 %v3672, %v718
  %v3951 = vmul.f32 %v3674, %v719
  %v3952 = vmul.f32 %v3725, %v720
  %v3953 = vmul.f32 %v3727, %v721
  %v3954 = vmul.f32 %v3778, %v722
  %v3955 = vmul.f32 %v3780, %v723
  %v3956 = vmul.f32 %v3831, %v724
  %v3957 = vmul.f32 %v3833, %v725
  %v3958 = vmul.f32 %v3884, %v726
  %v3959 = vmul.f32 %v3886, %v727
  %v3960 = vadd.f32 %v3896, %v3897
  %v3961 = vadd.f32 %v3960, %v3898
  %v3962 = vadd.f32 %v3961, %v3899
  %v3963 = vadd.f32 %v3962, %v3900
  %v3964 = vadd.f32 %v3963, %v3901
  %v3965 = vadd.f32 %v3964, %v3902
  %v3966 = vadd.f32 %v3965, %v3903
  %v3967 = vadd.f32 %v3966, %v3904
  %v3968 = vadd.f32 %v3967, %v3905
  %v3969 = vadd.f32 %v3968, %v3906
  %v3970 = vadd.f32 %v3969, %v3907
  %v3971 = vadd.f32 %v3970, %v3908
  %v3972 = vadd.f32 %v3971, %v3909
  %v3973 = vadd.f32 %v3972, %v3910
  %v3974 = vadd.f32 %v3973, %v3911
  %3975 = vadd.xlane.f32.xlu0 %v3974
  %v3976 = vpop.xlane.xlu0 %3975
  %v3977 = vadd.f32 %v3912, %v3913
  %v3978 = vadd.f32 %v3977, %v3914
  %v3979 = vadd.f32 %v3978, %v3915
  %v3980 = vadd.f32 %v3979, %v3916
  %v3981 = vadd.f32 %v3980, %v3917
  %v3982 = vadd.f32 %v3981, %v3918
  %v3983 = vadd.f32 %v3982, %v3919
  %v3984 = vadd.f32 %v3983, %v3920
  %v3985 = vadd.f32 %v3984, %v3921
  %v3986 = vadd.f32 %v3985, %v3922
  %v3987 = vadd.f32 %v3986, %v3923
  %v3988 = vadd.f32 %v3987, %v3924
  %v3989 = vadd.f32 %v3988, %v3925
  %v3990 = vadd.f32 %v3989, %v3926
  %v3991 = vadd.f32 %v3990, %v3927
  %3992 = vadd.xlane.f32.xlu0 %v3991
  %v3993 = vpop.xlane.xlu0 %3992
  %v3994 = vadd.f32 %v3928, %v3929
  %v3995 = vadd.f32 %v3994, %v3930
  %v3996 = vadd.f32 %v3995, %v3931
  %v3997 = vadd.f32 %v3996, %v3932
  %v3998 = vadd.f32 %v3997, %v3933
  %v3999 = vadd.f32 %v3998, %v3934
  %v4000 = vadd.f32 %v3999, %v3935
  %v4001 = vadd.f32 %v4000, %v3936
  %v4002 = vadd.f32 %v4001, %v3937
  %v4003 = vadd.f32 %v4002, %v3938
  %v4004 = vadd.f32 %v4003, %v3939
  %v4005 = vadd.f32 %v4004, %v3940
  %v4006 = vadd.f32 %v4005, %v3941
  %v4007 = vadd.f32 %v4006, %v3942
  %v4008 = vadd.f32 %v4007, %v3943
  %4009 = vadd.xlane.f32.xlu0 %v4008
  %v4010 = vpop.xlane.xlu0 %4009
  %v4011 = vadd.f32 %v3944, %v3945
  %v4012 = vadd.f32 %v4011, %v3946
  %v4013 = vadd.f32 %v4012, %v3947
  %v4014 = vadd.f32 %v4013, %v3948
  %v4015 = vadd.f32 %v4014, %v3949
  %v4016 = vadd.f32 %v4015, %v3950
  %v4017 = vadd.f32 %v4016, %v3951
  %v4018 = vadd.f32 %v4017, %v3952
  %v4019 = vadd.f32 %v4018, %v3953
  %v4020 = vadd.f32 %v4019, %v3954
  %v4021 = vadd.f32 %v4020, %v3955
  %v4022 = vadd.f32 %v4021, %v3956
  %v4023 = vadd.f32 %v4022, %v3957
  %v4024 = vadd.f32 %v4023, %v3958
  %v4025 = vadd.f32 %v4024, %v3959
  %4026 = vadd.xlane.f32.xlu0 %v4025
  %v4027 = vpop.xlane.xlu0 %4026
  %v4028 = vmul.f32 %v3976, 0.001953125
  %v4029 = vmul.f32 %v3993, 0.001953125
  %v4030 = vmul.f32 %v4010, 0.001953125
  %v4031 = vmul.f32 %v4027, 0.001953125
  %v4032 = vsub.f32 %v3499, %v4028
  %v4033 = vsub.f32 %v3501, %v4028
  %v4034 = vsub.f32 %v3552, %v4028
  %v4035 = vsub.f32 %v3554, %v4028
  %v4036 = vsub.f32 %v3605, %v4028
  %v4037 = vsub.f32 %v3607, %v4028
  %v4038 = vsub.f32 %v3658, %v4028
  %v4039 = vsub.f32 %v3660, %v4028
  %v4040 = vsub.f32 %v3711, %v4028
  %v4041 = vsub.f32 %v3713, %v4028
  %v4042 = vsub.f32 %v3764, %v4028
  %v4043 = vsub.f32 %v3766, %v4028
  %v4044 = vsub.f32 %v3817, %v4028
  %v4045 = vsub.f32 %v3819, %v4028
  %v4046 = vsub.f32 %v3870, %v4028
  %v4047 = vsub.f32 %v3872, %v4028
  %v4048 = vsub.f32 %v3503, %v4029
  %v4049 = vsub.f32 %v3505, %v4029
  %v4050 = vsub.f32 %v3556, %v4029
  %v4051 = vsub.f32 %v3558, %v4029
  %v4052 = vsub.f32 %v3609, %v4029
  %v4053 = vsub.f32 %v3611, %v4029
  %v4054 = vsub.f32 %v3662, %v4029
  %v4055 = vsub.f32 %v3664, %v4029
  %v4056 = vsub.f32 %v3715, %v4029
  %v4057 = vsub.f32 %v3717, %v4029
  %v4058 = vsub.f32 %v3768, %v4029
  %v4059 = vsub.f32 %v3770, %v4029
  %v4060 = vsub.f32 %v3821, %v4029
  %v4061 = vsub.f32 %v3823, %v4029
  %v4062 = vsub.f32 %v3874, %v4029
  %v4063 = vsub.f32 %v3876, %v4029
  %v4064 = vsub.f32 %v3509, %v4030
  %v4065 = vsub.f32 %v3511, %v4030
  %v4066 = vsub.f32 %v3562, %v4030
  %v4067 = vsub.f32 %v3564, %v4030
  %v4068 = vsub.f32 %v3615, %v4030
  %v4069 = vsub.f32 %v3617, %v4030
  %v4070 = vsub.f32 %v3668, %v4030
  %v4071 = vsub.f32 %v3670, %v4030
  %v4072 = vsub.f32 %v3721, %v4030
  %v4073 = vsub.f32 %v3723, %v4030
  %v4074 = vsub.f32 %v3774, %v4030
  %v4075 = vsub.f32 %v3776, %v4030
  %v4076 = vsub.f32 %v3827, %v4030
  %v4077 = vsub.f32 %v3829, %v4030
  %v4078 = vsub.f32 %v3880, %v4030
  %v4079 = vsub.f32 %v3882, %v4030
  %v4080 = vsub.f32 %v3513, %v4031
  %v4081 = vsub.f32 %v3515, %v4031
  %v4082 = vsub.f32 %v3566, %v4031
  %v4083 = vsub.f32 %v3568, %v4031
  %v4084 = vsub.f32 %v3619, %v4031
  %v4085 = vsub.f32 %v3621, %v4031
  %v4086 = vsub.f32 %v3672, %v4031
  %v4087 = vsub.f32 %v3674, %v4031
  %v4088 = vsub.f32 %v3725, %v4031
  %v4089 = vsub.f32 %v3727, %v4031
  %v4090 = vsub.f32 %v3778, %v4031
  %v4091 = vsub.f32 %v3780, %v4031
  %v4092 = vsub.f32 %v3831, %v4031
  %v4093 = vsub.f32 %v3833, %v4031
  %v4094 = vsub.f32 %v3884, %v4031
  %v4095 = vsub.f32 %v3886, %v4031
  %v4096 = vmul.f32 %v4032, %v4032
  %v4097 = vmul.f32 %v4033, %v4033
  %v4098 = vmul.f32 %v4034, %v4034
  %v4099 = vmul.f32 %v4035, %v4035
  %v4100 = vmul.f32 %v4036, %v4036
  %v4101 = vmul.f32 %v4037, %v4037
  %v4102 = vmul.f32 %v4038, %v4038
  %v4103 = vmul.f32 %v4039, %v4039
  %v4104 = vmul.f32 %v4040, %v4040
  %v4105 = vmul.f32 %v4041, %v4041
  %v4106 = vmul.f32 %v4042, %v4042
  %v4107 = vmul.f32 %v4043, %v4043
  %v4108 = vmul.f32 %v4044, %v4044
  %v4109 = vmul.f32 %v4045, %v4045
  %v4110 = vmul.f32 %v4046, %v4046
  %v4111 = vmul.f32 %v4047, %v4047
  %v4112 = vmul.f32 %v4048, %v4048
  %v4113 = vmul.f32 %v4049, %v4049
  %v4114 = vmul.f32 %v4050, %v4050
  %v4115 = vmul.f32 %v4051, %v4051
  %v4116 = vmul.f32 %v4052, %v4052
  %v4117 = vmul.f32 %v4053, %v4053
  %v4118 = vmul.f32 %v4054, %v4054
  %v4119 = vmul.f32 %v4055, %v4055
  %v4120 = vmul.f32 %v4056, %v4056
  %v4121 = vmul.f32 %v4057, %v4057
  %v4122 = vmul.f32 %v4058, %v4058
  %v4123 = vmul.f32 %v4059, %v4059
  %v4124 = vmul.f32 %v4060, %v4060
  %v4125 = vmul.f32 %v4061, %v4061
  %v4126 = vmul.f32 %v4062, %v4062
  %v4127 = vmul.f32 %v4063, %v4063
  %v4128 = vmul.f32 %v4064, %v4064
  %v4129 = vmul.f32 %v4065, %v4065
  %v4130 = vmul.f32 %v4066, %v4066
  %v4131 = vmul.f32 %v4067, %v4067
  %v4132 = vmul.f32 %v4068, %v4068
  %v4133 = vmul.f32 %v4069, %v4069
  %v4134 = vmul.f32 %v4070, %v4070
  %v4135 = vmul.f32 %v4071, %v4071
  %v4136 = vmul.f32 %v4072, %v4072
  %v4137 = vmul.f32 %v4073, %v4073
  %v4138 = vmul.f32 %v4074, %v4074
  %v4139 = vmul.f32 %v4075, %v4075
  %v4140 = vmul.f32 %v4076, %v4076
  %v4141 = vmul.f32 %v4077, %v4077
  %v4142 = vmul.f32 %v4078, %v4078
  %v4143 = vmul.f32 %v4079, %v4079
  %v4144 = vmul.f32 %v4080, %v4080
  %v4145 = vmul.f32 %v4081, %v4081
  %v4146 = vmul.f32 %v4082, %v4082
  %v4147 = vmul.f32 %v4083, %v4083
  %v4148 = vmul.f32 %v4084, %v4084
  %v4149 = vmul.f32 %v4085, %v4085
  %v4150 = vmul.f32 %v4086, %v4086
  %v4151 = vmul.f32 %v4087, %v4087
  %v4152 = vmul.f32 %v4088, %v4088
  %v4153 = vmul.f32 %v4089, %v4089
  %v4154 = vmul.f32 %v4090, %v4090
  %v4155 = vmul.f32 %v4091, %v4091
  %v4156 = vmul.f32 %v4092, %v4092
  %v4157 = vmul.f32 %v4093, %v4093
  %v4158 = vmul.f32 %v4094, %v4094
  %v4159 = vmul.f32 %v4095, %v4095
  %v4160 = vmul.f32 %v4096, %v712
  %v4161 = vmul.f32 %v4097, %v713
  %v4162 = vmul.f32 %v4098, %v714
  %v4163 = vmul.f32 %v4099, %v715
  %v4164 = vmul.f32 %v4100, %v716
  %v4165 = vmul.f32 %v4101, %v717
  %v4166 = vmul.f32 %v4102, %v718
  %v4167 = vmul.f32 %v4103, %v719
  %v4168 = vmul.f32 %v4104, %v720
  %v4169 = vmul.f32 %v4105, %v721
  %v4170 = vmul.f32 %v4106, %v722
  %v4171 = vmul.f32 %v4107, %v723
  %v4172 = vmul.f32 %v4108, %v724
  %v4173 = vmul.f32 %v4109, %v725
  %v4174 = vmul.f32 %v4110, %v726
  %v4175 = vmul.f32 %v4111, %v727
  %v4176 = vmul.f32 %v4112, %v712
  %v4177 = vmul.f32 %v4113, %v713
  %v4178 = vmul.f32 %v4114, %v714
  %v4179 = vmul.f32 %v4115, %v715
  %v4180 = vmul.f32 %v4116, %v716
  %v4181 = vmul.f32 %v4117, %v717
  %v4182 = vmul.f32 %v4118, %v718
  %v4183 = vmul.f32 %v4119, %v719
  %v4184 = vmul.f32 %v4120, %v720
  %v4185 = vmul.f32 %v4121, %v721
  %v4186 = vmul.f32 %v4122, %v722
  %v4187 = vmul.f32 %v4123, %v723
  %v4188 = vmul.f32 %v4124, %v724
  %v4189 = vmul.f32 %v4125, %v725
  %v4190 = vmul.f32 %v4126, %v726
  %v4191 = vmul.f32 %v4127, %v727
  %v4192 = vmul.f32 %v4128, %v712
  %v4193 = vmul.f32 %v4129, %v713
  %v4194 = vmul.f32 %v4130, %v714
  %v4195 = vmul.f32 %v4131, %v715
  %v4196 = vmul.f32 %v4132, %v716
  %v4197 = vmul.f32 %v4133, %v717
  %v4198 = vmul.f32 %v4134, %v718
  %v4199 = vmul.f32 %v4135, %v719
  %v4200 = vmul.f32 %v4136, %v720
  %v4201 = vmul.f32 %v4137, %v721
  %v4202 = vmul.f32 %v4138, %v722
  %v4203 = vmul.f32 %v4139, %v723
  %v4204 = vmul.f32 %v4140, %v724
  %v4205 = vmul.f32 %v4141, %v725
  %v4206 = vmul.f32 %v4142, %v726
  %v4207 = vmul.f32 %v4143, %v727
  %v4208 = vmul.f32 %v4144, %v712
  %v4209 = vmul.f32 %v4145, %v713
  %v4210 = vmul.f32 %v4146, %v714
  %v4211 = vmul.f32 %v4147, %v715
  %v4212 = vmul.f32 %v4148, %v716
  %v4213 = vmul.f32 %v4149, %v717
  %v4214 = vmul.f32 %v4150, %v718
  %v4215 = vmul.f32 %v4151, %v719
  %v4216 = vmul.f32 %v4152, %v720
  %v4217 = vmul.f32 %v4153, %v721
  %v4218 = vmul.f32 %v4154, %v722
  %v4219 = vmul.f32 %v4155, %v723
  %v4220 = vmul.f32 %v4156, %v724
  %v4221 = vmul.f32 %v4157, %v725
  %v4222 = vmul.f32 %v4158, %v726
  %v4223 = vmul.f32 %v4159, %v727
  %v4224 = vadd.f32 %v4160, %v4161
  %v4225 = vadd.f32 %v4224, %v4162
  %v4226 = vadd.f32 %v4225, %v4163
  %v4227 = vadd.f32 %v4226, %v4164
  %v4228 = vadd.f32 %v4227, %v4165
  %v4229 = vadd.f32 %v4228, %v4166
  %v4230 = vadd.f32 %v4229, %v4167
  %v4231 = vadd.f32 %v4230, %v4168
  %v4232 = vadd.f32 %v4231, %v4169
  %v4233 = vadd.f32 %v4232, %v4170
  %v4234 = vadd.f32 %v4233, %v4171
  %v4235 = vadd.f32 %v4234, %v4172
  %v4236 = vadd.f32 %v4235, %v4173
  %v4237 = vadd.f32 %v4236, %v4174
  %v4238 = vadd.f32 %v4237, %v4175
  %4239 = vadd.xlane.f32.xlu0 %v4238
  %v4240 = vpop.xlane.xlu0 %4239
  %v4241 = vadd.f32 %v4176, %v4177
  %v4242 = vadd.f32 %v4241, %v4178
  %v4243 = vadd.f32 %v4242, %v4179
  %v4244 = vadd.f32 %v4243, %v4180
  %v4245 = vadd.f32 %v4244, %v4181
  %v4246 = vadd.f32 %v4245, %v4182
  %v4247 = vadd.f32 %v4246, %v4183
  %v4248 = vadd.f32 %v4247, %v4184
  %v4249 = vadd.f32 %v4248, %v4185
  %v4250 = vadd.f32 %v4249, %v4186
  %v4251 = vadd.f32 %v4250, %v4187
  %v4252 = vadd.f32 %v4251, %v4188
  %v4253 = vadd.f32 %v4252, %v4189
  %v4254 = vadd.f32 %v4253, %v4190
  %v4255 = vadd.f32 %v4254, %v4191
  %4256 = vadd.xlane.f32.xlu0 %v4255
  %v4257 = vpop.xlane.xlu0 %4256
  %v4258 = vadd.f32 %v4192, %v4193
  %v4259 = vadd.f32 %v4258, %v4194
  %v4260 = vadd.f32 %v4259, %v4195
  %v4261 = vadd.f32 %v4260, %v4196
  %v4262 = vadd.f32 %v4261, %v4197
  %v4263 = vadd.f32 %v4262, %v4198
  %v4264 = vadd.f32 %v4263, %v4199
  %v4265 = vadd.f32 %v4264, %v4200
  %v4266 = vadd.f32 %v4265, %v4201
  %v4267 = vadd.f32 %v4266, %v4202
  %v4268 = vadd.f32 %v4267, %v4203
  %v4269 = vadd.f32 %v4268, %v4204
  %v4270 = vadd.f32 %v4269, %v4205
  %v4271 = vadd.f32 %v4270, %v4206
  %v4272 = vadd.f32 %v4271, %v4207
  %4273 = vadd.xlane.f32.xlu0 %v4272
  %v4274 = vpop.xlane.xlu0 %4273
  %v4275 = vadd.f32 %v4208, %v4209
  %v4276 = vadd.f32 %v4275, %v4210
  %v4277 = vadd.f32 %v4276, %v4211
  %v4278 = vadd.f32 %v4277, %v4212
  %v4279 = vadd.f32 %v4278, %v4213
  %v4280 = vadd.f32 %v4279, %v4214
  %v4281 = vadd.f32 %v4280, %v4215
  %v4282 = vadd.f32 %v4281, %v4216
  %v4283 = vadd.f32 %v4282, %v4217
  %v4284 = vadd.f32 %v4283, %v4218
  %v4285 = vadd.f32 %v4284, %v4219
  %v4286 = vadd.f32 %v4285, %v4220
  %v4287 = vadd.f32 %v4286, %v4221
  %v4288 = vadd.f32 %v4287, %v4222
  %v4289 = vadd.f32 %v4288, %v4223
  %4290 = vadd.xlane.f32.xlu0 %v4289
  %v4291 = vpop.xlane.xlu0 %4290
  %v4292 = vmul.f32 %v4240, 0.001953125
  %v4293 = vmul.f32 %v4257, 0.001953125
  %v4294 = vmul.f32 %v4274, 0.001953125
  %v4295 = vmul.f32 %v4291, 0.001953125
  %v4296 = vadd.f32 %v4292, 1e-05
  %v4297 = vadd.f32 %v4293, 1e-05
  %v4298 = vadd.f32 %v4294, 1e-05
  %v4299 = vadd.f32 %v4295, 1e-05
  %v4300 = vrsqrt.pop %v4296
  %v4301 = vrsqrt.pop %v4297
  %v4302 = vrsqrt.pop %v4298
  %v4303 = vrsqrt.pop %v4299
  %v4304 = vmul.f32 %v4032, %v4300
  %v4305 = vmul.f32 %v4033, %v4300
  %v4306 = vmul.f32 %v4034, %v4300
  %v4307 = vmul.f32 %v4035, %v4300
  %v4308 = vmul.f32 %v4036, %v4300
  %v4309 = vmul.f32 %v4037, %v4300
  %v4310 = vmul.f32 %v4038, %v4300
  %v4311 = vmul.f32 %v4039, %v4300
  %v4312 = vmul.f32 %v4040, %v4300
  %v4313 = vmul.f32 %v4041, %v4300
  %v4314 = vmul.f32 %v4042, %v4300
  %v4315 = vmul.f32 %v4043, %v4300
  %v4316 = vmul.f32 %v4044, %v4300
  %v4317 = vmul.f32 %v4045, %v4300
  %v4318 = vmul.f32 %v4046, %v4300
  %v4319 = vmul.f32 %v4047, %v4300
  %v4320 = vmul.f32 %v4048, %v4301
  %v4321 = vmul.f32 %v4049, %v4301
  %v4322 = vmul.f32 %v4050, %v4301
  %v4323 = vmul.f32 %v4051, %v4301
  %v4324 = vmul.f32 %v4052, %v4301
  %v4325 = vmul.f32 %v4053, %v4301
  %v4326 = vmul.f32 %v4054, %v4301
  %v4327 = vmul.f32 %v4055, %v4301
  %v4328 = vmul.f32 %v4056, %v4301
  %v4329 = vmul.f32 %v4057, %v4301
  %v4330 = vmul.f32 %v4058, %v4301
  %v4331 = vmul.f32 %v4059, %v4301
  %v4332 = vmul.f32 %v4060, %v4301
  %v4333 = vmul.f32 %v4061, %v4301
  %v4334 = vmul.f32 %v4062, %v4301
  %v4335 = vmul.f32 %v4063, %v4301
  %v4336 = vmul.f32 %v4064, %v4302
  %v4337 = vmul.f32 %v4065, %v4302
  %v4338 = vmul.f32 %v4066, %v4302
  %v4339 = vmul.f32 %v4067, %v4302
  %v4340 = vmul.f32 %v4068, %v4302
  %v4341 = vmul.f32 %v4069, %v4302
  %v4342 = vmul.f32 %v4070, %v4302
  %v4343 = vmul.f32 %v4071, %v4302
  %v4344 = vmul.f32 %v4072, %v4302
  %v4345 = vmul.f32 %v4073, %v4302
  %v4346 = vmul.f32 %v4074, %v4302
  %v4347 = vmul.f32 %v4075, %v4302
  %v4348 = vmul.f32 %v4076, %v4302
  %v4349 = vmul.f32 %v4077, %v4302
  %v4350 = vmul.f32 %v4078, %v4302
  %v4351 = vmul.f32 %v4079, %v4302
  %v4352 = vmul.f32 %v4080, %v4303
  %v4353 = vmul.f32 %v4081, %v4303
  %v4354 = vmul.f32 %v4082, %v4303
  %v4355 = vmul.f32 %v4083, %v4303
  %v4356 = vmul.f32 %v4084, %v4303
  %v4357 = vmul.f32 %v4085, %v4303
  %v4358 = vmul.f32 %v4086, %v4303
  %v4359 = vmul.f32 %v4087, %v4303
  %v4360 = vmul.f32 %v4088, %v4303
  %v4361 = vmul.f32 %v4089, %v4303
  %v4362 = vmul.f32 %v4090, %v4303
  %v4363 = vmul.f32 %v4091, %v4303
  %v4364 = vmul.f32 %v4092, %v4303
  %v4365 = vmul.f32 %v4093, %v4303
  %v4366 = vmul.f32 %v4094, %v4303
  %v4367 = vmul.f32 %v4095, %v4303
  %4369 = vset.pattern.permute.xlu0 0
  %4370 = vperm.xlu0 %4369, %v3888
  %v4371 = vpop.permute.xlu0 %4370
  %4374 = vset.pattern.permute.xlu0 0
  %4375 = vperm.xlu0 %4374, %v3889
  %v4376 = vpop.permute.xlu0 %4375
  %4379 = vset.pattern.permute.xlu0 0
  %4380 = vperm.xlu0 %4379, %v3890
  %v4381 = vpop.permute.xlu0 %4380
  %4384 = vset.pattern.permute.xlu0 0
  %4385 = vperm.xlu0 %4384, %v3891
  %v4386 = vpop.permute.xlu0 %4385
  %v4388 = vmul.f32 %v4304, %v4371
  %v4389 = vmul.f32 %v4305, %v4371
  %v4390 = vmul.f32 %v4306, %v4371
  %v4391 = vmul.f32 %v4307, %v4371
  %v4392 = vmul.f32 %v4308, %v4371
  %v4393 = vmul.f32 %v4309, %v4371
  %v4394 = vmul.f32 %v4310, %v4371
  %v4395 = vmul.f32 %v4311, %v4371
  %v4396 = vmul.f32 %v4312, %v4371
  %v4397 = vmul.f32 %v4313, %v4371
  %v4398 = vmul.f32 %v4314, %v4371
  %v4399 = vmul.f32 %v4315, %v4371
  %v4400 = vmul.f32 %v4316, %v4371
  %v4401 = vmul.f32 %v4317, %v4371
  %v4402 = vmul.f32 %v4318, %v4371
  %v4403 = vmul.f32 %v4319, %v4371
  %v4404 = vmul.f32 %v4320, %v4376
  %v4405 = vmul.f32 %v4321, %v4376
  %v4406 = vmul.f32 %v4322, %v4376
  %v4407 = vmul.f32 %v4323, %v4376
  %v4408 = vmul.f32 %v4324, %v4376
  %v4409 = vmul.f32 %v4325, %v4376
  %v4410 = vmul.f32 %v4326, %v4376
  %v4411 = vmul.f32 %v4327, %v4376
  %v4412 = vmul.f32 %v4328, %v4376
  %v4413 = vmul.f32 %v4329, %v4376
  %v4414 = vmul.f32 %v4330, %v4376
  %v4415 = vmul.f32 %v4331, %v4376
  %v4416 = vmul.f32 %v4332, %v4376
  %v4417 = vmul.f32 %v4333, %v4376
  %v4418 = vmul.f32 %v4334, %v4376
  %v4419 = vmul.f32 %v4335, %v4376
  %v4420 = vmul.f32 %v4336, %v4381
  %v4421 = vmul.f32 %v4337, %v4381
  %v4422 = vmul.f32 %v4338, %v4381
  %v4423 = vmul.f32 %v4339, %v4381
  %v4424 = vmul.f32 %v4340, %v4381
  %v4425 = vmul.f32 %v4341, %v4381
  %v4426 = vmul.f32 %v4342, %v4381
  %v4427 = vmul.f32 %v4343, %v4381
  %v4428 = vmul.f32 %v4344, %v4381
  %v4429 = vmul.f32 %v4345, %v4381
  %v4430 = vmul.f32 %v4346, %v4381
  %v4431 = vmul.f32 %v4347, %v4381
  %v4432 = vmul.f32 %v4348, %v4381
  %v4433 = vmul.f32 %v4349, %v4381
  %v4434 = vmul.f32 %v4350, %v4381
  %v4435 = vmul.f32 %v4351, %v4381
  %v4436 = vmul.f32 %v4352, %v4386
  %v4437 = vmul.f32 %v4353, %v4386
  %v4438 = vmul.f32 %v4354, %v4386
  %v4439 = vmul.f32 %v4355, %v4386
  %v4440 = vmul.f32 %v4356, %v4386
  %v4441 = vmul.f32 %v4357, %v4386
  %v4442 = vmul.f32 %v4358, %v4386
  %v4443 = vmul.f32 %v4359, %v4386
  %v4444 = vmul.f32 %v4360, %v4386
  %v4445 = vmul.f32 %v4361, %v4386
  %v4446 = vmul.f32 %v4362, %v4386
  %v4447 = vmul.f32 %v4363, %v4386
  %v4448 = vmul.f32 %v4364, %v4386
  %v4449 = vmul.f32 %v4365, %v4386
  %v4450 = vmul.f32 %v4366, %v4386
  %v4451 = vmul.f32 %v4367, %v4386
  %4453 = vset.pattern.permute.xlu0 0
  %4454 = vperm.xlu0 %4453, %v3892
  %v4455 = vpop.permute.xlu0 %4454
  %4458 = vset.pattern.permute.xlu0 0
  %4459 = vperm.xlu0 %4458, %v3893
  %v4460 = vpop.permute.xlu0 %4459
  %4463 = vset.pattern.permute.xlu0 0
  %4464 = vperm.xlu0 %4463, %v3894
  %v4465 = vpop.permute.xlu0 %4464
  %4468 = vset.pattern.permute.xlu0 0
  %4469 = vperm.xlu0 %4468, %v3895
  %v4470 = vpop.permute.xlu0 %4469
  %v4472 = vadd.f32 %v4388, %v4455
  %v4473 = vadd.f32 %v4389, %v4455
  %v4474 = vadd.f32 %v4390, %v4455
  %v4475 = vadd.f32 %v4391, %v4455
  %v4476 = vadd.f32 %v4392, %v4455
  %v4477 = vadd.f32 %v4393, %v4455
  %v4478 = vadd.f32 %v4394, %v4455
  %v4479 = vadd.f32 %v4395, %v4455
  %v4480 = vadd.f32 %v4396, %v4455
  %v4481 = vadd.f32 %v4397, %v4455
  %v4482 = vadd.f32 %v4398, %v4455
  %v4483 = vadd.f32 %v4399, %v4455
  %v4484 = vadd.f32 %v4400, %v4455
  %v4485 = vadd.f32 %v4401, %v4455
  %v4486 = vadd.f32 %v4402, %v4455
  %v4487 = vadd.f32 %v4403, %v4455
  %v4488 = vadd.f32 %v4404, %v4460
  %v4489 = vadd.f32 %v4405, %v4460
  %v4490 = vadd.f32 %v4406, %v4460
  %v4491 = vadd.f32 %v4407, %v4460
  %v4492 = vadd.f32 %v4408, %v4460
  %v4493 = vadd.f32 %v4409, %v4460
  %v4494 = vadd.f32 %v4410, %v4460
  %v4495 = vadd.f32 %v4411, %v4460
  %v4496 = vadd.f32 %v4412, %v4460
  %v4497 = vadd.f32 %v4413, %v4460
  %v4498 = vadd.f32 %v4414, %v4460
  %v4499 = vadd.f32 %v4415, %v4460
  %v4500 = vadd.f32 %v4416, %v4460
  %v4501 = vadd.f32 %v4417, %v4460
  %v4502 = vadd.f32 %v4418, %v4460
  %v4503 = vadd.f32 %v4419, %v4460
  %v4504 = vadd.f32 %v4420, %v4465
  %v4505 = vadd.f32 %v4421, %v4465
  %v4506 = vadd.f32 %v4422, %v4465
  %v4507 = vadd.f32 %v4423, %v4465
  %v4508 = vadd.f32 %v4424, %v4465
  %v4509 = vadd.f32 %v4425, %v4465
  %v4510 = vadd.f32 %v4426, %v4465
  %v4511 = vadd.f32 %v4427, %v4465
  %v4512 = vadd.f32 %v4428, %v4465
  %v4513 = vadd.f32 %v4429, %v4465
  %v4514 = vadd.f32 %v4430, %v4465
  %v4515 = vadd.f32 %v4431, %v4465
  %v4516 = vadd.f32 %v4432, %v4465
  %v4517 = vadd.f32 %v4433, %v4465
  %v4518 = vadd.f32 %v4434, %v4465
  %v4519 = vadd.f32 %v4435, %v4465
  %v4520 = vadd.f32 %v4436, %v4470
  %v4521 = vadd.f32 %v4437, %v4470
  %v4522 = vadd.f32 %v4438, %v4470
  %v4523 = vadd.f32 %v4439, %v4470
  %v4524 = vadd.f32 %v4440, %v4470
  %v4525 = vadd.f32 %v4441, %v4470
  %v4526 = vadd.f32 %v4442, %v4470
  %v4527 = vadd.f32 %v4443, %v4470
  %v4528 = vadd.f32 %v4444, %v4470
  %v4529 = vadd.f32 %v4445, %v4470
  %v4530 = vadd.f32 %v4446, %v4470
  %v4531 = vadd.f32 %v4447, %v4470
  %v4532 = vadd.f32 %v4448, %v4470
  %v4533 = vadd.f32 %v4449, %v4470
  %v4534 = vadd.f32 %v4450, %v4470
  %v4535 = vadd.f32 %v4451, %v4470
  %vm4536 = vcmp.ge.f32.partialorder %v4472, 0.0
  %vm4537 = vcmp.ge.f32.partialorder %v4473, 0.0
  %vm4538 = vcmp.ge.f32.partialorder %v4474, 0.0
  %vm4539 = vcmp.ge.f32.partialorder %v4475, 0.0
  %vm4540 = vcmp.ge.f32.partialorder %v4476, 0.0
  %vm4541 = vcmp.ge.f32.partialorder %v4477, 0.0
  %vm4542 = vcmp.ge.f32.partialorder %v4478, 0.0
  %vm4543 = vcmp.ge.f32.partialorder %v4479, 0.0
  %vm4544 = vcmp.ge.f32.partialorder %v4480, 0.0
  %vm4545 = vcmp.ge.f32.partialorder %v4481, 0.0
  %vm4546 = vcmp.ge.f32.partialorder %v4482, 0.0
  %vm4547 = vcmp.ge.f32.partialorder %v4483, 0.0
  %vm4548 = vcmp.ge.f32.partialorder %v4484, 0.0
  %vm4549 = vcmp.ge.f32.partialorder %v4485, 0.0
  %vm4550 = vcmp.ge.f32.partialorder %v4486, 0.0
  %vm4551 = vcmp.ge.f32.partialorder %v4487, 0.0
  %vm4552 = vcmp.ge.f32.partialorder %v4488, 0.0
  %vm4553 = vcmp.ge.f32.partialorder %v4489, 0.0
  %vm4554 = vcmp.ge.f32.partialorder %v4490, 0.0
  %vm4555 = vcmp.ge.f32.partialorder %v4491, 0.0
  %vm4556 = vcmp.ge.f32.partialorder %v4492, 0.0
  %vm4557 = vcmp.ge.f32.partialorder %v4493, 0.0
  %vm4558 = vcmp.ge.f32.partialorder %v4494, 0.0
  %vm4559 = vcmp.ge.f32.partialorder %v4495, 0.0
  %vm4560 = vcmp.ge.f32.partialorder %v4496, 0.0
  %vm4561 = vcmp.ge.f32.partialorder %v4497, 0.0
  %vm4562 = vcmp.ge.f32.partialorder %v4498, 0.0
  %vm4563 = vcmp.ge.f32.partialorder %v4499, 0.0
  %vm4564 = vcmp.ge.f32.partialorder %v4500, 0.0
  %vm4565 = vcmp.ge.f32.partialorder %v4501, 0.0
  %vm4566 = vcmp.ge.f32.partialorder %v4502, 0.0
  %vm4567 = vcmp.ge.f32.partialorder %v4503, 0.0
  %vm4568 = vcmp.ge.f32.partialorder %v4504, 0.0
  %vm4569 = vcmp.ge.f32.partialorder %v4505, 0.0
  %vm4570 = vcmp.ge.f32.partialorder %v4506, 0.0
  %vm4571 = vcmp.ge.f32.partialorder %v4507, 0.0
  %vm4572 = vcmp.ge.f32.partialorder %v4508, 0.0
  %vm4573 = vcmp.ge.f32.partialorder %v4509, 0.0
  %vm4574 = vcmp.ge.f32.partialorder %v4510, 0.0
  %vm4575 = vcmp.ge.f32.partialorder %v4511, 0.0
  %vm4576 = vcmp.ge.f32.partialorder %v4512, 0.0
  %vm4577 = vcmp.ge.f32.partialorder %v4513, 0.0
  %vm4578 = vcmp.ge.f32.partialorder %v4514, 0.0
  %vm4579 = vcmp.ge.f32.partialorder %v4515, 0.0
  %vm4580 = vcmp.ge.f32.partialorder %v4516, 0.0
  %vm4581 = vcmp.ge.f32.partialorder %v4517, 0.0
  %vm4582 = vcmp.ge.f32.partialorder %v4518, 0.0
  %vm4583 = vcmp.ge.f32.partialorder %v4519, 0.0
  %vm4584 = vcmp.ge.f32.partialorder %v4520, 0.0
  %vm4585 = vcmp.ge.f32.partialorder %v4521, 0.0
  %vm4586 = vcmp.ge.f32.partialorder %v4522, 0.0
  %vm4587 = vcmp.ge.f32.partialorder %v4523, 0.0
  %vm4588 = vcmp.ge.f32.partialorder %v4524, 0.0
  %vm4589 = vcmp.ge.f32.partialorder %v4525, 0.0
  %vm4590 = vcmp.ge.f32.partialorder %v4526, 0.0
  %vm4591 = vcmp.ge.f32.partialorder %v4527, 0.0
  %vm4592 = vcmp.ge.f32.partialorder %v4528, 0.0
  %vm4593 = vcmp.ge.f32.partialorder %v4529, 0.0
  %vm4594 = vcmp.ge.f32.partialorder %v4530, 0.0
  %vm4595 = vcmp.ge.f32.partialorder %v4531, 0.0
  %vm4596 = vcmp.ge.f32.partialorder %v4532, 0.0
  %vm4597 = vcmp.ge.f32.partialorder %v4533, 0.0
  %vm4598 = vcmp.ge.f32.partialorder %v4534, 0.0
  %vm4599 = vcmp.ge.f32.partialorder %v4535, 0.0
  %v4600 = vmul.f32 %v4472, 0.3
  %v4601 = vmul.f32 %v4473, 0.3
  %v4602 = vmul.f32 %v4474, 0.3
  %v4603 = vmul.f32 %v4475, 0.3
  %v4604 = vmul.f32 %v4476, 0.3
  %v4605 = vmul.f32 %v4477, 0.3
  %v4606 = vmul.f32 %v4478, 0.3
  %v4607 = vmul.f32 %v4479, 0.3
  %v4608 = vmul.f32 %v4480, 0.3
  %v4609 = vmul.f32 %v4481, 0.3
  %v4610 = vmul.f32 %v4482, 0.3
  %v4611 = vmul.f32 %v4483, 0.3
  %v4612 = vmul.f32 %v4484, 0.3
  %v4613 = vmul.f32 %v4485, 0.3
  %v4614 = vmul.f32 %v4486, 0.3
  %v4615 = vmul.f32 %v4487, 0.3
  %v4616 = vmul.f32 %v4488, 0.3
  %v4617 = vmul.f32 %v4489, 0.3
  %v4618 = vmul.f32 %v4490, 0.3
  %v4619 = vmul.f32 %v4491, 0.3
  %v4620 = vmul.f32 %v4492, 0.3
  %v4621 = vmul.f32 %v4493, 0.3
  %v4622 = vmul.f32 %v4494, 0.3
  %v4623 = vmul.f32 %v4495, 0.3
  %v4624 = vmul.f32 %v4496, 0.3
  %v4625 = vmul.f32 %v4497, 0.3
  %v4626 = vmul.f32 %v4498, 0.3
  %v4627 = vmul.f32 %v4499, 0.3
  %v4628 = vmul.f32 %v4500, 0.3
  %v4629 = vmul.f32 %v4501, 0.3
  %v4630 = vmul.f32 %v4502, 0.3
  %v4631 = vmul.f32 %v4503, 0.3
  %v4632 = vmul.f32 %v4504, 0.3
  %v4633 = vmul.f32 %v4505, 0.3
  %v4634 = vmul.f32 %v4506, 0.3
  %v4635 = vmul.f32 %v4507, 0.3
  %v4636 = vmul.f32 %v4508, 0.3
  %v4637 = vmul.f32 %v4509, 0.3
  %v4638 = vmul.f32 %v4510, 0.3
  %v4639 = vmul.f32 %v4511, 0.3
  %v4640 = vmul.f32 %v4512, 0.3
  %v4641 = vmul.f32 %v4513, 0.3
  %v4642 = vmul.f32 %v4514, 0.3
  %v4643 = vmul.f32 %v4515, 0.3
  %v4644 = vmul.f32 %v4516, 0.3
  %v4645 = vmul.f32 %v4517, 0.3
  %v4646 = vmul.f32 %v4518, 0.3
  %v4647 = vmul.f32 %v4519, 0.3
  %v4648 = vmul.f32 %v4520, 0.3
  %v4649 = vmul.f32 %v4521, 0.3
  %v4650 = vmul.f32 %v4522, 0.3
  %v4651 = vmul.f32 %v4523, 0.3
  %v4652 = vmul.f32 %v4524, 0.3
  %v4653 = vmul.f32 %v4525, 0.3
  %v4654 = vmul.f32 %v4526, 0.3
  %v4655 = vmul.f32 %v4527, 0.3
  %v4656 = vmul.f32 %v4528, 0.3
  %v4657 = vmul.f32 %v4529, 0.3
  %v4658 = vmul.f32 %v4530, 0.3
  %v4659 = vmul.f32 %v4531, 0.3
  %v4660 = vmul.f32 %v4532, 0.3
  %v4661 = vmul.f32 %v4533, 0.3
  %v4662 = vmul.f32 %v4534, 0.3
  %v4663 = vmul.f32 %v4535, 0.3
  %v4664 = vsel %vm4536, %v4472, %v4600
  %v4665 = vsel %vm4537, %v4473, %v4601
  %v4666 = vsel %vm4538, %v4474, %v4602
  %v4667 = vsel %vm4539, %v4475, %v4603
  %v4668 = vsel %vm4540, %v4476, %v4604
  %v4669 = vsel %vm4541, %v4477, %v4605
  %v4670 = vsel %vm4542, %v4478, %v4606
  %v4671 = vsel %vm4543, %v4479, %v4607
  %v4672 = vsel %vm4544, %v4480, %v4608
  %v4673 = vsel %vm4545, %v4481, %v4609
  %v4674 = vsel %vm4546, %v4482, %v4610
  %v4675 = vsel %vm4547, %v4483, %v4611
  %v4676 = vsel %vm4548, %v4484, %v4612
  %v4677 = vsel %vm4549, %v4485, %v4613
  %v4678 = vsel %vm4550, %v4486, %v4614
  %v4679 = vsel %vm4551, %v4487, %v4615
  %v4680 = vsel %vm4552, %v4488, %v4616
  %v4681 = vsel %vm4553, %v4489, %v4617
  %v4682 = vsel %vm4554, %v4490, %v4618
  %v4683 = vsel %vm4555, %v4491, %v4619
  %v4684 = vsel %vm4556, %v4492, %v4620
  %v4685 = vsel %vm4557, %v4493, %v4621
  %v4686 = vsel %vm4558, %v4494, %v4622
  %v4687 = vsel %vm4559, %v4495, %v4623
  %v4688 = vsel %vm4560, %v4496, %v4624
  %v4689 = vsel %vm4561, %v4497, %v4625
  %v4690 = vsel %vm4562, %v4498, %v4626
  %v4691 = vsel %vm4563, %v4499, %v4627
  %v4692 = vsel %vm4564, %v4500, %v4628
  %v4693 = vsel %vm4565, %v4501, %v4629
  %v4694 = vsel %vm4566, %v4502, %v4630
  %v4695 = vsel %vm4567, %v4503, %v4631
  %v4696 = vsel %vm4568, %v4504, %v4632
  %v4697 = vsel %vm4569, %v4505, %v4633
  %v4698 = vsel %vm4570, %v4506, %v4634
  %v4699 = vsel %vm4571, %v4507, %v4635
  %v4700 = vsel %vm4572, %v4508, %v4636
  %v4701 = vsel %vm4573, %v4509, %v4637
  %v4702 = vsel %vm4574, %v4510, %v4638
  %v4703 = vsel %vm4575, %v4511, %v4639
  %v4704 = vsel %vm4576, %v4512, %v4640
  %v4705 = vsel %vm4577, %v4513, %v4641
  %v4706 = vsel %vm4578, %v4514, %v4642
  %v4707 = vsel %vm4579, %v4515, %v4643
  %v4708 = vsel %vm4580, %v4516, %v4644
  %v4709 = vsel %vm4581, %v4517, %v4645
  %v4710 = vsel %vm4582, %v4518, %v4646
  %v4711 = vsel %vm4583, %v4519, %v4647
  %v4712 = vsel %vm4584, %v4520, %v4648
  %v4713 = vsel %vm4585, %v4521, %v4649
  %v4714 = vsel %vm4586, %v4522, %v4650
  %v4715 = vsel %vm4587, %v4523, %v4651
  %v4716 = vsel %vm4588, %v4524, %v4652
  %v4717 = vsel %vm4589, %v4525, %v4653
  %v4718 = vsel %vm4590, %v4526, %v4654
  %v4719 = vsel %vm4591, %v4527, %v4655
  %v4720 = vsel %vm4592, %v4528, %v4656
  %v4721 = vsel %vm4593, %v4529, %v4657
  %v4722 = vsel %vm4594, %v4530, %v4658
  %v4723 = vsel %vm4595, %v4531, %v4659
  %v4724 = vsel %vm4596, %v4532, %v4660
  %v4725 = vsel %vm4597, %v4533, %v4661
  %v4726 = vsel %vm4598, %v4534, %v4662
  %v4727 = vsel %vm4599, %v4535, %v4663
  %v4728 = vld [vmem:[%s9] sm:$0xff]
  %v4729 = vld [vmem:[%s9 + $0x8] sm:$0xff]
  %v4730 = vld [vmem:[%s9 + $0x10] sm:$0xff]
  %v4731 = vld [vmem:[%s9 + $0x18] sm:$0xff]
  %4732 = vrot.lane.b32.xlu0 %v4664, 8
  %v4733 = vpop.permute.xlu0 %4732
  %4734 = vrot.lane.b32.xlu0 %v4680, 8
  %v4735 = vpop.permute.xlu0 %4734
  %4736 = vrot.lane.b32.xlu0 %v4696, 8
  %v4737 = vpop.permute.xlu0 %4736
  %4738 = vrot.lane.b32.xlu0 %v4712, 8
  %v4739 = vpop.permute.xlu0 %4738
  %4740 = vrot.lane.b32.xlu0 %v4665, 8
  %v4741 = vpop.permute.xlu0 %4740
  %4742 = vrot.lane.b32.xlu0 %v4681, 8
  %v4743 = vpop.permute.xlu0 %4742
  %4744 = vrot.lane.b32.xlu0 %v4697, 8
  %v4745 = vpop.permute.xlu0 %4744
  %4746 = vrot.lane.b32.xlu0 %v4713, 8
  %v4747 = vpop.permute.xlu0 %4746
  %4748 = vrot.lane.b32.xlu0 %v4666, 8
  %v4749 = vpop.permute.xlu0 %4748
  %4750 = vrot.lane.b32.xlu0 %v4682, 8
  %v4751 = vpop.permute.xlu0 %4750
  %4752 = vrot.lane.b32.xlu0 %v4698, 8
  %v4753 = vpop.permute.xlu0 %4752
  %4754 = vrot.lane.b32.xlu0 %v4714, 8
  %v4755 = vpop.permute.xlu0 %4754
  %4756 = vrot.lane.b32.xlu0 %v4667, 8
  %v4757 = vpop.permute.xlu0 %4756
  %4758 = vrot.lane.b32.xlu0 %v4683, 8
  %v4759 = vpop.permute.xlu0 %4758
  %4760 = vrot.lane.b32.xlu0 %v4699, 8
  %v4761 = vpop.permute.xlu0 %4760
  %4762 = vrot.lane.b32.xlu0 %v4715, 8
  %v4763 = vpop.permute.xlu0 %4762
  %4764 = vrot.lane.b32.xlu0 %v4668, 8
  %v4765 = vpop.permute.xlu0 %4764
  %4766 = vrot.lane.b32.xlu0 %v4684, 8
  %v4767 = vpop.permute.xlu0 %4766
  %4768 = vrot.lane.b32.xlu0 %v4700, 8
  %v4769 = vpop.permute.xlu0 %4768
  %4770 = vrot.lane.b32.xlu0 %v4716, 8
  %v4771 = vpop.permute.xlu0 %4770
  %4772 = vrot.lane.b32.xlu0 %v4669, 8
  %v4773 = vpop.permute.xlu0 %4772
  %4774 = vrot.lane.b32.xlu0 %v4685, 8
  %v4775 = vpop.permute.xlu0 %4774
  %4776 = vrot.lane.b32.xlu0 %v4701, 8
  %v4777 = vpop.permute.xlu0 %4776
  %4778 = vrot.lane.b32.xlu0 %v4717, 8
  %v4779 = vpop.permute.xlu0 %4778
  %4780 = vrot.lane.b32.xlu0 %v4670, 8
  %v4781 = vpop.permute.xlu0 %4780
  %4782 = vrot.lane.b32.xlu0 %v4686, 8
  %v4783 = vpop.permute.xlu0 %4782
  %4784 = vrot.lane.b32.xlu0 %v4702, 8
  %v4785 = vpop.permute.xlu0 %4784
  %4786 = vrot.lane.b32.xlu0 %v4718, 8
  %v4787 = vpop.permute.xlu0 %4786
  %4788 = vrot.lane.b32.xlu0 %v4671, 8
  %v4789 = vpop.permute.xlu0 %4788
  %4790 = vrot.lane.b32.xlu0 %v4687, 8
  %v4791 = vpop.permute.xlu0 %4790
  %4792 = vrot.lane.b32.xlu0 %v4703, 8
  %v4793 = vpop.permute.xlu0 %4792
  %4794 = vrot.lane.b32.xlu0 %v4719, 8
  %v4795 = vpop.permute.xlu0 %4794
  %4796 = vrot.lane.b32.xlu0 %v4672, 8
  %v4797 = vpop.permute.xlu0 %4796
  %4798 = vrot.lane.b32.xlu0 %v4688, 8
  %v4799 = vpop.permute.xlu0 %4798
  %4800 = vrot.lane.b32.xlu0 %v4704, 8
  %v4801 = vpop.permute.xlu0 %4800
  %4802 = vrot.lane.b32.xlu0 %v4720, 8
  %v4803 = vpop.permute.xlu0 %4802
  %4804 = vrot.lane.b32.xlu0 %v4673, 8
  %v4805 = vpop.permute.xlu0 %4804
  %4806 = vrot.lane.b32.xlu0 %v4689, 8
  %v4807 = vpop.permute.xlu0 %4806
  %4808 = vrot.lane.b32.xlu0 %v4705, 8
  %v4809 = vpop.permute.xlu0 %4808
  %4810 = vrot.lane.b32.xlu0 %v4721, 8
  %v4811 = vpop.permute.xlu0 %4810
  %4812 = vrot.lane.b32.xlu0 %v4674, 8
  %v4813 = vpop.permute.xlu0 %4812
  %4814 = vrot.lane.b32.xlu0 %v4690, 8
  %v4815 = vpop.permute.xlu0 %4814
  %4816 = vrot.lane.b32.xlu0 %v4706, 8
  %v4817 = vpop.permute.xlu0 %4816
  %4818 = vrot.lane.b32.xlu0 %v4722, 8
  %v4819 = vpop.permute.xlu0 %4818
  %4820 = vrot.lane.b32.xlu0 %v4675, 8
  %v4821 = vpop.permute.xlu0 %4820
  %4822 = vrot.lane.b32.xlu0 %v4691, 8
  %v4823 = vpop.permute.xlu0 %4822
  %4824 = vrot.lane.b32.xlu0 %v4707, 8
  %v4825 = vpop.permute.xlu0 %4824
  %4826 = vrot.lane.b32.xlu0 %v4723, 8
  %v4827 = vpop.permute.xlu0 %4826
  %4828 = vrot.lane.b32.xlu0 %v4676, 8
  %v4829 = vpop.permute.xlu0 %4828
  %4830 = vrot.lane.b32.xlu0 %v4692, 8
  %v4831 = vpop.permute.xlu0 %4830
  %4832 = vrot.lane.b32.xlu0 %v4708, 8
  %v4833 = vpop.permute.xlu0 %4832
  %4834 = vrot.lane.b32.xlu0 %v4724, 8
  %v4835 = vpop.permute.xlu0 %4834
  %4836 = vrot.lane.b32.xlu0 %v4677, 8
  %v4837 = vpop.permute.xlu0 %4836
  %4838 = vrot.lane.b32.xlu0 %v4693, 8
  %v4839 = vpop.permute.xlu0 %4838
  %4840 = vrot.lane.b32.xlu0 %v4709, 8
  %v4841 = vpop.permute.xlu0 %4840
  %4842 = vrot.lane.b32.xlu0 %v4725, 8
  %v4843 = vpop.permute.xlu0 %4842
  %4844 = vrot.lane.b32.xlu0 %v4678, 8
  %v4845 = vpop.permute.xlu0 %4844
  %4846 = vrot.lane.b32.xlu0 %v4694, 8
  %v4847 = vpop.permute.xlu0 %4846
  %4848 = vrot.lane.b32.xlu0 %v4710, 8
  %v4849 = vpop.permute.xlu0 %4848
  %4850 = vrot.lane.b32.xlu0 %v4726, 8
  %v4851 = vpop.permute.xlu0 %4850
  %4852 = vrot.lane.b32.xlu0 %v4679, 8
  %v4853 = vpop.permute.xlu0 %4852
  %4854 = vrot.lane.b32.xlu0 %v4695, 8
  %v4855 = vpop.permute.xlu0 %4854
  %4856 = vrot.lane.b32.xlu0 %v4711, 8
  %v4857 = vpop.permute.xlu0 %4856
  %4858 = vrot.lane.b32.xlu0 %v4727, 8
  %v4859 = vpop.permute.xlu0 %4858
  %vm4860 = vcmp.lt.s32.totalorder %v40, 8
  %v4861 = vsel %vm4860, %v4845, %v4853
  %v4862 = vsel %vm4860, %v4847, %v4855
  %v4863 = vsel %vm4860, %v4849, %v4857
  %v4864 = vsel %vm4860, %v4851, %v4859
  %v4865 = vsel %vm4860, %v4837, %v4845
  %v4866 = vsel %vm4860, %v4839, %v4847
  %v4867 = vsel %vm4860, %v4841, %v4849
  %v4868 = vsel %vm4860, %v4843, %v4851
  %v4869 = vsel %vm4860, %v4829, %v4837
  %v4870 = vsel %vm4860, %v4831, %v4839
  %v4871 = vsel %vm4860, %v4833, %v4841
  %v4872 = vsel %vm4860, %v4835, %v4843
  %v4873 = vsel %vm4860, %v4821, %v4829
  %v4874 = vsel %vm4860, %v4823, %v4831
  %v4875 = vsel %vm4860, %v4825, %v4833
  %v4876 = vsel %vm4860, %v4827, %v4835
  %v4877 = vsel %vm4860, %v4813, %v4821
  %v4878 = vsel %vm4860, %v4815, %v4823
  %v4879 = vsel %vm4860, %v4817, %v4825
  %v4880 = vsel %vm4860, %v4819, %v4827
  %v4881 = vsel %vm4860, %v4805, %v4813
  %v4882 = vsel %vm4860, %v4807, %v4815
  %v4883 = vsel %vm4860, %v4809, %v4817
  %v4884 = vsel %vm4860, %v4811, %v4819
  %v4885 = vsel %vm4860, %v4797, %v4805
  %v4886 = vsel %vm4860, %v4799, %v4807
  %v4887 = vsel %vm4860, %v4801, %v4809
  %v4888 = vsel %vm4860, %v4803, %v4811
  %v4889 = vsel %vm4860, %v4789, %v4797
  %v4890 = vsel %vm4860, %v4791, %v4799
  %v4891 = vsel %vm4860, %v4793, %v4801
  %v4892 = vsel %vm4860, %v4795, %v4803
  %v4893 = vsel %vm4860, %v4781, %v4789
  %v4894 = vsel %vm4860, %v4783, %v4791
  %v4895 = vsel %vm4860, %v4785, %v4793
  %v4896 = vsel %vm4860, %v4787, %v4795
  %v4897 = vsel %vm4860, %v4773, %v4781
  %v4898 = vsel %vm4860, %v4775, %v4783
  %v4899 = vsel %vm4860, %v4777, %v4785
  %v4900 = vsel %vm4860, %v4779, %v4787
  %v4901 = vsel %vm4860, %v4765, %v4773
  %v4902 = vsel %vm4860, %v4767, %v4775
  %v4903 = vsel %vm4860, %v4769, %v4777
  %v4904 = vsel %vm4860, %v4771, %v4779
  %v4905 = vsel %vm4860, %v4757, %v4765
  %v4906 = vsel %vm4860, %v4759, %v4767
  %v4907 = vsel %vm4860, %v4761, %v4769
  %v4908 = vsel %vm4860, %v4763, %v4771
  %v4909 = vsel %vm4860, %v4749, %v4757
  %v4910 = vsel %vm4860, %v4751, %v4759
  %v4911 = vsel %vm4860, %v4753, %v4761
  %v4912 = vsel %vm4860, %v4755, %v4763
  %v4913 = vsel %vm4860, %v4741, %v4749
  %v4914 = vsel %vm4860, %v4743, %v4751
  %v4915 = vsel %vm4860, %v4745, %v4753
  %v4916 = vsel %vm4860, %v4747, %v4755
  %v4917 = vsel %vm4860, %v4733, %v4741
  %v4918 = vsel %vm4860, %v4735, %v4743
  %v4919 = vsel %vm4860, %v4737, %v4745
  %v4920 = vsel %vm4860, %v4739, %v4747
  %v4921 = vsel %vm4860, %v4853, %v4733
  %v4922 = vsel %vm4860, %v4855, %v4735
  %v4923 = vsel %vm4860, %v4857, %v4737
  %v4924 = vsel %vm4860, %v4859, %v4739
  %v4925 = vadd.s32 %v232, 4294967288
  %v4926 = vadd.s32 %v233, 4294967288
  %v4927 = vadd.s32 %v234, 4294967288
  %v4928 = vadd.s32 %v235, 4294967288
  %v4929 = vadd.s32 %v236, 4294967288
  %v4930 = vadd.s32 %v237, 4294967288
  %v4931 = vadd.s32 %v238, 4294967288
  %v4932 = vadd.s32 %v239, 4294967288
  %v4933 = vadd.s32 %v240, 4294967288
  %v4934 = vadd.s32 %v241, 4294967288
  %v4935 = vadd.s32 %v242, 4294967288
  %v4936 = vadd.s32 %v243, 4294967288
  %v4937 = vadd.s32 %v244, 4294967288
  %v4938 = vadd.s32 %v245, 4294967288
  %v4939 = vadd.s32 %v246, 4294967288
  %v4940 = vadd.s32 %v247, 4294967288
  %vm4941 = vcmp.ge.s32.totalorder %v4925, 0
  %vm4942 = vcmp.ge.s32.totalorder %v4926, 0
  %vm4943 = vcmp.ge.s32.totalorder %v4927, 0
  %vm4944 = vcmp.ge.s32.totalorder %v4928, 0
  %vm4945 = vcmp.ge.s32.totalorder %v4929, 0
  %vm4946 = vcmp.ge.s32.totalorder %v4930, 0
  %vm4947 = vcmp.ge.s32.totalorder %v4931, 0
  %vm4948 = vcmp.ge.s32.totalorder %v4932, 0
  %vm4949 = vcmp.ge.s32.totalorder %v4933, 0
  %vm4950 = vcmp.ge.s32.totalorder %v4934, 0
  %vm4951 = vcmp.ge.s32.totalorder %v4935, 0
  %vm4952 = vcmp.ge.s32.totalorder %v4936, 0
  %vm4953 = vcmp.ge.s32.totalorder %v4937, 0
  %vm4954 = vcmp.ge.s32.totalorder %v4938, 0
  %vm4955 = vcmp.ge.s32.totalorder %v4939, 0
  %vm4956 = vcmp.ge.s32.totalorder %v4940, 0
  %vm4957 = vcmp.lt.s32.totalorder %v4925, 1024
  %vm4958 = vcmp.lt.s32.totalorder %v4926, 1024
  %vm4959 = vcmp.lt.s32.totalorder %v4927, 1024
  %vm4960 = vcmp.lt.s32.totalorder %v4928, 1024
  %vm4961 = vcmp.lt.s32.totalorder %v4929, 1024
  %vm4962 = vcmp.lt.s32.totalorder %v4930, 1024
  %vm4963 = vcmp.lt.s32.totalorder %v4931, 1024
  %vm4964 = vcmp.lt.s32.totalorder %v4932, 1024
  %vm4965 = vcmp.lt.s32.totalorder %v4933, 1024
  %vm4966 = vcmp.lt.s32.totalorder %v4934, 1024
  %vm4967 = vcmp.lt.s32.totalorder %v4935, 1024
  %vm4968 = vcmp.lt.s32.totalorder %v4936, 1024
  %vm4969 = vcmp.lt.s32.totalorder %v4937, 1024
  %vm4970 = vcmp.lt.s32.totalorder %v4938, 1024
  %vm4971 = vcmp.lt.s32.totalorder %v4939, 1024
  %vm4972 = vcmp.lt.s32.totalorder %v4940, 1024
  %vm4973 = vmand %vm4941, %vm4957
  %vm4974 = vmand %vm4942, %vm4958
  %vm4975 = vmand %vm4943, %vm4959
  %vm4976 = vmand %vm4944, %vm4960
  %vm4977 = vmand %vm4945, %vm4961
  %vm4978 = vmand %vm4946, %vm4962
  %vm4979 = vmand %vm4947, %vm4963
  %vm4980 = vmand %vm4948, %vm4964
  %vm4981 = vmand %vm4949, %vm4965
  %vm4982 = vmand %vm4950, %vm4966
  %vm4983 = vmand %vm4951, %vm4967
  %vm4984 = vmand %vm4952, %vm4968
  %vm4985 = vmand %vm4953, %vm4969
  %vm4986 = vmand %vm4954, %vm4970
  %vm4987 = vmand %vm4955, %vm4971
  %vm4988 = vmand %vm4956, %vm4972
  %v4989 = vsel %vm4973, 1, 0
  %v4990 = vsel %vm4974, 1, 0
  %v4991 = vsel %vm4975, 1, 0
  %v4992 = vsel %vm4976, 1, 0
  %v4993 = vsel %vm4977, 1, 0
  %v4994 = vsel %vm4978, 1, 0
  %v4995 = vsel %vm4979, 1, 0
  %v4996 = vsel %vm4980, 1, 0
  %v4997 = vsel %vm4981, 1, 0
  %v4998 = vsel %vm4982, 1, 0
  %v4999 = vsel %vm4983, 1, 0
  %v5000 = vsel %vm4984, 1, 0
  %v5001 = vsel %vm4985, 1, 0
  %v5002 = vsel %vm4986, 1, 0
  %v5003 = vsel %vm4987, 1, 0
  %v5004 = vsel %vm4988, 1, 0
  %vm5005 = vcmp.eq.s32.totalorder %v4989, 1
  %vm5006 = vcmp.eq.s32.totalorder %v4990, 1
  %vm5007 = vcmp.eq.s32.totalorder %v4991, 1
  %vm5008 = vcmp.eq.s32.totalorder %v4992, 1
  %vm5009 = vcmp.eq.s32.totalorder %v4993, 1
  %vm5010 = vcmp.eq.s32.totalorder %v4994, 1
  %vm5011 = vcmp.eq.s32.totalorder %v4995, 1
  %vm5012 = vcmp.eq.s32.totalorder %v4996, 1
  %vm5013 = vcmp.eq.s32.totalorder %v4997, 1
  %vm5014 = vcmp.eq.s32.totalorder %v4998, 1
  %vm5015 = vcmp.eq.s32.totalorder %v4999, 1
  %vm5016 = vcmp.eq.s32.totalorder %v5000, 1
  %vm5017 = vcmp.eq.s32.totalorder %v5001, 1
  %vm5018 = vcmp.eq.s32.totalorder %v5002, 1
  %vm5019 = vcmp.eq.s32.totalorder %v5003, 1
  %vm5020 = vcmp.eq.s32.totalorder %v5004, 1
  %v5021 = vsel %vm5005, %v4921, 0.0
  %v5022 = vsel %vm5006, %v4917, 0.0
  %v5023 = vsel %vm5007, %v4913, 0.0
  %v5024 = vsel %vm5008, %v4909, 0.0
  %v5025 = vsel %vm5009, %v4905, 0.0
  %v5026 = vsel %vm5010, %v4901, 0.0
  %v5027 = vsel %vm5011, %v4897, 0.0
  %v5028 = vsel %vm5012, %v4893, 0.0
  %v5029 = vsel %vm5013, %v4889, 0.0
  %v5030 = vsel %vm5014, %v4885, 0.0
  %v5031 = vsel %vm5015, %v4881, 0.0
  %v5032 = vsel %vm5016, %v4877, 0.0
  %v5033 = vsel %vm5017, %v4873, 0.0
  %v5034 = vsel %vm5018, %v4869, 0.0
  %v5035 = vsel %vm5019, %v4865, 0.0
  %v5036 = vsel %vm5020, %v4861, 0.0
  %v5037 = vsel %vm5005, %v4922, 0.0
  %v5038 = vsel %vm5006, %v4918, 0.0
  %v5039 = vsel %vm5007, %v4914, 0.0
  %v5040 = vsel %vm5008, %v4910, 0.0
  %v5041 = vsel %vm5009, %v4906, 0.0
  %v5042 = vsel %vm5010, %v4902, 0.0
  %v5043 = vsel %vm5011, %v4898, 0.0
  %v5044 = vsel %vm5012, %v4894, 0.0
  %v5045 = vsel %vm5013, %v4890, 0.0
  %v5046 = vsel %vm5014, %v4886, 0.0
  %v5047 = vsel %vm5015, %v4882, 0.0
  %v5048 = vsel %vm5016, %v4878, 0.0
  %v5049 = vsel %vm5017, %v4874, 0.0
  %v5050 = vsel %vm5018, %v4870, 0.0
  %v5051 = vsel %vm5019, %v4866, 0.0
  %v5052 = vsel %vm5020, %v4862, 0.0
  %v5053 = vsel %vm5005, %v4923, 0.0
  %v5054 = vsel %vm5006, %v4919, 0.0
  %v5055 = vsel %vm5007, %v4915, 0.0
  %v5056 = vsel %vm5008, %v4911, 0.0
  %v5057 = vsel %vm5009, %v4907, 0.0
  %v5058 = vsel %vm5010, %v4903, 0.0
  %v5059 = vsel %vm5011, %v4899, 0.0
  %v5060 = vsel %vm5012, %v4895, 0.0
  %v5061 = vsel %vm5013, %v4891, 0.0
  %v5062 = vsel %vm5014, %v4887, 0.0
  %v5063 = vsel %vm5015, %v4883, 0.0
  %v5064 = vsel %vm5016, %v4879, 0.0
  %v5065 = vsel %vm5017, %v4875, 0.0
  %v5066 = vsel %vm5018, %v4871, 0.0
  %v5067 = vsel %vm5019, %v4867, 0.0
  %v5068 = vsel %vm5020, %v4863, 0.0
  %v5069 = vsel %vm5005, %v4924, 0.0
  %v5070 = vsel %vm5006, %v4920, 0.0
  %v5071 = vsel %vm5007, %v4916, 0.0
  %v5072 = vsel %vm5008, %v4912, 0.0
  %v5073 = vsel %vm5009, %v4908, 0.0
  %v5074 = vsel %vm5010, %v4904, 0.0
  %v5075 = vsel %vm5011, %v4900, 0.0
  %v5076 = vsel %vm5012, %v4896, 0.0
  %v5077 = vsel %vm5013, %v4892, 0.0
  %v5078 = vsel %vm5014, %v4888, 0.0
  %v5079 = vsel %vm5015, %v4884, 0.0
  %v5080 = vsel %vm5016, %v4880, 0.0
  %v5081 = vsel %vm5017, %v4876, 0.0
  %v5082 = vsel %vm5018, %v4872, 0.0
  %v5083 = vsel %vm5019, %v4868, 0.0
  %v5084 = vsel %vm5020, %v4864, 0.0
  %5085 = vrot.lane.b32.xlu0 %v4664, 4
  %v5086 = vpop.permute.xlu0 %5085
  %5087 = vrot.lane.b32.xlu0 %v4680, 4
  %v5088 = vpop.permute.xlu0 %5087
  %5089 = vrot.lane.b32.xlu0 %v4696, 4
  %v5090 = vpop.permute.xlu0 %5089
  %5091 = vrot.lane.b32.xlu0 %v4712, 4
  %v5092 = vpop.permute.xlu0 %5091
  %5093 = vrot.lane.b32.xlu0 %v4665, 4
  %v5094 = vpop.permute.xlu0 %5093
  %5095 = vrot.lane.b32.xlu0 %v4681, 4
  %v5096 = vpop.permute.xlu0 %5095
  %5097 = vrot.lane.b32.xlu0 %v4697, 4
  %v5098 = vpop.permute.xlu0 %5097
  %5099 = vrot.lane.b32.xlu0 %v4713, 4
  %v5100 = vpop.permute.xlu0 %5099
  %5101 = vrot.lane.b32.xlu0 %v4666, 4
  %v5102 = vpop.permute.xlu0 %5101
  %5103 = vrot.lane.b32.xlu0 %v4682, 4
  %v5104 = vpop.permute.xlu0 %5103
  %5105 = vrot.lane.b32.xlu0 %v4698, 4
  %v5106 = vpop.permute.xlu0 %5105
  %5107 = vrot.lane.b32.xlu0 %v4714, 4
  %v5108 = vpop.permute.xlu0 %5107
  %5109 = vrot.lane.b32.xlu0 %v4667, 4
  %v5110 = vpop.permute.xlu0 %5109
  %5111 = vrot.lane.b32.xlu0 %v4683, 4
  %v5112 = vpop.permute.xlu0 %5111
  %5113 = vrot.lane.b32.xlu0 %v4699, 4
  %v5114 = vpop.permute.xlu0 %5113
  %5115 = vrot.lane.b32.xlu0 %v4715, 4
  %v5116 = vpop.permute.xlu0 %5115
  %5117 = vrot.lane.b32.xlu0 %v4668, 4
  %v5118 = vpop.permute.xlu0 %5117
  %5119 = vrot.lane.b32.xlu0 %v4684, 4
  %v5120 = vpop.permute.xlu0 %5119
  %5121 = vrot.lane.b32.xlu0 %v4700, 4
  %v5122 = vpop.permute.xlu0 %5121
  %5123 = vrot.lane.b32.xlu0 %v4716, 4
  %v5124 = vpop.permute.xlu0 %5123
  %5125 = vrot.lane.b32.xlu0 %v4669, 4
  %v5126 = vpop.permute.xlu0 %5125
  %5127 = vrot.lane.b32.xlu0 %v4685, 4
  %v5128 = vpop.permute.xlu0 %5127
  %5129 = vrot.lane.b32.xlu0 %v4701, 4
  %v5130 = vpop.permute.xlu0 %5129
  %5131 = vrot.lane.b32.xlu0 %v4717, 4
  %v5132 = vpop.permute.xlu0 %5131
  %5133 = vrot.lane.b32.xlu0 %v4670, 4
  %v5134 = vpop.permute.xlu0 %5133
  %5135 = vrot.lane.b32.xlu0 %v4686, 4
  %v5136 = vpop.permute.xlu0 %5135
  %5137 = vrot.lane.b32.xlu0 %v4702, 4
  %v5138 = vpop.permute.xlu0 %5137
  %5139 = vrot.lane.b32.xlu0 %v4718, 4
  %v5140 = vpop.permute.xlu0 %5139
  %5141 = vrot.lane.b32.xlu0 %v4671, 4
  %v5142 = vpop.permute.xlu0 %5141
  %5143 = vrot.lane.b32.xlu0 %v4687, 4
  %v5144 = vpop.permute.xlu0 %5143
  %5145 = vrot.lane.b32.xlu0 %v4703, 4
  %v5146 = vpop.permute.xlu0 %5145
  %5147 = vrot.lane.b32.xlu0 %v4719, 4
  %v5148 = vpop.permute.xlu0 %5147
  %5149 = vrot.lane.b32.xlu0 %v4672, 4
  %v5150 = vpop.permute.xlu0 %5149
  %5151 = vrot.lane.b32.xlu0 %v4688, 4
  %v5152 = vpop.permute.xlu0 %5151
  %5153 = vrot.lane.b32.xlu0 %v4704, 4
  %v5154 = vpop.permute.xlu0 %5153
  %5155 = vrot.lane.b32.xlu0 %v4720, 4
  %v5156 = vpop.permute.xlu0 %5155
  %5157 = vrot.lane.b32.xlu0 %v4673, 4
  %v5158 = vpop.permute.xlu0 %5157
  %5159 = vrot.lane.b32.xlu0 %v4689, 4
  %v5160 = vpop.permute.xlu0 %5159
  %5161 = vrot.lane.b32.xlu0 %v4705, 4
  %v5162 = vpop.permute.xlu0 %5161
  %5163 = vrot.lane.b32.xlu0 %v4721, 4
  %v5164 = vpop.permute.xlu0 %5163
  %5165 = vrot.lane.b32.xlu0 %v4674, 4
  %v5166 = vpop.permute.xlu0 %5165
  %5167 = vrot.lane.b32.xlu0 %v4690, 4
  %v5168 = vpop.permute.xlu0 %5167
  %5169 = vrot.lane.b32.xlu0 %v4706, 4
  %v5170 = vpop.permute.xlu0 %5169
  %5171 = vrot.lane.b32.xlu0 %v4722, 4
  %v5172 = vpop.permute.xlu0 %5171
  %5173 = vrot.lane.b32.xlu0 %v4675, 4
  %v5174 = vpop.permute.xlu0 %5173
  %5175 = vrot.lane.b32.xlu0 %v4691, 4
  %v5176 = vpop.permute.xlu0 %5175
  %5177 = vrot.lane.b32.xlu0 %v4707, 4
  %v5178 = vpop.permute.xlu0 %5177
  %5179 = vrot.lane.b32.xlu0 %v4723, 4
  %v5180 = vpop.permute.xlu0 %5179
  %5181 = vrot.lane.b32.xlu0 %v4676, 4
  %v5182 = vpop.permute.xlu0 %5181
  %5183 = vrot.lane.b32.xlu0 %v4692, 4
  %v5184 = vpop.permute.xlu0 %5183
  %5185 = vrot.lane.b32.xlu0 %v4708, 4
  %v5186 = vpop.permute.xlu0 %5185
  %5187 = vrot.lane.b32.xlu0 %v4724, 4
  %v5188 = vpop.permute.xlu0 %5187
  %5189 = vrot.lane.b32.xlu0 %v4677, 4
  %v5190 = vpop.permute.xlu0 %5189
  %5191 = vrot.lane.b32.xlu0 %v4693, 4
  %v5192 = vpop.permute.xlu0 %5191
  %5193 = vrot.lane.b32.xlu0 %v4709, 4
  %v5194 = vpop.permute.xlu0 %5193
  %5195 = vrot.lane.b32.xlu0 %v4725, 4
  %v5196 = vpop.permute.xlu0 %5195
  %5197 = vrot.lane.b32.xlu0 %v4678, 4
  %v5198 = vpop.permute.xlu0 %5197
  %5199 = vrot.lane.b32.xlu0 %v4694, 4
  %v5200 = vpop.permute.xlu0 %5199
  %5201 = vrot.lane.b32.xlu0 %v4710, 4
  %v5202 = vpop.permute.xlu0 %5201
  %5203 = vrot.lane.b32.xlu0 %v4726, 4
  %v5204 = vpop.permute.xlu0 %5203
  %5205 = vrot.lane.b32.xlu0 %v4679, 4
  %v5206 = vpop.permute.xlu0 %5205
  %5207 = vrot.lane.b32.xlu0 %v4695, 4
  %v5208 = vpop.permute.xlu0 %5207
  %5209 = vrot.lane.b32.xlu0 %v4711, 4
  %v5210 = vpop.permute.xlu0 %5209
  %5211 = vrot.lane.b32.xlu0 %v4727, 4
  %v5212 = vpop.permute.xlu0 %5211
  %v5213 = vsel %vm2573, %v5198, %v5206
  %v5214 = vsel %vm2573, %v5200, %v5208
  %v5215 = vsel %vm2573, %v5202, %v5210
  %v5216 = vsel %vm2573, %v5204, %v5212
  %v5217 = vsel %vm2573, %v5190, %v5198
  %v5218 = vsel %vm2573, %v5192, %v5200
  %v5219 = vsel %vm2573, %v5194, %v5202
  %v5220 = vsel %vm2573, %v5196, %v5204
  %v5221 = vsel %vm2573, %v5182, %v5190
  %v5222 = vsel %vm2573, %v5184, %v5192
  %v5223 = vsel %vm2573, %v5186, %v5194
  %v5224 = vsel %vm2573, %v5188, %v5196
  %v5225 = vsel %vm2573, %v5174, %v5182
  %v5226 = vsel %vm2573, %v5176, %v5184
  %v5227 = vsel %vm2573, %v5178, %v5186
  %v5228 = vsel %vm2573, %v5180, %v5188
  %v5229 = vsel %vm2573, %v5166, %v5174
  %v5230 = vsel %vm2573, %v5168, %v5176
  %v5231 = vsel %vm2573, %v5170, %v5178
  %v5232 = vsel %vm2573, %v5172, %v5180
  %v5233 = vsel %vm2573, %v5158, %v5166
  %v5234 = vsel %vm2573, %v5160, %v5168
  %v5235 = vsel %vm2573, %v5162, %v5170
  %v5236 = vsel %vm2573, %v5164, %v5172
  %v5237 = vsel %vm2573, %v5150, %v5158
  %v5238 = vsel %vm2573, %v5152, %v5160
  %v5239 = vsel %vm2573, %v5154, %v5162
  %v5240 = vsel %vm2573, %v5156, %v5164
  %v5241 = vsel %vm2573, %v5142, %v5150
  %v5242 = vsel %vm2573, %v5144, %v5152
  %v5243 = vsel %vm2573, %v5146, %v5154
  %v5244 = vsel %vm2573, %v5148, %v5156
  %v5245 = vsel %vm2573, %v5134, %v5142
  %v5246 = vsel %vm2573, %v5136, %v5144
  %v5247 = vsel %vm2573, %v5138, %v5146
  %v5248 = vsel %vm2573, %v5140, %v5148
  %v5249 = vsel %vm2573, %v5126, %v5134
  %v5250 = vsel %vm2573, %v5128, %v5136
  %v5251 = vsel %vm2573, %v5130, %v5138
  %v5252 = vsel %vm2573, %v5132, %v5140
  %v5253 = vsel %vm2573, %v5118, %v5126
  %v5254 = vsel %vm2573, %v5120, %v5128
  %v5255 = vsel %vm2573, %v5122, %v5130
  %v5256 = vsel %vm2573, %v5124, %v5132
  %v5257 = vsel %vm2573, %v5110, %v5118
  %v5258 = vsel %vm2573, %v5112, %v5120
  %v5259 = vsel %vm2573, %v5114, %v5122
  %v5260 = vsel %vm2573, %v5116, %v5124
  %v5261 = vsel %vm2573, %v5102, %v5110
  %v5262 = vsel %vm2573, %v5104, %v5112
  %v5263 = vsel %vm2573, %v5106, %v5114
  %v5264 = vsel %vm2573, %v5108, %v5116
  %v5265 = vsel %vm2573, %v5094, %v5102
  %v5266 = vsel %vm2573, %v5096, %v5104
  %v5267 = vsel %vm2573, %v5098, %v5106
  %v5268 = vsel %vm2573, %v5100, %v5108
  %v5269 = vsel %vm2573, %v5086, %v5094
  %v5270 = vsel %vm2573, %v5088, %v5096
  %v5271 = vsel %vm2573, %v5090, %v5098
  %v5272 = vsel %vm2573, %v5092, %v5100
  %v5273 = vsel %vm2573, %v5206, %v5086
  %v5274 = vsel %vm2573, %v5208, %v5088
  %v5275 = vsel %vm2573, %v5210, %v5090
  %v5276 = vsel %vm2573, %v5212, %v5092
  %v5277 = vsel %vm2686, %v5273, 0.0
  %v5278 = vsel %vm2687, %v5269, 0.0
  %v5279 = vsel %vm2688, %v5265, 0.0
  %v5280 = vsel %vm2689, %v5261, 0.0
  %v5281 = vsel %vm2690, %v5257, 0.0
  %v5282 = vsel %vm2691, %v5253, 0.0
  %v5283 = vsel %vm2692, %v5249, 0.0
  %v5284 = vsel %vm2693, %v5245, 0.0
  %v5285 = vsel %vm2694, %v5241, 0.0
  %v5286 = vsel %vm2695, %v5237, 0.0
  %v5287 = vsel %vm2696, %v5233, 0.0
  %v5288 = vsel %vm2697, %v5229, 0.0
  %v5289 = vsel %vm2698, %v5225, 0.0
  %v5290 = vsel %vm2699, %v5221, 0.0
  %v5291 = vsel %vm2700, %v5217, 0.0
  %v5292 = vsel %vm2701, %v5213, 0.0
  %v5293 = vsel %vm2686, %v5274, 0.0
  %v5294 = vsel %vm2687, %v5270, 0.0
  %v5295 = vsel %vm2688, %v5266, 0.0
  %v5296 = vsel %vm2689, %v5262, 0.0
  %v5297 = vsel %vm2690, %v5258, 0.0
  %v5298 = vsel %vm2691, %v5254, 0.0
  %v5299 = vsel %vm2692, %v5250, 0.0
  %v5300 = vsel %vm2693, %v5246, 0.0
  %v5301 = vsel %vm2694, %v5242, 0.0
  %v5302 = vsel %vm2695, %v5238, 0.0
  %v5303 = vsel %vm2696, %v5234, 0.0
  %v5304 = vsel %vm2697, %v5230, 0.0
  %v5305 = vsel %vm2698, %v5226, 0.0
  %v5306 = vsel %vm2699, %v5222, 0.0
  %v5307 = vsel %vm2700, %v5218, 0.0
  %v5308 = vsel %vm2701, %v5214, 0.0
  %v5309 = vsel %vm2686, %v5275, 0.0
  %v5310 = vsel %vm2687, %v5271, 0.0
  %v5311 = vsel %vm2688, %v5267, 0.0
  %v5312 = vsel %vm2689, %v5263, 0.0
  %v5313 = vsel %vm2690, %v5259, 0.0
  %v5314 = vsel %vm2691, %v5255, 0.0
  %v5315 = vsel %vm2692, %v5251, 0.0
  %v5316 = vsel %vm2693, %v5247, 0.0
  %v5317 = vsel %vm2694, %v5243, 0.0
  %v5318 = vsel %vm2695, %v5239, 0.0
  %v5319 = vsel %vm2696, %v5235, 0.0
  %v5320 = vsel %vm2697, %v5231, 0.0
  %v5321 = vsel %vm2698, %v5227, 0.0
  %v5322 = vsel %vm2699, %v5223, 0.0
  %v5323 = vsel %vm2700, %v5219, 0.0
  %v5324 = vsel %vm2701, %v5215, 0.0
  %v5325 = vsel %vm2686, %v5276, 0.0
  %v5326 = vsel %vm2687, %v5272, 0.0
  %v5327 = vsel %vm2688, %v5268, 0.0
  %v5328 = vsel %vm2689, %v5264, 0.0
  %v5329 = vsel %vm2690, %v5260, 0.0
  %v5330 = vsel %vm2691, %v5256, 0.0
  %v5331 = vsel %vm2692, %v5252, 0.0
  %v5332 = vsel %vm2693, %v5248, 0.0
  %v5333 = vsel %vm2694, %v5244, 0.0
  %v5334 = vsel %vm2695, %v5240, 0.0
  %v5335 = vsel %vm2696, %v5236, 0.0
  %v5336 = vsel %vm2697, %v5232, 0.0
  %v5337 = vsel %vm2698, %v5228, 0.0
  %v5338 = vsel %vm2699, %v5224, 0.0
  %v5339 = vsel %vm2700, %v5220, 0.0
  %v5340 = vsel %vm2701, %v5216, 0.0
  %v5341 = vsel %vm2910, %v4664, 0.0
  %v5342 = vsel %vm2911, %v4665, 0.0
  %v5343 = vsel %vm2912, %v4666, 0.0
  %v5344 = vsel %vm2913, %v4667, 0.0
  %v5345 = vsel %vm2914, %v4668, 0.0
  %v5346 = vsel %vm2915, %v4669, 0.0
  %v5347 = vsel %vm2916, %v4670, 0.0
  %v5348 = vsel %vm2917, %v4671, 0.0
  %v5349 = vsel %vm2918, %v4672, 0.0
  %v5350 = vsel %vm2919, %v4673, 0.0
  %v5351 = vsel %vm2920, %v4674, 0.0
  %v5352 = vsel %vm2921, %v4675, 0.0
  %v5353 = vsel %vm2922, %v4676, 0.0
  %v5354 = vsel %vm2923, %v4677, 0.0
  %v5355 = vsel %vm2924, %v4678, 0.0
  %v5356 = vsel %vm2925, %v4679, 0.0
  %v5357 = vsel %vm2910, %v4680, 0.0
  %v5358 = vsel %vm2911, %v4681, 0.0
  %v5359 = vsel %vm2912, %v4682, 0.0
  %v5360 = vsel %vm2913, %v4683, 0.0
  %v5361 = vsel %vm2914, %v4684, 0.0
  %v5362 = vsel %vm2915, %v4685, 0.0
  %v5363 = vsel %vm2916, %v4686, 0.0
  %v5364 = vsel %vm2917, %v4687, 0.0
  %v5365 = vsel %vm2918, %v4688, 0.0
  %v5366 = vsel %vm2919, %v4689, 0.0
  %v5367 = vsel %vm2920, %v4690, 0.0
  %v5368 = vsel %vm2921, %v4691, 0.0
  %v5369 = vsel %vm2922, %v4692, 0.0
  %v5370 = vsel %vm2923, %v4693, 0.0
  %v5371 = vsel %vm2924, %v4694, 0.0
  %v5372 = vsel %vm2925, %v4695, 0.0
  %v5373 = vsel %vm2910, %v4696, 0.0
  %v5374 = vsel %vm2911, %v4697, 0.0
  %v5375 = vsel %vm2912, %v4698, 0.0
  %v5376 = vsel %vm2913, %v4699, 0.0
  %v5377 = vsel %vm2914, %v4700, 0.0
  %v5378 = vsel %vm2915, %v4701, 0.0
  %v5379 = vsel %vm2916, %v4702, 0.0
  %v5380 = vsel %vm2917, %v4703, 0.0
  %v5381 = vsel %vm2918, %v4704, 0.0
  %v5382 = vsel %vm2919, %v4705, 0.0
  %v5383 = vsel %vm2920, %v4706, 0.0
  %v5384 = vsel %vm2921, %v4707, 0.0
  %v5385 = vsel %vm2922, %v4708, 0.0
  %v5386 = vsel %vm2923, %v4709, 0.0
  %v5387 = vsel %vm2924, %v4710, 0.0
  %v5388 = vsel %vm2925, %v4711, 0.0
  %v5389 = vsel %vm2910, %v4712, 0.0
  %v5390 = vsel %vm2911, %v4713, 0.0
  %v5391 = vsel %vm2912, %v4714, 0.0
  %v5392 = vsel %vm2913, %v4715, 0.0
  %v5393 = vsel %vm2914, %v4716, 0.0
  %v5394 = vsel %vm2915, %v4717, 0.0
  %v5395 = vsel %vm2916, %v4718, 0.0
  %v5396 = vsel %vm2917, %v4719, 0.0
  %v5397 = vsel %vm2918, %v4720, 0.0
  %v5398 = vsel %vm2919, %v4721, 0.0
  %v5399 = vsel %vm2920, %v4722, 0.0
  %v5400 = vsel %vm2921, %v4723, 0.0
  %v5401 = vsel %vm2922, %v4724, 0.0
  %v5402 = vsel %vm2923, %v4725, 0.0
  %v5403 = vsel %vm2924, %v4726, 0.0
  %v5404 = vsel %vm2925, %v4727, 0.0
  %5405 = vrot.lane.b32.xlu0 %v4664, 124
  %v5406 = vpop.permute.xlu0 %5405
  %5407 = vrot.lane.b32.xlu0 %v4680, 124
  %v5408 = vpop.permute.xlu0 %5407
  %5409 = vrot.lane.b32.xlu0 %v4696, 124
  %v5410 = vpop.permute.xlu0 %5409
  %5411 = vrot.lane.b32.xlu0 %v4712, 124
  %v5412 = vpop.permute.xlu0 %5411
  %5413 = vrot.lane.b32.xlu0 %v4665, 124
  %v5414 = vpop.permute.xlu0 %5413
  %5415 = vrot.lane.b32.xlu0 %v4681, 124
  %v5416 = vpop.permute.xlu0 %5415
  %5417 = vrot.lane.b32.xlu0 %v4697, 124
  %v5418 = vpop.permute.xlu0 %5417
  %5419 = vrot.lane.b32.xlu0 %v4713, 124
  %v5420 = vpop.permute.xlu0 %5419
  %5421 = vrot.lane.b32.xlu0 %v4666, 124
  %v5422 = vpop.permute.xlu0 %5421
  %5423 = vrot.lane.b32.xlu0 %v4682, 124
  %v5424 = vpop.permute.xlu0 %5423
  %5425 = vrot.lane.b32.xlu0 %v4698, 124
  %v5426 = vpop.permute.xlu0 %5425
  %5427 = vrot.lane.b32.xlu0 %v4714, 124
  %v5428 = vpop.permute.xlu0 %5427
  %5429 = vrot.lane.b32.xlu0 %v4667, 124
  %v5430 = vpop.permute.xlu0 %5429
  %5431 = vrot.lane.b32.xlu0 %v4683, 124
  %v5432 = vpop.permute.xlu0 %5431
  %5433 = vrot.lane.b32.xlu0 %v4699, 124
  %v5434 = vpop.permute.xlu0 %5433
  %5435 = vrot.lane.b32.xlu0 %v4715, 124
  %v5436 = vpop.permute.xlu0 %5435
  %5437 = vrot.lane.b32.xlu0 %v4668, 124
  %v5438 = vpop.permute.xlu0 %5437
  %5439 = vrot.lane.b32.xlu0 %v4684, 124
  %v5440 = vpop.permute.xlu0 %5439
  %5441 = vrot.lane.b32.xlu0 %v4700, 124
  %v5442 = vpop.permute.xlu0 %5441
  %5443 = vrot.lane.b32.xlu0 %v4716, 124
  %v5444 = vpop.permute.xlu0 %5443
  %5445 = vrot.lane.b32.xlu0 %v4669, 124
  %v5446 = vpop.permute.xlu0 %5445
  %5447 = vrot.lane.b32.xlu0 %v4685, 124
  %v5448 = vpop.permute.xlu0 %5447
  %5449 = vrot.lane.b32.xlu0 %v4701, 124
  %v5450 = vpop.permute.xlu0 %5449
  %5451 = vrot.lane.b32.xlu0 %v4717, 124
  %v5452 = vpop.permute.xlu0 %5451
  %5453 = vrot.lane.b32.xlu0 %v4670, 124
  %v5454 = vpop.permute.xlu0 %5453
  %5455 = vrot.lane.b32.xlu0 %v4686, 124
  %v5456 = vpop.permute.xlu0 %5455
  %5457 = vrot.lane.b32.xlu0 %v4702, 124
  %v5458 = vpop.permute.xlu0 %5457
  %5459 = vrot.lane.b32.xlu0 %v4718, 124
  %v5460 = vpop.permute.xlu0 %5459
  %5461 = vrot.lane.b32.xlu0 %v4671, 124
  %v5462 = vpop.permute.xlu0 %5461
  %5463 = vrot.lane.b32.xlu0 %v4687, 124
  %v5464 = vpop.permute.xlu0 %5463
  %5465 = vrot.lane.b32.xlu0 %v4703, 124
  %v5466 = vpop.permute.xlu0 %5465
  %5467 = vrot.lane.b32.xlu0 %v4719, 124
  %v5468 = vpop.permute.xlu0 %5467
  %5469 = vrot.lane.b32.xlu0 %v4672, 124
  %v5470 = vpop.permute.xlu0 %5469
  %5471 = vrot.lane.b32.xlu0 %v4688, 124
  %v5472 = vpop.permute.xlu0 %5471
  %5473 = vrot.lane.b32.xlu0 %v4704, 124
  %v5474 = vpop.permute.xlu0 %5473
  %5475 = vrot.lane.b32.xlu0 %v4720, 124
  %v5476 = vpop.permute.xlu0 %5475
  %5477 = vrot.lane.b32.xlu0 %v4673, 124
  %v5478 = vpop.permute.xlu0 %5477
  %5479 = vrot.lane.b32.xlu0 %v4689, 124
  %v5480 = vpop.permute.xlu0 %5479
  %5481 = vrot.lane.b32.xlu0 %v4705, 124
  %v5482 = vpop.permute.xlu0 %5481
  %5483 = vrot.lane.b32.xlu0 %v4721, 124
  %v5484 = vpop.permute.xlu0 %5483
  %5485 = vrot.lane.b32.xlu0 %v4674, 124
  %v5486 = vpop.permute.xlu0 %5485
  %5487 = vrot.lane.b32.xlu0 %v4690, 124
  %v5488 = vpop.permute.xlu0 %5487
  %5489 = vrot.lane.b32.xlu0 %v4706, 124
  %v5490 = vpop.permute.xlu0 %5489
  %5491 = vrot.lane.b32.xlu0 %v4722, 124
  %v5492 = vpop.permute.xlu0 %5491
  %5493 = vrot.lane.b32.xlu0 %v4675, 124
  %v5494 = vpop.permute.xlu0 %5493
  %5495 = vrot.lane.b32.xlu0 %v4691, 124
  %v5496 = vpop.permute.xlu0 %5495
  %5497 = vrot.lane.b32.xlu0 %v4707, 124
  %v5498 = vpop.permute.xlu0 %5497
  %5499 = vrot.lane.b32.xlu0 %v4723, 124
  %v5500 = vpop.permute.xlu0 %5499
  %5501 = vrot.lane.b32.xlu0 %v4676, 124
  %v5502 = vpop.permute.xlu0 %5501
  %5503 = vrot.lane.b32.xlu0 %v4692, 124
  %v5504 = vpop.permute.xlu0 %5503
  %5505 = vrot.lane.b32.xlu0 %v4708, 124
  %v5506 = vpop.permute.xlu0 %5505
  %5507 = vrot.lane.b32.xlu0 %v4724, 124
  %v5508 = vpop.permute.xlu0 %5507
  %5509 = vrot.lane.b32.xlu0 %v4677, 124
  %v5510 = vpop.permute.xlu0 %5509
  %5511 = vrot.lane.b32.xlu0 %v4693, 124
  %v5512 = vpop.permute.xlu0 %5511
  %5513 = vrot.lane.b32.xlu0 %v4709, 124
  %v5514 = vpop.permute.xlu0 %5513
  %5515 = vrot.lane.b32.xlu0 %v4725, 124
  %v5516 = vpop.permute.xlu0 %5515
  %5517 = vrot.lane.b32.xlu0 %v4678, 124
  %v5518 = vpop.permute.xlu0 %5517
  %5519 = vrot.lane.b32.xlu0 %v4694, 124
  %v5520 = vpop.permute.xlu0 %5519
  %5521 = vrot.lane.b32.xlu0 %v4710, 124
  %v5522 = vpop.permute.xlu0 %5521
  %5523 = vrot.lane.b32.xlu0 %v4726, 124
  %v5524 = vpop.permute.xlu0 %5523
  %5525 = vrot.lane.b32.xlu0 %v4679, 124
  %v5526 = vpop.permute.xlu0 %5525
  %5527 = vrot.lane.b32.xlu0 %v4695, 124
  %v5528 = vpop.permute.xlu0 %5527
  %5529 = vrot.lane.b32.xlu0 %v4711, 124
  %v5530 = vpop.permute.xlu0 %5529
  %5531 = vrot.lane.b32.xlu0 %v4727, 124
  %v5532 = vpop.permute.xlu0 %5531
  %v5533 = vsel %vm3182, %v5518, %v5526
  %v5534 = vsel %vm3182, %v5520, %v5528
  %v5535 = vsel %vm3182, %v5522, %v5530
  %v5536 = vsel %vm3182, %v5524, %v5532
  %v5537 = vsel %vm3182, %v5510, %v5518
  %v5538 = vsel %vm3182, %v5512, %v5520
  %v5539 = vsel %vm3182, %v5514, %v5522
  %v5540 = vsel %vm3182, %v5516, %v5524
  %v5541 = vsel %vm3182, %v5502, %v5510
  %v5542 = vsel %vm3182, %v5504, %v5512
  %v5543 = vsel %vm3182, %v5506, %v5514
  %v5544 = vsel %vm3182, %v5508, %v5516
  %v5545 = vsel %vm3182, %v5494, %v5502
  %v5546 = vsel %vm3182, %v5496, %v5504
  %v5547 = vsel %vm3182, %v5498, %v5506
  %v5548 = vsel %vm3182, %v5500, %v5508
  %v5549 = vsel %vm3182, %v5486, %v5494
  %v5550 = vsel %vm3182, %v5488, %v5496
  %v5551 = vsel %vm3182, %v5490, %v5498
  %v5552 = vsel %vm3182, %v5492, %v5500
  %v5553 = vsel %vm3182, %v5478, %v5486
  %v5554 = vsel %vm3182, %v5480, %v5488
  %v5555 = vsel %vm3182, %v5482, %v5490
  %v5556 = vsel %vm3182, %v5484, %v5492
  %v5557 = vsel %vm3182, %v5470, %v5478
  %v5558 = vsel %vm3182, %v5472, %v5480
  %v5559 = vsel %vm3182, %v5474, %v5482
  %v5560 = vsel %vm3182, %v5476, %v5484
  %v5561 = vsel %vm3182, %v5462, %v5470
  %v5562 = vsel %vm3182, %v5464, %v5472
  %v5563 = vsel %vm3182, %v5466, %v5474
  %v5564 = vsel %vm3182, %v5468, %v5476
  %v5565 = vsel %vm3182, %v5454, %v5462
  %v5566 = vsel %vm3182, %v5456, %v5464
  %v5567 = vsel %vm3182, %v5458, %v5466
  %v5568 = vsel %vm3182, %v5460, %v5468
  %v5569 = vsel %vm3182, %v5446, %v5454
  %v5570 = vsel %vm3182, %v5448, %v5456
  %v5571 = vsel %vm3182, %v5450, %v5458
  %v5572 = vsel %vm3182, %v5452, %v5460
  %v5573 = vsel %vm3182, %v5438, %v5446
  %v5574 = vsel %vm3182, %v5440, %v5448
  %v5575 = vsel %vm3182, %v5442, %v5450
  %v5576 = vsel %vm3182, %v5444, %v5452
  %v5577 = vsel %vm3182, %v5430, %v5438
  %v5578 = vsel %vm3182, %v5432, %v5440
  %v5579 = vsel %vm3182, %v5434, %v5442
  %v5580 = vsel %vm3182, %v5436, %v5444
  %v5581 = vsel %vm3182, %v5422, %v5430
  %v5582 = vsel %vm3182, %v5424, %v5432
  %v5583 = vsel %vm3182, %v5426, %v5434
  %v5584 = vsel %vm3182, %v5428, %v5436
  %v5585 = vsel %vm3182, %v5414, %v5422
  %v5586 = vsel %vm3182, %v5416, %v5424
  %v5587 = vsel %vm3182, %v5418, %v5426
  %v5588 = vsel %vm3182, %v5420, %v5428
  %v5589 = vsel %vm3182, %v5406, %v5414
  %v5590 = vsel %vm3182, %v5408, %v5416
  %v5591 = vsel %vm3182, %v5410, %v5418
  %v5592 = vsel %vm3182, %v5412, %v5420
  %v5593 = vsel %vm3182, %v5526, %v5406
  %v5594 = vsel %vm3182, %v5528, %v5408
  %v5595 = vsel %vm3182, %v5530, %v5410
  %v5596 = vsel %vm3182, %v5532, %v5412
  %v5597 = vsel %vm3295, %v5589, 0.0
  %v5598 = vsel %vm3296, %v5585, 0.0
  %v5599 = vsel %vm3297, %v5581, 0.0
  %v5600 = vsel %vm3298, %v5577, 0.0
  %v5601 = vsel %vm3299, %v5573, 0.0
  %v5602 = vsel %vm3300, %v5569, 0.0
  %v5603 = vsel %vm3301, %v5565, 0.0
  %v5604 = vsel %vm3302, %v5561, 0.0
  %v5605 = vsel %vm3303, %v5557, 0.0
  %v5606 = vsel %vm3304, %v5553, 0.0
  %v5607 = vsel %vm3305, %v5549, 0.0
  %v5608 = vsel %vm3306, %v5545, 0.0
  %v5609 = vsel %vm3307, %v5541, 0.0
  %v5610 = vsel %vm3308, %v5537, 0.0
  %v5611 = vsel %vm3309, %v5533, 0.0
  %v5612 = vsel %vm3310, %v5593, 0.0
  %v5613 = vsel %vm3295, %v5590, 0.0
  %v5614 = vsel %vm3296, %v5586, 0.0
  %v5615 = vsel %vm3297, %v5582, 0.0
  %v5616 = vsel %vm3298, %v5578, 0.0
  %v5617 = vsel %vm3299, %v5574, 0.0
  %v5618 = vsel %vm3300, %v5570, 0.0
  %v5619 = vsel %vm3301, %v5566, 0.0
  %v5620 = vsel %vm3302, %v5562, 0.0
  %v5621 = vsel %vm3303, %v5558, 0.0
  %v5622 = vsel %vm3304, %v5554, 0.0
  %v5623 = vsel %vm3305, %v5550, 0.0
  %v5624 = vsel %vm3306, %v5546, 0.0
  %v5625 = vsel %vm3307, %v5542, 0.0
  %v5626 = vsel %vm3308, %v5538, 0.0
  %v5627 = vsel %vm3309, %v5534, 0.0
  %v5628 = vsel %vm3310, %v5594, 0.0
  %v5629 = vsel %vm3295, %v5591, 0.0
  %v5630 = vsel %vm3296, %v5587, 0.0
  %v5631 = vsel %vm3297, %v5583, 0.0
  %v5632 = vsel %vm3298, %v5579, 0.0
  %v5633 = vsel %vm3299, %v5575, 0.0
  %v5634 = vsel %vm3300, %v5571, 0.0
  %v5635 = vsel %vm3301, %v5567, 0.0
  %v5636 = vsel %vm3302, %v5563, 0.0
  %v5637 = vsel %vm3303, %v5559, 0.0
  %v5638 = vsel %vm3304, %v5555, 0.0
  %v5639 = vsel %vm3305, %v5551, 0.0
  %v5640 = vsel %vm3306, %v5547, 0.0
  %v5641 = vsel %vm3307, %v5543, 0.0
  %v5642 = vsel %vm3308, %v5539, 0.0
  %v5643 = vsel %vm3309, %v5535, 0.0
  %v5644 = vsel %vm3310, %v5595, 0.0
  %v5645 = vsel %vm3295, %v5592, 0.0
  %v5646 = vsel %vm3296, %v5588, 0.0
  %v5647 = vsel %vm3297, %v5584, 0.0
  %v5648 = vsel %vm3298, %v5580, 0.0
  %v5649 = vsel %vm3299, %v5576, 0.0
  %v5650 = vsel %vm3300, %v5572, 0.0
  %v5651 = vsel %vm3301, %v5568, 0.0
  %v5652 = vsel %vm3302, %v5564, 0.0
  %v5653 = vsel %vm3303, %v5560, 0.0
  %v5654 = vsel %vm3304, %v5556, 0.0
  %v5655 = vsel %vm3305, %v5552, 0.0
  %v5656 = vsel %vm3306, %v5548, 0.0
  %v5657 = vsel %vm3307, %v5544, 0.0
  %v5658 = vsel %vm3308, %v5540, 0.0
  %v5659 = vsel %vm3309, %v5536, 0.0
  %v5660 = vsel %vm3310, %v5596, 0.0
  %5661 = vrot.lane.b32.xlu0 %v4664, 120
  %v5662 = vpop.permute.xlu0 %5661
  %5663 = vrot.lane.b32.xlu0 %v4680, 120
  %v5664 = vpop.permute.xlu0 %5663
  %5665 = vrot.lane.b32.xlu0 %v4696, 120
  %v5666 = vpop.permute.xlu0 %5665
  %5667 = vrot.lane.b32.xlu0 %v4712, 120
  %v5668 = vpop.permute.xlu0 %5667
  %5669 = vrot.lane.b32.xlu0 %v4665, 120
  %v5670 = vpop.permute.xlu0 %5669
  %5671 = vrot.lane.b32.xlu0 %v4681, 120
  %v5672 = vpop.permute.xlu0 %5671
  %5673 = vrot.lane.b32.xlu0 %v4697, 120
  %v5674 = vpop.permute.xlu0 %5673
  %5675 = vrot.lane.b32.xlu0 %v4713, 120
  %v5676 = vpop.permute.xlu0 %5675
  %5677 = vrot.lane.b32.xlu0 %v4666, 120
  %v5678 = vpop.permute.xlu0 %5677
  %5679 = vrot.lane.b32.xlu0 %v4682, 120
  %v5680 = vpop.permute.xlu0 %5679
  %5681 = vrot.lane.b32.xlu0 %v4698, 120
  %v5682 = vpop.permute.xlu0 %5681
  %5683 = vrot.lane.b32.xlu0 %v4714, 120
  %v5684 = vpop.permute.xlu0 %5683
  %5685 = vrot.lane.b32.xlu0 %v4667, 120
  %v5686 = vpop.permute.xlu0 %5685
  %5687 = vrot.lane.b32.xlu0 %v4683, 120
  %v5688 = vpop.permute.xlu0 %5687
  %5689 = vrot.lane.b32.xlu0 %v4699, 120
  %v5690 = vpop.permute.xlu0 %5689
  %5691 = vrot.lane.b32.xlu0 %v4715, 120
  %v5692 = vpop.permute.xlu0 %5691
  %5693 = vrot.lane.b32.xlu0 %v4668, 120
  %v5694 = vpop.permute.xlu0 %5693
  %5695 = vrot.lane.b32.xlu0 %v4684, 120
  %v5696 = vpop.permute.xlu0 %5695
  %5697 = vrot.lane.b32.xlu0 %v4700, 120
  %v5698 = vpop.permute.xlu0 %5697
  %5699 = vrot.lane.b32.xlu0 %v4716, 120
  %v5700 = vpop.permute.xlu0 %5699
  %5701 = vrot.lane.b32.xlu0 %v4669, 120
  %v5702 = vpop.permute.xlu0 %5701
  %5703 = vrot.lane.b32.xlu0 %v4685, 120
  %v5704 = vpop.permute.xlu0 %5703
  %5705 = vrot.lane.b32.xlu0 %v4701, 120
  %v5706 = vpop.permute.xlu0 %5705
  %5707 = vrot.lane.b32.xlu0 %v4717, 120
  %v5708 = vpop.permute.xlu0 %5707
  %5709 = vrot.lane.b32.xlu0 %v4670, 120
  %v5710 = vpop.permute.xlu0 %5709
  %5711 = vrot.lane.b32.xlu0 %v4686, 120
  %v5712 = vpop.permute.xlu0 %5711
  %5713 = vrot.lane.b32.xlu0 %v4702, 120
  %v5714 = vpop.permute.xlu0 %5713
  %5715 = vrot.lane.b32.xlu0 %v4718, 120
  %v5716 = vpop.permute.xlu0 %5715
  %5717 = vrot.lane.b32.xlu0 %v4671, 120
  %v5718 = vpop.permute.xlu0 %5717
  %5719 = vrot.lane.b32.xlu0 %v4687, 120
  %v5720 = vpop.permute.xlu0 %5719
  %5721 = vrot.lane.b32.xlu0 %v4703, 120
  %v5722 = vpop.permute.xlu0 %5721
  %5723 = vrot.lane.b32.xlu0 %v4719, 120
  %v5724 = vpop.permute.xlu0 %5723
  %5725 = vrot.lane.b32.xlu0 %v4672, 120
  %v5726 = vpop.permute.xlu0 %5725
  %5727 = vrot.lane.b32.xlu0 %v4688, 120
  %v5728 = vpop.permute.xlu0 %5727
  %5729 = vrot.lane.b32.xlu0 %v4704, 120
  %v5730 = vpop.permute.xlu0 %5729
  %5731 = vrot.lane.b32.xlu0 %v4720, 120
  %v5732 = vpop.permute.xlu0 %5731
  %5733 = vrot.lane.b32.xlu0 %v4673, 120
  %v5734 = vpop.permute.xlu0 %5733
  %5735 = vrot.lane.b32.xlu0 %v4689, 120
  %v5736 = vpop.permute.xlu0 %5735
  %5737 = vrot.lane.b32.xlu0 %v4705, 120
  %v5738 = vpop.permute.xlu0 %5737
  %5739 = vrot.lane.b32.xlu0 %v4721, 120
  %v5740 = vpop.permute.xlu0 %5739
  %5741 = vrot.lane.b32.xlu0 %v4674, 120
  %v5742 = vpop.permute.xlu0 %5741
  %5743 = vrot.lane.b32.xlu0 %v4690, 120
  %v5744 = vpop.permute.xlu0 %5743
  %5745 = vrot.lane.b32.xlu0 %v4706, 120
  %v5746 = vpop.permute.xlu0 %5745
  %5747 = vrot.lane.b32.xlu0 %v4722, 120
  %v5748 = vpop.permute.xlu0 %5747
  %5749 = vrot.lane.b32.xlu0 %v4675, 120
  %v5750 = vpop.permute.xlu0 %5749
  %5751 = vrot.lane.b32.xlu0 %v4691, 120
  %v5752 = vpop.permute.xlu0 %5751
  %5753 = vrot.lane.b32.xlu0 %v4707, 120
  %v5754 = vpop.permute.xlu0 %5753
  %5755 = vrot.lane.b32.xlu0 %v4723, 120
  %v5756 = vpop.permute.xlu0 %5755
  %5757 = vrot.lane.b32.xlu0 %v4676, 120
  %v5758 = vpop.permute.xlu0 %5757
  %5759 = vrot.lane.b32.xlu0 %v4692, 120
  %v5760 = vpop.permute.xlu0 %5759
  %5761 = vrot.lane.b32.xlu0 %v4708, 120
  %v5762 = vpop.permute.xlu0 %5761
  %5763 = vrot.lane.b32.xlu0 %v4724, 120
  %v5764 = vpop.permute.xlu0 %5763
  %5765 = vrot.lane.b32.xlu0 %v4677, 120
  %v5766 = vpop.permute.xlu0 %5765
  %5767 = vrot.lane.b32.xlu0 %v4693, 120
  %v5768 = vpop.permute.xlu0 %5767
  %5769 = vrot.lane.b32.xlu0 %v4709, 120
  %v5770 = vpop.permute.xlu0 %5769
  %5771 = vrot.lane.b32.xlu0 %v4725, 120
  %v5772 = vpop.permute.xlu0 %5771
  %5773 = vrot.lane.b32.xlu0 %v4678, 120
  %v5774 = vpop.permute.xlu0 %5773
  %5775 = vrot.lane.b32.xlu0 %v4694, 120
  %v5776 = vpop.permute.xlu0 %5775
  %5777 = vrot.lane.b32.xlu0 %v4710, 120
  %v5778 = vpop.permute.xlu0 %5777
  %5779 = vrot.lane.b32.xlu0 %v4726, 120
  %v5780 = vpop.permute.xlu0 %5779
  %5781 = vrot.lane.b32.xlu0 %v4679, 120
  %v5782 = vpop.permute.xlu0 %5781
  %5783 = vrot.lane.b32.xlu0 %v4695, 120
  %v5784 = vpop.permute.xlu0 %5783
  %5785 = vrot.lane.b32.xlu0 %v4711, 120
  %v5786 = vpop.permute.xlu0 %5785
  %5787 = vrot.lane.b32.xlu0 %v4727, 120
  %v5788 = vpop.permute.xlu0 %5787
  %vm5789 = vcmp.lt.s32.totalorder %v40, 120
  %v5790 = vsel %vm5789, %v5774, %v5782
  %v5791 = vsel %vm5789, %v5776, %v5784
  %v5792 = vsel %vm5789, %v5778, %v5786
  %v5793 = vsel %vm5789, %v5780, %v5788
  %v5794 = vsel %vm5789, %v5766, %v5774
  %v5795 = vsel %vm5789, %v5768, %v5776
  %v5796 = vsel %vm5789, %v5770, %v5778
  %v5797 = vsel %vm5789, %v5772, %v5780
  %v5798 = vsel %vm5789, %v5758, %v5766
  %v5799 = vsel %vm5789, %v5760, %v5768
  %v5800 = vsel %vm5789, %v5762, %v5770
  %v5801 = vsel %vm5789, %v5764, %v5772
  %v5802 = vsel %vm5789, %v5750, %v5758
  %v5803 = vsel %vm5789, %v5752, %v5760
  %v5804 = vsel %vm5789, %v5754, %v5762
  %v5805 = vsel %vm5789, %v5756, %v5764
  %v5806 = vsel %vm5789, %v5742, %v5750
  %v5807 = vsel %vm5789, %v5744, %v5752
  %v5808 = vsel %vm5789, %v5746, %v5754
  %v5809 = vsel %vm5789, %v5748, %v5756
  %v5810 = vsel %vm5789, %v5734, %v5742
  %v5811 = vsel %vm5789, %v5736, %v5744
  %v5812 = vsel %vm5789, %v5738, %v5746
  %v5813 = vsel %vm5789, %v5740, %v5748
  %v5814 = vsel %vm5789, %v5726, %v5734
  %v5815 = vsel %vm5789, %v5728, %v5736
  %v5816 = vsel %vm5789, %v5730, %v5738
  %v5817 = vsel %vm5789, %v5732, %v5740
  %v5818 = vsel %vm5789, %v5718, %v5726
  %v5819 = vsel %vm5789, %v5720, %v5728
  %v5820 = vsel %vm5789, %v5722, %v5730
  %v5821 = vsel %vm5789, %v5724, %v5732
  %v5822 = vsel %vm5789, %v5710, %v5718
  %v5823 = vsel %vm5789, %v5712, %v5720
  %v5824 = vsel %vm5789, %v5714, %v5722
  %v5825 = vsel %vm5789, %v5716, %v5724
  %v5826 = vsel %vm5789, %v5702, %v5710
  %v5827 = vsel %vm5789, %v5704, %v5712
  %v5828 = vsel %vm5789, %v5706, %v5714
  %v5829 = vsel %vm5789, %v5708, %v5716
  %v5830 = vsel %vm5789, %v5694, %v5702
  %v5831 = vsel %vm5789, %v5696, %v5704
  %v5832 = vsel %vm5789, %v5698, %v5706
  %v5833 = vsel %vm5789, %v5700, %v5708
  %v5834 = vsel %vm5789, %v5686, %v5694
  %v5835 = vsel %vm5789, %v5688, %v5696
  %v5836 = vsel %vm5789, %v5690, %v5698
  %v5837 = vsel %vm5789, %v5692, %v5700
  %v5838 = vsel %vm5789, %v5678, %v5686
  %v5839 = vsel %vm5789, %v5680, %v5688
  %v5840 = vsel %vm5789, %v5682, %v5690
  %v5841 = vsel %vm5789, %v5684, %v5692
  %v5842 = vsel %vm5789, %v5670, %v5678
  %v5843 = vsel %vm5789, %v5672, %v5680
  %v5844 = vsel %vm5789, %v5674, %v5682
  %v5845 = vsel %vm5789, %v5676, %v5684
  %v5846 = vsel %vm5789, %v5662, %v5670
  %v5847 = vsel %vm5789, %v5664, %v5672
  %v5848 = vsel %vm5789, %v5666, %v5674
  %v5849 = vsel %vm5789, %v5668, %v5676
  %v5850 = vsel %vm5789, %v5782, %v5662
  %v5851 = vsel %vm5789, %v5784, %v5664
  %v5852 = vsel %vm5789, %v5786, %v5666
  %v5853 = vsel %vm5789, %v5788, %v5668
  %v5854 = vadd.s32 %v232, 8
  %v5855 = vadd.s32 %v233, 8
  %v5856 = vadd.s32 %v234, 8
  %v5857 = vadd.s32 %v235, 8
  %v5858 = vadd.s32 %v236, 8
  %v5859 = vadd.s32 %v237, 8
  %v5860 = vadd.s32 %v238, 8
  %v5861 = vadd.s32 %v239, 8
  %v5862 = vadd.s32 %v240, 8
  %v5863 = vadd.s32 %v241, 8
  %v5864 = vadd.s32 %v242, 8
  %v5865 = vadd.s32 %v243, 8
  %v5866 = vadd.s32 %v244, 8
  %v5867 = vadd.s32 %v245, 8
  %v5868 = vadd.s32 %v246, 8
  %v5869 = vadd.s32 %v247, 8
  %vm5870 = vcmp.ge.s32.totalorder %v5854, 0
  %vm5871 = vcmp.ge.s32.totalorder %v5855, 0
  %vm5872 = vcmp.ge.s32.totalorder %v5856, 0
  %vm5873 = vcmp.ge.s32.totalorder %v5857, 0
  %vm5874 = vcmp.ge.s32.totalorder %v5858, 0
  %vm5875 = vcmp.ge.s32.totalorder %v5859, 0
  %vm5876 = vcmp.ge.s32.totalorder %v5860, 0
  %vm5877 = vcmp.ge.s32.totalorder %v5861, 0
  %vm5878 = vcmp.ge.s32.totalorder %v5862, 0
  %vm5879 = vcmp.ge.s32.totalorder %v5863, 0
  %vm5880 = vcmp.ge.s32.totalorder %v5864, 0
  %vm5881 = vcmp.ge.s32.totalorder %v5865, 0
  %vm5882 = vcmp.ge.s32.totalorder %v5866, 0
  %vm5883 = vcmp.ge.s32.totalorder %v5867, 0
  %vm5884 = vcmp.ge.s32.totalorder %v5868, 0
  %vm5885 = vcmp.ge.s32.totalorder %v5869, 0
  %vm5886 = vcmp.lt.s32.totalorder %v5854, 1024
  %vm5887 = vcmp.lt.s32.totalorder %v5855, 1024
  %vm5888 = vcmp.lt.s32.totalorder %v5856, 1024
  %vm5889 = vcmp.lt.s32.totalorder %v5857, 1024
  %vm5890 = vcmp.lt.s32.totalorder %v5858, 1024
  %vm5891 = vcmp.lt.s32.totalorder %v5859, 1024
  %vm5892 = vcmp.lt.s32.totalorder %v5860, 1024
  %vm5893 = vcmp.lt.s32.totalorder %v5861, 1024
  %vm5894 = vcmp.lt.s32.totalorder %v5862, 1024
  %vm5895 = vcmp.lt.s32.totalorder %v5863, 1024
  %vm5896 = vcmp.lt.s32.totalorder %v5864, 1024
  %vm5897 = vcmp.lt.s32.totalorder %v5865, 1024
  %vm5898 = vcmp.lt.s32.totalorder %v5866, 1024
  %vm5899 = vcmp.lt.s32.totalorder %v5867, 1024
  %vm5900 = vcmp.lt.s32.totalorder %v5868, 1024
  %vm5901 = vcmp.lt.s32.totalorder %v5869, 1024
  %vm5902 = vmand %vm5870, %vm5886
  %vm5903 = vmand %vm5871, %vm5887
  %vm5904 = vmand %vm5872, %vm5888
  %vm5905 = vmand %vm5873, %vm5889
  %vm5906 = vmand %vm5874, %vm5890
  %vm5907 = vmand %vm5875, %vm5891
  %vm5908 = vmand %vm5876, %vm5892
  %vm5909 = vmand %vm5877, %vm5893
  %vm5910 = vmand %vm5878, %vm5894
  %vm5911 = vmand %vm5879, %vm5895
  %vm5912 = vmand %vm5880, %vm5896
  %vm5913 = vmand %vm5881, %vm5897
  %vm5914 = vmand %vm5882, %vm5898
  %vm5915 = vmand %vm5883, %vm5899
  %vm5916 = vmand %vm5884, %vm5900
  %vm5917 = vmand %vm5885, %vm5901
  %v5918 = vsel %vm5902, 1, 0
  %v5919 = vsel %vm5903, 1, 0
  %v5920 = vsel %vm5904, 1, 0
  %v5921 = vsel %vm5905, 1, 0
  %v5922 = vsel %vm5906, 1, 0
  %v5923 = vsel %vm5907, 1, 0
  %v5924 = vsel %vm5908, 1, 0
  %v5925 = vsel %vm5909, 1, 0
  %v5926 = vsel %vm5910, 1, 0
  %v5927 = vsel %vm5911, 1, 0
  %v5928 = vsel %vm5912, 1, 0
  %v5929 = vsel %vm5913, 1, 0
  %v5930 = vsel %vm5914, 1, 0
  %v5931 = vsel %vm5915, 1, 0
  %v5932 = vsel %vm5916, 1, 0
  %v5933 = vsel %vm5917, 1, 0
  %vm5934 = vcmp.eq.s32.totalorder %v5918, 1
  %vm5935 = vcmp.eq.s32.totalorder %v5919, 1
  %vm5936 = vcmp.eq.s32.totalorder %v5920, 1
  %vm5937 = vcmp.eq.s32.totalorder %v5921, 1
  %vm5938 = vcmp.eq.s32.totalorder %v5922, 1
  %vm5939 = vcmp.eq.s32.totalorder %v5923, 1
  %vm5940 = vcmp.eq.s32.totalorder %v5924, 1
  %vm5941 = vcmp.eq.s32.totalorder %v5925, 1
  %vm5942 = vcmp.eq.s32.totalorder %v5926, 1
  %vm5943 = vcmp.eq.s32.totalorder %v5927, 1
  %vm5944 = vcmp.eq.s32.totalorder %v5928, 1
  %vm5945 = vcmp.eq.s32.totalorder %v5929, 1
  %vm5946 = vcmp.eq.s32.totalorder %v5930, 1
  %vm5947 = vcmp.eq.s32.totalorder %v5931, 1
  %vm5948 = vcmp.eq.s32.totalorder %v5932, 1
  %vm5949 = vcmp.eq.s32.totalorder %v5933, 1
  %v5950 = vsel %vm5934, %v5846, 0.0
  %v5951 = vsel %vm5935, %v5842, 0.0
  %v5952 = vsel %vm5936, %v5838, 0.0
  %v5953 = vsel %vm5937, %v5834, 0.0
  %v5954 = vsel %vm5938, %v5830, 0.0
  %v5955 = vsel %vm5939, %v5826, 0.0
  %v5956 = vsel %vm5940, %v5822, 0.0
  %v5957 = vsel %vm5941, %v5818, 0.0
  %v5958 = vsel %vm5942, %v5814, 0.0
  %v5959 = vsel %vm5943, %v5810, 0.0
  %v5960 = vsel %vm5944, %v5806, 0.0
  %v5961 = vsel %vm5945, %v5802, 0.0
  %v5962 = vsel %vm5946, %v5798, 0.0
  %v5963 = vsel %vm5947, %v5794, 0.0
  %v5964 = vsel %vm5948, %v5790, 0.0
  %v5965 = vsel %vm5949, %v5850, 0.0
  %v5966 = vsel %vm5934, %v5847, 0.0
  %v5967 = vsel %vm5935, %v5843, 0.0
  %v5968 = vsel %vm5936, %v5839, 0.0
  %v5969 = vsel %vm5937, %v5835, 0.0
  %v5970 = vsel %vm5938, %v5831, 0.0
  %v5971 = vsel %vm5939, %v5827, 0.0
  %v5972 = vsel %vm5940, %v5823, 0.0
  %v5973 = vsel %vm5941, %v5819, 0.0
  %v5974 = vsel %vm5942, %v5815, 0.0
  %v5975 = vsel %vm5943, %v5811, 0.0
  %v5976 = vsel %vm5944, %v5807, 0.0
  %v5977 = vsel %vm5945, %v5803, 0.0
  %v5978 = vsel %vm5946, %v5799, 0.0
  %v5979 = vsel %vm5947, %v5795, 0.0
  %v5980 = vsel %vm5948, %v5791, 0.0
  %v5981 = vsel %vm5949, %v5851, 0.0
  %v5982 = vsel %vm5934, %v5848, 0.0
  %v5983 = vsel %vm5935, %v5844, 0.0
  %v5984 = vsel %vm5936, %v5840, 0.0
  %v5985 = vsel %vm5937, %v5836, 0.0
  %v5986 = vsel %vm5938, %v5832, 0.0
  %v5987 = vsel %vm5939, %v5828, 0.0
  %v5988 = vsel %vm5940, %v5824, 0.0
  %v5989 = vsel %vm5941, %v5820, 0.0
  %v5990 = vsel %vm5942, %v5816, 0.0
  %v5991 = vsel %vm5943, %v5812, 0.0
  %v5992 = vsel %vm5944, %v5808, 0.0
  %v5993 = vsel %vm5945, %v5804, 0.0
  %v5994 = vsel %vm5946, %v5800, 0.0
  %v5995 = vsel %vm5947, %v5796, 0.0
  %v5996 = vsel %vm5948, %v5792, 0.0
  %v5997 = vsel %vm5949, %v5852, 0.0
  %v5998 = vsel %vm5934, %v5849, 0.0
  %v5999 = vsel %vm5935, %v5845, 0.0
  %v6000 = vsel %vm5936, %v5841, 0.0
  %v6001 = vsel %vm5937, %v5837, 0.0
  %v6002 = vsel %vm5938, %v5833, 0.0
  %v6003 = vsel %vm5939, %v5829, 0.0
  %v6004 = vsel %vm5940, %v5825, 0.0
  %v6005 = vsel %vm5941, %v5821, 0.0
  %v6006 = vsel %vm5942, %v5817, 0.0
  %v6007 = vsel %vm5943, %v5813, 0.0
  %v6008 = vsel %vm5944, %v5809, 0.0
  %v6009 = vsel %vm5945, %v5805, 0.0
  %v6010 = vsel %vm5946, %v5801, 0.0
  %v6011 = vsel %vm5947, %v5797, 0.0
  %v6012 = vsel %vm5948, %v5793, 0.0
  %v6013 = vsel %vm5949, %v5853, 0.0
  %v6014 = vpack.c.bf16 %v5037, %v5021
  %v6015 = vpack.c.bf16 %v5038, %v5022
  %v6016 = vpack.c.bf16 %v5039, %v5023
  %v6017 = vpack.c.bf16 %v5040, %v5024
  %v6018 = vpack.c.bf16 %v5041, %v5025
  %v6019 = vpack.c.bf16 %v5042, %v5026
  %v6020 = vpack.c.bf16 %v5043, %v5027
  %v6021 = vpack.c.bf16 %v5044, %v5028
  %v6022 = vpack.c.bf16 %v5045, %v5029
  %v6023 = vpack.c.bf16 %v5046, %v5030
  %v6024 = vpack.c.bf16 %v5047, %v5031
  %v6025 = vpack.c.bf16 %v5048, %v5032
  %v6026 = vpack.c.bf16 %v5049, %v5033
  %v6027 = vpack.c.bf16 %v5050, %v5034
  %v6028 = vpack.c.bf16 %v5051, %v5035
  %v6029 = vpack.c.bf16 %v5052, %v5036
  %v6030 = vpack.c.bf16 %v5069, %v5053
  %v6031 = vpack.c.bf16 %v5070, %v5054
  %v6032 = vpack.c.bf16 %v5071, %v5055
  %v6033 = vpack.c.bf16 %v5072, %v5056
  %v6034 = vpack.c.bf16 %v5073, %v5057
  %v6035 = vpack.c.bf16 %v5074, %v5058
  %v6036 = vpack.c.bf16 %v5075, %v5059
  %v6037 = vpack.c.bf16 %v5076, %v5060
  %v6038 = vpack.c.bf16 %v5077, %v5061
  %v6039 = vpack.c.bf16 %v5078, %v5062
  %v6040 = vpack.c.bf16 %v5079, %v5063
  %v6041 = vpack.c.bf16 %v5080, %v5064
  %v6042 = vpack.c.bf16 %v5081, %v5065
  %v6043 = vpack.c.bf16 %v5082, %v5066
  %v6044 = vpack.c.bf16 %v5083, %v5067
  %v6045 = vpack.c.bf16 %v5084, %v5068
  %v6046 = vpack.c.bf16 %v5293, %v5277
  %v6047 = vpack.c.bf16 %v5294, %v5278
  %v6048 = vpack.c.bf16 %v5295, %v5279
  %v6049 = vpack.c.bf16 %v5296, %v5280
  %v6050 = vpack.c.bf16 %v5297, %v5281
  %v6051 = vpack.c.bf16 %v5298, %v5282
  %v6052 = vpack.c.bf16 %v5299, %v5283
  %v6053 = vpack.c.bf16 %v5300, %v5284
  %v6054 = vpack.c.bf16 %v5301, %v5285
  %v6055 = vpack.c.bf16 %v5302, %v5286
  %v6056 = vpack.c.bf16 %v5303, %v5287
  %v6057 = vpack.c.bf16 %v5304, %v5288
  %v6058 = vpack.c.bf16 %v5305, %v5289
  %v6059 = vpack.c.bf16 %v5306, %v5290
  %v6060 = vpack.c.bf16 %v5307, %v5291
  %v6061 = vpack.c.bf16 %v5308, %v5292
  %v6062 = vpack.c.bf16 %v5325, %v5309
  %v6063 = vpack.c.bf16 %v5326, %v5310
  %v6064 = vpack.c.bf16 %v5327, %v5311
  %v6065 = vpack.c.bf16 %v5328, %v5312
  %v6066 = vpack.c.bf16 %v5329, %v5313
  %v6067 = vpack.c.bf16 %v5330, %v5314
  %v6068 = vpack.c.bf16 %v5331, %v5315
  %v6069 = vpack.c.bf16 %v5332, %v5316
  %v6070 = vpack.c.bf16 %v5333, %v5317
  %v6071 = vpack.c.bf16 %v5334, %v5318
  %v6072 = vpack.c.bf16 %v5335, %v5319
  %v6073 = vpack.c.bf16 %v5336, %v5320
  %v6074 = vpack.c.bf16 %v5337, %v5321
  %v6075 = vpack.c.bf16 %v5338, %v5322
  %v6076 = vpack.c.bf16 %v5339, %v5323
  %v6077 = vpack.c.bf16 %v5340, %v5324
  %v6078 = vpack.c.bf16 %v5357, %v5341
  %v6079 = vpack.c.bf16 %v5358, %v5342
  %v6080 = vpack.c.bf16 %v5359, %v5343
  %v6081 = vpack.c.bf16 %v5360, %v5344
  %v6082 = vpack.c.bf16 %v5361, %v5345
  %v6083 = vpack.c.bf16 %v5362, %v5346
  %v6084 = vpack.c.bf16 %v5363, %v5347
  %v6085 = vpack.c.bf16 %v5364, %v5348
  %v6086 = vpack.c.bf16 %v5365, %v5349
  %v6087 = vpack.c.bf16 %v5366, %v5350
  %v6088 = vpack.c.bf16 %v5367, %v5351
  %v6089 = vpack.c.bf16 %v5368, %v5352
  %v6090 = vpack.c.bf16 %v5369, %v5353
  %v6091 = vpack.c.bf16 %v5370, %v5354
  %v6092 = vpack.c.bf16 %v5371, %v5355
  %v6093 = vpack.c.bf16 %v5372, %v5356
  %v6094 = vpack.c.bf16 %v5389, %v5373
  %v6095 = vpack.c.bf16 %v5390, %v5374
  %v6096 = vpack.c.bf16 %v5391, %v5375
  %v6097 = vpack.c.bf16 %v5392, %v5376
  %v6098 = vpack.c.bf16 %v5393, %v5377
  %v6099 = vpack.c.bf16 %v5394, %v5378
  %v6100 = vpack.c.bf16 %v5395, %v5379
  %v6101 = vpack.c.bf16 %v5396, %v5380
  %v6102 = vpack.c.bf16 %v5397, %v5381
  %v6103 = vpack.c.bf16 %v5398, %v5382
  %v6104 = vpack.c.bf16 %v5399, %v5383
  %v6105 = vpack.c.bf16 %v5400, %v5384
  %v6106 = vpack.c.bf16 %v5401, %v5385
  %v6107 = vpack.c.bf16 %v5402, %v5386
  %v6108 = vpack.c.bf16 %v5403, %v5387
  %v6109 = vpack.c.bf16 %v5404, %v5388
  %v6110 = vpack.c.bf16 %v5613, %v5597
  %v6111 = vpack.c.bf16 %v5614, %v5598
  %v6112 = vpack.c.bf16 %v5615, %v5599
  %v6113 = vpack.c.bf16 %v5616, %v5600
  %v6114 = vpack.c.bf16 %v5617, %v5601
  %v6115 = vpack.c.bf16 %v5618, %v5602
  %v6116 = vpack.c.bf16 %v5619, %v5603
  %v6117 = vpack.c.bf16 %v5620, %v5604
  %v6118 = vpack.c.bf16 %v5621, %v5605
  %v6119 = vpack.c.bf16 %v5622, %v5606
  %v6120 = vpack.c.bf16 %v5623, %v5607
  %v6121 = vpack.c.bf16 %v5624, %v5608
  %v6122 = vpack.c.bf16 %v5625, %v5609
  %v6123 = vpack.c.bf16 %v5626, %v5610
  %v6124 = vpack.c.bf16 %v5627, %v5611
  %v6125 = vpack.c.bf16 %v5628, %v5612
  %v6126 = vpack.c.bf16 %v5645, %v5629
  %v6127 = vpack.c.bf16 %v5646, %v5630
  %v6128 = vpack.c.bf16 %v5647, %v5631
  %v6129 = vpack.c.bf16 %v5648, %v5632
  %v6130 = vpack.c.bf16 %v5649, %v5633
  %v6131 = vpack.c.bf16 %v5650, %v5634
  %v6132 = vpack.c.bf16 %v5651, %v5635
  %v6133 = vpack.c.bf16 %v5652, %v5636
  %v6134 = vpack.c.bf16 %v5653, %v5637
  %v6135 = vpack.c.bf16 %v5654, %v5638
  %v6136 = vpack.c.bf16 %v5655, %v5639
  %v6137 = vpack.c.bf16 %v5656, %v5640
  %v6138 = vpack.c.bf16 %v5657, %v5641
  %v6139 = vpack.c.bf16 %v5658, %v5642
  %v6140 = vpack.c.bf16 %v5659, %v5643
  %v6141 = vpack.c.bf16 %v5660, %v5644
  %v6142 = vpack.c.bf16 %v5966, %v5950
  %v6143 = vpack.c.bf16 %v5967, %v5951
  %v6144 = vpack.c.bf16 %v5968, %v5952
  %v6145 = vpack.c.bf16 %v5969, %v5953
  %v6146 = vpack.c.bf16 %v5970, %v5954
  %v6147 = vpack.c.bf16 %v5971, %v5955
  %v6148 = vpack.c.bf16 %v5972, %v5956
  %v6149 = vpack.c.bf16 %v5973, %v5957
  %v6150 = vpack.c.bf16 %v5974, %v5958
  %v6151 = vpack.c.bf16 %v5975, %v5959
  %v6152 = vpack.c.bf16 %v5976, %v5960
  %v6153 = vpack.c.bf16 %v5977, %v5961
  %v6154 = vpack.c.bf16 %v5978, %v5962
  %v6155 = vpack.c.bf16 %v5979, %v5963
  %v6156 = vpack.c.bf16 %v5980, %v5964
  %v6157 = vpack.c.bf16 %v5981, %v5965
  %v6158 = vpack.c.bf16 %v5998, %v5982
  %v6159 = vpack.c.bf16 %v5999, %v5983
  %v6160 = vpack.c.bf16 %v6000, %v5984
  %v6161 = vpack.c.bf16 %v6001, %v5985
  %v6162 = vpack.c.bf16 %v6002, %v5986
  %v6163 = vpack.c.bf16 %v6003, %v5987
  %v6164 = vpack.c.bf16 %v6004, %v5988
  %v6165 = vpack.c.bf16 %v6005, %v5989
  %v6166 = vpack.c.bf16 %v6006, %v5990
  %v6167 = vpack.c.bf16 %v6007, %v5991
  %v6168 = vpack.c.bf16 %v6008, %v5992
  %v6169 = vpack.c.bf16 %v6009, %v5993
  %v6170 = vpack.c.bf16 %v6010, %v5994
  %v6171 = vpack.c.bf16 %v6011, %v5995
  %v6172 = vpack.c.bf16 %v6012, %v5996
  %v6173 = vpack.c.bf16 %v6013, %v5997
  %v6174 = vld [vmem:[%s10] sm:$0xff]
  %v6175 = vld [vmem:[%s10 + $0x8] sm:$0xff]
  %v6176 = vld [vmem:[%s10 + $0x10] sm:$0xff]
  %v6177 = vld [vmem:[%s10 + $0x18] sm:$0xff]
  %6179 = vset.pattern.permute.xlu0 0
  %6180 = vperm.xlu0 %6179, %v6174
  %v6181 = vpop.permute.xlu0 %6180
  %6184 = vset.pattern.permute.xlu0 0
  %6185 = vperm.xlu0 %6184, %v6175
  %v6186 = vpop.permute.xlu0 %6185
  %6189 = vset.pattern.permute.xlu0 0
  %6190 = vperm.xlu0 %6189, %v6176
  %v6191 = vpop.permute.xlu0 %6190
  %6194 = vset.pattern.permute.xlu0 0
  %6195 = vperm.xlu0 %6194, %v6177
  %v6196 = vpop.permute.xlu0 %6195
  %v6202 = vunpack.c.l.b16 %v4728
  %v6203 = vunpack.c.h.b16 %v4728
  %v6204 = vunpack.c.l.b16 %v4729
  %v6205 = vunpack.c.h.b16 %v4729
  %v6206 = vunpack.c.l.b16 %v4730
  %v6207 = vunpack.c.h.b16 %v4730
  %v6208 = vunpack.c.l.b16 %v4731
  %v6209 = vunpack.c.h.b16 %v4731
  %v6210 = vpack.c.b16 %v6204, %v6202
  %v6211 = vpack.c.b16 %v6205, %v6203
  %v6212 = vpack.c.b16 %v6208, %v6206
  %v6213 = vpack.c.b16 %v6209, %v6207
  %vm6216 = vcmask 261120
  %v6218 = vsel %vm6216, %v6211, 0
  %v6221 = vsel %vm6216, %v6213, 0
  %6223 = vmatprep.subr.bf16.mxu0 %v6015
  %6224 = vmatpush1.bf16.msra.mxu0 %v6014
  %6225 = vmatprep.subr.bf16.mxu0 %v6031
  %6226 = vmatpush1.bf16.msra.mxu0 %v6030
  %6227 = vmatprep.subr.bf16.mxu0 %v6047
  %6228 = vmatpush1.bf16.msra.mxu0 %v6046
  %6229 = vmatprep.subr.bf16.mxu0 %v6063
  %6230 = vmatpush1.bf16.msra.mxu0 %v6062
  %6231 = vmatprep.subr.bf16.mxu0 %v6079
  %6232 = vmatpush1.bf16.msra.mxu0 %v6078
  %6233 = vmatprep.subr.bf16.mxu0 %v6095
  %6234 = vmatpush1.bf16.msra.mxu0 %v6094
  %6235 = vmatprep.subr.bf16.mxu0 %v6111
  %6236 = vmatpush1.bf16.msra.mxu0 %v6110
  %6237 = vmatprep.subr.bf16.mxu0 %v6127
  %6238 = vmatpush1.bf16.msra.mxu0 %v6126
  %6239 = vmatprep.subr.bf16.mxu0 %v6143
  %6240 = vmatpush1.bf16.msra.mxu0 %v6142
  %6241 = vmatprep.subr.bf16.mxu0 %v6159
  %6242 = vmatpush1.bf16.msra.mxu0 %v6158
  %6243 = vmatprep.subr.bf16.mxu0 0
  %6244 = vmatpush1.bf16.msra.mxu0 0
  %6245 = vmatprep.subr.bf16.mxu0 0
  %6246 = vmatpush1.bf16.msra.mxu0 0
  %6247 = vmatprep.subr.bf16.mxu0 0
  %6248 = vmatpush1.bf16.msra.mxu0 0
  %6249 = vmatprep.subr.bf16.mxu0 0
  %6250 = vmatpush1.bf16.msra.mxu0 0
  %6251 = vmatprep.subr.bf16.mxu0 0
  %6252 = vmatpush1.bf16.msra.mxu0 0
  %6253 = vmatprep.subr.bf16.mxu0 0
  %6254 = vmatpush1.bf16.msra.mxu0 0
  %6255 = vmatprep.mubr.bf16.mxu0 %v6218
  %6256 = vmatmul.mubr.bf16.gmra.mrb[0].mxu0 %v6210
  %v6257 = vpop.f32.mrb[0].mxu0
  %v6258 = vadd.f32 %v6181, %v6257
  %v6259 = vpop.f32.mrb[0].mxu0
  %v6260 = vadd.f32 %v6181, %v6259
  %v6261 = vpop.f32.mrb[0].mxu0
  %v6262 = vadd.f32 %v6186, %v6261
  %v6263 = vpop.f32.mrb[0].mxu0
  %v6264 = vadd.f32 %v6186, %v6263
  %6265 = vmatprep.mubr.bf16.mxu0 %v6221
  %6266 = vmatmul.mubr.bf16.gmra.mrb[0].mxu0 %v6212
  %v6267 = vpop.f32.mrb[0].mxu0
  %v6268 = vadd.f32 %v6191, %v6267
  %v6269 = vpop.f32.mrb[0].mxu0
  %v6270 = vadd.f32 %v6191, %v6269
  %v6271 = vpop.f32.mrb[0].mxu0
  %v6272 = vadd.f32 %v6196, %v6271
  %v6273 = vpop.f32.mrb[0].mxu0
  %v6274 = vadd.f32 %v6196, %v6273
  %6275 = vdwg.mxu0
  %6276 = vmatprep.subr.bf16.mxu0 %v6017
  %6277 = vmatpush1.bf16.msra.mxu0 %v6016
  %6278 = vmatprep.subr.bf16.mxu0 %v6033
  %6279 = vmatpush1.bf16.msra.mxu0 %v6032
  %6280 = vmatprep.subr.bf16.mxu0 %v6049
  %6281 = vmatpush1.bf16.msra.mxu0 %v6048
  %6282 = vmatprep.subr.bf16.mxu0 %v6065
  %6283 = vmatpush1.bf16.msra.mxu0 %v6064
  %6284 = vmatprep.subr.bf16.mxu0 %v6081
  %6285 = vmatpush1.bf16.msra.mxu0 %v6080
  %6286 = vmatprep.subr.bf16.mxu0 %v6097
  %6287 = vmatpush1.bf16.msra.mxu0 %v6096
  %6288 = vmatprep.subr.bf16.mxu0 %v6113
  %6289 = vmatpush1.bf16.msra.mxu0 %v6112
  %6290 = vmatprep.subr.bf16.mxu0 %v6129
  %6291 = vmatpush1.bf16.msra.mxu0 %v6128
  %6292 = vmatprep.subr.bf16.mxu0 %v6145
  %6293 = vmatpush1.bf16.msra.mxu0 %v6144
  %6294 = vmatprep.subr.bf16.mxu0 %v6161
  %6295 = vmatpush1.bf16.msra.mxu0 %v6160
  %6296 = vmatprep.subr.bf16.mxu0 0
  %6297 = vmatpush1.bf16.msra.mxu0 0
  %6298 = vmatprep.subr.bf16.mxu0 0
  %6299 = vmatpush1.bf16.msra.mxu0 0
  %6300 = vmatprep.subr.bf16.mxu0 0
  %6301 = vmatpush1.bf16.msra.mxu0 0
  %6302 = vmatprep.subr.bf16.mxu0 0
  %6303 = vmatpush1.bf16.msra.mxu0 0
  %6304 = vmatprep.subr.bf16.mxu0 0
  %6305 = vmatpush1.bf16.msra.mxu0 0
  %6306 = vmatprep.subr.bf16.mxu0 0
  %6307 = vmatpush1.bf16.msra.mxu0 0
  %6308 = vmatprep.mubr.bf16.mxu0 %v6218
  %6309 = vmatmul.mubr.bf16.gmra.mrb[0].mxu0 %v6210
  %v6310 = vpop.f32.mrb[0].mxu0
  %v6311 = vadd.f32 %v6181, %v6310
  %v6312 = vpop.f32.mrb[0].mxu0
  %v6313 = vadd.f32 %v6181, %v6312
  %v6314 = vpop.f32.mrb[0].mxu0
  %v6315 = vadd.f32 %v6186, %v6314
  %v6316 = vpop.f32.mrb[0].mxu0
  %v6317 = vadd.f32 %v6186, %v6316
  %6318 = vmatprep.mubr.bf16.mxu0 %v6221
  %6319 = vmatmul.mubr.bf16.gmra.mrb[0].mxu0 %v6212
  %v6320 = vpop.f32.mrb[0].mxu0
  %v6321 = vadd.f32 %v6191, %v6320
  %v6322 = vpop.f32.mrb[0].mxu0
  %v6323 = vadd.f32 %v6191, %v6322
  %v6324 = vpop.f32.mrb[0].mxu0
  %v6325 = vadd.f32 %v6196, %v6324
  %v6326 = vpop.f32.mrb[0].mxu0
  %v6327 = vadd.f32 %v6196, %v6326
  %6328 = vdwg.mxu0
  %6329 = vmatprep.subr.bf16.mxu0 %v6019
  %6330 = vmatpush1.bf16.msra.mxu0 %v6018
  %6331 = vmatprep.subr.bf16.mxu0 %v6035
  %6332 = vmatpush1.bf16.msra.mxu0 %v6034
  %6333 = vmatprep.subr.bf16.mxu0 %v6051
  %6334 = vmatpush1.bf16.msra.mxu0 %v6050
  %6335 = vmatprep.subr.bf16.mxu0 %v6067
  %6336 = vmatpush1.bf16.msra.mxu0 %v6066
  %6337 = vmatprep.subr.bf16.mxu0 %v6083
  %6338 = vmatpush1.bf16.msra.mxu0 %v6082
  %6339 = vmatprep.subr.bf16.mxu0 %v6099
  %6340 = vmatpush1.bf16.msra.mxu0 %v6098
  %6341 = vmatprep.subr.bf16.mxu0 %v6115
  %6342 = vmatpush1.bf16.msra.mxu0 %v6114
  %6343 = vmatprep.subr.bf16.mxu0 %v6131
  %6344 = vmatpush1.bf16.msra.mxu0 %v6130
  %6345 = vmatprep.subr.bf16.mxu0 %v6147
  %6346 = vmatpush1.bf16.msra.mxu0 %v6146
  %6347 = vmatprep.subr.bf16.mxu0 %v6163
  %6348 = vmatpush1.bf16.msra.mxu0 %v6162
  %6349 = vmatprep.subr.bf16.mxu0 0
  %6350 = vmatpush1.bf16.msra.mxu0 0
  %6351 = vmatprep.subr.bf16.mxu0 0
  %6352 = vmatpush1.bf16.msra.mxu0 0
  %6353 = vmatprep.subr.bf16.mxu0 0
  %6354 = vmatpush1.bf16.msra.mxu0 0
  %6355 = vmatprep.subr.bf16.mxu0 0
  %6356 = vmatpush1.bf16.msra.mxu0 0
  %6357 = vmatprep.subr.bf16.mxu0 0
  %6358 = vmatpush1.bf16.msra.mxu0 0
  %6359 = vmatprep.subr.bf16.mxu0 0
  %6360 = vmatpush1.bf16.msra.mxu0 0
  %6361 = vmatprep.mubr.bf16.mxu0 %v6218
  %6362 = vmatmul.mubr.bf16.gmra.mrb[0].mxu0 %v6210
  %v6363 = vpop.f32.mrb[0].mxu0
  %v6364 = vadd.f32 %v6181, %v6363
  %v6365 = vpop.f32.mrb[0].mxu0
  %v6366 = vadd.f32 %v6181, %v6365
  %v6367 = vpop.f32.mrb[0].mxu0
  %v6368 = vadd.f32 %v6186, %v6367
  %v6369 = vpop.f32.mrb[0].mxu0
  %v6370 = vadd.f32 %v6186, %v6369
  %6371 = vmatprep.mubr.bf16.mxu0 %v6221
  %6372 = vmatmul.mubr.bf16.gmra.mrb[0].mxu0 %v6212
  %v6373 = vpop.f32.mrb[0].mxu0
  %v6374 = vadd.f32 %v6191, %v6373
  %v6375 = vpop.f32.mrb[0].mxu0
  %v6376 = vadd.f32 %v6191, %v6375
  %v6377 = vpop.f32.mrb[0].mxu0
  %v6378 = vadd.f32 %v6196, %v6377
  %v6379 = vpop.f32.mrb[0].mxu0
  %v6380 = vadd.f32 %v6196, %v6379
  %6381 = vdwg.mxu0
  %6382 = vmatprep.subr.bf16.mxu0 %v6021
  %6383 = vmatpush1.bf16.msra.mxu0 %v6020
  %6384 = vmatprep.subr.bf16.mxu0 %v6037
  %6385 = vmatpush1.bf16.msra.mxu0 %v6036
  %6386 = vmatprep.subr.bf16.mxu0 %v6053
  %6387 = vmatpush1.bf16.msra.mxu0 %v6052
  %6388 = vmatprep.subr.bf16.mxu0 %v6069
  %6389 = vmatpush1.bf16.msra.mxu0 %v6068
  %6390 = vmatprep.subr.bf16.mxu0 %v6085
  %6391 = vmatpush1.bf16.msra.mxu0 %v6084
  %6392 = vmatprep.subr.bf16.mxu0 %v6101
  %6393 = vmatpush1.bf16.msra.mxu0 %v6100
  %6394 = vmatprep.subr.bf16.mxu0 %v6117
  %6395 = vmatpush1.bf16.msra.mxu0 %v6116
  %6396 = vmatprep.subr.bf16.mxu0 %v6133
  %6397 = vmatpush1.bf16.msra.mxu0 %v6132
  %6398 = vmatprep.subr.bf16.mxu0 %v6149
  %6399 = vmatpush1.bf16.msra.mxu0 %v6148
  %6400 = vmatprep.subr.bf16.mxu0 %v6165
  %6401 = vmatpush1.bf16.msra.mxu0 %v6164
  %6402 = vmatprep.subr.bf16.mxu0 0
  %6403 = vmatpush1.bf16.msra.mxu0 0
  %6404 = vmatprep.subr.bf16.mxu0 0
  %6405 = vmatpush1.bf16.msra.mxu0 0
  %6406 = vmatprep.subr.bf16.mxu0 0
  %6407 = vmatpush1.bf16.msra.mxu0 0
  %6408 = vmatprep.subr.bf16.mxu0 0
  %6409 = vmatpush1.bf16.msra.mxu0 0
  %6410 = vmatprep.subr.bf16.mxu0 0
  %6411 = vmatpush1.bf16.msra.mxu0 0
  %6412 = vmatprep.subr.bf16.mxu0 0
  %6413 = vmatpush1.bf16.msra.mxu0 0
  %6414 = vmatprep.mubr.bf16.mxu0 %v6218
  %6415 = vmatmul.mubr.bf16.gmra.mrb[0].mxu0 %v6210
  %v6416 = vpop.f32.mrb[0].mxu0
  %v6417 = vadd.f32 %v6181, %v6416
  %v6418 = vpop.f32.mrb[0].mxu0
  %v6419 = vadd.f32 %v6181, %v6418
  %v6420 = vpop.f32.mrb[0].mxu0
  %v6421 = vadd.f32 %v6186, %v6420
  %v6422 = vpop.f32.mrb[0].mxu0
  %v6423 = vadd.f32 %v6186, %v6422
  %6424 = vmatprep.mubr.bf16.mxu0 %v6221
  %6425 = vmatmul.mubr.bf16.gmra.mrb[0].mxu0 %v6212
  %v6426 = vpop.f32.mrb[0].mxu0
  %v6427 = vadd.f32 %v6191, %v6426
  %v6428 = vpop.f32.mrb[0].mxu0
  %v6429 = vadd.f32 %v6191, %v6428
  %v6430 = vpop.f32.mrb[0].mxu0
  %v6431 = vadd.f32 %v6196, %v6430
  %v6432 = vpop.f32.mrb[0].mxu0
  %v6433 = vadd.f32 %v6196, %v6432
  %6434 = vdwg.mxu0
  %6435 = vmatprep.subr.bf16.mxu0 %v6023
  %6436 = vmatpush1.bf16.msra.mxu0 %v6022
  %6437 = vmatprep.subr.bf16.mxu0 %v6039
  %6438 = vmatpush1.bf16.msra.mxu0 %v6038
  %6439 = vmatprep.subr.bf16.mxu0 %v6055
  %6440 = vmatpush1.bf16.msra.mxu0 %v6054
  %6441 = vmatprep.subr.bf16.mxu0 %v6071
  %6442 = vmatpush1.bf16.msra.mxu0 %v6070
  %6443 = vmatprep.subr.bf16.mxu0 %v6087
  %6444 = vmatpush1.bf16.msra.mxu0 %v6086
  %6445 = vmatprep.subr.bf16.mxu0 %v6103
  %6446 = vmatpush1.bf16.msra.mxu0 %v6102
  %6447 = vmatprep.subr.bf16.mxu0 %v6119
  %6448 = vmatpush1.bf16.msra.mxu0 %v6118
  %6449 = vmatprep.subr.bf16.mxu0 %v6135
  %6450 = vmatpush1.bf16.msra.mxu0 %v6134
  %6451 = vmatprep.subr.bf16.mxu0 %v6151
  %6452 = vmatpush1.bf16.msra.mxu0 %v6150
  %6453 = vmatprep.subr.bf16.mxu0 %v6167
  %6454 = vmatpush1.bf16.msra.mxu0 %v6166
  %6455 = vmatprep.subr.bf16.mxu0 0
  %6456 = vmatpush1.bf16.msra.mxu0 0
  %6457 = vmatprep.subr.bf16.mxu0 0
  %6458 = vmatpush1.bf16.msra.mxu0 0
  %6459 = vmatprep.subr.bf16.mxu0 0
  %6460 = vmatpush1.bf16.msra.mxu0 0
  %6461 = vmatprep.subr.bf16.mxu0 0
  %6462 = vmatpush1.bf16.msra.mxu0 0
  %6463 = vmatprep.subr.bf16.mxu0 0
  %6464 = vmatpush1.bf16.msra.mxu0 0
  %6465 = vmatprep.subr.bf16.mxu0 0
  %6466 = vmatpush1.bf16.msra.mxu0 0
  %6467 = vmatprep.mubr.bf16.mxu0 %v6218
  %6468 = vmatmul.mubr.bf16.gmra.mrb[0].mxu0 %v6210
  %v6469 = vpop.f32.mrb[0].mxu0
  %v6470 = vadd.f32 %v6181, %v6469
  %v6471 = vpop.f32.mrb[0].mxu0
  %v6472 = vadd.f32 %v6181, %v6471
  %v6473 = vpop.f32.mrb[0].mxu0
  %v6474 = vadd.f32 %v6186, %v6473
  %v6475 = vpop.f32.mrb[0].mxu0
  %v6476 = vadd.f32 %v6186, %v6475
  %6477 = vmatprep.mubr.bf16.mxu0 %v6221
  %6478 = vmatmul.mubr.bf16.gmra.mrb[0].mxu0 %v6212
  %v6479 = vpop.f32.mrb[0].mxu0
  %v6480 = vadd.f32 %v6191, %v6479
  %v6481 = vpop.f32.mrb[0].mxu0
  %v6482 = vadd.f32 %v6191, %v6481
  %v6483 = vpop.f32.mrb[0].mxu0
  %v6484 = vadd.f32 %v6196, %v6483
  %v6485 = vpop.f32.mrb[0].mxu0
  %v6486 = vadd.f32 %v6196, %v6485
  %6487 = vdwg.mxu0
  %6488 = vmatprep.subr.bf16.mxu0 %v6025
  %6489 = vmatpush1.bf16.msra.mxu0 %v6024
  %6490 = vmatprep.subr.bf16.mxu0 %v6041
  %6491 = vmatpush1.bf16.msra.mxu0 %v6040
  %6492 = vmatprep.subr.bf16.mxu0 %v6057
  %6493 = vmatpush1.bf16.msra.mxu0 %v6056
  %6494 = vmatprep.subr.bf16.mxu0 %v6073
  %6495 = vmatpush1.bf16.msra.mxu0 %v6072
  %6496 = vmatprep.subr.bf16.mxu0 %v6089
  %6497 = vmatpush1.bf16.msra.mxu0 %v6088
  %6498 = vmatprep.subr.bf16.mxu0 %v6105
  %6499 = vmatpush1.bf16.msra.mxu0 %v6104
  %6500 = vmatprep.subr.bf16.mxu0 %v6121
  %6501 = vmatpush1.bf16.msra.mxu0 %v6120
  %6502 = vmatprep.subr.bf16.mxu0 %v6137
  %6503 = vmatpush1.bf16.msra.mxu0 %v6136
  %6504 = vmatprep.subr.bf16.mxu0 %v6153
  %6505 = vmatpush1.bf16.msra.mxu0 %v6152
  %6506 = vmatprep.subr.bf16.mxu0 %v6169
  %6507 = vmatpush1.bf16.msra.mxu0 %v6168
  %6508 = vmatprep.subr.bf16.mxu0 0
  %6509 = vmatpush1.bf16.msra.mxu0 0
  %6510 = vmatprep.subr.bf16.mxu0 0
  %6511 = vmatpush1.bf16.msra.mxu0 0
  %6512 = vmatprep.subr.bf16.mxu0 0
  %6513 = vmatpush1.bf16.msra.mxu0 0
  %6514 = vmatprep.subr.bf16.mxu0 0
  %6515 = vmatpush1.bf16.msra.mxu0 0
  %6516 = vmatprep.subr.bf16.mxu0 0
  %6517 = vmatpush1.bf16.msra.mxu0 0
  %6518 = vmatprep.subr.bf16.mxu0 0
  %6519 = vmatpush1.bf16.msra.mxu0 0
  %6520 = vmatprep.mubr.bf16.mxu0 %v6218
  %6521 = vmatmul.mubr.bf16.gmra.mrb[0].mxu0 %v6210
  %v6522 = vpop.f32.mrb[0].mxu0
  %v6523 = vadd.f32 %v6181, %v6522
  %v6524 = vpop.f32.mrb[0].mxu0
  %v6525 = vadd.f32 %v6181, %v6524
  %v6526 = vpop.f32.mrb[0].mxu0
  %v6527 = vadd.f32 %v6186, %v6526
  %v6528 = vpop.f32.mrb[0].mxu0
  %v6529 = vadd.f32 %v6186, %v6528
  %6530 = vmatprep.mubr.bf16.mxu0 %v6221
  %6531 = vmatmul.mubr.bf16.gmra.mrb[0].mxu0 %v6212
  %v6532 = vpop.f32.mrb[0].mxu0
  %v6533 = vadd.f32 %v6191, %v6532
  %v6534 = vpop.f32.mrb[0].mxu0
  %v6535 = vadd.f32 %v6191, %v6534
  %v6536 = vpop.f32.mrb[0].mxu0
  %v6537 = vadd.f32 %v6196, %v6536
  %v6538 = vpop.f32.mrb[0].mxu0
  %v6539 = vadd.f32 %v6196, %v6538
  %6540 = vdwg.mxu0
  %6541 = vmatprep.subr.bf16.mxu0 %v6027
  %6542 = vmatpush1.bf16.msra.mxu0 %v6026
  %6543 = vmatprep.subr.bf16.mxu0 %v6043
  %6544 = vmatpush1.bf16.msra.mxu0 %v6042
  %6545 = vmatprep.subr.bf16.mxu0 %v6059
  %6546 = vmatpush1.bf16.msra.mxu0 %v6058
  %6547 = vmatprep.subr.bf16.mxu0 %v6075
  %6548 = vmatpush1.bf16.msra.mxu0 %v6074
  %6549 = vmatprep.subr.bf16.mxu0 %v6091
  %6550 = vmatpush1.bf16.msra.mxu0 %v6090
  %6551 = vmatprep.subr.bf16.mxu0 %v6107
  %6552 = vmatpush1.bf16.msra.mxu0 %v6106
  %6553 = vmatprep.subr.bf16.mxu0 %v6123
  %6554 = vmatpush1.bf16.msra.mxu0 %v6122
  %6555 = vmatprep.subr.bf16.mxu0 %v6139
  %6556 = vmatpush1.bf16.msra.mxu0 %v6138
  %6557 = vmatprep.subr.bf16.mxu0 %v6155
  %6558 = vmatpush1.bf16.msra.mxu0 %v6154
  %6559 = vmatprep.subr.bf16.mxu0 %v6171
  %6560 = vmatpush1.bf16.msra.mxu0 %v6170
  %6561 = vmatprep.subr.bf16.mxu0 0
  %6562 = vmatpush1.bf16.msra.mxu0 0
  %6563 = vmatprep.subr.bf16.mxu0 0
  %6564 = vmatpush1.bf16.msra.mxu0 0
  %6565 = vmatprep.subr.bf16.mxu0 0
  %6566 = vmatpush1.bf16.msra.mxu0 0
  %6567 = vmatprep.subr.bf16.mxu0 0
  %6568 = vmatpush1.bf16.msra.mxu0 0
  %6569 = vmatprep.subr.bf16.mxu0 0
  %6570 = vmatpush1.bf16.msra.mxu0 0
  %6571 = vmatprep.subr.bf16.mxu0 0
  %6572 = vmatpush1.bf16.msra.mxu0 0
  %6573 = vmatprep.mubr.bf16.mxu0 %v6218
  %6574 = vmatmul.mubr.bf16.gmra.mrb[0].mxu0 %v6210
  %v6575 = vpop.f32.mrb[0].mxu0
  %v6576 = vadd.f32 %v6181, %v6575
  %v6577 = vpop.f32.mrb[0].mxu0
  %v6578 = vadd.f32 %v6181, %v6577
  %v6579 = vpop.f32.mrb[0].mxu0
  %v6580 = vadd.f32 %v6186, %v6579
  %v6581 = vpop.f32.mrb[0].mxu0
  %v6582 = vadd.f32 %v6186, %v6581
  %6583 = vmatprep.mubr.bf16.mxu0 %v6221
  %6584 = vmatmul.mubr.bf16.gmra.mrb[0].mxu0 %v6212
  %v6585 = vpop.f32.mrb[0].mxu0
  %v6586 = vadd.f32 %v6191, %v6585
  %v6587 = vpop.f32.mrb[0].mxu0
  %v6588 = vadd.f32 %v6191, %v6587
  %v6589 = vpop.f32.mrb[0].mxu0
  %v6590 = vadd.f32 %v6196, %v6589
  %v6591 = vpop.f32.mrb[0].mxu0
  %v6592 = vadd.f32 %v6196, %v6591
  %6593 = vdwg.mxu0
  %6594 = vmatprep.subr.bf16.mxu0 %v6029
  %6595 = vmatpush1.bf16.msra.mxu0 %v6028
  %6596 = vmatprep.subr.bf16.mxu0 %v6045
  %6597 = vmatpush1.bf16.msra.mxu0 %v6044
  %6598 = vmatprep.subr.bf16.mxu0 %v6061
  %6599 = vmatpush1.bf16.msra.mxu0 %v6060
  %6600 = vmatprep.subr.bf16.mxu0 %v6077
  %6601 = vmatpush1.bf16.msra.mxu0 %v6076
  %6602 = vmatprep.subr.bf16.mxu0 %v6093
  %6603 = vmatpush1.bf16.msra.mxu0 %v6092
  %6604 = vmatprep.subr.bf16.mxu0 %v6109
  %6605 = vmatpush1.bf16.msra.mxu0 %v6108
  %6606 = vmatprep.subr.bf16.mxu0 %v6125
  %6607 = vmatpush1.bf16.msra.mxu0 %v6124
  %6608 = vmatprep.subr.bf16.mxu0 %v6141
  %6609 = vmatpush1.bf16.msra.mxu0 %v6140
  %6610 = vmatprep.subr.bf16.mxu0 %v6157
  %6611 = vmatpush1.bf16.msra.mxu0 %v6156
  %6612 = vmatprep.subr.bf16.mxu0 %v6173
  %6613 = vmatpush1.bf16.msra.mxu0 %v6172
  %6614 = vmatprep.subr.bf16.mxu0 0
  %6615 = vmatpush1.bf16.msra.mxu0 0
  %6616 = vmatprep.subr.bf16.mxu0 0
  %6617 = vmatpush1.bf16.msra.mxu0 0
  %6618 = vmatprep.subr.bf16.mxu0 0
  %6619 = vmatpush1.bf16.msra.mxu0 0
  %6620 = vmatprep.subr.bf16.mxu0 0
  %6621 = vmatpush1.bf16.msra.mxu0 0
  %6622 = vmatprep.subr.bf16.mxu0 0
  %6623 = vmatpush1.bf16.msra.mxu0 0
  %6624 = vmatprep.subr.bf16.mxu0 0
  %6625 = vmatpush1.bf16.msra.mxu0 0
  %6626 = vmatprep.mubr.bf16.mxu0 %v6218
  %6627 = vmatmul.mubr.bf16.gmra.mrb[0].mxu0 %v6210
  %v6628 = vpop.f32.mrb[0].mxu0
  %v6629 = vadd.f32 %v6181, %v6628
  %v6630 = vpop.f32.mrb[0].mxu0
  %v6631 = vadd.f32 %v6181, %v6630
  %v6632 = vpop.f32.mrb[0].mxu0
  %v6633 = vadd.f32 %v6186, %v6632
  %v6634 = vpop.f32.mrb[0].mxu0
  %v6635 = vadd.f32 %v6186, %v6634
  %6636 = vmatprep.mubr.bf16.mxu0 %v6221
  %6637 = vmatmul.mubr.bf16.gmra.mrb[0].mxu0 %v6212
  %v6638 = vpop.f32.mrb[0].mxu0
  %v6639 = vadd.f32 %v6191, %v6638
  %v6640 = vpop.f32.mrb[0].mxu0
  %v6641 = vadd.f32 %v6191, %v6640
  %v6642 = vpop.f32.mrb[0].mxu0
  %v6643 = vadd.f32 %v6196, %v6642
  %v6644 = vpop.f32.mrb[0].mxu0
  %v6645 = vadd.f32 %v6196, %v6644
  %6646 = vdwg.mxu0
  %6647 = vst [vmem:[%s11] sm:$0xff] %v6258
  %6648 = vst [vmem:[%s11 + $0x8] sm:$0xff] %v6260
  %6649 = vst [vmem:[%s11 + $0x10] sm:$0xff] %v6311
  %6650 = vst [vmem:[%s11 + $0x18] sm:$0xff] %v6313
  %6651 = vst [vmem:[%s11 + $0x20] sm:$0xff] %v6364
  %6652 = vst [vmem:[%s11 + $0x28] sm:$0xff] %v6366
  %6653 = vst [vmem:[%s11 + $0x30] sm:$0xff] %v6417
  %6654 = vst [vmem:[%s11 + $0x38] sm:$0xff] %v6419
  %6655 = vst [vmem:[%s11 + $0x40] sm:$0xff] %v6470
  %6656 = vst [vmem:[%s11 + $0x48] sm:$0xff] %v6472
  %6657 = vst [vmem:[%s11 + $0x50] sm:$0xff] %v6523
  %6658 = vst [vmem:[%s11 + $0x58] sm:$0xff] %v6525
  %6659 = vst [vmem:[%s11 + $0x60] sm:$0xff] %v6576
  %6660 = vst [vmem:[%s11 + $0x68] sm:$0xff] %v6578
  %6661 = vst [vmem:[%s11 + $0x70] sm:$0xff] %v6629
  %6662 = vst [vmem:[%s11 + $0x78] sm:$0xff] %v6631
  %6663 = vst [vmem:[%s11 + $0x80] sm:$0xff] %v6262
  %6664 = vst [vmem:[%s11 + $0x88] sm:$0xff] %v6264
  %6665 = vst [vmem:[%s11 + $0x90] sm:$0xff] %v6315
  %6666 = vst [vmem:[%s11 + $0x98] sm:$0xff] %v6317
  %6667 = vst [vmem:[%s11 + $0xa0] sm:$0xff] %v6368
  %6668 = vst [vmem:[%s11 + $0xa8] sm:$0xff] %v6370
  %6669 = vst [vmem:[%s11 + $0xb0] sm:$0xff] %v6421
  %6670 = vst [vmem:[%s11 + $0xb8] sm:$0xff] %v6423
  %6671 = vst [vmem:[%s11 + $0xc0] sm:$0xff] %v6474
  %6672 = vst [vmem:[%s11 + $0xc8] sm:$0xff] %v6476
  %6673 = vst [vmem:[%s11 + $0xd0] sm:$0xff] %v6527
  %6674 = vst [vmem:[%s11 + $0xd8] sm:$0xff] %v6529
  %6675 = vst [vmem:[%s11 + $0xe0] sm:$0xff] %v6580
  %6676 = vst [vmem:[%s11 + $0xe8] sm:$0xff] %v6582
  %6677 = vst [vmem:[%s11 + $0xf0] sm:$0xff] %v6633
  %6678 = vst [vmem:[%s11 + $0xf8] sm:$0xff] %v6635
  %6679 = vst [vmem:[%s11 + $0x100] sm:$0xff] %v6268
  %6680 = vst [vmem:[%s11 + $0x108] sm:$0xff] %v6270
  %6681 = vst [vmem:[%s11 + $0x110] sm:$0xff] %v6321
  %6682 = vst [vmem:[%s11 + $0x118] sm:$0xff] %v6323
  %6683 = vst [vmem:[%s11 + $0x120] sm:$0xff] %v6374
  %6684 = vst [vmem:[%s11 + $0x128] sm:$0xff] %v6376
  %6685 = vst [vmem:[%s11 + $0x130] sm:$0xff] %v6427
  %6686 = vst [vmem:[%s11 + $0x138] sm:$0xff] %v6429
  %6687 = vst [vmem:[%s11 + $0x140] sm:$0xff] %v6480
  %6688 = vst [vmem:[%s11 + $0x148] sm:$0xff] %v6482
  %6689 = vst [vmem:[%s11 + $0x150] sm:$0xff] %v6533
  %6690 = vst [vmem:[%s11 + $0x158] sm:$0xff] %v6535
  %6691 = vst [vmem:[%s11 + $0x160] sm:$0xff] %v6586
  %6692 = vst [vmem:[%s11 + $0x168] sm:$0xff] %v6588
  %6693 = vst [vmem:[%s11 + $0x170] sm:$0xff] %v6639
  %6694 = vst [vmem:[%s11 + $0x178] sm:$0xff] %v6641
  %6695 = vst [vmem:[%s11 + $0x180] sm:$0xff] %v6272
  %6696 = vst [vmem:[%s11 + $0x188] sm:$0xff] %v6274
  %6697 = vst [vmem:[%s11 + $0x190] sm:$0xff] %v6325
  %6698 = vst [vmem:[%s11 + $0x198] sm:$0xff] %v6327
  %6699 = vst [vmem:[%s11 + $0x1a0] sm:$0xff] %v6378
  %6700 = vst [vmem:[%s11 + $0x1a8] sm:$0xff] %v6380
  %6701 = vst [vmem:[%s11 + $0x1b0] sm:$0xff] %v6431
  %6702 = vst [vmem:[%s11 + $0x1b8] sm:$0xff] %v6433
  %6703 = vst [vmem:[%s11 + $0x1c0] sm:$0xff] %v6484
  %6704 = vst [vmem:[%s11 + $0x1c8] sm:$0xff] %v6486
  %6705 = vst [vmem:[%s11 + $0x1d0] sm:$0xff] %v6537
  %6706 = vst [vmem:[%s11 + $0x1d8] sm:$0xff] %v6539
  %6707 = vst [vmem:[%s11 + $0x1e0] sm:$0xff] %v6590
  %6708 = vst [vmem:[%s11 + $0x1e8] sm:$0xff] %v6592
  %6709 = vst [vmem:[%s11 + $0x1f0] sm:$0xff] %v6643
  %6710 = vst [vmem:[%s11 + $0x1f8] sm:$0xff] %v6645
  // Predicated region
  $region46: #{model_forward.2} parent=0 // pred_check
    _
  $region47: #{model_forward.2} parent=0 // pred_check_branch
    %6712 = sbr.rel (0) target = $region49
  $region48: #{model_forward.2} parent=0 // pred_region
    _
  $region49: #{model_forward.2} parent=0 // pred_fallthru
    _
  // Predicated region
  $region50: #{model_forward.2} parent=0 // pred_check
    _
  $region51: #{model_forward.2} parent=0 // pred_check_branch
    %6714 = sbr.rel (0) target = $region53
  $region52: #{model_forward.2} parent=0 // pred_region
    _
  $region53: #{model_forward.2} parent=0 // pred_fallthru
    _

</llo_original>
